<compile_context>
chip_gen: v5e
topology: v5e:2x2
jax: 0.10.0
libtpu: 0.0.40
codegen_flags: <defaults>
</compile_context>

<pallas_src>
import jax
import jax.numpy as jnp
from jax.experimental import pallas as pl
from jax.experimental.pallas import tpu as pltpu

# ----- hyper-parameters (stand-ins for `opt`, consistent with the module) ---
N_CLASSES = 10
LATENT_DIM = 32
CHANNELS = 4                       # opt.channels
IMG_SIZE = 16                      # opt.img_size
INIT_SIZE = 2
IMG_SHAPE = (1, CHANNELS, IMG_SIZE, IMG_SIZE)
# Original code hardcodes Linear(13056, ...); we keep the self-consistent
# value for these opt stand-ins: flatten of (CHANNELS, 8, 8).
FLAT_DIM = CHANNELS * 8 * 8
OUT_DIM = int(1 * CHANNELS * IMG_SIZE * IMG_SIZE)
HIDDEN = 128 * INIT_SIZE ** 2      # 512

# conv-pipeline geometry (static)
H1 = W1 = 2 * INIT_SIZE            # 4 : spatial size seen by conv1
H2 = W2 = 4 * INIT_SIZE            # 8 : spatial size seen by conv2 / conv3
HP1, WP1 = H1 + 2, W1 + 2          # zero-padded grids
HP2, WP2 = H2 + 2, W2 + 2
G1 = WP1 + 1                       # guard rows: every 3x3 tap is one contiguous slice
G2 = WP2 + 1


def _vmem_specs(n):
    return [pl.BlockSpec(memory_space=pltpu.MemorySpace.VMEM) for _ in range(n)]


# --------------------------- fused generator kernel ---------------------------

def _generator_kernel(emb_ref, noise_ref,
                      l1_w_ref, l1_b_ref, bn1_g_ref, bn1_b_ref,
                      c1_w_ref, c1_b_ref, bn2_g_ref, bn2_b_ref,
                      c2_w_ref, c2_b_ref, bn3_g_ref, bn3_b_ref,
                      c3_w_ref, c3_b_ref,
                      mask1_ref, mask2_ref,
                      out_ref,
                      slab1, slab2, slab3):
    f32, bf16 = jnp.float32, jnp.bfloat16
    B = emb_ref.shape[0]
    N1 = B * HP1 * WP1
    N2 = B * HP2 * WP2

    # ---- l1: (label_emb * noise) @ W + b  (columns pre-permuted to NHWC) ----
    gi = (emb_ref[...] * noise_ref[...]).astype(bf16)
    h1 = jnp.dot(gi, l1_w_ref[...], preferred_element_type=f32) + l1_b_ref[...]

    # ---- BatchNorm2d(128) on the (B,128,2,2) view (train-mode batch stats) ----
    chunks = [h1[:, k * 128:(k + 1) * 128] for k in range(INIT_SIZE * INIT_SIZE)]
    n1 = float(B * INIT_SIZE * INIT_SIZE)
    mean1 = sum(jnp.sum(c, axis=0, keepdims=True) for c in chunks) / n1
    var1 = sum(jnp.sum(jnp.square(c - mean1), axis=0, keepdims=True)
               for c in chunks) / n1
    scale1 = jax.lax.rsqrt(var1 + 1e-5) * bn1_g_ref[...]
    shift1 = bn1_b_ref[...] - mean1 * scale1
    bn1 = [c * scale1 + shift1 for c in chunks]

    z2 = jnp.zeros((2, 128), f32)

    # ---- Upsample x2 (2x2 -> 4x4) into the zero-padded conv1 slab ----
    # One wide store per (batch, source row): covers both duplicated padded
    # rows plus the zero gap between them.
    slab1[...] = jnp.zeros(slab1.shape, f32)
    for b in range(B):
        for h in range(INIT_SIZE):
            v0 = jnp.broadcast_to(bn1[h * 2 + 0][b:b + 1, :], (2, 128))
            v1 = jnp.broadcast_to(bn1[h * 2 + 1][b:b + 1, :], (2, 128))
            dup = jnp.concatenate([v0, v1], axis=0)           # one upsampled row
            blk = jnp.concatenate([dup, z2, dup], axis=0)     # (2*WP1-2, 128)
            r0 = G1 + b * HP1 * WP1 + (2 * h + 1) * WP1 + 1
            slab1[r0:r0 + 2 * WP1 - 2, :] = blk

    # ---- Conv2d(128,128,3,p=1): 9 shifted matmuls over the guarded slab ----
    acc1 = None
    for t in range(9):
        di, dj = divmod(t, 3)
        off = G1 + (di - 1) * WP1 + (dj - 1)
        x = slab1[off:off + N1, :].astype(bf16)
        y = jnp.dot(x, c1_w_ref[t], preferred_element_type=f32)
        acc1 = y if acc1 is None else acc1 + y
    acc1 = acc1 + c1_b_ref[...]

    # ---- BatchNorm2d(128, eps=0.8) + LeakyReLU(0.2)  (masked stats) ----
    m1 = mask1_ref[...]
    cnt1 = float(B * H1 * W1)
    mu = jnp.sum(acc1 * m1, axis=0, keepdims=True) / cnt1
    var = jnp.sum(jnp.square(acc1 - mu) * m1, axis=0, keepdims=True) / cnt1
    y1 = (acc1 - mu) * jax.lax.rsqrt(var + 0.8) * bn2_g_ref[...] + bn2_b_ref[...]
    y1 = jnp.where(y1 > 0, y1, 0.2 * y1)

    # ---- Upsample x2 (4x4 -> 8x8) into the zero-padded conv2 slab ----
    slab2[...] = jnp.zeros(slab2.shape, f32)
    for b in range(B):
        for h in range(H1):
            src0 = b * HP1 * WP1 + (h + 1) * WP1 + 1
            dup = jnp.concatenate(
                [jnp.broadcast_to(y1[src0 + w:src0 + w + 1, :], (2, 128))
                 for w in range(W1)], axis=0)                 # (2*W1, 128)
            blk = jnp.concatenate([dup, z2, dup], axis=0)     # (2*WP2-2, 128)
            r0 = G2 + b * HP2 * WP2 + (2 * h + 1) * WP2 + 1
            slab2[r0:r0 + 2 * WP2 - 2, :] = blk

    # ---- Conv2d(128,64,3,p=1) ----
    acc2 = None
    for t in range(9):
        di, dj = divmod(t, 3)
        off = G2 + (di - 1) * WP2 + (dj - 1)
        x = slab2[off:off + N2, :].astype(bf16)
        y = jnp.dot(x, c2_w_ref[t], preferred_element_type=f32)
        acc2 = y if acc2 is None else acc2 + y
    acc2 = acc2 + c2_b_ref[...]

    # ---- BatchNorm2d(64, eps=0.8) + LeakyReLU(0.2) ----
    m2 = mask2_ref[...]
    cnt2 = float(B * H2 * W2)
    mu = jnp.sum(acc2 * m2, axis=0, keepdims=True) / cnt2
    var = jnp.sum(jnp.square(acc2 - mu) * m2, axis=0, keepdims=True) / cnt2
    y2 = (acc2 - mu) * jax.lax.rsqrt(var + 0.8) * bn3_g_ref[...] + bn3_b_ref[...]
    y2 = jnp.where(y2 > 0, y2, 0.2 * y2)

    # masked activations ARE the correctly zero-padded input of conv3
    slab3[...] = jnp.zeros(slab3.shape, f32)
    slab3[G2:G2 + N2, :] = y2 * m2

    # ---- Conv2d(64, channels, 3, p=1) ----
    acc3 = None
    for t in range(9):
        di, dj = divmod(t, 3)
        off = G2 + (di - 1) * WP2 + (dj - 1)
        x = slab3[off:off + N2, :].astype(bf16)
        y = jnp.dot(x, c3_w_ref[t], preferred_element_type=f32)
        acc3 = y if acc3 is None else acc3 + y
    acc3 = acc3 + c3_b_ref[...]

    # ---- emit valid rows in (b, h, w) order, channels minor (NHWC flatten) ----
    for b in range(B):
        for h in range(H2):
            src = b * HP2 * WP2 + (h + 1) * WP2 + 1
            dst = (b * H2 + h) * W2
            out_ref[dst:dst + W2, :] = acc3[src:src + W2, :]


def _fc_tanh_kernel(x_ref, w_ref, b_ref, o_ref):
    y = jnp.dot(x_ref[...].astype(jnp.bfloat16), w_ref[...],
                preferred_element_type=jnp.float32) + b_ref[...]
    o_ref[...] = jnp.tanh(y)


# --------------------------- wrappers ---------------------------

def _valid_mask(B, H, W):
    vals = []
    for _ in range(B):
        for ph in range(H + 2):
            for pw in range(W + 2):
                vals.append(1.0 if (1 <= ph <= H and 1 <= pw <= W) else 0.0)
    return jnp.asarray(vals, jnp.float32).reshape(B * (H + 2) * (W + 2), 1)


def generator_forward(kp, noise, labels):
    B = noise.shape[0]
    # TODO(synk): embedding gather (nn.Embedding) stays in XLA glue.
    emb = jnp.take(kp["emb"], labels, axis=0)

    N1, N2 = B * HP1 * WP1, B * HP2 * WP2
    R1, R2 = N1 + 2 * G1, N2 + 2 * G2
    mask1 = _valid_mask(B, H1, W1)
    mask2 = _valid_mask(B, H2, W2)

    feat = pl.pallas_call(
        _generator_kernel,
        out_shape=jax.ShapeDtypeStruct((B * H2 * W2, CHANNELS), jnp.float32),
        in_specs=_vmem_specs(18),
        out_specs=pl.BlockSpec(memory_space=pltpu.MemorySpace.VMEM),
        scratch_shapes=[
            pltpu.VMEM((R1, 128), jnp.float32),   # padded conv1 input slab
            pltpu.VMEM((R2, 128), jnp.float32),   # padded conv2 input slab
            pltpu.VMEM((R2, 64), jnp.float32),    # padded conv3 input slab
        ],
    )(emb, noise,
      kp["l1_w"], kp["l1_b"], kp["bn1_g"], kp["bn1_b"],
      kp["c1_w"], kp["c1_b"], kp["bn2_g"], kp["bn2_b"],
      kp["c2_w"], kp["c2_b"], kp["bn3_g"], kp["bn3_b"],
      kp["c3_w"], kp["c3_b"],
      mask1, mask2)

    # (B*H*W, C) -> (B, H*W*C) is a free row-major reshape (no transpose):
    # the fc weight rows were pre-permuted to this NHWC flatten order.
    flat = feat.reshape(B, FLAT_DIM)

    img = pl.pallas_call(
        _fc_tanh_kernel,
        out_shape=jax.ShapeDtypeStruct((B, OUT_DIM), jnp.float32),
        in_specs=_vmem_specs(3),
        out_specs=pl.BlockSpec(memory_space=pltpu.MemorySpace.VMEM),
    )(flat, kp["fc_w"], kp["fc_b"])

    return img.reshape(B, *IMG_SHAPE)


# --------------------------- parameters ---------------------------

def init_params():
    """Deterministic params in PyTorch layouts (nn.Linear (out,in), OIHW)."""
    key = jax.random.PRNGKey(0)
    ks = jax.random.split(key, 12)

    def rnd(k, shape, scale=0.05):
        return (jax.random.normal(k, shape, jnp.float32) * scale).astype(jnp.float32)

    return {
        "emb":   rnd(ks[0], (N_CLASSES, LATENT_DIM), 1.0),
        "l1_w":  rnd(ks[1], (HIDDEN, LATENT_DIM)),
        "l1_b":  rnd(ks[2], (HIDDEN,)),
        "bn1_g": jnp.ones((128,), jnp.float32),
        "bn1_b": jnp.zeros((128,), jnp.float32),
        "c1_w":  rnd(ks[3], (128, 128, 3, 3)),
        "c1_b":  rnd(ks[4], (128,)),
        "bn2_g": jnp.ones((128,), jnp.float32),
        "bn2_b": jnp.zeros((128,), jnp.float32),
        "c2_w":  rnd(ks[5], (64, 128, 3, 3)),
        "c2_b":  rnd(ks[6], (64,)),
        "bn3_g": jnp.ones((64,), jnp.float32),
        "bn3_b": jnp.zeros((64,), jnp.float32),
        "c3_w":  rnd(ks[7], (CHANNELS, 64, 3, 3)),
        "c3_b":  rnd(ks[8], (CHANNELS,)),
        "fc_w":  rnd(ks[9], (OUT_DIM, FLAT_DIM)),
        "fc_b":  rnd(ks[10], (OUT_DIM,)),
    }


def prepare_params(p):
    """One-time layout / dtype prep (no per-forward transposes)."""
    bf16 = jnp.bfloat16

    # l1: (out,in) -> (in,out), output columns permuted so that
    # h1[:, (h*2+w)*128 + c] == out.view(B,128,2,2)[:, c, h, w]
    l1_w = (p["l1_w"].reshape(128, INIT_SIZE, INIT_SIZE, LATENT_DIM)
            .transpose(1, 2, 0, 3).reshape(HIDDEN, LATENT_DIM).T)
    l1_b = (p["l1_b"].reshape(128, INIT_SIZE, INIT_SIZE)
            .transpose(1, 2, 0).reshape(1, HIDDEN))

    def conv_w(w):  # (Cout, Cin, 3, 3) -> (tap, Cin, Cout)
        return jnp.transpose(w, (2, 3, 1, 0)).reshape(9, w.shape[1], w.shape[0])

    # fc: input index (c*64 + h*8 + w) -> rows in NHWC flatten order (h*32+w*4+c)
    fc_w = (p["fc_w"].reshape(OUT_DIM, CHANNELS, H2, W2)
            .transpose(2, 3, 1, 0).reshape(FLAT_DIM, OUT_DIM))

    return {
        "emb":   p["emb"],
        "l1_w":  l1_w.astype(bf16),
        "l1_b":  l1_b,
        "bn1_g": p["bn1_g"].reshape(1, 128),
        "bn1_b": p["bn1_b"].reshape(1, 128),
        "c1_w":  conv_w(p["c1_w"]).astype(bf16),
        "c1_b":  p["c1_b"].reshape(1, 128),
        "bn2_g": p["bn2_g"].reshape(1, 128),
        "bn2_b": p["bn2_b"].reshape(1, 128),
        "c2_w":  conv_w(p["c2_w"]).astype(bf16),
        "c2_b":  p["c2_b"].reshape(1, 64),
        "bn3_g": p["bn3_g"].reshape(1, 64),
        "bn3_b": p["bn3_b"].reshape(1, 64),
        "c3_w":  conv_w(p["c3_w"]).astype(bf16),
        "c3_b":  p["c3_b"].reshape(1, CHANNELS),
        "fc_w":  fc_w.astype(bf16),
        "fc_b":  p["fc_b"].reshape(1, OUT_DIM),
    }


# --------------------------- pure-XLA f32 reference ---------------------------

def reference_forward(p, noise, labels):
    B = noise.shape[0]
    gi = jnp.take(p["emb"], labels, axis=0) * noise
    out = gi @ p["l1_w"].T + p["l1_b"]
    x = out.reshape(B, 128, INIT_SIZE, INIT_SIZE)

    def bn(x, g, b, eps):
        mean = jnp.mean(x, axis=(0, 2, 3), keepdims=True)
        var = jnp.mean(jnp.square(x - mean), axis=(0, 2, 3), keepdims=True)
        return ((x - mean) * jax.lax.rsqrt(var + eps)
                * g.reshape(1, -1, 1, 1) + b.reshape(1, -1, 1, 1))

    def up(x):
        return jnp.repeat(jnp.repeat(x, 2, axis=2), 2, axis=3)

    def conv(x, w, b):
        y = jax.lax.conv_general_dilated(
            x, w, (1, 1), ((1, 1), (1, 1)),
            dimension_numbers=("NCHW", "OIHW", "NCHW"))
        return y + b.reshape(1, -1, 1, 1)

    def lrelu(x):
        return jnp.where(x > 0, x, 0.2 * x)

    x = up(bn(x, p["bn1_g"], p["bn1_b"], 1e-5))
    x = lrelu(bn(conv(x, p["c1_w"], p["c1_b"]), p["bn2_g"], p["bn2_b"], 0.8))
    x = up(x)
    x = lrelu(bn(conv(x, p["c2_w"], p["c2_b"]), p["bn3_g"], p["bn3_b"], 0.8))
    x = conv(x, p["c3_w"], p["c3_b"])
    flat = x.reshape(B, -1)
    img = jnp.tanh(flat @ p["fc_w"].T + p["fc_b"])
    return img.reshape(B, *IMG_SHAPE)


if __name__ == "__main__":
    B = 2
    key = jax.random.PRNGKey(0)
    k_noise, k_lab = jax.random.split(key)
    noise = jax.random.normal(k_noise, (B, LATENT_DIM), jnp.float32)
    labels = jax.random.randint(k_lab, (B,), 0, N_CLASSES, jnp.int32)

    raw = init_params()
    params = prepare_params(raw)

    fwd = jax.jit(generator_forward)
    img = fwd(params, noise, labels)
    jax.block_until_ready(img)

    assert img.shape == (B, *IMG_SHAPE), img.shape
    assert img.dtype == jnp.float32
    assert bool(jnp.all(jnp.isfinite(img)))

    # numerics check against a pure-XLA f32 reference (bf16 MXU noise allowed)
    ref = jax.jit(reference_forward)(raw, noise, labels)
    err = float(jnp.max(jnp.abs(img - ref)))
    assert err < 1e-1, f"max |err| vs reference = {err}"

    print("KERNEL_OK")
</pallas_src>

<mosaic_0001>
module attributes {stable_mosaic.version = 11 : i64} {
  func.func @_generator_kernel(%arg0: memref<2x32xf32, #tpu.memory_space<vmem>>, %arg1: memref<2x32xf32, #tpu.memory_space<vmem>>, %arg2: memref<32x512xbf16, #tpu.memory_space<vmem>>, %arg3: memref<1x512xf32, #tpu.memory_space<vmem>>, %arg4: memref<1x128xf32, #tpu.memory_space<vmem>>, %arg5: memref<1x128xf32, #tpu.memory_space<vmem>>, %arg6: memref<9x128x128xbf16, #tpu.memory_space<vmem>>, %arg7: memref<1x128xf32, #tpu.memory_space<vmem>>, %arg8: memref<1x128xf32, #tpu.memory_space<vmem>>, %arg9: memref<1x128xf32, #tpu.memory_space<vmem>>, %arg10: memref<9x128x64xbf16, #tpu.memory_space<vmem>>, %arg11: memref<1x64xf32, #tpu.memory_space<vmem>>, %arg12: memref<1x64xf32, #tpu.memory_space<vmem>>, %arg13: memref<1x64xf32, #tpu.memory_space<vmem>>, %arg14: memref<9x64x4xbf16, #tpu.memory_space<vmem>>, %arg15: memref<1x4xf32, #tpu.memory_space<vmem>>, %arg16: memref<72x1xf32, #tpu.memory_space<vmem>>, %arg17: memref<200x1xf32, #tpu.memory_space<vmem>>, %arg18: memref<128x4xf32, #tpu.memory_space<vmem>>, %arg19: memref<86x128xf32, #tpu.memory_space<vmem>>, %arg20: memref<222x128xf32, #tpu.memory_space<vmem>>, %arg21: memref<222x64xf32, #tpu.memory_space<vmem>>) attributes {dimension_semantics = [], scalar_prefetch = 0 : i64, scratch_operands = 3 : i64, tpu.core_type = #tpu.core_type<tc>} {
    %c0 = arith.constant 0 : index
    %c0_0 = arith.constant 0 : index
    %0 = vector.load %arg0[%c0, %c0_0] : memref<2x32xf32, #tpu.memory_space<vmem>>, vector<2x32xf32>
    %c0_1 = arith.constant 0 : index
    %c0_2 = arith.constant 0 : index
    %1 = vector.load %arg1[%c0_1, %c0_2] : memref<2x32xf32, #tpu.memory_space<vmem>>, vector<2x32xf32>
    %2 = arith.mulf %0, %1 : vector<2x32xf32>
    %3 = arith.truncf %2 : vector<2x32xf32> to vector<2x32xbf16>
    %c0_3 = arith.constant 0 : index
    %c0_4 = arith.constant 0 : index
    %4 = vector.load %arg2[%c0_3, %c0_4] : memref<32x512xbf16, #tpu.memory_space<vmem>>, vector<32x512xbf16>
    %cst = arith.constant dense<0.000000e+00> : vector<2x512xf32>
    %5 = tpu.matmul %3, %4, %cst {dimension_numbers = #tpu.dot_dimension_numbers<[1], [0], [0], [1], [0, 0, 1, 1], [], []>} : vector<2x32xbf16>, vector<32x512xbf16>, vector<2x512xf32> -> vector<2x512xf32>
    %c0_5 = arith.constant 0 : index
    %c0_6 = arith.constant 0 : index
    %6 = vector.load %arg3[%c0_5, %c0_6] : memref<1x512xf32, #tpu.memory_space<vmem>>, vector<1x512xf32>
    %7 = vector.broadcast %6 : vector<1x512xf32> to vector<2x512xf32>
    %8 = arith.addf %5, %7 : vector<2x512xf32>
    %9 = vector.extract_strided_slice %8 {offsets = [0, 0], sizes = [2, 128], strides = [1, 1]} : vector<2x512xf32> to vector<2x128xf32>
    %10 = vector.extract_strided_slice %8 {offsets = [0, 128], sizes = [2, 128], strides = [1, 1]} : vector<2x512xf32> to vector<2x128xf32>
    %11 = vector.extract_strided_slice %8 {offsets = [0, 256], sizes = [2, 128], strides = [1, 1]} : vector<2x512xf32> to vector<2x128xf32>
    %12 = vector.extract_strided_slice %8 {offsets = [0, 384], sizes = [2, 128], strides = [1, 1]} : vector<2x512xf32> to vector<2x128xf32>
    %cst_7 = arith.constant dense<0.000000e+00> : vector<128xf32>
    %13 = vector.multi_reduction <add>, %9, %cst_7 [0] : vector<2x128xf32> to vector<128xf32>
    %14 = vector.shape_cast %13 : vector<128xf32> to vector<1x128xf32>
    %cst_8 = arith.constant 0.000000e+00 : f32
    %15 = vector.broadcast %cst_8 : f32 to vector<1x128xf32>
    %16 = arith.addf %15, %14 : vector<1x128xf32>
    %cst_9 = arith.constant dense<0.000000e+00> : vector<128xf32>
    %17 = vector.multi_reduction <add>, %10, %cst_9 [0] : vector<2x128xf32> to vector<128xf32>
    %18 = vector.shape_cast %17 : vector<128xf32> to vector<1x128xf32>
    %19 = arith.addf %16, %18 : vector<1x128xf32>
    %cst_10 = arith.constant dense<0.000000e+00> : vector<128xf32>
    %20 = vector.multi_reduction <add>, %11, %cst_10 [0] : vector<2x128xf32> to vector<128xf32>
    %21 = vector.shape_cast %20 : vector<128xf32> to vector<1x128xf32>
    %22 = arith.addf %19, %21 : vector<1x128xf32>
    %cst_11 = arith.constant dense<0.000000e+00> : vector<128xf32>
    %23 = vector.multi_reduction <add>, %12, %cst_11 [0] : vector<2x128xf32> to vector<128xf32>
    %24 = vector.shape_cast %23 : vector<128xf32> to vector<1x128xf32>
    %25 = arith.addf %22, %24 : vector<1x128xf32>
    %cst_12 = arith.constant 8.000000e+00 : f32
    %26 = vector.broadcast %cst_12 : f32 to vector<1x128xf32>
    %27 = arith.divf %25, %26 : vector<1x128xf32>
    %28 = vector.broadcast %27 : vector<1x128xf32> to vector<2x128xf32>
    %29 = arith.subf %9, %28 : vector<2x128xf32>
    %30 = arith.mulf %29, %29 : vector<2x128xf32>
    %cst_13 = arith.constant dense<0.000000e+00> : vector<128xf32>
    %31 = vector.multi_reduction <add>, %30, %cst_13 [0] : vector<2x128xf32> to vector<128xf32>
    %32 = vector.shape_cast %31 : vector<128xf32> to vector<1x128xf32>
    %cst_14 = arith.constant 0.000000e+00 : f32
    %33 = vector.broadcast %cst_14 : f32 to vector<1x128xf32>
    %34 = arith.addf %33, %32 : vector<1x128xf32>
    %35 = vector.broadcast %27 : vector<1x128xf32> to vector<2x128xf32>
    %36 = arith.subf %10, %35 : vector<2x128xf32>
    %37 = arith.mulf %36, %36 : vector<2x128xf32>
    %cst_15 = arith.constant dense<0.000000e+00> : vector<128xf32>
    %38 = vector.multi_reduction <add>, %37, %cst_15 [0] : vector<2x128xf32> to vector<128xf32>
    %39 = vector.shape_cast %38 : vector<128xf32> to vector<1x128xf32>
    %40 = arith.addf %34, %39 : vector<1x128xf32>
    %41 = vector.broadcast %27 : vector<1x128xf32> to vector<2x128xf32>
    %42 = arith.subf %11, %41 : vector<2x128xf32>
    %43 = arith.mulf %42, %42 : vector<2x128xf32>
    %cst_16 = arith.constant dense<0.000000e+00> : vector<128xf32>
    %44 = vector.multi_reduction <add>, %43, %cst_16 [0] : vector<2x128xf32> to vector<128xf32>
    %45 = vector.shape_cast %44 : vector<128xf32> to vector<1x128xf32>
    %46 = arith.addf %40, %45 : vector<1x128xf32>
    %47 = vector.broadcast %27 : vector<1x128xf32> to vector<2x128xf32>
    %48 = arith.subf %12, %47 : vector<2x128xf32>
    %49 = arith.mulf %48, %48 : vector<2x128xf32>
    %cst_17 = arith.constant dense<0.000000e+00> : vector<128xf32>
    %50 = vector.multi_reduction <add>, %49, %cst_17 [0] : vector<2x128xf32> to vector<128xf32>
    %51 = vector.shape_cast %50 : vector<128xf32> to vector<1x128xf32>
    %52 = arith.addf %46, %51 : vector<1x128xf32>
    %cst_18 = arith.constant 8.000000e+00 : f32
    %53 = vector.broadcast %cst_18 : f32 to vector<1x128xf32>
    %54 = arith.divf %52, %53 : vector<1x128xf32>
    %cst_19 = arith.constant 9.99999974E-6 : f32
    %55 = vector.broadcast %cst_19 : f32 to vector<1x128xf32>
    %56 = arith.addf %54, %55 : vector<1x128xf32>
    %57 = math.rsqrt %56 : vector<1x128xf32>
    %c0_20 = arith.constant 0 : index
    %c0_21 = arith.constant 0 : index
    %58 = vector.load %arg4[%c0_20, %c0_21] : memref<1x128xf32, #tpu.memory_space<vmem>>, vector<1x128xf32>
    %59 = arith.mulf %57, %58 : vector<1x128xf32>
    %c0_22 = arith.constant 0 : index
    %c0_23 = arith.constant 0 : index
    %60 = vector.load %arg5[%c0_22, %c0_23] : memref<1x128xf32, #tpu.memory_space<vmem>>, vector<1x128xf32>
    %61 = arith.mulf %27, %59 : vector<1x128xf32>
    %62 = arith.subf %60, %61 : vector<1x128xf32>
    %63 = vector.broadcast %59 : vector<1x128xf32> to vector<2x128xf32>
    %64 = arith.mulf %9, %63 : vector<2x128xf32>
    %65 = vector.broadcast %62 : vector<1x128xf32> to vector<2x128xf32>
    %66 = arith.addf %64, %65 : vector<2x128xf32>
    %67 = vector.broadcast %59 : vector<1x128xf32> to vector<2x128xf32>
    %68 = arith.mulf %10, %67 : vector<2x128xf32>
    %69 = vector.broadcast %62 : vector<1x128xf32> to vector<2x128xf32>
    %70 = arith.addf %68, %69 : vector<2x128xf32>
    %71 = vector.broadcast %59 : vector<1x128xf32> to vector<2x128xf32>
    %72 = arith.mulf %11, %71 : vector<2x128xf32>
    %73 = vector.broadcast %62 : vector<1x128xf32> to vector<2x128xf32>
    %74 = arith.addf %72, %73 : vector<2x128xf32>
    %75 = vector.broadcast %59 : vector<1x128xf32> to vector<2x128xf32>
    %76 = arith.mulf %12, %75 : vector<2x128xf32>
    %77 = vector.broadcast %62 : vector<1x128xf32> to vector<2x128xf32>
    %78 = arith.addf %76, %77 : vector<2x128xf32>
    %cst_24 = arith.constant 0.000000e+00 : f32
    %79 = vector.broadcast %cst_24 : f32 to vector<2x128xf32>
    %cst_25 = arith.constant 0.000000e+00 : f32
    %80 = vector.broadcast %cst_25 : f32 to vector<86x128xf32>
    %c0_26 = arith.constant 0 : index
    %c0_27 = arith.constant 0 : index
    %81 = vector.load %arg19[%c0_26, %c0_27] : memref<86x128xf32, #tpu.memory_space<vmem>>, vector<86x128xf32>
    tpu.vector_store %arg19[%c0_26, %c0_27], %80 {strides = array<i32>} : memref<86x128xf32, #tpu.memory_space<vmem>>, vector<86x128xf32>,
    %82 = vector.extract_strided_slice %66 {offsets = [0, 0], sizes = [1, 128], strides = [1, 1]} : vector<2x128xf32> to vector<1x128xf32>
    %83 = vector.shape_cast %82 : vector<1x128xf32> to vector<1x128xf32>
    %84 = vector.broadcast %83 : vector<1x128xf32> to vector<2x128xf32>
    %85 = vector.extract_strided_slice %70 {offsets = [0, 0], sizes = [1, 128], strides = [1, 1]} : vector<2x128xf32> to vector<1x128xf32>
    %86 = vector.shape_cast %85 : vector<1x128xf32> to vector<1x128xf32>
    %87 = vector.broadcast %86 : vector<1x128xf32> to vector<2x128xf32>
    %88 = tpu.concatenate %84, %87 in 0 : vector<2x128xf32>, vector<2x128xf32> -> vector<4x128xf32>
    %89 = tpu.concatenate %88, %79, %88 in 0 : vector<4x128xf32>, vector<2x128xf32>, vector<4x128xf32> -> vector<10x128xf32>
    %c14 = arith.constant 14 : index
    %c0_28 = arith.constant 0 : index
    %90 = vector.load %arg19[%c14, %c0_28] : memref<86x128xf32, #tpu.memory_space<vmem>>, vector<10x128xf32>
    tpu.vector_store %arg19[%c14, %c0_28], %89 {strides = array<i32>} : memref<86x128xf32, #tpu.memory_space<vmem>>, vector<10x128xf32>,
    %91 = vector.extract_strided_slice %74 {offsets = [0, 0], sizes = [1, 128], strides = [1, 1]} : vector<2x128xf32> to vector<1x128xf32>
    %92 = vector.shape_cast %91 : vector<1x128xf32> to vector<1x128xf32>
    %93 = vector.broadcast %92 : vector<1x128xf32> to vector<2x128xf32>
    %94 = vector.extract_strided_slice %78 {offsets = [0, 0], sizes = [1, 128], strides = [1, 1]} : vector<2x128xf32> to vector<1x128xf32>
    %95 = vector.shape_cast %94 : vector<1x128xf32> to vector<1x128xf32>
    %96 = vector.broadcast %95 : vector<1x128xf32> to vector<2x128xf32>
    %97 = tpu.concatenate %93, %96 in 0 : vector<2x128xf32>, vector<2x128xf32> -> vector<4x128xf32>
    %98 = tpu.concatenate %97, %79, %97 in 0 : vector<4x128xf32>, vector<2x128xf32>, vector<4x128xf32> -> vector<10x128xf32>
    %c26 = arith.constant 26 : index
    %c0_29 = arith.constant 0 : index
    %99 = vector.load %arg19[%c26, %c0_29] : memref<86x128xf32, #tpu.memory_space<vmem>>, vector<10x128xf32>
    tpu.vector_store %arg19[%c26, %c0_29], %98 {strides = array<i32>} : memref<86x128xf32, #tpu.memory_space<vmem>>, vector<10x128xf32>,
    %100 = vector.extract_strided_slice %66 {offsets = [1, 0], sizes = [1, 128], strides = [1, 1]} : vector<2x128xf32> to vector<1x128xf32>
    %101 = vector.shape_cast %100 : vector<1x128xf32> to vector<1x128xf32>
    %102 = vector.broadcast %101 : vector<1x128xf32> to vector<2x128xf32>
    %103 = vector.extract_strided_slice %70 {offsets = [1, 0], sizes = [1, 128], strides = [1, 1]} : vector<2x128xf32> to vector<1x128xf32>
    %104 = vector.shape_cast %103 : vector<1x128xf32> to vector<1x128xf32>
    %105 = vector.broadcast %104 : vector<1x128xf32> to vector<2x128xf32>
    %106 = tpu.concatenate %102, %105 in 0 : vector<2x128xf32>, vector<2x128xf32> -> vector<4x128xf32>
    %107 = tpu.concatenate %106, %79, %106 in 0 : vector<4x128xf32>, vector<2x128xf32>, vector<4x128xf32> -> vector<10x128xf32>
    %c50 = arith.constant 50 : index
    %c0_30 = arith.constant 0 : index
    %108 = vector.load %arg19[%c50, %c0_30] : memref<86x128xf32, #tpu.memory_space<vmem>>, vector<10x128xf32>
    tpu.vector_store %arg19[%c50, %c0_30], %107 {strides = array<i32>} : memref<86x128xf32, #tpu.memory_space<vmem>>, vector<10x128xf32>,
    %109 = vector.extract_strided_slice %74 {offsets = [1, 0], sizes = [1, 128], strides = [1, 1]} : vector<2x128xf32> to vector<1x128xf32>
    %110 = vector.shape_cast %109 : vector<1x128xf32> to vector<1x128xf32>
    %111 = vector.broadcast %110 : vector<1x128xf32> to vector<2x128xf32>
    %112 = vector.extract_strided_slice %78 {offsets = [1, 0], sizes = [1, 128], strides = [1, 1]} : vector<2x128xf32> to vector<1x128xf32>
    %113 = vector.shape_cast %112 : vector<1x128xf32> to vector<1x128xf32>
    %114 = vector.broadcast %113 : vector<1x128xf32> to vector<2x128xf32>
    %115 = tpu.concatenate %111, %114 in 0 : vector<2x128xf32>, vector<2x128xf32> -> vector<4x128xf32>
    %116 = tpu.concatenate %115, %79, %115 in 0 : vector<4x128xf32>, vector<2x128xf32>, vector<4x128xf32> -> vector<10x128xf32>
    %c62 = arith.constant 62 : index
    %c0_31 = arith.constant 0 : index
    %117 = vector.load %arg19[%c62, %c0_31] : memref<86x128xf32, #tpu.memory_space<vmem>>, vector<10x128xf32>
    tpu.vector_store %arg19[%c62, %c0_31], %116 {strides = array<i32>} : memref<86x128xf32, #tpu.memory_space<vmem>>, vector<10x128xf32>,
    %c0_32 = arith.constant 0 : index
    %c0_33 = arith.constant 0 : index
    %118 = vector.load %arg19[%c0_32, %c0_33] : memref<86x128xf32, #tpu.memory_space<vmem>>, vector<72x128xf32>
    %119 = arith.truncf %118 : vector<72x128xf32> to vector<72x128xbf16>
    %c0_34 = arith.constant 0 : index
    %c0_35 = arith.constant 0 : index
    %c0_36 = arith.constant 0 : index
    %120 = vector.load %arg6[%c0_34, %c0_35, %c0_36] : memref<9x128x128xbf16, #tpu.memory_space<vmem>>, vector<1x128x128xbf16>
    %121 = vector.shape_cast %120 : vector<1x128x128xbf16> to vector<128x128xbf16>
    %cst_37 = arith.constant dense<0.000000e+00> : vector<72x128xf32>
    %122 = tpu.matmul %119, %121, %cst_37 {dimension_numbers = #tpu.dot_dimension_numbers<[1], [0], [0], [1], [0, 0, 1, 1], [], []>} : vector<72x128xbf16>, vector<128x128xbf16>, vector<72x128xf32> -> vector<72x128xf32>
    %c1 = arith.constant 1 : index
    %c0_38 = arith.constant 0 : index
    %123 = vector.load %arg19[%c1, %c0_38] : memref<86x128xf32, #tpu.memory_space<vmem>>, vector<72x128xf32>
    %124 = arith.truncf %123 : vector<72x128xf32> to vector<72x128xbf16>
    %c1_39 = arith.constant 1 : index
    %c0_40 = arith.constant 0 : index
    %c0_41 = arith.constant 0 : index
    %125 = vector.load %arg6[%c1_39, %c0_40, %c0_41] : memref<9x128x128xbf16, #tpu.memory_space<vmem>>, vector<1x128x128xbf16>
    %126 = vector.shape_cast %125 : vector<1x128x128xbf16> to vector<128x128xbf16>
    %cst_42 = arith.constant dense<0.000000e+00> : vector<72x128xf32>
    %127 = tpu.matmul %124, %126, %cst_42 {dimension_numbers = #tpu.dot_dimension_numbers<[1], [0], [0], [1], [0, 0, 1, 1], [], []>} : vector<72x128xbf16>, vector<128x128xbf16>, vector<72x128xf32> -> vector<72x128xf32>
    %128 = arith.addf %122, %127 : vector<72x128xf32>
    %c2 = arith.constant 2 : index
    %c0_43 = arith.constant 0 : index
    %129 = vector.load %arg19[%c2, %c0_43] : memref<86x128xf32, #tpu.memory_space<vmem>>, vector<72x128xf32>
    %130 = arith.truncf %129 : vector<72x128xf32> to vector<72x128xbf16>
    %c2_44 = arith.constant 2 : index
    %c0_45 = arith.constant 0 : index
    %c0_46 = arith.constant 0 : index
    %131 = vector.load %arg6[%c2_44, %c0_45, %c0_46] : memref<9x128x128xbf16, #tpu.memory_space<vmem>>, vector<1x128x128xbf16>
    %132 = vector.shape_cast %131 : vector<1x128x128xbf16> to vector<128x128xbf16>
    %cst_47 = arith.constant dense<0.000000e+00> : vector<72x128xf32>
    %133 = tpu.matmul %130, %132, %cst_47 {dimension_numbers = #tpu.dot_dimension_numbers<[1], [0], [0], [1], [0, 0, 1, 1], [], []>} : vector<72x128xbf16>, vector<128x128xbf16>, vector<72x128xf32> -> vector<72x128xf32>
    %134 = arith.addf %128, %133 : vector<72x128xf32>
    %c6 = arith.constant 6 : index
    %c0_48 = arith.constant 0 : index
    %135 = vector.load %arg19[%c6, %c0_48] : memref<86x128xf32, #tpu.memory_space<vmem>>, vector<72x128xf32>
    %136 = arith.truncf %135 : vector<72x128xf32> to vector<72x128xbf16>
    %c3 = arith.constant 3 : index
    %c0_49 = arith.constant 0 : index
    %c0_50 = arith.constant 0 : index
    %137 = vector.load %arg6[%c3, %c0_49, %c0_50] : memref<9x128x128xbf16, #tpu.memory_space<vmem>>, vector<1x128x128xbf16>
    %138 = vector.shape_cast %137 : vector<1x128x128xbf16> to vector<128x128xbf16>
    %cst_51 = arith.constant dense<0.000000e+00> : vector<72x128xf32>
    %139 = tpu.matmul %136, %138, %cst_51 {dimension_numbers = #tpu.dot_dimension_numbers<[1], [0], [0], [1], [0, 0, 1, 1], [], []>} : vector<72x128xbf16>, vector<128x128xbf16>, vector<72x128xf32> -> vector<72x128xf32>
    %140 = arith.addf %134, %139 : vector<72x128xf32>
    %c7 = arith.constant 7 : index
    %c0_52 = arith.constant 0 : index
    %141 = vector.load %arg19[%c7, %c0_52] : memref<86x128xf32, #tpu.memory_space<vmem>>, vector<72x128xf32>
    %142 = arith.truncf %141 : vector<72x128xf32> to vector<72x128xbf16>
    %c4 = arith.constant 4 : index
    %c0_53 = arith.constant 0 : index
    %c0_54 = arith.constant 0 : index
    %143 = vector.load %arg6[%c4, %c0_53, %c0_54] : memref<9x128x128xbf16, #tpu.memory_space<vmem>>, vector<1x128x128xbf16>
    %144 = vector.shape_cast %143 : vector<1x128x128xbf16> to vector<128x128xbf16>
    %cst_55 = arith.constant dense<0.000000e+00> : vector<72x128xf32>
    %145 = tpu.matmul %142, %144, %cst_55 {dimension_numbers = #tpu.dot_dimension_numbers<[1], [0], [0], [1], [0, 0, 1, 1], [], []>} : vector<72x128xbf16>, vector<128x128xbf16>, vector<72x128xf32> -> vector<72x128xf32>
    %146 = arith.addf %140, %145 : vector<72x128xf32>
    %c8 = arith.constant 8 : index
    %c0_56 = arith.constant 0 : index
    %147 = vector.load %arg19[%c8, %c0_56] : memref<86x128xf32, #tpu.memory_space<vmem>>, vector<72x128xf32>
    %148 = arith.truncf %147 : vector<72x128xf32> to vector<72x128xbf16>
    %c5 = arith.constant 5 : index
    %c0_57 = arith.constant 0 : index
    %c0_58 = arith.constant 0 : index
    %149 = vector.load %arg6[%c5, %c0_57, %c0_58] : memref<9x128x128xbf16, #tpu.memory_space<vmem>>, vector<1x128x128xbf16>
    %150 = vector.shape_cast %149 : vector<1x128x128xbf16> to vector<128x128xbf16>
    %cst_59 = arith.constant dense<0.000000e+00> : vector<72x128xf32>
    %151 = tpu.matmul %148, %150, %cst_59 {dimension_numbers = #tpu.dot_dimension_numbers<[1], [0], [0], [1], [0, 0, 1, 1], [], []>} : vector<72x128xbf16>, vector<128x128xbf16>, vector<72x128xf32> -> vector<72x128xf32>
    %152 = arith.addf %146, %151 : vector<72x128xf32>
    %c12 = arith.constant 12 : index
    %c0_60 = arith.constant 0 : index
    %153 = vector.load %arg19[%c12, %c0_60] : memref<86x128xf32, #tpu.memory_space<vmem>>, vector<72x128xf32>
    %154 = arith.truncf %153 : vector<72x128xf32> to vector<72x128xbf16>
    %c6_61 = arith.constant 6 : index
    %c0_62 = arith.constant 0 : index
    %c0_63 = arith.constant 0 : index
    %155 = vector.load %arg6[%c6_61, %c0_62, %c0_63] : memref<9x128x128xbf16, #tpu.memory_space<vmem>>, vector<1x128x128xbf16>
    %156 = vector.shape_cast %155 : vector<1x128x128xbf16> to vector<128x128xbf16>
    %cst_64 = arith.constant dense<0.000000e+00> : vector<72x128xf32>
    %157 = tpu.matmul %154, %156, %cst_64 {dimension_numbers = #tpu.dot_dimension_numbers<[1], [0], [0], [1], [0, 0, 1, 1], [], []>} : vector<72x128xbf16>, vector<128x128xbf16>, vector<72x128xf32> -> vector<72x128xf32>
    %158 = arith.addf %152, %157 : vector<72x128xf32>
    %c13 = arith.constant 13 : index
    %c0_65 = arith.constant 0 : index
    %159 = vector.load %arg19[%c13, %c0_65] : memref<86x128xf32, #tpu.memory_space<vmem>>, vector<72x128xf32>
    %160 = arith.truncf %159 : vector<72x128xf32> to vector<72x128xbf16>
    %c7_66 = arith.constant 7 : index
    %c0_67 = arith.constant 0 : index
    %c0_68 = arith.constant 0 : index
    %161 = vector.load %arg6[%c7_66, %c0_67, %c0_68] : memref<9x128x128xbf16, #tpu.memory_space<vmem>>, vector<1x128x128xbf16>
    %162 = vector.shape_cast %161 : vector<1x128x128xbf16> to vector<128x128xbf16>
    %cst_69 = arith.constant dense<0.000000e+00> : vector<72x128xf32>
    %163 = tpu.matmul %160, %162, %cst_69 {dimension_numbers = #tpu.dot_dimension_numbers<[1], [0], [0], [1], [0, 0, 1, 1], [], []>} : vector<72x128xbf16>, vector<128x128xbf16>, vector<72x128xf32> -> vector<72x128xf32>
    %164 = arith.addf %158, %163 : vector<72x128xf32>
    %c14_70 = arith.constant 14 : index
    %c0_71 = arith.constant 0 : index
    %165 = vector.load %arg19[%c14_70, %c0_71] : memref<86x128xf32, #tpu.memory_space<vmem>>, vector<72x128xf32>
    %166 = arith.truncf %165 : vector<72x128xf32> to vector<72x128xbf16>
    %c8_72 = arith.constant 8 : index
    %c0_73 = arith.constant 0 : index
    %c0_74 = arith.constant 0 : index
    %167 = vector.load %arg6[%c8_72, %c0_73, %c0_74] : memref<9x128x128xbf16, #tpu.memory_space<vmem>>, vector<1x128x128xbf16>
    %168 = vector.shape_cast %167 : vector<1x128x128xbf16> to vector<128x128xbf16>
    %cst_75 = arith.constant dense<0.000000e+00> : vector<72x128xf32>
    %169 = tpu.matmul %166, %168, %cst_75 {dimension_numbers = #tpu.dot_dimension_numbers<[1], [0], [0], [1], [0, 0, 1, 1], [], []>} : vector<72x128xbf16>, vector<128x128xbf16>, vector<72x128xf32> -> vector<72x128xf32>
    %170 = arith.addf %164, %169 : vector<72x128xf32>
    %c0_76 = arith.constant 0 : index
    %c0_77 = arith.constant 0 : index
    %171 = vector.load %arg7[%c0_76, %c0_77] : memref<1x128xf32, #tpu.memory_space<vmem>>, vector<1x128xf32>
    %172 = vector.broadcast %171 : vector<1x128xf32> to vector<72x128xf32>
    %173 = arith.addf %170, %172 : vector<72x128xf32>
    %c0_78 = arith.constant 0 : index
    %c0_79 = arith.constant 0 : index
    %174 = vector.load %arg16[%c0_78, %c0_79] : memref<72x1xf32, #tpu.memory_space<vmem>>, vector<72x1xf32>
    %175 = vector.broadcast %174 : vector<72x1xf32> to vector<72x128xf32>
    %176 = arith.mulf %173, %175 : vector<72x128xf32>
    %cst_80 = arith.constant dense<0.000000e+00> : vector<128xf32>
    %177 = vector.multi_reduction <add>, %176, %cst_80 [0] : vector<72x128xf32> to vector<128xf32>
    %178 = vector.shape_cast %177 : vector<128xf32> to vector<1x128xf32>
    %cst_81 = arith.constant 3.200000e+01 : f32
    %179 = vector.broadcast %cst_81 : f32 to vector<1x128xf32>
    %180 = arith.divf %178, %179 : vector<1x128xf32>
    %181 = vector.broadcast %180 : vector<1x128xf32> to vector<72x128xf32>
    %182 = arith.subf %173, %181 : vector<72x128xf32>
    %183 = arith.mulf %182, %182 : vector<72x128xf32>
    %184 = vector.broadcast %174 : vector<72x1xf32> to vector<72x128xf32>
    %185 = arith.mulf %183, %184 : vector<72x128xf32>
    %cst_82 = arith.constant dense<0.000000e+00> : vector<128xf32>
    %186 = vector.multi_reduction <add>, %185, %cst_82 [0] : vector<72x128xf32> to vector<128xf32>
    %187 = vector.shape_cast %186 : vector<128xf32> to vector<1x128xf32>
    %cst_83 = arith.constant 3.200000e+01 : f32
    %188 = vector.broadcast %cst_83 : f32 to vector<1x128xf32>
    %189 = arith.divf %187, %188 : vector<1x128xf32>
    %190 = vector.broadcast %180 : vector<1x128xf32> to vector<72x128xf32>
    %191 = arith.subf %173, %190 : vector<72x128xf32>
    %cst_84 = arith.constant 8.000000e-01 : f32
    %192 = vector.broadcast %cst_84 : f32 to vector<1x128xf32>
    %193 = arith.addf %189, %192 : vector<1x128xf32>
    %194 = math.rsqrt %193 : vector<1x128xf32>
    %195 = vector.broadcast %194 : vector<1x128xf32> to vector<72x128xf32>
    %196 = arith.mulf %191, %195 : vector<72x128xf32>
    %c0_85 = arith.constant 0 : index
    %c0_86 = arith.constant 0 : index
    %197 = vector.load %arg8[%c0_85, %c0_86] : memref<1x128xf32, #tpu.memory_space<vmem>>, vector<1x128xf32>
    %198 = vector.broadcast %197 : vector<1x128xf32> to vector<72x128xf32>
    %199 = arith.mulf %196, %198 : vector<72x128xf32>
    %c0_87 = arith.constant 0 : index
    %c0_88 = arith.constant 0 : index
    %200 = vector.load %arg9[%c0_87, %c0_88] : memref<1x128xf32, #tpu.memory_space<vmem>>, vector<1x128xf32>
    %201 = vector.broadcast %200 : vector<1x128xf32> to vector<72x128xf32>
    %202 = arith.addf %199, %201 : vector<72x128xf32>
    %cst_89 = arith.constant 0.000000e+00 : f32
    %203 = vector.broadcast %cst_89 : f32 to vector<72x128xf32>
    %204 = arith.cmpf ogt, %202, %203 : vector<72x128xf32>
    %cst_90 = arith.constant 2.000000e-01 : f32
    %205 = vector.broadcast %cst_90 : f32 to vector<72x128xf32>
    %206 = arith.mulf %205, %202 : vector<72x128xf32>
    %207 = arith.select %204, %202, %206 : vector<72x128xi1>, vector<72x128xf32>
    %cst_91 = arith.constant 0.000000e+00 : f32
    %208 = vector.broadcast %cst_91 : f32 to vector<222x128xf32>
    %c0_92 = arith.constant 0 : index
    %c0_93 = arith.constant 0 : index
    %209 = vector.load %arg20[%c0_92, %c0_93] : memref<222x128xf32, #tpu.memory_space<vmem>>, vector<222x128xf32>
    tpu.vector_store %arg20[%c0_92, %c0_93], %208 {strides = array<i32>} : memref<222x128xf32, #tpu.memory_space<vmem>>, vector<222x128xf32>,
    %210 = vector.extract_strided_slice %207 {offsets = [7, 0], sizes = [1, 128], strides = [1, 1]} : vector<72x128xf32> to vector<1x128xf32>
    %211 = vector.shape_cast %210 : vector<1x128xf32> to vector<1x128xf32>
    %212 = vector.broadcast %211 : vector<1x128xf32> to vector<2x128xf32>
    %213 = vector.extract_strided_slice %207 {offsets = [8, 0], sizes = [1, 128], strides = [1, 1]} : vector<72x128xf32> to vector<1x128xf32>
    %214 = vector.shape_cast %213 : vector<1x128xf32> to vector<1x128xf32>
    %215 = vector.broadcast %214 : vector<1x128xf32> to vector<2x128xf32>
    %216 = vector.extract_strided_slice %207 {offsets = [9, 0], sizes = [1, 128], strides = [1, 1]} : vector<72x128xf32> to vector<1x128xf32>
    %217 = vector.shape_cast %216 : vector<1x128xf32> to vector<1x128xf32>
    %218 = vector.broadcast %217 : vector<1x128xf32> to vector<2x128xf32>
    %219 = vector.extract_strided_slice %207 {offsets = [10, 0], sizes = [1, 128], strides = [1, 1]} : vector<72x128xf32> to vector<1x128xf32>
    %220 = vector.shape_cast %219 : vector<1x128xf32> to vector<1x128xf32>
    %221 = vector.broadcast %220 : vector<1x128xf32> to vector<2x128xf32>
    %222 = tpu.concatenate %212, %215, %218, %221 in 0 : vector<2x128xf32>, vector<2x128xf32>, vector<2x128xf32>, vector<2x128xf32> -> vector<8x128xf32>
    %223 = tpu.concatenate %222, %79, %222 in 0 : vector<8x128xf32>, vector<2x128xf32>, vector<8x128xf32> -> vector<18x128xf32>
    %c22 = arith.constant 22 : index
    %c0_94 = arith.constant 0 : index
    %224 = vector.load %arg20[%c22, %c0_94] : memref<222x128xf32, #tpu.memory_space<vmem>>, vector<18x128xf32>
    tpu.vector_store %arg20[%c22, %c0_94], %223 {strides = array<i32>} : memref<222x128xf32, #tpu.memory_space<vmem>>, vector<18x128xf32>,
    %225 = vector.extract_strided_slice %207 {offsets = [13, 0], sizes = [1, 128], strides = [1, 1]} : vector<72x128xf32> to vector<1x128xf32>
    %226 = vector.shape_cast %225 : vector<1x128xf32> to vector<1x128xf32>
    %227 = vector.broadcast %226 : vector<1x128xf32> to vector<2x128xf32>
    %228 = vector.extract_strided_slice %207 {offsets = [14, 0], sizes = [1, 128], strides = [1, 1]} : vector<72x128xf32> to vector<1x128xf32>
    %229 = vector.shape_cast %228 : vector<1x128xf32> to vector<1x128xf32>
    %230 = vector.broadcast %229 : vector<1x128xf32> to vector<2x128xf32>
    %231 = vector.extract_strided_slice %207 {offsets = [15, 0], sizes = [1, 128], strides = [1, 1]} : vector<72x128xf32> to vector<1x128xf32>
    %232 = vector.shape_cast %231 : vector<1x128xf32> to vector<1x128xf32>
    %233 = vector.broadcast %232 : vector<1x128xf32> to vector<2x128xf32>
    %234 = vector.extract_strided_slice %207 {offsets = [16, 0], sizes = [1, 128], strides = [1, 1]} : vector<72x128xf32> to vector<1x128xf32>
    %235 = vector.shape_cast %234 : vector<1x128xf32> to vector<1x128xf32>
    %236 = vector.broadcast %235 : vector<1x128xf32> to vector<2x128xf32>
    %237 = tpu.concatenate %227, %230, %233, %236 in 0 : vector<2x128xf32>, vector<2x128xf32>, vector<2x128xf32>, vector<2x128xf32> -> vector<8x128xf32>
    %238 = tpu.concatenate %237, %79, %237 in 0 : vector<8x128xf32>, vector<2x128xf32>, vector<8x128xf32> -> vector<18x128xf32>
    %c42 = arith.constant 42 : index
    %c0_95 = arith.constant 0 : index
    %239 = vector.load %arg20[%c42, %c0_95] : memref<222x128xf32, #tpu.memory_space<vmem>>, vector<18x128xf32>
    tpu.vector_store %arg20[%c42, %c0_95], %238 {strides = array<i32>} : memref<222x128xf32, #tpu.memory_space<vmem>>, vector<18x128xf32>,
    %240 = vector.extract_strided_slice %207 {offsets = [19, 0], sizes = [1, 128], strides = [1, 1]} : vector<72x128xf32> to vector<1x128xf32>
    %241 = vector.shape_cast %240 : vector<1x128xf32> to vector<1x128xf32>
    %242 = vector.broadcast %241 : vector<1x128xf32> to vector<2x128xf32>
    %243 = vector.extract_strided_slice %207 {offsets = [20, 0], sizes = [1, 128], strides = [1, 1]} : vector<72x128xf32> to vector<1x128xf32>
    %244 = vector.shape_cast %243 : vector<1x128xf32> to vector<1x128xf32>
    %245 = vector.broadcast %244 : vector<1x128xf32> to vector<2x128xf32>
    %246 = vector.extract_strided_slice %207 {offsets = [21, 0], sizes = [1, 128], strides = [1, 1]} : vector<72x128xf32> to vector<1x128xf32>
    %247 = vector.shape_cast %246 : vector<1x128xf32> to vector<1x128xf32>
    %248 = vector.broadcast %247 : vector<1x128xf32> to vector<2x128xf32>
    %249 = vector.extract_strided_slice %207 {offsets = [22, 0], sizes = [1, 128], strides = [1, 1]} : vector<72x128xf32> to vector<1x128xf32>
    %250 = vector.shape_cast %249 : vector<1x128xf32> to vector<1x128xf32>
    %251 = vector.broadcast %250 : vector<1x128xf32> to vector<2x128xf32>
    %252 = tpu.concatenate %242, %245, %248, %251 in 0 : vector<2x128xf32>, vector<2x128xf32>, vector<2x128xf32>, vector<2x128xf32> -> vector<8x128xf32>
    %253 = tpu.concatenate %252, %79, %252 in 0 : vector<8x128xf32>, vector<2x128xf32>, vector<8x128xf32> -> vector<18x128xf32>
    %c62_96 = arith.constant 62 : index
    %c0_97 = arith.constant 0 : index
    %254 = vector.load %arg20[%c62_96, %c0_97] : memref<222x128xf32, #tpu.memory_space<vmem>>, vector<18x128xf32>
    tpu.vector_store %arg20[%c62_96, %c0_97], %253 {strides = array<i32>} : memref<222x128xf32, #tpu.memory_space<vmem>>, vector<18x128xf32>,
    %255 = vector.extract_strided_slice %207 {offsets = [25, 0], sizes = [1, 128], strides = [1, 1]} : vector<72x128xf32> to vector<1x128xf32>
    %256 = vector.shape_cast %255 : vector<1x128xf32> to vector<1x128xf32>
    %257 = vector.broadcast %256 : vector<1x128xf32> to vector<2x128xf32>
    %258 = vector.extract_strided_slice %207 {offsets = [26, 0], sizes = [1, 128], strides = [1, 1]} : vector<72x128xf32> to vector<1x128xf32>
    %259 = vector.shape_cast %258 : vector<1x128xf32> to vector<1x128xf32>
    %260 = vector.broadcast %259 : vector<1x128xf32> to vector<2x128xf32>
    %261 = vector.extract_strided_slice %207 {offsets = [27, 0], sizes = [1, 128], strides = [1, 1]} : vector<72x128xf32> to vector<1x128xf32>
    %262 = vector.shape_cast %261 : vector<1x128xf32> to vector<1x128xf32>
    %263 = vector.broadcast %262 : vector<1x128xf32> to vector<2x128xf32>
    %264 = vector.extract_strided_slice %207 {offsets = [28, 0], sizes = [1, 128], strides = [1, 1]} : vector<72x128xf32> to vector<1x128xf32>
    %265 = vector.shape_cast %264 : vector<1x128xf32> to vector<1x128xf32>
    %266 = vector.broadcast %265 : vector<1x128xf32> to vector<2x128xf32>
    %267 = tpu.concatenate %257, %260, %263, %266 in 0 : vector<2x128xf32>, vector<2x128xf32>, vector<2x128xf32>, vector<2x128xf32> -> vector<8x128xf32>
    %268 = tpu.concatenate %267, %79, %267 in 0 : vector<8x128xf32>, vector<2x128xf32>, vector<8x128xf32> -> vector<18x128xf32>
    %c82 = arith.constant 82 : index
    %c0_98 = arith.constant 0 : index
    %269 = vector.load %arg20[%c82, %c0_98] : memref<222x128xf32, #tpu.memory_space<vmem>>, vector<18x128xf32>
    tpu.vector_store %arg20[%c82, %c0_98], %268 {strides = array<i32>} : memref<222x128xf32, #tpu.memory_space<vmem>>, vector<18x128xf32>,
    %270 = vector.extract_strided_slice %207 {offsets = [43, 0], sizes = [1, 128], strides = [1, 1]} : vector<72x128xf32> to vector<1x128xf32>
    %271 = vector.shape_cast %270 : vector<1x128xf32> to vector<1x128xf32>
    %272 = vector.broadcast %271 : vector<1x128xf32> to vector<2x128xf32>
    %273 = vector.extract_strided_slice %207 {offsets = [44, 0], sizes = [1, 128], strides = [1, 1]} : vector<72x128xf32> to vector<1x128xf32>
    %274 = vector.shape_cast %273 : vector<1x128xf32> to vector<1x128xf32>
    %275 = vector.broadcast %274 : vector<1x128xf32> to vector<2x128xf32>
    %276 = vector.extract_strided_slice %207 {offsets = [45, 0], sizes = [1, 128], strides = [1, 1]} : vector<72x128xf32> to vector<1x128xf32>
    %277 = vector.shape_cast %276 : vector<1x128xf32> to vector<1x128xf32>
    %278 = vector.broadcast %277 : vector<1x128xf32> to vector<2x128xf32>
    %279 = vector.extract_strided_slice %207 {offsets = [46, 0], sizes = [1, 128], strides = [1, 1]} : vector<72x128xf32> to vector<1x128xf32>
    %280 = vector.shape_cast %279 : vector<1x128xf32> to vector<1x128xf32>
    %281 = vector.broadcast %280 : vector<1x128xf32> to vector<2x128xf32>
    %282 = tpu.concatenate %272, %275, %278, %281 in 0 : vector<2x128xf32>, vector<2x128xf32>, vector<2x128xf32>, vector<2x128xf32> -> vector<8x128xf32>
    %283 = tpu.concatenate %282, %79, %282 in 0 : vector<8x128xf32>, vector<2x128xf32>, vector<8x128xf32> -> vector<18x128xf32>
    %c122 = arith.constant 122 : index
    %c0_99 = arith.constant 0 : index
    %284 = vector.load %arg20[%c122, %c0_99] : memref<222x128xf32, #tpu.memory_space<vmem>>, vector<18x128xf32>
    tpu.vector_store %arg20[%c122, %c0_99], %283 {strides = array<i32>} : memref<222x128xf32, #tpu.memory_space<vmem>>, vector<18x128xf32>,
    %285 = vector.extract_strided_slice %207 {offsets = [49, 0], sizes = [1, 128], strides = [1, 1]} : vector<72x128xf32> to vector<1x128xf32>
    %286 = vector.shape_cast %285 : vector<1x128xf32> to vector<1x128xf32>
    %287 = vector.broadcast %286 : vector<1x128xf32> to vector<2x128xf32>
    %288 = vector.extract_strided_slice %207 {offsets = [50, 0], sizes = [1, 128], strides = [1, 1]} : vector<72x128xf32> to vector<1x128xf32>
    %289 = vector.shape_cast %288 : vector<1x128xf32> to vector<1x128xf32>
    %290 = vector.broadcast %289 : vector<1x128xf32> to vector<2x128xf32>
    %291 = vector.extract_strided_slice %207 {offsets = [51, 0], sizes = [1, 128], strides = [1, 1]} : vector<72x128xf32> to vector<1x128xf32>
    %292 = vector.shape_cast %291 : vector<1x128xf32> to vector<1x128xf32>
    %293 = vector.broadcast %292 : vector<1x128xf32> to vector<2x128xf32>
    %294 = vector.extract_strided_slice %207 {offsets = [52, 0], sizes = [1, 128], strides = [1, 1]} : vector<72x128xf32> to vector<1x128xf32>
    %295 = vector.shape_cast %294 : vector<1x128xf32> to vector<1x128xf32>
    %296 = vector.broadcast %295 : vector<1x128xf32> to vector<2x128xf32>
    %297 = tpu.concatenate %287, %290, %293, %296 in 0 : vector<2x128xf32>, vector<2x128xf32>, vector<2x128xf32>, vector<2x128xf32> -> vector<8x128xf32>
    %298 = tpu.concatenate %297, %79, %297 in 0 : vector<8x128xf32>, vector<2x128xf32>, vector<8x128xf32> -> vector<18x128xf32>
    %c142 = arith.constant 142 : index
    %c0_100 = arith.constant 0 : index
    %299 = vector.load %arg20[%c142, %c0_100] : memref<222x128xf32, #tpu.memory_space<vmem>>, vector<18x128xf32>
    tpu.vector_store %arg20[%c142, %c0_100], %298 {strides = array<i32>} : memref<222x128xf32, #tpu.memory_space<vmem>>, vector<18x128xf32>,
    %300 = vector.extract_strided_slice %207 {offsets = [55, 0], sizes = [1, 128], strides = [1, 1]} : vector<72x128xf32> to vector<1x128xf32>
    %301 = vector.shape_cast %300 : vector<1x128xf32> to vector<1x128xf32>
    %302 = vector.broadcast %301 : vector<1x128xf32> to vector<2x128xf32>
    %303 = vector.extract_strided_slice %207 {offsets = [56, 0], sizes = [1, 128], strides = [1, 1]} : vector<72x128xf32> to vector<1x128xf32>
    %304 = vector.shape_cast %303 : vector<1x128xf32> to vector<1x128xf32>
    %305 = vector.broadcast %304 : vector<1x128xf32> to vector<2x128xf32>
    %306 = vector.extract_strided_slice %207 {offsets = [57, 0], sizes = [1, 128], strides = [1, 1]} : vector<72x128xf32> to vector<1x128xf32>
    %307 = vector.shape_cast %306 : vector<1x128xf32> to vector<1x128xf32>
    %308 = vector.broadcast %307 : vector<1x128xf32> to vector<2x128xf32>
    %309 = vector.extract_strided_slice %207 {offsets = [58, 0], sizes = [1, 128], strides = [1, 1]} : vector<72x128xf32> to vector<1x128xf32>
    %310 = vector.shape_cast %309 : vector<1x128xf32> to vector<1x128xf32>
    %311 = vector.broadcast %310 : vector<1x128xf32> to vector<2x128xf32>
    %312 = tpu.concatenate %302, %305, %308, %311 in 0 : vector<2x128xf32>, vector<2x128xf32>, vector<2x128xf32>, vector<2x128xf32> -> vector<8x128xf32>
    %313 = tpu.concatenate %312, %79, %312 in 0 : vector<8x128xf32>, vector<2x128xf32>, vector<8x128xf32> -> vector<18x128xf32>
    %c162 = arith.constant 162 : index
    %c0_101 = arith.constant 0 : index
    %314 = vector.load %arg20[%c162, %c0_101] : memref<222x128xf32, #tpu.memory_space<vmem>>, vector<18x128xf32>
    tpu.vector_store %arg20[%c162, %c0_101], %313 {strides = array<i32>} : memref<222x128xf32, #tpu.memory_space<vmem>>, vector<18x128xf32>,
    %315 = vector.extract_strided_slice %207 {offsets = [61, 0], sizes = [1, 128], strides = [1, 1]} : vector<72x128xf32> to vector<1x128xf32>
    %316 = vector.shape_cast %315 : vector<1x128xf32> to vector<1x128xf32>
    %317 = vector.broadcast %316 : vector<1x128xf32> to vector<2x128xf32>
    %318 = vector.extract_strided_slice %207 {offsets = [62, 0], sizes = [1, 128], strides = [1, 1]} : vector<72x128xf32> to vector<1x128xf32>
    %319 = vector.shape_cast %318 : vector<1x128xf32> to vector<1x128xf32>
    %320 = vector.broadcast %319 : vector<1x128xf32> to vector<2x128xf32>
    %321 = vector.extract_strided_slice %207 {offsets = [63, 0], sizes = [1, 128], strides = [1, 1]} : vector<72x128xf32> to vector<1x128xf32>
    %322 = vector.shape_cast %321 : vector<1x128xf32> to vector<1x128xf32>
    %323 = vector.broadcast %322 : vector<1x128xf32> to vector<2x128xf32>
    %324 = vector.extract_strided_slice %207 {offsets = [64, 0], sizes = [1, 128], strides = [1, 1]} : vector<72x128xf32> to vector<1x128xf32>
    %325 = vector.shape_cast %324 : vector<1x128xf32> to vector<1x128xf32>
    %326 = vector.broadcast %325 : vector<1x128xf32> to vector<2x128xf32>
    %327 = tpu.concatenate %317, %320, %323, %326 in 0 : vector<2x128xf32>, vector<2x128xf32>, vector<2x128xf32>, vector<2x128xf32> -> vector<8x128xf32>
    %328 = tpu.concatenate %327, %79, %327 in 0 : vector<8x128xf32>, vector<2x128xf32>, vector<8x128xf32> -> vector<18x128xf32>
    %c182 = arith.constant 182 : index
    %c0_102 = arith.constant 0 : index
    %329 = vector.load %arg20[%c182, %c0_102] : memref<222x128xf32, #tpu.memory_space<vmem>>, vector<18x128xf32>
    tpu.vector_store %arg20[%c182, %c0_102], %328 {strides = array<i32>} : memref<222x128xf32, #tpu.memory_space<vmem>>, vector<18x128xf32>,
    %c0_103 = arith.constant 0 : index
    %c0_104 = arith.constant 0 : index
    %330 = vector.load %arg20[%c0_103, %c0_104] : memref<222x128xf32, #tpu.memory_space<vmem>>, vector<200x128xf32>
    %331 = arith.truncf %330 : vector<200x128xf32> to vector<200x128xbf16>
    %c0_105 = arith.constant 0 : index
    %c0_106 = arith.constant 0 : index
    %c0_107 = arith.constant 0 : index
    %332 = vector.load %arg10[%c0_105, %c0_106, %c0_107] : memref<9x128x64xbf16, #tpu.memory_space<vmem>>, vector<1x128x64xbf16>
    %333 = vector.shape_cast %332 : vector<1x128x64xbf16> to vector<128x64xbf16>
    %cst_108 = arith.constant dense<0.000000e+00> : vector<200x64xf32>
    %334 = tpu.matmul %331, %333, %cst_108 {dimension_numbers = #tpu.dot_dimension_numbers<[1], [0], [0], [1], [0, 0, 1, 1], [], []>} : vector<200x128xbf16>, vector<128x64xbf16>, vector<200x64xf32> -> vector<200x64xf32>
    %c1_109 = arith.constant 1 : index
    %c0_110 = arith.constant 0 : index
    %335 = vector.load %arg20[%c1_109, %c0_110] : memref<222x128xf32, #tpu.memory_space<vmem>>, vector<200x128xf32>
    %336 = arith.truncf %335 : vector<200x128xf32> to vector<200x128xbf16>
    %c1_111 = arith.constant 1 : index
    %c0_112 = arith.constant 0 : index
    %c0_113 = arith.constant 0 : index
    %337 = vector.load %arg10[%c1_111, %c0_112, %c0_113] : memref<9x128x64xbf16, #tpu.memory_space<vmem>>, vector<1x128x64xbf16>
    %338 = vector.shape_cast %337 : vector<1x128x64xbf16> to vector<128x64xbf16>
    %cst_114 = arith.constant dense<0.000000e+00> : vector<200x64xf32>
    %339 = tpu.matmul %336, %338, %cst_114 {dimension_numbers = #tpu.dot_dimension_numbers<[1], [0], [0], [1], [0, 0, 1, 1], [], []>} : vector<200x128xbf16>, vector<128x64xbf16>, vector<200x64xf32> -> vector<200x64xf32>
    %340 = arith.addf %334, %339 : vector<200x64xf32>
    %c2_115 = arith.constant 2 : index
    %c0_116 = arith.constant 0 : index
    %341 = vector.load %arg20[%c2_115, %c0_116] : memref<222x128xf32, #tpu.memory_space<vmem>>, vector<200x128xf32>
    %342 = arith.truncf %341 : vector<200x128xf32> to vector<200x128xbf16>
    %c2_117 = arith.constant 2 : index
    %c0_118 = arith.constant 0 : index
    %c0_119 = arith.constant 0 : index
    %343 = vector.load %arg10[%c2_117, %c0_118, %c0_119] : memref<9x128x64xbf16, #tpu.memory_space<vmem>>, vector<1x128x64xbf16>
    %344 = vector.shape_cast %343 : vector<1x128x64xbf16> to vector<128x64xbf16>
    %cst_120 = arith.constant dense<0.000000e+00> : vector<200x64xf32>
    %345 = tpu.matmul %342, %344, %cst_120 {dimension_numbers = #tpu.dot_dimension_numbers<[1], [0], [0], [1], [0, 0, 1, 1], [], []>} : vector<200x128xbf16>, vector<128x64xbf16>, vector<200x64xf32> -> vector<200x64xf32>
    %346 = arith.addf %340, %345 : vector<200x64xf32>
    %c10 = arith.constant 10 : index
    %c0_121 = arith.constant 0 : index
    %347 = vector.load %arg20[%c10, %c0_121] : memref<222x128xf32, #tpu.memory_space<vmem>>, vector<200x128xf32>
    %348 = arith.truncf %347 : vector<200x128xf32> to vector<200x128xbf16>
    %c3_122 = arith.constant 3 : index
    %c0_123 = arith.constant 0 : index
    %c0_124 = arith.constant 0 : index
    %349 = vector.load %arg10[%c3_122, %c0_123, %c0_124] : memref<9x128x64xbf16, #tpu.memory_space<vmem>>, vector<1x128x64xbf16>
    %350 = vector.shape_cast %349 : vector<1x128x64xbf16> to vector<128x64xbf16>
    %cst_125 = arith.constant dense<0.000000e+00> : vector<200x64xf32>
    %351 = tpu.matmul %348, %350, %cst_125 {dimension_numbers = #tpu.dot_dimension_numbers<[1], [0], [0], [1], [0, 0, 1, 1], [], []>} : vector<200x128xbf16>, vector<128x64xbf16>, vector<200x64xf32> -> vector<200x64xf32>
    %352 = arith.addf %346, %351 : vector<200x64xf32>
    %c11 = arith.constant 11 : index
    %c0_126 = arith.constant 0 : index
    %353 = vector.load %arg20[%c11, %c0_126] : memref<222x128xf32, #tpu.memory_space<vmem>>, vector<200x128xf32>
    %354 = arith.truncf %353 : vector<200x128xf32> to vector<200x128xbf16>
    %c4_127 = arith.constant 4 : index
    %c0_128 = arith.constant 0 : index
    %c0_129 = arith.constant 0 : index
    %355 = vector.load %arg10[%c4_127, %c0_128, %c0_129] : memref<9x128x64xbf16, #tpu.memory_space<vmem>>, vector<1x128x64xbf16>
    %356 = vector.shape_cast %355 : vector<1x128x64xbf16> to vector<128x64xbf16>
    %cst_130 = arith.constant dense<0.000000e+00> : vector<200x64xf32>
    %357 = tpu.matmul %354, %356, %cst_130 {dimension_numbers = #tpu.dot_dimension_numbers<[1], [0], [0], [1], [0, 0, 1, 1], [], []>} : vector<200x128xbf16>, vector<128x64xbf16>, vector<200x64xf32> -> vector<200x64xf32>
    %358 = arith.addf %352, %357 : vector<200x64xf32>
    %c12_131 = arith.constant 12 : index
    %c0_132 = arith.constant 0 : index
    %359 = vector.load %arg20[%c12_131, %c0_132] : memref<222x128xf32, #tpu.memory_space<vmem>>, vector<200x128xf32>
    %360 = arith.truncf %359 : vector<200x128xf32> to vector<200x128xbf16>
    %c5_133 = arith.constant 5 : index
    %c0_134 = arith.constant 0 : index
    %c0_135 = arith.constant 0 : index
    %361 = vector.load %arg10[%c5_133, %c0_134, %c0_135] : memref<9x128x64xbf16, #tpu.memory_space<vmem>>, vector<1x128x64xbf16>
    %362 = vector.shape_cast %361 : vector<1x128x64xbf16> to vector<128x64xbf16>
    %cst_136 = arith.constant dense<0.000000e+00> : vector<200x64xf32>
    %363 = tpu.matmul %360, %362, %cst_136 {dimension_numbers = #tpu.dot_dimension_numbers<[1], [0], [0], [1], [0, 0, 1, 1], [], []>} : vector<200x128xbf16>, vector<128x64xbf16>, vector<200x64xf32> -> vector<200x64xf32>
    %364 = arith.addf %358, %363 : vector<200x64xf32>
    %c20 = arith.constant 20 : index
    %c0_137 = arith.constant 0 : index
    %365 = vector.load %arg20[%c20, %c0_137] : memref<222x128xf32, #tpu.memory_space<vmem>>, vector<200x128xf32>
    %366 = arith.truncf %365 : vector<200x128xf32> to vector<200x128xbf16>
    %c6_138 = arith.constant 6 : index
    %c0_139 = arith.constant 0 : index
    %c0_140 = arith.constant 0 : index
    %367 = vector.load %arg10[%c6_138, %c0_139, %c0_140] : memref<9x128x64xbf16, #tpu.memory_space<vmem>>, vector<1x128x64xbf16>
    %368 = vector.shape_cast %367 : vector<1x128x64xbf16> to vector<128x64xbf16>
    %cst_141 = arith.constant dense<0.000000e+00> : vector<200x64xf32>
    %369 = tpu.matmul %366, %368, %cst_141 {dimension_numbers = #tpu.dot_dimension_numbers<[1], [0], [0], [1], [0, 0, 1, 1], [], []>} : vector<200x128xbf16>, vector<128x64xbf16>, vector<200x64xf32> -> vector<200x64xf32>
    %370 = arith.addf %364, %369 : vector<200x64xf32>
    %c21 = arith.constant 21 : index
    %c0_142 = arith.constant 0 : index
    %371 = vector.load %arg20[%c21, %c0_142] : memref<222x128xf32, #tpu.memory_space<vmem>>, vector<200x128xf32>
    %372 = arith.truncf %371 : vector<200x128xf32> to vector<200x128xbf16>
    %c7_143 = arith.constant 7 : index
    %c0_144 = arith.constant 0 : index
    %c0_145 = arith.constant 0 : index
    %373 = vector.load %arg10[%c7_143, %c0_144, %c0_145] : memref<9x128x64xbf16, #tpu.memory_space<vmem>>, vector<1x128x64xbf16>
    %374 = vector.shape_cast %373 : vector<1x128x64xbf16> to vector<128x64xbf16>
    %cst_146 = arith.constant dense<0.000000e+00> : vector<200x64xf32>
    %375 = tpu.matmul %372, %374, %cst_146 {dimension_numbers = #tpu.dot_dimension_numbers<[1], [0], [0], [1], [0, 0, 1, 1], [], []>} : vector<200x128xbf16>, vector<128x64xbf16>, vector<200x64xf32> -> vector<200x64xf32>
    %376 = arith.addf %370, %375 : vector<200x64xf32>
    %c22_147 = arith.constant 22 : index
    %c0_148 = arith.constant 0 : index
    %377 = vector.load %arg20[%c22_147, %c0_148] : memref<222x128xf32, #tpu.memory_space<vmem>>, vector<200x128xf32>
    %378 = arith.truncf %377 : vector<200x128xf32> to vector<200x128xbf16>
    %c8_149 = arith.constant 8 : index
    %c0_150 = arith.constant 0 : index
    %c0_151 = arith.constant 0 : index
    %379 = vector.load %arg10[%c8_149, %c0_150, %c0_151] : memref<9x128x64xbf16, #tpu.memory_space<vmem>>, vector<1x128x64xbf16>
    %380 = vector.shape_cast %379 : vector<1x128x64xbf16> to vector<128x64xbf16>
    %cst_152 = arith.constant dense<0.000000e+00> : vector<200x64xf32>
    %381 = tpu.matmul %378, %380, %cst_152 {dimension_numbers = #tpu.dot_dimension_numbers<[1], [0], [0], [1], [0, 0, 1, 1], [], []>} : vector<200x128xbf16>, vector<128x64xbf16>, vector<200x64xf32> -> vector<200x64xf32>
    %382 = arith.addf %376, %381 : vector<200x64xf32>
    %c0_153 = arith.constant 0 : index
    %c0_154 = arith.constant 0 : index
    %383 = vector.load %arg11[%c0_153, %c0_154] : memref<1x64xf32, #tpu.memory_space<vmem>>, vector<1x64xf32>
    %384 = vector.broadcast %383 : vector<1x64xf32> to vector<200x64xf32>
    %385 = arith.addf %382, %384 : vector<200x64xf32>
    %c0_155 = arith.constant 0 : index
    %c0_156 = arith.constant 0 : index
    %386 = vector.load %arg17[%c0_155, %c0_156] : memref<200x1xf32, #tpu.memory_space<vmem>>, vector<200x1xf32>
    %387 = vector.broadcast %386 : vector<200x1xf32> to vector<200x64xf32>
    %388 = arith.mulf %385, %387 : vector<200x64xf32>
    %cst_157 = arith.constant dense<0.000000e+00> : vector<64xf32>
    %389 = vector.multi_reduction <add>, %388, %cst_157 [0] : vector<200x64xf32> to vector<64xf32>
    %390 = vector.shape_cast %389 : vector<64xf32> to vector<1x64xf32>
    %cst_158 = arith.constant 1.280000e+02 : f32
    %391 = vector.broadcast %cst_158 : f32 to vector<1x64xf32>
    %392 = arith.divf %390, %391 : vector<1x64xf32>
    %393 = vector.broadcast %392 : vector<1x64xf32> to vector<200x64xf32>
    %394 = arith.subf %385, %393 : vector<200x64xf32>
    %395 = arith.mulf %394, %394 : vector<200x64xf32>
    %396 = vector.broadcast %386 : vector<200x1xf32> to vector<200x64xf32>
    %397 = arith.mulf %395, %396 : vector<200x64xf32>
    %cst_159 = arith.constant dense<0.000000e+00> : vector<64xf32>
    %398 = vector.multi_reduction <add>, %397, %cst_159 [0] : vector<200x64xf32> to vector<64xf32>
    %399 = vector.shape_cast %398 : vector<64xf32> to vector<1x64xf32>
    %cst_160 = arith.constant 1.280000e+02 : f32
    %400 = vector.broadcast %cst_160 : f32 to vector<1x64xf32>
    %401 = arith.divf %399, %400 : vector<1x64xf32>
    %402 = vector.broadcast %392 : vector<1x64xf32> to vector<200x64xf32>
    %403 = arith.subf %385, %402 : vector<200x64xf32>
    %cst_161 = arith.constant 8.000000e-01 : f32
    %404 = vector.broadcast %cst_161 : f32 to vector<1x64xf32>
    %405 = arith.addf %401, %404 : vector<1x64xf32>
    %406 = math.rsqrt %405 : vector<1x64xf32>
    %407 = vector.broadcast %406 : vector<1x64xf32> to vector<200x64xf32>
    %408 = arith.mulf %403, %407 : vector<200x64xf32>
    %c0_162 = arith.constant 0 : index
    %c0_163 = arith.constant 0 : index
    %409 = vector.load %arg12[%c0_162, %c0_163] : memref<1x64xf32, #tpu.memory_space<vmem>>, vector<1x64xf32>
    %410 = vector.broadcast %409 : vector<1x64xf32> to vector<200x64xf32>
    %411 = arith.mulf %408, %410 : vector<200x64xf32>
    %c0_164 = arith.constant 0 : index
    %c0_165 = arith.constant 0 : index
    %412 = vector.load %arg13[%c0_164, %c0_165] : memref<1x64xf32, #tpu.memory_space<vmem>>, vector<1x64xf32>
    %413 = vector.broadcast %412 : vector<1x64xf32> to vector<200x64xf32>
    %414 = arith.addf %411, %413 : vector<200x64xf32>
    %cst_166 = arith.constant 0.000000e+00 : f32
    %415 = vector.broadcast %cst_166 : f32 to vector<200x64xf32>
    %416 = arith.cmpf ogt, %414, %415 : vector<200x64xf32>
    %cst_167 = arith.constant 2.000000e-01 : f32
    %417 = vector.broadcast %cst_167 : f32 to vector<200x64xf32>
    %418 = arith.mulf %417, %414 : vector<200x64xf32>
    %419 = arith.select %416, %414, %418 : vector<200x64xi1>, vector<200x64xf32>
    %cst_168 = arith.constant 0.000000e+00 : f32
    %420 = vector.broadcast %cst_168 : f32 to vector<222x64xf32>
    %c0_169 = arith.constant 0 : index
    %c0_170 = arith.constant 0 : index
    %421 = vector.load %arg21[%c0_169, %c0_170] : memref<222x64xf32, #tpu.memory_space<vmem>>, vector<222x64xf32>
    tpu.vector_store %arg21[%c0_169, %c0_170], %420 {strides = array<i32>} : memref<222x64xf32, #tpu.memory_space<vmem>>, vector<222x64xf32>,
    %422 = vector.broadcast %386 : vector<200x1xf32> to vector<200x64xf32>
    %423 = arith.mulf %419, %422 : vector<200x64xf32>
    %c11_171 = arith.constant 11 : index
    %c0_172 = arith.constant 0 : index
    %424 = vector.load %arg21[%c11_171, %c0_172] : memref<222x64xf32, #tpu.memory_space<vmem>>, vector<200x64xf32>
    tpu.vector_store %arg21[%c11_171, %c0_172], %423 {strides = array<i32>} : memref<222x64xf32, #tpu.memory_space<vmem>>, vector<200x64xf32>,
    %c0_173 = arith.constant 0 : index
    %c0_174 = arith.constant 0 : index
    %425 = vector.load %arg21[%c0_173, %c0_174] : memref<222x64xf32, #tpu.memory_space<vmem>>, vector<200x64xf32>
    %426 = arith.truncf %425 : vector<200x64xf32> to vector<200x64xbf16>
    %c0_175 = arith.constant 0 : index
    %c0_176 = arith.constant 0 : index
    %c0_177 = arith.constant 0 : index
    %427 = vector.load %arg14[%c0_175, %c0_176, %c0_177] : memref<9x64x4xbf16, #tpu.memory_space<vmem>>, vector<1x64x4xbf16>
    %428 = vector.shape_cast %427 : vector<1x64x4xbf16> to vector<64x4xbf16>
    %cst_178 = arith.constant dense<0.000000e+00> : vector<200x4xf32>
    %429 = tpu.matmul %426, %428, %cst_178 {dimension_numbers = #tpu.dot_dimension_numbers<[1], [0], [0], [1], [0, 0, 1, 1], [], []>} : vector<200x64xbf16>, vector<64x4xbf16>, vector<200x4xf32> -> vector<200x4xf32>
    %c1_179 = arith.constant 1 : index
    %c0_180 = arith.constant 0 : index
    %430 = vector.load %arg21[%c1_179, %c0_180] : memref<222x64xf32, #tpu.memory_space<vmem>>, vector<200x64xf32>
    %431 = arith.truncf %430 : vector<200x64xf32> to vector<200x64xbf16>
    %c1_181 = arith.constant 1 : index
    %c0_182 = arith.constant 0 : index
    %c0_183 = arith.constant 0 : index
    %432 = vector.load %arg14[%c1_181, %c0_182, %c0_183] : memref<9x64x4xbf16, #tpu.memory_space<vmem>>, vector<1x64x4xbf16>
    %433 = vector.shape_cast %432 : vector<1x64x4xbf16> to vector<64x4xbf16>
    %cst_184 = arith.constant dense<0.000000e+00> : vector<200x4xf32>
    %434 = tpu.matmul %431, %433, %cst_184 {dimension_numbers = #tpu.dot_dimension_numbers<[1], [0], [0], [1], [0, 0, 1, 1], [], []>} : vector<200x64xbf16>, vector<64x4xbf16>, vector<200x4xf32> -> vector<200x4xf32>
    %435 = arith.addf %429, %434 : vector<200x4xf32>
    %c2_185 = arith.constant 2 : index
    %c0_186 = arith.constant 0 : index
    %436 = vector.load %arg21[%c2_185, %c0_186] : memref<222x64xf32, #tpu.memory_space<vmem>>, vector<200x64xf32>
    %437 = arith.truncf %436 : vector<200x64xf32> to vector<200x64xbf16>
    %c2_187 = arith.constant 2 : index
    %c0_188 = arith.constant 0 : index
    %c0_189 = arith.constant 0 : index
    %438 = vector.load %arg14[%c2_187, %c0_188, %c0_189] : memref<9x64x4xbf16, #tpu.memory_space<vmem>>, vector<1x64x4xbf16>
    %439 = vector.shape_cast %438 : vector<1x64x4xbf16> to vector<64x4xbf16>
    %cst_190 = arith.constant dense<0.000000e+00> : vector<200x4xf32>
    %440 = tpu.matmul %437, %439, %cst_190 {dimension_numbers = #tpu.dot_dimension_numbers<[1], [0], [0], [1], [0, 0, 1, 1], [], []>} : vector<200x64xbf16>, vector<64x4xbf16>, vector<200x4xf32> -> vector<200x4xf32>
    %441 = arith.addf %435, %440 : vector<200x4xf32>
    %c10_191 = arith.constant 10 : index
    %c0_192 = arith.constant 0 : index
    %442 = vector.load %arg21[%c10_191, %c0_192] : memref<222x64xf32, #tpu.memory_space<vmem>>, vector<200x64xf32>
    %443 = arith.truncf %442 : vector<200x64xf32> to vector<200x64xbf16>
    %c3_193 = arith.constant 3 : index
    %c0_194 = arith.constant 0 : index
    %c0_195 = arith.constant 0 : index
    %444 = vector.load %arg14[%c3_193, %c0_194, %c0_195] : memref<9x64x4xbf16, #tpu.memory_space<vmem>>, vector<1x64x4xbf16>
    %445 = vector.shape_cast %444 : vector<1x64x4xbf16> to vector<64x4xbf16>
    %cst_196 = arith.constant dense<0.000000e+00> : vector<200x4xf32>
    %446 = tpu.matmul %443, %445, %cst_196 {dimension_numbers = #tpu.dot_dimension_numbers<[1], [0], [0], [1], [0, 0, 1, 1], [], []>} : vector<200x64xbf16>, vector<64x4xbf16>, vector<200x4xf32> -> vector<200x4xf32>
    %447 = arith.addf %441, %446 : vector<200x4xf32>
    %c11_197 = arith.constant 11 : index
    %c0_198 = arith.constant 0 : index
    %448 = vector.load %arg21[%c11_197, %c0_198] : memref<222x64xf32, #tpu.memory_space<vmem>>, vector<200x64xf32>
    %449 = arith.truncf %448 : vector<200x64xf32> to vector<200x64xbf16>
    %c4_199 = arith.constant 4 : index
    %c0_200 = arith.constant 0 : index
    %c0_201 = arith.constant 0 : index
    %450 = vector.load %arg14[%c4_199, %c0_200, %c0_201] : memref<9x64x4xbf16, #tpu.memory_space<vmem>>, vector<1x64x4xbf16>
    %451 = vector.shape_cast %450 : vector<1x64x4xbf16> to vector<64x4xbf16>
    %cst_202 = arith.constant dense<0.000000e+00> : vector<200x4xf32>
    %452 = tpu.matmul %449, %451, %cst_202 {dimension_numbers = #tpu.dot_dimension_numbers<[1], [0], [0], [1], [0, 0, 1, 1], [], []>} : vector<200x64xbf16>, vector<64x4xbf16>, vector<200x4xf32> -> vector<200x4xf32>
    %453 = arith.addf %447, %452 : vector<200x4xf32>
    %c12_203 = arith.constant 12 : index
    %c0_204 = arith.constant 0 : index
    %454 = vector.load %arg21[%c12_203, %c0_204] : memref<222x64xf32, #tpu.memory_space<vmem>>, vector<200x64xf32>
    %455 = arith.truncf %454 : vector<200x64xf32> to vector<200x64xbf16>
    %c5_205 = arith.constant 5 : index
    %c0_206 = arith.constant 0 : index
    %c0_207 = arith.constant 0 : index
    %456 = vector.load %arg14[%c5_205, %c0_206, %c0_207] : memref<9x64x4xbf16, #tpu.memory_space<vmem>>, vector<1x64x4xbf16>
    %457 = vector.shape_cast %456 : vector<1x64x4xbf16> to vector<64x4xbf16>
    %cst_208 = arith.constant dense<0.000000e+00> : vector<200x4xf32>
    %458 = tpu.matmul %455, %457, %cst_208 {dimension_numbers = #tpu.dot_dimension_numbers<[1], [0], [0], [1], [0, 0, 1, 1], [], []>} : vector<200x64xbf16>, vector<64x4xbf16>, vector<200x4xf32> -> vector<200x4xf32>
    %459 = arith.addf %453, %458 : vector<200x4xf32>
    %c20_209 = arith.constant 20 : index
    %c0_210 = arith.constant 0 : index
    %460 = vector.load %arg21[%c20_209, %c0_210] : memref<222x64xf32, #tpu.memory_space<vmem>>, vector<200x64xf32>
    %461 = arith.truncf %460 : vector<200x64xf32> to vector<200x64xbf16>
    %c6_211 = arith.constant 6 : index
    %c0_212 = arith.constant 0 : index
    %c0_213 = arith.constant 0 : index
    %462 = vector.load %arg14[%c6_211, %c0_212, %c0_213] : memref<9x64x4xbf16, #tpu.memory_space<vmem>>, vector<1x64x4xbf16>
    %463 = vector.shape_cast %462 : vector<1x64x4xbf16> to vector<64x4xbf16>
    %cst_214 = arith.constant dense<0.000000e+00> : vector<200x4xf32>
    %464 = tpu.matmul %461, %463, %cst_214 {dimension_numbers = #tpu.dot_dimension_numbers<[1], [0], [0], [1], [0, 0, 1, 1], [], []>} : vector<200x64xbf16>, vector<64x4xbf16>, vector<200x4xf32> -> vector<200x4xf32>
    %465 = arith.addf %459, %464 : vector<200x4xf32>
    %c21_215 = arith.constant 21 : index
    %c0_216 = arith.constant 0 : index
    %466 = vector.load %arg21[%c21_215, %c0_216] : memref<222x64xf32, #tpu.memory_space<vmem>>, vector<200x64xf32>
    %467 = arith.truncf %466 : vector<200x64xf32> to vector<200x64xbf16>
    %c7_217 = arith.constant 7 : index
    %c0_218 = arith.constant 0 : index
    %c0_219 = arith.constant 0 : index
    %468 = vector.load %arg14[%c7_217, %c0_218, %c0_219] : memref<9x64x4xbf16, #tpu.memory_space<vmem>>, vector<1x64x4xbf16>
    %469 = vector.shape_cast %468 : vector<1x64x4xbf16> to vector<64x4xbf16>
    %cst_220 = arith.constant dense<0.000000e+00> : vector<200x4xf32>
    %470 = tpu.matmul %467, %469, %cst_220 {dimension_numbers = #tpu.dot_dimension_numbers<[1], [0], [0], [1], [0, 0, 1, 1], [], []>} : vector<200x64xbf16>, vector<64x4xbf16>, vector<200x4xf32> -> vector<200x4xf32>
    %471 = arith.addf %465, %470 : vector<200x4xf32>
    %c22_221 = arith.constant 22 : index
    %c0_222 = arith.constant 0 : index
    %472 = vector.load %arg21[%c22_221, %c0_222] : memref<222x64xf32, #tpu.memory_space<vmem>>, vector<200x64xf32>
    %473 = arith.truncf %472 : vector<200x64xf32> to vector<200x64xbf16>
    %c8_223 = arith.constant 8 : index
    %c0_224 = arith.constant 0 : index
    %c0_225 = arith.constant 0 : index
    %474 = vector.load %arg14[%c8_223, %c0_224, %c0_225] : memref<9x64x4xbf16, #tpu.memory_space<vmem>>, vector<1x64x4xbf16>
    %475 = vector.shape_cast %474 : vector<1x64x4xbf16> to vector<64x4xbf16>
    %cst_226 = arith.constant dense<0.000000e+00> : vector<200x4xf32>
    %476 = tpu.matmul %473, %475, %cst_226 {dimension_numbers = #tpu.dot_dimension_numbers<[1], [0], [0], [1], [0, 0, 1, 1], [], []>} : vector<200x64xbf16>, vector<64x4xbf16>, vector<200x4xf32> -> vector<200x4xf32>
    %477 = arith.addf %471, %476 : vector<200x4xf32>
    %c0_227 = arith.constant 0 : index
    %c0_228 = arith.constant 0 : index
    %478 = vector.load %arg15[%c0_227, %c0_228] : memref<1x4xf32, #tpu.memory_space<vmem>>, vector<1x4xf32>
    %479 = vector.broadcast %478 : vector<1x4xf32> to vector<200x4xf32>
    %480 = arith.addf %477, %479 : vector<200x4xf32>
    %481 = vector.extract_strided_slice %480 {offsets = [11, 0], sizes = [8, 4], strides = [1, 1]} : vector<200x4xf32> to vector<8x4xf32>
    %c0_229 = arith.constant 0 : index
    %c0_230 = arith.constant 0 : index
    %482 = vector.load %arg18[%c0_229, %c0_230] : memref<128x4xf32, #tpu.memory_space<vmem>>, vector<8x4xf32>
    tpu.vector_store %arg18[%c0_229, %c0_230], %481 {strides = array<i32>} : memref<128x4xf32, #tpu.memory_space<vmem>>, vector<8x4xf32>,
    %483 = vector.extract_strided_slice %480 {offsets = [21, 0], sizes = [8, 4], strides = [1, 1]} : vector<200x4xf32> to vector<8x4xf32>
    %c8_231 = arith.constant 8 : index
    %c0_232 = arith.constant 0 : index
    %484 = vector.load %arg18[%c8_231, %c0_232] : memref<128x4xf32, #tpu.memory_space<vmem>>, vector<8x4xf32>
    tpu.vector_store %arg18[%c8_231, %c0_232], %483 {strides = array<i32>} : memref<128x4xf32, #tpu.memory_space<vmem>>, vector<8x4xf32>,
    %485 = vector.extract_strided_slice %480 {offsets = [31, 0], sizes = [8, 4], strides = [1, 1]} : vector<200x4xf32> to vector<8x4xf32>
    %c16 = arith.constant 16 : index
    %c0_233 = arith.constant 0 : index
    %486 = vector.load %arg18[%c16, %c0_233] : memref<128x4xf32, #tpu.memory_space<vmem>>, vector<8x4xf32>
    tpu.vector_store %arg18[%c16, %c0_233], %485 {strides = array<i32>} : memref<128x4xf32, #tpu.memory_space<vmem>>, vector<8x4xf32>,
    %487 = vector.extract_strided_slice %480 {offsets = [41, 0], sizes = [8, 4], strides = [1, 1]} : vector<200x4xf32> to vector<8x4xf32>
    %c24 = arith.constant 24 : index
    %c0_234 = arith.constant 0 : index
    %488 = vector.load %arg18[%c24, %c0_234] : memref<128x4xf32, #tpu.memory_space<vmem>>, vector<8x4xf32>
    tpu.vector_store %arg18[%c24, %c0_234], %487 {strides = array<i32>} : memref<128x4xf32, #tpu.memory_space<vmem>>, vector<8x4xf32>,
    %489 = vector.extract_strided_slice %480 {offsets = [51, 0], sizes = [8, 4], strides = [1, 1]} : vector<200x4xf32> to vector<8x4xf32>
    %c32 = arith.constant 32 : index
    %c0_235 = arith.constant 0 : index
    %490 = vector.load %arg18[%c32, %c0_235] : memref<128x4xf32, #tpu.memory_space<vmem>>, vector<8x4xf32>
    tpu.vector_store %arg18[%c32, %c0_235], %489 {strides = array<i32>} : memref<128x4xf32, #tpu.memory_space<vmem>>, vector<8x4xf32>,
    %491 = vector.extract_strided_slice %480 {offsets = [61, 0], sizes = [8, 4], strides = [1, 1]} : vector<200x4xf32> to vector<8x4xf32>
    %c40 = arith.constant 40 : index
    %c0_236 = arith.constant 0 : index
    %492 = vector.load %arg18[%c40, %c0_236] : memref<128x4xf32, #tpu.memory_space<vmem>>, vector<8x4xf32>
    tpu.vector_store %arg18[%c40, %c0_236], %491 {strides = array<i32>} : memref<128x4xf32, #tpu.memory_space<vmem>>, vector<8x4xf32>,
    %493 = vector.extract_strided_slice %480 {offsets = [71, 0], sizes = [8, 4], strides = [1, 1]} : vector<200x4xf32> to vector<8x4xf32>
    %c48 = arith.constant 48 : index
    %c0_237 = arith.constant 0 : index
    %494 = vector.load %arg18[%c48, %c0_237] : memref<128x4xf32, #tpu.memory_space<vmem>>, vector<8x4xf32>
    tpu.vector_store %arg18[%c48, %c0_237], %493 {strides = array<i32>} : memref<128x4xf32, #tpu.memory_space<vmem>>, vector<8x4xf32>,
    %495 = vector.extract_strided_slice %480 {offsets = [81, 0], sizes = [8, 4], strides = [1, 1]} : vector<200x4xf32> to vector<8x4xf32>
    %c56 = arith.constant 56 : index
    %c0_238 = arith.constant 0 : index
    %496 = vector.load %arg18[%c56, %c0_238] : memref<128x4xf32, #tpu.memory_space<vmem>>, vector<8x4xf32>
    tpu.vector_store %arg18[%c56, %c0_238], %495 {strides = array<i32>} : memref<128x4xf32, #tpu.memory_space<vmem>>, vector<8x4xf32>,
    %497 = vector.extract_strided_slice %480 {offsets = [111, 0], sizes = [8, 4], strides = [1, 1]} : vector<200x4xf32> to vector<8x4xf32>
    %c64 = arith.constant 64 : index
    %c0_239 = arith.constant 0 : index
    %498 = vector.load %arg18[%c64, %c0_239] : memref<128x4xf32, #tpu.memory_space<vmem>>, vector<8x4xf32>
    tpu.vector_store %arg18[%c64, %c0_239], %497 {strides = array<i32>} : memref<128x4xf32, #tpu.memory_space<vmem>>, vector<8x4xf32>,
    %499 = vector.extract_strided_slice %480 {offsets = [121, 0], sizes = [8, 4], strides = [1, 1]} : vector<200x4xf32> to vector<8x4xf32>
    %c72 = arith.constant 72 : index
    %c0_240 = arith.constant 0 : index
    %500 = vector.load %arg18[%c72, %c0_240] : memref<128x4xf32, #tpu.memory_space<vmem>>, vector<8x4xf32>
    tpu.vector_store %arg18[%c72, %c0_240], %499 {strides = array<i32>} : memref<128x4xf32, #tpu.memory_space<vmem>>, vector<8x4xf32>,
    %501 = vector.extract_strided_slice %480 {offsets = [131, 0], sizes = [8, 4], strides = [1, 1]} : vector<200x4xf32> to vector<8x4xf32>
    %c80 = arith.constant 80 : index
    %c0_241 = arith.constant 0 : index
    %502 = vector.load %arg18[%c80, %c0_241] : memref<128x4xf32, #tpu.memory_space<vmem>>, vector<8x4xf32>
    tpu.vector_store %arg18[%c80, %c0_241], %501 {strides = array<i32>} : memref<128x4xf32, #tpu.memory_space<vmem>>, vector<8x4xf32>,
    %503 = vector.extract_strided_slice %480 {offsets = [141, 0], sizes = [8, 4], strides = [1, 1]} : vector<200x4xf32> to vector<8x4xf32>
    %c88 = arith.constant 88 : index
    %c0_242 = arith.constant 0 : index
    %504 = vector.load %arg18[%c88, %c0_242] : memref<128x4xf32, #tpu.memory_space<vmem>>, vector<8x4xf32>
    tpu.vector_store %arg18[%c88, %c0_242], %503 {strides = array<i32>} : memref<128x4xf32, #tpu.memory_space<vmem>>, vector<8x4xf32>,
    %505 = vector.extract_strided_slice %480 {offsets = [151, 0], sizes = [8, 4], strides = [1, 1]} : vector<200x4xf32> to vector<8x4xf32>
    %c96 = arith.constant 96 : index
    %c0_243 = arith.constant 0 : index
    %506 = vector.load %arg18[%c96, %c0_243] : memref<128x4xf32, #tpu.memory_space<vmem>>, vector<8x4xf32>
    tpu.vector_store %arg18[%c96, %c0_243], %505 {strides = array<i32>} : memref<128x4xf32, #tpu.memory_space<vmem>>, vector<8x4xf32>,
    %507 = vector.extract_strided_slice %480 {offsets = [161, 0], sizes = [8, 4], strides = [1, 1]} : vector<200x4xf32> to vector<8x4xf32>
    %c104 = arith.constant 104 : index
    %c0_244 = arith.constant 0 : index
    %508 = vector.load %arg18[%c104, %c0_244] : memref<128x4xf32, #tpu.memory_space<vmem>>, vector<8x4xf32>
    tpu.vector_store %arg18[%c104, %c0_244], %507 {strides = array<i32>} : memref<128x4xf32, #tpu.memory_space<vmem>>, vector<8x4xf32>,
    %509 = vector.extract_strided_slice %480 {offsets = [171, 0], sizes = [8, 4], strides = [1, 1]} : vector<200x4xf32> to vector<8x4xf32>
    %c112 = arith.constant 112 : index
    %c0_245 = arith.constant 0 : index
    %510 = vector.load %arg18[%c112, %c0_245] : memref<128x4xf32, #tpu.memory_space<vmem>>, vector<8x4xf32>
    tpu.vector_store %arg18[%c112, %c0_245], %509 {strides = array<i32>} : memref<128x4xf32, #tpu.memory_space<vmem>>, vector<8x4xf32>,
    %511 = vector.extract_strided_slice %480 {offsets = [181, 0], sizes = [8, 4], strides = [1, 1]} : vector<200x4xf32> to vector<8x4xf32>
    %c120 = arith.constant 120 : index
    %c0_246 = arith.constant 0 : index
    %512 = vector.load %arg18[%c120, %c0_246] : memref<128x4xf32, #tpu.memory_space<vmem>>, vector<8x4xf32>
    tpu.vector_store %arg18[%c120, %c0_246], %511 {strides = array<i32>} : memref<128x4xf32, #tpu.memory_space<vmem>>, vector<8x4xf32>,
    return
  }
}

module attributes {stable_mosaic.version = 11 : i64} {
  func.func @_fc_tanh_kernel(%arg0: memref<2x256xf32, #tpu.memory_space<vmem>>, %arg1: memref<256x1024xbf16, #tpu.memory_space<vmem>>, %arg2: memref<1x1024xf32, #tpu.memory_space<vmem>>, %arg3: memref<2x1024xf32, #tpu.memory_space<vmem>>) attributes {dimension_semantics = [], scalar_prefetch = 0 : i64, scratch_operands = 0 : i64, tpu.core_type = #tpu.core_type<tc>} {
    %c0 = arith.constant 0 : index
    %c0_0 = arith.constant 0 : index
    %0 = vector.load %arg0[%c0, %c0_0] : memref<2x256xf32, #tpu.memory_space<vmem>>, vector<2x256xf32>
    %1 = arith.truncf %0 : vector<2x256xf32> to vector<2x256xbf16>
    %c0_1 = arith.constant 0 : index
    %c0_2 = arith.constant 0 : index
    %2 = vector.load %arg1[%c0_1, %c0_2] : memref<256x1024xbf16, #tpu.memory_space<vmem>>, vector<256x1024xbf16>
    %cst = arith.constant dense<0.000000e+00> : vector<2x1024xf32>
    %3 = tpu.matmul %1, %2, %cst {dimension_numbers = #tpu.dot_dimension_numbers<[1], [0], [0], [1], [0, 0, 1, 1], [], []>} : vector<2x256xbf16>, vector<256x1024xbf16>, vector<2x1024xf32> -> vector<2x1024xf32>
    %c0_3 = arith.constant 0 : index
    %c0_4 = arith.constant 0 : index
    %4 = vector.load %arg2[%c0_3, %c0_4] : memref<1x1024xf32, #tpu.memory_space<vmem>>, vector<1x1024xf32>
    %5 = vector.broadcast %4 : vector<1x1024xf32> to vector<2x1024xf32>
    %6 = arith.addf %3, %5 : vector<2x1024xf32>
    %7 = math.tanh %6 : vector<2x1024xf32>
    %c0_5 = arith.constant 0 : index
    %c0_6 = arith.constant 0 : index
    %8 = vector.load %arg3[%c0_5, %c0_6] : memref<2x1024xf32, #tpu.memory_space<vmem>>, vector<2x1024xf32>
    tpu.vector_store %arg3[%c0_5, %c0_6], %7 {strides = array<i32>} : memref<2x1024xf32, #tpu.memory_space<vmem>>, vector<2x1024xf32>,
    return
  }
}

</mosaic_0001>

<llo_original>
// kernel: generator_forward.3
$region0: #{generator_forward.3}
  #allocation0 [shape = 'u32[]', space=smem, size = 0x4, offset = 0x4, fixed_abs, tag = 'smem constant byte address 0x4 - core index']
  #allocation1 [shape = 'u32[72,128]{1,0:T(1,128)}', space=vmem, size = 0x9000, scoped, tag = 'internal scratch']
  %s0 = inlined_call_operand.vmem [shape: f32[2,256], index: 0, kind: input, shape index: {}]
  %s1 = inlined_call_operand.vmem [shape: bf16[256,1024], index: 1, kind: input, shape index: {}]
  %s2 = inlined_call_operand.vmem [shape: f32[1,1024], index: 2, kind: input, shape index: {}]
  %s3 = inlined_call_operand.vmem [shape: f32[2,1024], index: 3, kind: output, shape index: {}]
  %s4 = sld [smem:[#allocation0]]
  $region22: #{generator_forward.3} parent=0
    _
  %s6 = ssub.s32 1, %s4
  %s7 = scalar_select 0, %s6, %s4
  // Predicated region
  $region2: #{generator_forward.3} parent=0 // pred_check
    _
  $region3: #{generator_forward.3} parent=0 // pred_check_branch
    %9 = sbr.rel (0) target = $region5
  $region4: #{generator_forward.3} parent=0 // pred_region
    _
  $region5: #{generator_forward.3} parent=0 // pred_fallthru
    _
  // Predicated region
  $region6: #{generator_forward.3} parent=0 // pred_check
    _
  $region7: #{generator_forward.3} parent=0 // pred_check_branch
    %11 = sbr.rel (0) target = $region9
  $region8: #{generator_forward.3} parent=0 // pred_region
    _
  $region9: #{generator_forward.3} parent=0 // pred_fallthru
    _
  // Predicated region
  $region10: #{generator_forward.3} parent=0 // pred_check
    _
  $region11: #{generator_forward.3} parent=0 // pred_check_branch
    %13 = sbr.rel (0) target = $region13
  $region12: #{generator_forward.3} parent=0 // pred_region
    _
  $region13: #{generator_forward.3} parent=0 // pred_fallthru
    _
  %v14 = vld [vmem:[%s0] sm:$0xf]
  %16 = vst [vmem:[#allocation1] ss:$4 sm:$0xff] %v14
  %v17 = vld.sshfl [vmem:[#allocation1] sm:$0xff pattern:$0x73625140]
  %v18 = vld.sshfl [vmem:[#allocation1 + $0x8] sm:$0xff pattern:$0x73625140]
  %v21 = vpack.c.bf16 %v17, %v17
  %v22 = vpack.c.bf16 %v18, %v18
  %v23 = vld [vmem:[%s1] sm:$0xff]
  %v24 = vld [vmem:[%s1 + $0x8] sm:$0xff]
  %v25 = vld [vmem:[%s1 + $0x10] sm:$0xff]
  %v26 = vld [vmem:[%s1 + $0x18] sm:$0xff]
  %v27 = vld [vmem:[%s1 + $0x20] sm:$0xff]
  %v28 = vld [vmem:[%s1 + $0x28] sm:$0xff]
  %v29 = vld [vmem:[%s1 + $0x30] sm:$0xff]
  %v30 = vld [vmem:[%s1 + $0x38] sm:$0xff]
  %v31 = vld [vmem:[%s1 + $0x40] sm:$0xff]
  %v32 = vld [vmem:[%s1 + $0x48] sm:$0xff]
  %v33 = vld [vmem:[%s1 + $0x50] sm:$0xff]
  %v34 = vld [vmem:[%s1 + $0x58] sm:$0xff]
  %v35 = vld [vmem:[%s1 + $0x60] sm:$0xff]
  %v36 = vld [vmem:[%s1 + $0x68] sm:$0xff]
  %v37 = vld [vmem:[%s1 + $0x70] sm:$0xff]
  %v38 = vld [vmem:[%s1 + $0x78] sm:$0xff]
  %v39 = vld [vmem:[%s1 + $0x80] sm:$0xff]
  %v40 = vld [vmem:[%s1 + $0x88] sm:$0xff]
  %v41 = vld [vmem:[%s1 + $0x90] sm:$0xff]
  %v42 = vld [vmem:[%s1 + $0x98] sm:$0xff]
  %v43 = vld [vmem:[%s1 + $0xa0] sm:$0xff]
  %v44 = vld [vmem:[%s1 + $0xa8] sm:$0xff]
  %v45 = vld [vmem:[%s1 + $0xb0] sm:$0xff]
  %v46 = vld [vmem:[%s1 + $0xb8] sm:$0xff]
  %v47 = vld [vmem:[%s1 + $0xc0] sm:$0xff]
  %v48 = vld [vmem:[%s1 + $0xc8] sm:$0xff]
  %v49 = vld [vmem:[%s1 + $0xd0] sm:$0xff]
  %v50 = vld [vmem:[%s1 + $0xd8] sm:$0xff]
  %v51 = vld [vmem:[%s1 + $0xe0] sm:$0xff]
  %v52 = vld [vmem:[%s1 + $0xe8] sm:$0xff]
  %v53 = vld [vmem:[%s1 + $0xf0] sm:$0xff]
  %v54 = vld [vmem:[%s1 + $0xf8] sm:$0xff]
  %v55 = vld [vmem:[%s1 + $0x100] sm:$0xff]
  %v56 = vld [vmem:[%s1 + $0x108] sm:$0xff]
  %v57 = vld [vmem:[%s1 + $0x110] sm:$0xff]
  %v58 = vld [vmem:[%s1 + $0x118] sm:$0xff]
  %v59 = vld [vmem:[%s1 + $0x120] sm:$0xff]
  %v60 = vld [vmem:[%s1 + $0x128] sm:$0xff]
  %v61 = vld [vmem:[%s1 + $0x130] sm:$0xff]
  %v62 = vld [vmem:[%s1 + $0x138] sm:$0xff]
  %v63 = vld [vmem:[%s1 + $0x140] sm:$0xff]
  %v64 = vld [vmem:[%s1 + $0x148] sm:$0xff]
  %v65 = vld [vmem:[%s1 + $0x150] sm:$0xff]
  %v66 = vld [vmem:[%s1 + $0x158] sm:$0xff]
  %v67 = vld [vmem:[%s1 + $0x160] sm:$0xff]
  %v68 = vld [vmem:[%s1 + $0x168] sm:$0xff]
  %v69 = vld [vmem:[%s1 + $0x170] sm:$0xff]
  %v70 = vld [vmem:[%s1 + $0x178] sm:$0xff]
  %v71 = vld [vmem:[%s1 + $0x180] sm:$0xff]
  %v72 = vld [vmem:[%s1 + $0x188] sm:$0xff]
  %v73 = vld [vmem:[%s1 + $0x190] sm:$0xff]
  %v74 = vld [vmem:[%s1 + $0x198] sm:$0xff]
  %v75 = vld [vmem:[%s1 + $0x1a0] sm:$0xff]
  %v76 = vld [vmem:[%s1 + $0x1a8] sm:$0xff]
  %v77 = vld [vmem:[%s1 + $0x1b0] sm:$0xff]
  %v78 = vld [vmem:[%s1 + $0x1b8] sm:$0xff]
  %v79 = vld [vmem:[%s1 + $0x1c0] sm:$0xff]
  %v80 = vld [vmem:[%s1 + $0x1c8] sm:$0xff]
  %v81 = vld [vmem:[%s1 + $0x1d0] sm:$0xff]
  %v82 = vld [vmem:[%s1 + $0x1d8] sm:$0xff]
  %v83 = vld [vmem:[%s1 + $0x1e0] sm:$0xff]
  %v84 = vld [vmem:[%s1 + $0x1e8] sm:$0xff]
  %v85 = vld [vmem:[%s1 + $0x1f0] sm:$0xff]
  %v86 = vld [vmem:[%s1 + $0x1f8] sm:$0xff]
  %v87 = vld [vmem:[%s1 + $0x200] sm:$0xff]
  %v88 = vld [vmem:[%s1 + $0x208] sm:$0xff]
  %v89 = vld [vmem:[%s1 + $0x210] sm:$0xff]
  %v90 = vld [vmem:[%s1 + $0x218] sm:$0xff]
  %v91 = vld [vmem:[%s1 + $0x220] sm:$0xff]
  %v92 = vld [vmem:[%s1 + $0x228] sm:$0xff]
  %v93 = vld [vmem:[%s1 + $0x230] sm:$0xff]
  %v94 = vld [vmem:[%s1 + $0x238] sm:$0xff]
  %v95 = vld [vmem:[%s1 + $0x240] sm:$0xff]
  %v96 = vld [vmem:[%s1 + $0x248] sm:$0xff]
  %v97 = vld [vmem:[%s1 + $0x250] sm:$0xff]
  %v98 = vld [vmem:[%s1 + $0x258] sm:$0xff]
  %v99 = vld [vmem:[%s1 + $0x260] sm:$0xff]
  %v100 = vld [vmem:[%s1 + $0x268] sm:$0xff]
  %v101 = vld [vmem:[%s1 + $0x270] sm:$0xff]
  %v102 = vld [vmem:[%s1 + $0x278] sm:$0xff]
  %v103 = vld [vmem:[%s1 + $0x280] sm:$0xff]
  %v104 = vld [vmem:[%s1 + $0x288] sm:$0xff]
  %v105 = vld [vmem:[%s1 + $0x290] sm:$0xff]
  %v106 = vld [vmem:[%s1 + $0x298] sm:$0xff]
  %v107 = vld [vmem:[%s1 + $0x2a0] sm:$0xff]
  %v108 = vld [vmem:[%s1 + $0x2a8] sm:$0xff]
  %v109 = vld [vmem:[%s1 + $0x2b0] sm:$0xff]
  %v110 = vld [vmem:[%s1 + $0x2b8] sm:$0xff]
  %v111 = vld [vmem:[%s1 + $0x2c0] sm:$0xff]
  %v112 = vld [vmem:[%s1 + $0x2c8] sm:$0xff]
  %v113 = vld [vmem:[%s1 + $0x2d0] sm:$0xff]
  %v114 = vld [vmem:[%s1 + $0x2d8] sm:$0xff]
  %v115 = vld [vmem:[%s1 + $0x2e0] sm:$0xff]
  %v116 = vld [vmem:[%s1 + $0x2e8] sm:$0xff]
  %v117 = vld [vmem:[%s1 + $0x2f0] sm:$0xff]
  %v118 = vld [vmem:[%s1 + $0x2f8] sm:$0xff]
  %v119 = vld [vmem:[%s1 + $0x300] sm:$0xff]
  %v120 = vld [vmem:[%s1 + $0x308] sm:$0xff]
  %v121 = vld [vmem:[%s1 + $0x310] sm:$0xff]
  %v122 = vld [vmem:[%s1 + $0x318] sm:$0xff]
  %v123 = vld [vmem:[%s1 + $0x320] sm:$0xff]
  %v124 = vld [vmem:[%s1 + $0x328] sm:$0xff]
  %v125 = vld [vmem:[%s1 + $0x330] sm:$0xff]
  %v126 = vld [vmem:[%s1 + $0x338] sm:$0xff]
  %v127 = vld [vmem:[%s1 + $0x340] sm:$0xff]
  %v128 = vld [vmem:[%s1 + $0x348] sm:$0xff]
  %v129 = vld [vmem:[%s1 + $0x350] sm:$0xff]
  %v130 = vld [vmem:[%s1 + $0x358] sm:$0xff]
  %v131 = vld [vmem:[%s1 + $0x360] sm:$0xff]
  %v132 = vld [vmem:[%s1 + $0x368] sm:$0xff]
  %v133 = vld [vmem:[%s1 + $0x370] sm:$0xff]
  %v134 = vld [vmem:[%s1 + $0x378] sm:$0xff]
  %v135 = vld [vmem:[%s1 + $0x380] sm:$0xff]
  %v136 = vld [vmem:[%s1 + $0x388] sm:$0xff]
  %v137 = vld [vmem:[%s1 + $0x390] sm:$0xff]
  %v138 = vld [vmem:[%s1 + $0x398] sm:$0xff]
  %v139 = vld [vmem:[%s1 + $0x3a0] sm:$0xff]
  %v140 = vld [vmem:[%s1 + $0x3a8] sm:$0xff]
  %v141 = vld [vmem:[%s1 + $0x3b0] sm:$0xff]
  %v142 = vld [vmem:[%s1 + $0x3b8] sm:$0xff]
  %v143 = vld [vmem:[%s1 + $0x3c0] sm:$0xff]
  %v144 = vld [vmem:[%s1 + $0x3c8] sm:$0xff]
  %v145 = vld [vmem:[%s1 + $0x3d0] sm:$0xff]
  %v146 = vld [vmem:[%s1 + $0x3d8] sm:$0xff]
  %v147 = vld [vmem:[%s1 + $0x3e0] sm:$0xff]
  %v148 = vld [vmem:[%s1 + $0x3e8] sm:$0xff]
  %v149 = vld [vmem:[%s1 + $0x3f0] sm:$0xff]
  %v150 = vld [vmem:[%s1 + $0x3f8] sm:$0xff]
  %v151 = vld [vmem:[%s2] sm:$0xff]
  %v153 = vperm.slane %v151, 0
  %v154 = vperm.slane %v151, 1
  %v155 = vperm.slane %v151, 2
  %v156 = vperm.slane %v151, 3
  %v157 = vperm.slane %v151, 4
  %v158 = vperm.slane %v151, 5
  %v159 = vperm.slane %v151, 6
  %v160 = vperm.slane %v151, 7
  %v297 = vunpack.c.l.b16 %v23
  %v298 = vunpack.c.h.b16 %v23
  %v299 = vunpack.c.l.b16 %v24
  %v300 = vunpack.c.h.b16 %v24
  %v301 = vunpack.c.l.b16 %v25
  %v302 = vunpack.c.h.b16 %v25
  %v303 = vunpack.c.l.b16 %v26
  %v304 = vunpack.c.h.b16 %v26
  %v305 = vunpack.c.l.b16 %v27
  %v306 = vunpack.c.h.b16 %v27
  %v307 = vunpack.c.l.b16 %v28
  %v308 = vunpack.c.h.b16 %v28
  %v309 = vunpack.c.l.b16 %v29
  %v310 = vunpack.c.h.b16 %v29
  %v311 = vunpack.c.l.b16 %v30
  %v312 = vunpack.c.h.b16 %v30
  %v313 = vunpack.c.l.b16 %v31
  %v314 = vunpack.c.h.b16 %v31
  %v315 = vunpack.c.l.b16 %v32
  %v316 = vunpack.c.h.b16 %v32
  %v317 = vunpack.c.l.b16 %v33
  %v318 = vunpack.c.h.b16 %v33
  %v319 = vunpack.c.l.b16 %v34
  %v320 = vunpack.c.h.b16 %v34
  %v321 = vunpack.c.l.b16 %v35
  %v322 = vunpack.c.h.b16 %v35
  %v323 = vunpack.c.l.b16 %v36
  %v324 = vunpack.c.h.b16 %v36
  %v325 = vunpack.c.l.b16 %v37
  %v326 = vunpack.c.h.b16 %v37
  %v327 = vunpack.c.l.b16 %v38
  %v328 = vunpack.c.h.b16 %v38
  %v329 = vunpack.c.l.b16 %v39
  %v330 = vunpack.c.h.b16 %v39
  %v331 = vunpack.c.l.b16 %v40
  %v332 = vunpack.c.h.b16 %v40
  %v333 = vunpack.c.l.b16 %v41
  %v334 = vunpack.c.h.b16 %v41
  %v335 = vunpack.c.l.b16 %v42
  %v336 = vunpack.c.h.b16 %v42
  %v337 = vunpack.c.l.b16 %v43
  %v338 = vunpack.c.h.b16 %v43
  %v339 = vunpack.c.l.b16 %v44
  %v340 = vunpack.c.h.b16 %v44
  %v341 = vunpack.c.l.b16 %v45
  %v342 = vunpack.c.h.b16 %v45
  %v343 = vunpack.c.l.b16 %v46
  %v344 = vunpack.c.h.b16 %v46
  %v345 = vunpack.c.l.b16 %v47
  %v346 = vunpack.c.h.b16 %v47
  %v347 = vunpack.c.l.b16 %v48
  %v348 = vunpack.c.h.b16 %v48
  %v349 = vunpack.c.l.b16 %v49
  %v350 = vunpack.c.h.b16 %v49
  %v351 = vunpack.c.l.b16 %v50
  %v352 = vunpack.c.h.b16 %v50
  %v353 = vunpack.c.l.b16 %v51
  %v354 = vunpack.c.h.b16 %v51
  %v355 = vunpack.c.l.b16 %v52
  %v356 = vunpack.c.h.b16 %v52
  %v357 = vunpack.c.l.b16 %v53
  %v358 = vunpack.c.h.b16 %v53
  %v359 = vunpack.c.l.b16 %v54
  %v360 = vunpack.c.h.b16 %v54
  %v361 = vunpack.c.l.b16 %v55
  %v362 = vunpack.c.h.b16 %v55
  %v363 = vunpack.c.l.b16 %v56
  %v364 = vunpack.c.h.b16 %v56
  %v365 = vunpack.c.l.b16 %v57
  %v366 = vunpack.c.h.b16 %v57
  %v367 = vunpack.c.l.b16 %v58
  %v368 = vunpack.c.h.b16 %v58
  %v369 = vunpack.c.l.b16 %v59
  %v370 = vunpack.c.h.b16 %v59
  %v371 = vunpack.c.l.b16 %v60
  %v372 = vunpack.c.h.b16 %v60
  %v373 = vunpack.c.l.b16 %v61
  %v374 = vunpack.c.h.b16 %v61
  %v375 = vunpack.c.l.b16 %v62
  %v376 = vunpack.c.h.b16 %v62
  %v377 = vunpack.c.l.b16 %v63
  %v378 = vunpack.c.h.b16 %v63
  %v379 = vunpack.c.l.b16 %v64
  %v380 = vunpack.c.h.b16 %v64
  %v381 = vunpack.c.l.b16 %v65
  %v382 = vunpack.c.h.b16 %v65
  %v383 = vunpack.c.l.b16 %v66
  %v384 = vunpack.c.h.b16 %v66
  %v385 = vunpack.c.l.b16 %v67
  %v386 = vunpack.c.h.b16 %v67
  %v387 = vunpack.c.l.b16 %v68
  %v388 = vunpack.c.h.b16 %v68
  %v389 = vunpack.c.l.b16 %v69
  %v390 = vunpack.c.h.b16 %v69
  %v391 = vunpack.c.l.b16 %v70
  %v392 = vunpack.c.h.b16 %v70
  %v393 = vunpack.c.l.b16 %v71
  %v394 = vunpack.c.h.b16 %v71
  %v395 = vunpack.c.l.b16 %v72
  %v396 = vunpack.c.h.b16 %v72
  %v397 = vunpack.c.l.b16 %v73
  %v398 = vunpack.c.h.b16 %v73
  %v399 = vunpack.c.l.b16 %v74
  %v400 = vunpack.c.h.b16 %v74
  %v401 = vunpack.c.l.b16 %v75
  %v402 = vunpack.c.h.b16 %v75
  %v403 = vunpack.c.l.b16 %v76
  %v404 = vunpack.c.h.b16 %v76
  %v405 = vunpack.c.l.b16 %v77
  %v406 = vunpack.c.h.b16 %v77
  %v407 = vunpack.c.l.b16 %v78
  %v408 = vunpack.c.h.b16 %v78
  %v409 = vunpack.c.l.b16 %v79
  %v410 = vunpack.c.h.b16 %v79
  %v411 = vunpack.c.l.b16 %v80
  %v412 = vunpack.c.h.b16 %v80
  %v413 = vunpack.c.l.b16 %v81
  %v414 = vunpack.c.h.b16 %v81
  %v415 = vunpack.c.l.b16 %v82
  %v416 = vunpack.c.h.b16 %v82
  %v417 = vunpack.c.l.b16 %v83
  %v418 = vunpack.c.h.b16 %v83
  %v419 = vunpack.c.l.b16 %v84
  %v420 = vunpack.c.h.b16 %v84
  %v421 = vunpack.c.l.b16 %v85
  %v422 = vunpack.c.h.b16 %v85
  %v423 = vunpack.c.l.b16 %v86
  %v424 = vunpack.c.h.b16 %v86
  %v425 = vunpack.c.l.b16 %v87
  %v426 = vunpack.c.h.b16 %v87
  %v427 = vunpack.c.l.b16 %v88
  %v428 = vunpack.c.h.b16 %v88
  %v429 = vunpack.c.l.b16 %v89
  %v430 = vunpack.c.h.b16 %v89
  %v431 = vunpack.c.l.b16 %v90
  %v432 = vunpack.c.h.b16 %v90
  %v433 = vunpack.c.l.b16 %v91
  %v434 = vunpack.c.h.b16 %v91
  %v435 = vunpack.c.l.b16 %v92
  %v436 = vunpack.c.h.b16 %v92
  %v437 = vunpack.c.l.b16 %v93
  %v438 = vunpack.c.h.b16 %v93
  %v439 = vunpack.c.l.b16 %v94
  %v440 = vunpack.c.h.b16 %v94
  %v441 = vunpack.c.l.b16 %v95
  %v442 = vunpack.c.h.b16 %v95
  %v443 = vunpack.c.l.b16 %v96
  %v444 = vunpack.c.h.b16 %v96
  %v445 = vunpack.c.l.b16 %v97
  %v446 = vunpack.c.h.b16 %v97
  %v447 = vunpack.c.l.b16 %v98
  %v448 = vunpack.c.h.b16 %v98
  %v449 = vunpack.c.l.b16 %v99
  %v450 = vunpack.c.h.b16 %v99
  %v451 = vunpack.c.l.b16 %v100
  %v452 = vunpack.c.h.b16 %v100
  %v453 = vunpack.c.l.b16 %v101
  %v454 = vunpack.c.h.b16 %v101
  %v455 = vunpack.c.l.b16 %v102
  %v456 = vunpack.c.h.b16 %v102
  %v457 = vunpack.c.l.b16 %v103
  %v458 = vunpack.c.h.b16 %v103
  %v459 = vunpack.c.l.b16 %v104
  %v460 = vunpack.c.h.b16 %v104
  %v461 = vunpack.c.l.b16 %v105
  %v462 = vunpack.c.h.b16 %v105
  %v463 = vunpack.c.l.b16 %v106
  %v464 = vunpack.c.h.b16 %v106
  %v465 = vunpack.c.l.b16 %v107
  %v466 = vunpack.c.h.b16 %v107
  %v467 = vunpack.c.l.b16 %v108
  %v468 = vunpack.c.h.b16 %v108
  %v469 = vunpack.c.l.b16 %v109
  %v470 = vunpack.c.h.b16 %v109
  %v471 = vunpack.c.l.b16 %v110
  %v472 = vunpack.c.h.b16 %v110
  %v473 = vunpack.c.l.b16 %v111
  %v474 = vunpack.c.h.b16 %v111
  %v475 = vunpack.c.l.b16 %v112
  %v476 = vunpack.c.h.b16 %v112
  %v477 = vunpack.c.l.b16 %v113
  %v478 = vunpack.c.h.b16 %v113
  %v479 = vunpack.c.l.b16 %v114
  %v480 = vunpack.c.h.b16 %v114
  %v481 = vunpack.c.l.b16 %v115
  %v482 = vunpack.c.h.b16 %v115
  %v483 = vunpack.c.l.b16 %v116
  %v484 = vunpack.c.h.b16 %v116
  %v485 = vunpack.c.l.b16 %v117
  %v486 = vunpack.c.h.b16 %v117
  %v487 = vunpack.c.l.b16 %v118
  %v488 = vunpack.c.h.b16 %v118
  %v489 = vunpack.c.l.b16 %v119
  %v490 = vunpack.c.h.b16 %v119
  %v491 = vunpack.c.l.b16 %v120
  %v492 = vunpack.c.h.b16 %v120
  %v493 = vunpack.c.l.b16 %v121
  %v494 = vunpack.c.h.b16 %v121
  %v495 = vunpack.c.l.b16 %v122
  %v496 = vunpack.c.h.b16 %v122
  %v497 = vunpack.c.l.b16 %v123
  %v498 = vunpack.c.h.b16 %v123
  %v499 = vunpack.c.l.b16 %v124
  %v500 = vunpack.c.h.b16 %v124
  %v501 = vunpack.c.l.b16 %v125
  %v502 = vunpack.c.h.b16 %v125
  %v503 = vunpack.c.l.b16 %v126
  %v504 = vunpack.c.h.b16 %v126
  %v505 = vunpack.c.l.b16 %v127
  %v506 = vunpack.c.h.b16 %v127
  %v507 = vunpack.c.l.b16 %v128
  %v508 = vunpack.c.h.b16 %v128
  %v509 = vunpack.c.l.b16 %v129
  %v510 = vunpack.c.h.b16 %v129
  %v511 = vunpack.c.l.b16 %v130
  %v512 = vunpack.c.h.b16 %v130
  %v513 = vunpack.c.l.b16 %v131
  %v514 = vunpack.c.h.b16 %v131
  %v515 = vunpack.c.l.b16 %v132
  %v516 = vunpack.c.h.b16 %v132
  %v517 = vunpack.c.l.b16 %v133
  %v518 = vunpack.c.h.b16 %v133
  %v519 = vunpack.c.l.b16 %v134
  %v520 = vunpack.c.h.b16 %v134
  %v521 = vunpack.c.l.b16 %v135
  %v522 = vunpack.c.h.b16 %v135
  %v523 = vunpack.c.l.b16 %v136
  %v524 = vunpack.c.h.b16 %v136
  %v525 = vunpack.c.l.b16 %v137
  %v526 = vunpack.c.h.b16 %v137
  %v527 = vunpack.c.l.b16 %v138
  %v528 = vunpack.c.h.b16 %v138
  %v529 = vunpack.c.l.b16 %v139
  %v530 = vunpack.c.h.b16 %v139
  %v531 = vunpack.c.l.b16 %v140
  %v532 = vunpack.c.h.b16 %v140
  %v533 = vunpack.c.l.b16 %v141
  %v534 = vunpack.c.h.b16 %v141
  %v535 = vunpack.c.l.b16 %v142
  %v536 = vunpack.c.h.b16 %v142
  %v537 = vunpack.c.l.b16 %v143
  %v538 = vunpack.c.h.b16 %v143
  %v539 = vunpack.c.l.b16 %v144
  %v540 = vunpack.c.h.b16 %v144
  %v541 = vunpack.c.l.b16 %v145
  %v542 = vunpack.c.h.b16 %v145
  %v543 = vunpack.c.l.b16 %v146
  %v544 = vunpack.c.h.b16 %v146
  %v545 = vunpack.c.l.b16 %v147
  %v546 = vunpack.c.h.b16 %v147
  %v547 = vunpack.c.l.b16 %v148
  %v548 = vunpack.c.h.b16 %v148
  %v549 = vunpack.c.l.b16 %v149
  %v550 = vunpack.c.h.b16 %v149
  %v551 = vunpack.c.l.b16 %v150
  %v552 = vunpack.c.h.b16 %v150
  %v553 = vpack.c.b16 %v305, %v297
  %v554 = vpack.c.b16 %v306, %v298
  %v555 = vpack.c.b16 %v307, %v299
  %v556 = vpack.c.b16 %v308, %v300
  %v557 = vpack.c.b16 %v309, %v301
  %v558 = vpack.c.b16 %v310, %v302
  %v559 = vpack.c.b16 %v311, %v303
  %v560 = vpack.c.b16 %v312, %v304
  %v561 = vpack.c.b16 %v321, %v313
  %v562 = vpack.c.b16 %v322, %v314
  %v563 = vpack.c.b16 %v323, %v315
  %v564 = vpack.c.b16 %v324, %v316
  %v565 = vpack.c.b16 %v325, %v317
  %v566 = vpack.c.b16 %v326, %v318
  %v567 = vpack.c.b16 %v327, %v319
  %v568 = vpack.c.b16 %v328, %v320
  %v569 = vpack.c.b16 %v337, %v329
  %v570 = vpack.c.b16 %v338, %v330
  %v571 = vpack.c.b16 %v339, %v331
  %v572 = vpack.c.b16 %v340, %v332
  %v573 = vpack.c.b16 %v341, %v333
  %v574 = vpack.c.b16 %v342, %v334
  %v575 = vpack.c.b16 %v343, %v335
  %v576 = vpack.c.b16 %v344, %v336
  %v577 = vpack.c.b16 %v353, %v345
  %v578 = vpack.c.b16 %v354, %v346
  %v579 = vpack.c.b16 %v355, %v347
  %v580 = vpack.c.b16 %v356, %v348
  %v581 = vpack.c.b16 %v357, %v349
  %v582 = vpack.c.b16 %v358, %v350
  %v583 = vpack.c.b16 %v359, %v351
  %v584 = vpack.c.b16 %v360, %v352
  %v585 = vpack.c.b16 %v369, %v361
  %v586 = vpack.c.b16 %v370, %v362
  %v587 = vpack.c.b16 %v371, %v363
  %v588 = vpack.c.b16 %v372, %v364
  %v589 = vpack.c.b16 %v373, %v365
  %v590 = vpack.c.b16 %v374, %v366
  %v591 = vpack.c.b16 %v375, %v367
  %v592 = vpack.c.b16 %v376, %v368
  %v593 = vpack.c.b16 %v385, %v377
  %v594 = vpack.c.b16 %v386, %v378
  %v595 = vpack.c.b16 %v387, %v379
  %v596 = vpack.c.b16 %v388, %v380
  %v597 = vpack.c.b16 %v389, %v381
  %v598 = vpack.c.b16 %v390, %v382
  %v599 = vpack.c.b16 %v391, %v383
  %v600 = vpack.c.b16 %v392, %v384
  %v601 = vpack.c.b16 %v401, %v393
  %v602 = vpack.c.b16 %v402, %v394
  %v603 = vpack.c.b16 %v403, %v395
  %v604 = vpack.c.b16 %v404, %v396
  %v605 = vpack.c.b16 %v405, %v397
  %v606 = vpack.c.b16 %v406, %v398
  %v607 = vpack.c.b16 %v407, %v399
  %v608 = vpack.c.b16 %v408, %v400
  %v609 = vpack.c.b16 %v417, %v409
  %v610 = vpack.c.b16 %v418, %v410
  %v611 = vpack.c.b16 %v419, %v411
  %v612 = vpack.c.b16 %v420, %v412
  %v613 = vpack.c.b16 %v421, %v413
  %v614 = vpack.c.b16 %v422, %v414
  %v615 = vpack.c.b16 %v423, %v415
  %v616 = vpack.c.b16 %v424, %v416
  %v617 = vpack.c.b16 %v433, %v425
  %v618 = vpack.c.b16 %v434, %v426
  %v619 = vpack.c.b16 %v435, %v427
  %v620 = vpack.c.b16 %v436, %v428
  %v621 = vpack.c.b16 %v437, %v429
  %v622 = vpack.c.b16 %v438, %v430
  %v623 = vpack.c.b16 %v439, %v431
  %v624 = vpack.c.b16 %v440, %v432
  %v625 = vpack.c.b16 %v449, %v441
  %v626 = vpack.c.b16 %v450, %v442
  %v627 = vpack.c.b16 %v451, %v443
  %v628 = vpack.c.b16 %v452, %v444
  %v629 = vpack.c.b16 %v453, %v445
  %v630 = vpack.c.b16 %v454, %v446
  %v631 = vpack.c.b16 %v455, %v447
  %v632 = vpack.c.b16 %v456, %v448
  %v633 = vpack.c.b16 %v465, %v457
  %v634 = vpack.c.b16 %v466, %v458
  %v635 = vpack.c.b16 %v467, %v459
  %v636 = vpack.c.b16 %v468, %v460
  %v637 = vpack.c.b16 %v469, %v461
  %v638 = vpack.c.b16 %v470, %v462
  %v639 = vpack.c.b16 %v471, %v463
  %v640 = vpack.c.b16 %v472, %v464
  %v641 = vpack.c.b16 %v481, %v473
  %v642 = vpack.c.b16 %v482, %v474
  %v643 = vpack.c.b16 %v483, %v475
  %v644 = vpack.c.b16 %v484, %v476
  %v645 = vpack.c.b16 %v485, %v477
  %v646 = vpack.c.b16 %v486, %v478
  %v647 = vpack.c.b16 %v487, %v479
  %v648 = vpack.c.b16 %v488, %v480
  %v649 = vpack.c.b16 %v497, %v489
  %v650 = vpack.c.b16 %v498, %v490
  %v651 = vpack.c.b16 %v499, %v491
  %v652 = vpack.c.b16 %v500, %v492
  %v653 = vpack.c.b16 %v501, %v493
  %v654 = vpack.c.b16 %v502, %v494
  %v655 = vpack.c.b16 %v503, %v495
  %v656 = vpack.c.b16 %v504, %v496
  %v657 = vpack.c.b16 %v513, %v505
  %v658 = vpack.c.b16 %v514, %v506
  %v659 = vpack.c.b16 %v515, %v507
  %v660 = vpack.c.b16 %v516, %v508
  %v661 = vpack.c.b16 %v517, %v509
  %v662 = vpack.c.b16 %v518, %v510
  %v663 = vpack.c.b16 %v519, %v511
  %v664 = vpack.c.b16 %v520, %v512
  %v665 = vpack.c.b16 %v529, %v521
  %v666 = vpack.c.b16 %v530, %v522
  %v667 = vpack.c.b16 %v531, %v523
  %v668 = vpack.c.b16 %v532, %v524
  %v669 = vpack.c.b16 %v533, %v525
  %v670 = vpack.c.b16 %v534, %v526
  %v671 = vpack.c.b16 %v535, %v527
  %v672 = vpack.c.b16 %v536, %v528
  %v673 = vpack.c.b16 %v545, %v537
  %v674 = vpack.c.b16 %v546, %v538
  %v675 = vpack.c.b16 %v547, %v539
  %v676 = vpack.c.b16 %v548, %v540
  %v677 = vpack.c.b16 %v549, %v541
  %v678 = vpack.c.b16 %v550, %v542
  %v679 = vpack.c.b16 %v551, %v543
  %v680 = vpack.c.b16 %v552, %v544
  %809 = vmatpush.bf16.msra.mxu0 %v609
  %810 = vmatpush.bf16.msra.mxu0 %v601
  %811 = vmatpush.bf16.msra.mxu0 %v593
  %812 = vmatpush.bf16.msra.mxu0 %v585
  %813 = vmatpush.bf16.msra.mxu0 %v577
  %814 = vmatpush.bf16.msra.mxu0 %v569
  %815 = vmatpush.bf16.msra.mxu0 %v561
  %816 = vmatpush.bf16.msra.mxu0 %v553
  %817 = vmatmul.bf16.gmra.mxu0 %v21
  %v818 = vpop.f32.mrf.mxu0
  %v819 = vadd.f32 %v153, %v818
  %v820 = vpop.f32.mrf.mxu0
  %821 = vdwg.mxu0
  %822 = vmatpush.bf16.msra.mxu0 %v673
  %823 = vmatpush.bf16.msra.mxu0 %v665
  %824 = vmatpush.bf16.msra.mxu0 %v657
  %825 = vmatpush.bf16.msra.mxu0 %v649
  %826 = vmatpush.bf16.msra.mxu0 %v641
  %827 = vmatpush.bf16.msra.mxu0 %v633
  %828 = vmatpush.bf16.msra.mxu0 %v625
  %829 = vmatpush.bf16.msra.mxu0 %v617
  %830 = vmatmul.bf16.gmra.mxu0 %v22
  %v831 = vpop.f32.mrf.mxu0
  %v832 = vadd.f32 %v819, %v831
  %v833 = vpop.f32.mrf.mxu0
  %834 = vdwg.mxu0
  %835 = vmatpush.bf16.msra.mxu0 %v610
  %836 = vmatpush.bf16.msra.mxu0 %v602
  %837 = vmatpush.bf16.msra.mxu0 %v594
  %838 = vmatpush.bf16.msra.mxu0 %v586
  %839 = vmatpush.bf16.msra.mxu0 %v578
  %840 = vmatpush.bf16.msra.mxu0 %v570
  %841 = vmatpush.bf16.msra.mxu0 %v562
  %842 = vmatpush.bf16.msra.mxu0 %v554
  %843 = vmatmul.bf16.gmra.mxu0 %v21
  %v844 = vpop.f32.mrf.mxu0
  %v845 = vadd.f32 %v154, %v844
  %v846 = vpop.f32.mrf.mxu0
  %847 = vdwg.mxu0
  %848 = vmatpush.bf16.msra.mxu0 %v674
  %849 = vmatpush.bf16.msra.mxu0 %v666
  %850 = vmatpush.bf16.msra.mxu0 %v658
  %851 = vmatpush.bf16.msra.mxu0 %v650
  %852 = vmatpush.bf16.msra.mxu0 %v642
  %853 = vmatpush.bf16.msra.mxu0 %v634
  %854 = vmatpush.bf16.msra.mxu0 %v626
  %855 = vmatpush.bf16.msra.mxu0 %v618
  %856 = vmatmul.bf16.gmra.mxu0 %v22
  %v857 = vpop.f32.mrf.mxu0
  %v858 = vadd.f32 %v845, %v857
  %v859 = vpop.f32.mrf.mxu0
  %860 = vdwg.mxu0
  %861 = vmatpush.bf16.msra.mxu0 %v611
  %862 = vmatpush.bf16.msra.mxu0 %v603
  %863 = vmatpush.bf16.msra.mxu0 %v595
  %864 = vmatpush.bf16.msra.mxu0 %v587
  %865 = vmatpush.bf16.msra.mxu0 %v579
  %866 = vmatpush.bf16.msra.mxu0 %v571
  %867 = vmatpush.bf16.msra.mxu0 %v563
  %868 = vmatpush.bf16.msra.mxu0 %v555
  %869 = vmatmul.bf16.gmra.mxu0 %v21
  %v870 = vpop.f32.mrf.mxu0
  %v871 = vadd.f32 %v155, %v870
  %v872 = vpop.f32.mrf.mxu0
  %873 = vdwg.mxu0
  %874 = vmatpush.bf16.msra.mxu0 %v675
  %875 = vmatpush.bf16.msra.mxu0 %v667
  %876 = vmatpush.bf16.msra.mxu0 %v659
  %877 = vmatpush.bf16.msra.mxu0 %v651
  %878 = vmatpush.bf16.msra.mxu0 %v643
  %879 = vmatpush.bf16.msra.mxu0 %v635
  %880 = vmatpush.bf16.msra.mxu0 %v627
  %881 = vmatpush.bf16.msra.mxu0 %v619
  %882 = vmatmul.bf16.gmra.mxu0 %v22
  %v883 = vpop.f32.mrf.mxu0
  %v884 = vadd.f32 %v871, %v883
  %v885 = vpop.f32.mrf.mxu0
  %886 = vdwg.mxu0
  %887 = vmatpush.bf16.msra.mxu0 %v612
  %888 = vmatpush.bf16.msra.mxu0 %v604
  %889 = vmatpush.bf16.msra.mxu0 %v596
  %890 = vmatpush.bf16.msra.mxu0 %v588
  %891 = vmatpush.bf16.msra.mxu0 %v580
  %892 = vmatpush.bf16.msra.mxu0 %v572
  %893 = vmatpush.bf16.msra.mxu0 %v564
  %894 = vmatpush.bf16.msra.mxu0 %v556
  %895 = vmatmul.bf16.gmra.mxu0 %v21
  %v896 = vpop.f32.mrf.mxu0
  %v897 = vadd.f32 %v156, %v896
  %v898 = vpop.f32.mrf.mxu0
  %899 = vdwg.mxu0
  %900 = vmatpush.bf16.msra.mxu0 %v676
  %901 = vmatpush.bf16.msra.mxu0 %v668
  %902 = vmatpush.bf16.msra.mxu0 %v660
  %903 = vmatpush.bf16.msra.mxu0 %v652
  %904 = vmatpush.bf16.msra.mxu0 %v644
  %905 = vmatpush.bf16.msra.mxu0 %v636
  %906 = vmatpush.bf16.msra.mxu0 %v628
  %907 = vmatpush.bf16.msra.mxu0 %v620
  %908 = vmatmul.bf16.gmra.mxu0 %v22
  %v909 = vpop.f32.mrf.mxu0
  %v910 = vadd.f32 %v897, %v909
  %v911 = vpop.f32.mrf.mxu0
  %912 = vdwg.mxu0
  %913 = vmatpush.bf16.msra.mxu0 %v613
  %914 = vmatpush.bf16.msra.mxu0 %v605
  %915 = vmatpush.bf16.msra.mxu0 %v597
  %916 = vmatpush.bf16.msra.mxu0 %v589
  %917 = vmatpush.bf16.msra.mxu0 %v581
  %918 = vmatpush.bf16.msra.mxu0 %v573
  %919 = vmatpush.bf16.msra.mxu0 %v565
  %920 = vmatpush.bf16.msra.mxu0 %v557
  %921 = vmatmul.bf16.gmra.mxu0 %v21
  %v922 = vpop.f32.mrf.mxu0
  %v923 = vadd.f32 %v157, %v922
  %v924 = vpop.f32.mrf.mxu0
  %925 = vdwg.mxu0
  %926 = vmatpush.bf16.msra.mxu0 %v677
  %927 = vmatpush.bf16.msra.mxu0 %v669
  %928 = vmatpush.bf16.msra.mxu0 %v661
  %929 = vmatpush.bf16.msra.mxu0 %v653
  %930 = vmatpush.bf16.msra.mxu0 %v645
  %931 = vmatpush.bf16.msra.mxu0 %v637
  %932 = vmatpush.bf16.msra.mxu0 %v629
  %933 = vmatpush.bf16.msra.mxu0 %v621
  %934 = vmatmul.bf16.gmra.mxu0 %v22
  %v935 = vpop.f32.mrf.mxu0
  %v936 = vadd.f32 %v923, %v935
  %v937 = vpop.f32.mrf.mxu0
  %938 = vdwg.mxu0
  %939 = vmatpush.bf16.msra.mxu0 %v614
  %940 = vmatpush.bf16.msra.mxu0 %v606
  %941 = vmatpush.bf16.msra.mxu0 %v598
  %942 = vmatpush.bf16.msra.mxu0 %v590
  %943 = vmatpush.bf16.msra.mxu0 %v582
  %944 = vmatpush.bf16.msra.mxu0 %v574
  %945 = vmatpush.bf16.msra.mxu0 %v566
  %946 = vmatpush.bf16.msra.mxu0 %v558
  %947 = vmatmul.bf16.gmra.mxu0 %v21
  %v948 = vpop.f32.mrf.mxu0
  %v949 = vadd.f32 %v158, %v948
  %v950 = vpop.f32.mrf.mxu0
  %951 = vdwg.mxu0
  %952 = vmatpush.bf16.msra.mxu0 %v678
  %953 = vmatpush.bf16.msra.mxu0 %v670
  %954 = vmatpush.bf16.msra.mxu0 %v662
  %955 = vmatpush.bf16.msra.mxu0 %v654
  %956 = vmatpush.bf16.msra.mxu0 %v646
  %957 = vmatpush.bf16.msra.mxu0 %v638
  %958 = vmatpush.bf16.msra.mxu0 %v630
  %959 = vmatpush.bf16.msra.mxu0 %v622
  %960 = vmatmul.bf16.gmra.mxu0 %v22
  %v961 = vpop.f32.mrf.mxu0
  %v962 = vadd.f32 %v949, %v961
  %v963 = vpop.f32.mrf.mxu0
  %964 = vdwg.mxu0
  %965 = vmatpush.bf16.msra.mxu0 %v615
  %966 = vmatpush.bf16.msra.mxu0 %v607
  %967 = vmatpush.bf16.msra.mxu0 %v599
  %968 = vmatpush.bf16.msra.mxu0 %v591
  %969 = vmatpush.bf16.msra.mxu0 %v583
  %970 = vmatpush.bf16.msra.mxu0 %v575
  %971 = vmatpush.bf16.msra.mxu0 %v567
  %972 = vmatpush.bf16.msra.mxu0 %v559
  %973 = vmatmul.bf16.gmra.mxu0 %v21
  %v974 = vpop.f32.mrf.mxu0
  %v975 = vadd.f32 %v159, %v974
  %v976 = vpop.f32.mrf.mxu0
  %977 = vdwg.mxu0
  %978 = vmatpush.bf16.msra.mxu0 %v679
  %979 = vmatpush.bf16.msra.mxu0 %v671
  %980 = vmatpush.bf16.msra.mxu0 %v663
  %981 = vmatpush.bf16.msra.mxu0 %v655
  %982 = vmatpush.bf16.msra.mxu0 %v647
  %983 = vmatpush.bf16.msra.mxu0 %v639
  %984 = vmatpush.bf16.msra.mxu0 %v631
  %985 = vmatpush.bf16.msra.mxu0 %v623
  %986 = vmatmul.bf16.gmra.mxu0 %v22
  %v987 = vpop.f32.mrf.mxu0
  %v988 = vadd.f32 %v975, %v987
  %v989 = vpop.f32.mrf.mxu0
  %990 = vdwg.mxu0
  %991 = vmatpush.bf16.msra.mxu0 %v616
  %992 = vmatpush.bf16.msra.mxu0 %v608
  %993 = vmatpush.bf16.msra.mxu0 %v600
  %994 = vmatpush.bf16.msra.mxu0 %v592
  %995 = vmatpush.bf16.msra.mxu0 %v584
  %996 = vmatpush.bf16.msra.mxu0 %v576
  %997 = vmatpush.bf16.msra.mxu0 %v568
  %998 = vmatpush.bf16.msra.mxu0 %v560
  %999 = vmatmul.bf16.gmra.mxu0 %v21
  %v1000 = vpop.f32.mrf.mxu0
  %v1001 = vadd.f32 %v160, %v1000
  %v1002 = vpop.f32.mrf.mxu0
  %1003 = vdwg.mxu0
  %1004 = vmatpush.bf16.msra.mxu0 %v680
  %1005 = vmatpush.bf16.msra.mxu0 %v672
  %1006 = vmatpush.bf16.msra.mxu0 %v664
  %1007 = vmatpush.bf16.msra.mxu0 %v656
  %1008 = vmatpush.bf16.msra.mxu0 %v648
  %1009 = vmatpush.bf16.msra.mxu0 %v640
  %1010 = vmatpush.bf16.msra.mxu0 %v632
  %1011 = vmatpush.bf16.msra.mxu0 %v624
  %1012 = vmatmul.bf16.gmra.mxu0 %v22
  %v1013 = vpop.f32.mrf.mxu0
  %v1014 = vadd.f32 %v1001, %v1013
  %v1015 = vpop.f32.mrf.mxu0
  %1016 = vdwg.mxu0
  %v1017 = vtanh.pop %v832
  %v1018 = vtanh.pop %v858
  %v1019 = vtanh.pop %v884
  %v1020 = vtanh.pop %v910
  %v1021 = vtanh.pop %v936
  %v1022 = vtanh.pop %v962
  %v1023 = vtanh.pop %v988
  %v1024 = vtanh.pop %v1014
  %v1033 = vrot.slane %v1018, 6
  %v1034 = vrot.slane %v1019, 4
  %v1035 = vrot.slane %v1020, 2
  %v1036 = vrot.slane %v1022, 6
  %v1037 = vrot.slane %v1023, 4
  %v1038 = vrot.slane %v1024, 2
  %vm1039 = vcmask 1041408
  %v1040 = vsel %vm1039, %v1017, %v1033
  %vm1041 = vcmask 1045508
  %v1042 = vsel %vm1041, %v1034, %v1035
  %vm1043 = vcmask 1043456
  %v1044 = vsel %vm1043, %v1040, %v1042
  %v1045 = vsel %vm1039, %v1021, %v1036
  %v1046 = vsel %vm1041, %v1037, %v1038
  %v1047 = vsel %vm1043, %v1045, %v1046
  %1050 = vst [vmem:[%s3] sm:$0xff] %v1044
  %1051 = vst [vmem:[%s3 + $0x8] sm:$0xff] %v1047
  // Predicated region
  $region14: #{generator_forward.3} parent=0 // pred_check
    _
  $region15: #{generator_forward.3} parent=0 // pred_check_branch
    %1053 = sbr.rel (0) target = $region17
  $region16: #{generator_forward.3} parent=0 // pred_region
    _
  $region17: #{generator_forward.3} parent=0 // pred_fallthru
    _
  // Predicated region
  $region18: #{generator_forward.3} parent=0 // pred_check
    _
  $region19: #{generator_forward.3} parent=0 // pred_check_branch
    %1055 = sbr.rel (0) target = $region21
  $region20: #{generator_forward.3} parent=0 // pred_region
    _
  $region21: #{generator_forward.3} parent=0 // pred_fallthru
    _

// kernel: generator_forward.2
$region0: #{generator_forward.2}
  #allocation0 [shape = 'u32[]', space=smem, size = 0x4, offset = 0x4, fixed_abs, tag = 'smem constant byte address 0x4 - core index']
  #allocation1 [shape = 'u32[72,128]{1,0:T(1,128)}', space=vmem, size = 0x9000, scoped, tag = 'internal scratch']
  #allocation2 [shape = 'f32[86,128]{1,0:T(8,128)}', space=vmem, size = 0xb000, scoped, tag = 'scratch operand']
  #allocation3 [shape = 'f32[222,128]{1,0:T(8,128)}', space=vmem, size = 0x1c000, scoped, tag = 'scratch operand']
  #allocation4 [shape = 'f32[222,64]{1,0:T(8,128)}', space=vmem, size = 0x1c000, scoped, tag = 'scratch operand']
  %s0 = inlined_call_operand.vmem [shape: f32[2,32], index: 0, kind: input, shape index: {}]
  %s1 = inlined_call_operand.vmem [shape: f32[2,32], index: 1, kind: input, shape index: {}]
  %s2 = inlined_call_operand.hbm [shape: bf16[32,512], index: 2, kind: input, shape index: {}]
  %s3 = inlined_call_operand.vmem [shape: f32[1,512], index: 3, kind: input, shape index: {}]
  %s4 = inlined_call_operand.hbm [shape: f32[1,128], index: 4, kind: input, shape index: {}]
  %s5 = inlined_call_operand.hbm [shape: f32[1,128], index: 5, kind: input, shape index: {}]
  %s6 = inlined_call_operand.hbm [shape: bf16[9,128,128], index: 6, kind: input, shape index: {}]
  %s7 = inlined_call_operand.hbm [shape: f32[1,128], index: 7, kind: input, shape index: {}]
  %s8 = inlined_call_operand.hbm [shape: f32[1,128], index: 8, kind: input, shape index: {}]
  %s9 = inlined_call_operand.hbm [shape: f32[1,128], index: 9, kind: input, shape index: {}]
  %s10 = inlined_call_operand.vmem [shape: bf16[9,128,64], index: 10, kind: input, shape index: {}]
  %s11 = inlined_call_operand.hbm [shape: f32[1,64], index: 11, kind: input, shape index: {}]
  %s12 = inlined_call_operand.hbm [shape: f32[1,64], index: 12, kind: input, shape index: {}]
  %s13 = inlined_call_operand.hbm [shape: f32[1,64], index: 13, kind: input, shape index: {}]
  %s14 = inlined_call_operand.vmem [shape: bf16[9,64,4], index: 14, kind: input, shape index: {}]
  %s15 = inlined_call_operand.hbm [shape: f32[1,4], index: 15, kind: input, shape index: {}]
  %s16 = inlined_call_operand.hbm [shape: f32[72,1], index: 16, kind: input, shape index: {}]
  %s17 = inlined_call_operand.hbm [shape: f32[200,1], index: 17, kind: input, shape index: {}]
  %s18 = inlined_call_operand.vmem [shape: f32[128,4], index: 18, kind: output, shape index: {}]
  %s19 = sld [smem:[#allocation0]]
  $region134: #{generator_forward.2} parent=0
    _
  %s21 = ssub.s32 1, %s19
  %s22 = scalar_select 0, %s21, %s19
  $region1: #{generator_forward.2} parent=0
    #allocation5 [shape = 'u8[32768]{0}', space=vmem, size = 0x8000, scoped, tag = 'input window, operand 2, single buffered']
    #allocation6 [shape = 's32[1]{0}', space=sflag, size = 0x4, scoped, tag = 'scoped memory for generator_forward.2']
    #allocation7 [shape = 'u8[512]{0}', space=vmem, size = 0x400, scoped, tag = 'input window, operand 4, single buffered']
    #allocation8 [shape = 's32[1]{0}', space=sflag, size = 0x4, scoped, tag = 'scoped memory for generator_forward.2']
    #allocation9 [shape = 'u8[512]{0}', space=vmem, size = 0x400, scoped, tag = 'input window, operand 5, single buffered']
    #allocation10 [shape = 'u8[294912]{0}', space=vmem, size = 0x48000, scoped, tag = 'input window, operand 6, single buffered']
    #allocation11 [shape = 's32[1]{0}', space=sflag, size = 0x4, scoped, tag = 'scoped memory for generator_forward.2']
    #allocation12 [shape = 'u8[512]{0}', space=vmem, size = 0x400, scoped, tag = 'input window, operand 7, single buffered']
    #allocation13 [shape = 'u8[512]{0}', space=vmem, size = 0x400, scoped, tag = 'input window, operand 8, single buffered']
    #allocation14 [shape = 's32[1]{0}', space=sflag, size = 0x4, scoped, tag = 'scoped memory for generator_forward.2']
    #allocation15 [shape = 'u8[512]{0}', space=vmem, size = 0x400, scoped, tag = 'input window, operand 9, single buffered']
    #allocation16 [shape = 'u8[512]{0}', space=vmem, size = 0x400, scoped, tag = 'input window, operand 11, single buffered']
    #allocation17 [shape = 's32[1]{0}', space=sflag, size = 0x4, scoped, tag = 'scoped memory for generator_forward.2']
    #allocation18 [shape = 'u8[512]{0}', space=vmem, size = 0x400, scoped, tag = 'input window, operand 12, single buffered']
    #allocation19 [shape = 'u8[512]{0}', space=vmem, size = 0x400, scoped, tag = 'input window, operand 13, single buffered']
    #allocation20 [shape = 's32[1]{0}', space=sflag, size = 0x4, scoped, tag = 'scoped memory for generator_forward.2']
    #allocation21 [shape = 'u8[512]{0}', space=vmem, size = 0x400, scoped, tag = 'input window, operand 15, single buffered']
    #allocation22 [shape = 'u8[36864]{0}', space=vmem, size = 0x9000, scoped, tag = 'input window, operand 16, single buffered']
    #allocation23 [shape = 's32[1]{0}', space=sflag, size = 0x4, scoped, tag = 'scoped memory for generator_forward.2']
    #allocation24 [shape = 'u8[102400]{0}', space=vmem, size = 0x19000, scoped, tag = 'input window, operand 17, single buffered']
    %23 = vsyncpa [#allocation6], 0
    %24 = vsyncpa [#allocation8], 0
    %25 = vsyncpa [#allocation11], 0
    %26 = vsyncpa [#allocation14], 0
    %27 = vsyncpa [#allocation17], 0
    %28 = vsyncpa [#allocation20], 0
    %29 = vsyncpa [#allocation23], 0
    // Predicated region
    $region2: #{generator_forward.2} parent=1 // pred_check
      _
    $region3: #{generator_forward.2} parent=1 // pred_check_branch
      %31 = sbr.rel (0) target = $region5
    $region4: #{generator_forward.2} parent=1 // pred_region
      _
    $region5: #{generator_forward.2} parent=1 // pred_fallthru
      _
    // Predicated region
    $region6: #{generator_forward.2} parent=1 // pred_check
      _
    $region7: #{generator_forward.2} parent=1 // pred_check_branch
      %33 = sbr.rel (0) target = $region9
    $region8: #{generator_forward.2} parent=1 // pred_region
      _
    $region9: #{generator_forward.2} parent=1 // pred_fallthru
      _
    // Predicated region
    $region10: #{generator_forward.2} parent=1 // pred_check
      _
    $region11: #{generator_forward.2} parent=1 // pred_check_branch
      %35 = sbr.rel (0) target = $region13
    $region12: #{generator_forward.2} parent=1 // pred_region
      %37 = vsyncadd [#allocation6], 0
      %s38 = sshll.u32 %s2, 4
      %s39 = int_to_ptr.hbm [resolvable:$true] %s38
      %s40 = sshll.u32 [#allocation5], 4
      %s41 = int_to_ptr.vmem [resolvable:$true] %s40
      %46 = dma.hbm_to_vmem [thread:$0]  %s39, 1024, %s41, [#allocation6], 256, 256, 16
    $region13: #{generator_forward.2} parent=1 // pred_fallthru
      _
    // Predicated region
    $region14: #{generator_forward.2} parent=1 // pred_check
      _
    $region15: #{generator_forward.2} parent=1 // pred_check_branch
      %48 = sbr.rel (0) target = $region17
    $region16: #{generator_forward.2} parent=1 // pred_region
      _
    $region17: #{generator_forward.2} parent=1 // pred_fallthru
      _
    // Predicated region
    $region18: #{generator_forward.2} parent=1 // pred_check
      _
    $region19: #{generator_forward.2} parent=1 // pred_check_branch
      %50 = sbr.rel (0) target = $region21
    $region20: #{generator_forward.2} parent=1 // pred_region
      %52 = vsyncadd [#allocation8], 0
      %s54 = sshll.u32 %s4, 4
      %s55 = int_to_ptr.hbm [resolvable:$true] %s54
      %s56 = sshll.u32 [#allocation7], 4
      %s57 = int_to_ptr.vmem [resolvable:$true] %s56
      %59 = dma.hbm_to_vmem [thread:$0]  %s55, 16, %s57, [#allocation8]
    $region21: #{generator_forward.2} parent=1 // pred_fallthru
      _
    // Predicated region
    $region22: #{generator_forward.2} parent=1 // pred_check
      _
    $region23: #{generator_forward.2} parent=1 // pred_check_branch
      %61 = sbr.rel (0) target = $region25
    $region24: #{generator_forward.2} parent=1 // pred_region
      %63 = vsyncadd [#allocation8], 0
      %s65 = sshll.u32 %s5, 4
      %s66 = int_to_ptr.hbm [resolvable:$true] %s65
      %s67 = sshll.u32 [#allocation9], 4
      %s68 = int_to_ptr.vmem [resolvable:$true] %s67
      %70 = dma.hbm_to_vmem [thread:$0]  %s66, 16, %s68, [#allocation8]
    $region25: #{generator_forward.2} parent=1 // pred_fallthru
      _
    // Predicated region
    $region26: #{generator_forward.2} parent=1 // pred_check
      _
    $region27: #{generator_forward.2} parent=1 // pred_check_branch
      %72 = sbr.rel (0) target = $region29
    $region28: #{generator_forward.2} parent=1 // pred_region
      %74 = vsyncadd [#allocation11], 0
      %s75 = sshll.u32 %s6, 4
      %s76 = int_to_ptr.hbm [resolvable:$true] %s75
      %s77 = sshll.u32 [#allocation10], 4
      %s78 = int_to_ptr.vmem [resolvable:$true] %s77
      %83 = dma.hbm_to_vmem [thread:$0]  %s76, 9216, %s78, [#allocation11], 64, 64, 4
    $region29: #{generator_forward.2} parent=1 // pred_fallthru
      _
    // Predicated region
    $region30: #{generator_forward.2} parent=1 // pred_check
      _
    $region31: #{generator_forward.2} parent=1 // pred_check_branch
      %85 = sbr.rel (0) target = $region33
    $region32: #{generator_forward.2} parent=1 // pred_region
      %87 = vsyncadd [#allocation11], 0
      %s89 = sshll.u32 %s7, 4
      %s90 = int_to_ptr.hbm [resolvable:$true] %s89
      %s91 = sshll.u32 [#allocation12], 4
      %s92 = int_to_ptr.vmem [resolvable:$true] %s91
      %94 = dma.hbm_to_vmem [thread:$0]  %s90, 16, %s92, [#allocation11]
    $region33: #{generator_forward.2} parent=1 // pred_fallthru
      _
    // Predicated region
    $region34: #{generator_forward.2} parent=1 // pred_check
      _
    $region35: #{generator_forward.2} parent=1 // pred_check_branch
      %96 = sbr.rel (0) target = $region37
    $region36: #{generator_forward.2} parent=1 // pred_region
      %98 = vsyncadd [#allocation14], 0
      %s100 = sshll.u32 %s8, 4
      %s101 = int_to_ptr.hbm [resolvable:$true] %s100
      %s102 = sshll.u32 [#allocation13], 4
      %s103 = int_to_ptr.vmem [resolvable:$true] %s102
      %105 = dma.hbm_to_vmem [thread:$0]  %s101, 16, %s103, [#allocation14]
    $region37: #{generator_forward.2} parent=1 // pred_fallthru
      _
    // Predicated region
    $region38: #{generator_forward.2} parent=1 // pred_check
      _
    $region39: #{generator_forward.2} parent=1 // pred_check_branch
      %107 = sbr.rel (0) target = $region41
    $region40: #{generator_forward.2} parent=1 // pred_region
      %109 = vsyncadd [#allocation14], 0
      %s111 = sshll.u32 %s9, 4
      %s112 = int_to_ptr.hbm [resolvable:$true] %s111
      %s113 = sshll.u32 [#allocation15], 4
      %s114 = int_to_ptr.vmem [resolvable:$true] %s113
      %116 = dma.hbm_to_vmem [thread:$0]  %s112, 16, %s114, [#allocation14]
    $region41: #{generator_forward.2} parent=1 // pred_fallthru
      _
    // Predicated region
    $region42: #{generator_forward.2} parent=1 // pred_check
      _
    $region43: #{generator_forward.2} parent=1 // pred_check_branch
      %118 = sbr.rel (0) target = $region45
    $region44: #{generator_forward.2} parent=1 // pred_region
      _
    $region45: #{generator_forward.2} parent=1 // pred_fallthru
      _
    // Predicated region
    $region46: #{generator_forward.2} parent=1 // pred_check
      _
    $region47: #{generator_forward.2} parent=1 // pred_check_branch
      %120 = sbr.rel (0) target = $region49
    $region48: #{generator_forward.2} parent=1 // pred_region
      %122 = vsyncadd [#allocation17], 0
      %s124 = sshll.u32 %s11, 4
      %s125 = int_to_ptr.hbm [resolvable:$true] %s124
      %s126 = sshll.u32 [#allocation16], 4
      %s127 = int_to_ptr.vmem [resolvable:$true] %s126
      %129 = dma.hbm_to_vmem [thread:$0]  %s125, 16, %s127, [#allocation17]
    $region49: #{generator_forward.2} parent=1 // pred_fallthru
      _
    // Predicated region
    $region50: #{generator_forward.2} parent=1 // pred_check
      _
    $region51: #{generator_forward.2} parent=1 // pred_check_branch
      %131 = sbr.rel (0) target = $region53
    $region52: #{generator_forward.2} parent=1 // pred_region
      %133 = vsyncadd [#allocation17], 0
      %s135 = sshll.u32 %s12, 4
      %s136 = int_to_ptr.hbm [resolvable:$true] %s135
      %s137 = sshll.u32 [#allocation18], 4
      %s138 = int_to_ptr.vmem [resolvable:$true] %s137
      %140 = dma.hbm_to_vmem [thread:$0]  %s136, 16, %s138, [#allocation17]
    $region53: #{generator_forward.2} parent=1 // pred_fallthru
      _
    // Predicated region
    $region54: #{generator_forward.2} parent=1 // pred_check
      _
    $region55: #{generator_forward.2} parent=1 // pred_check_branch
      %142 = sbr.rel (0) target = $region57
    $region56: #{generator_forward.2} parent=1 // pred_region
      %144 = vsyncadd [#allocation20], 0
      %s146 = sshll.u32 %s13, 4
      %s147 = int_to_ptr.hbm [resolvable:$true] %s146
      %s148 = sshll.u32 [#allocation19], 4
      %s149 = int_to_ptr.vmem [resolvable:$true] %s148
      %151 = dma.hbm_to_vmem [thread:$0]  %s147, 16, %s149, [#allocation20]
    $region57: #{generator_forward.2} parent=1 // pred_fallthru
      _
    // Predicated region
    $region58: #{generator_forward.2} parent=1 // pred_check
      _
    $region59: #{generator_forward.2} parent=1 // pred_check_branch
      %153 = sbr.rel (0) target = $region61
    $region60: #{generator_forward.2} parent=1 // pred_region
      _
    $region61: #{generator_forward.2} parent=1 // pred_fallthru
      _
    // Predicated region
    $region62: #{generator_forward.2} parent=1 // pred_check
      _
    $region63: #{generator_forward.2} parent=1 // pred_check_branch
      %155 = sbr.rel (0) target = $region65
    $region64: #{generator_forward.2} parent=1 // pred_region
      %157 = vsyncadd [#allocation20], 0
      %s159 = sshll.u32 %s15, 4
      %s160 = int_to_ptr.hbm [resolvable:$true] %s159
      %s161 = sshll.u32 [#allocation21], 4
      %s162 = int_to_ptr.vmem [resolvable:$true] %s161
      %164 = dma.hbm_to_vmem [thread:$0]  %s160, 16, %s162, [#allocation20]
    $region65: #{generator_forward.2} parent=1 // pred_fallthru
      _
    // Predicated region
    $region66: #{generator_forward.2} parent=1 // pred_check
      _
    $region67: #{generator_forward.2} parent=1 // pred_check_branch
      %166 = sbr.rel (0) target = $region69
    $region68: #{generator_forward.2} parent=1 // pred_region
      %168 = vsyncadd [#allocation23], 0
      %s169 = sshll.u32 %s16, 4
      %s170 = int_to_ptr.hbm [resolvable:$true] %s169
      %s171 = sshll.u32 [#allocation22], 4
      %s172 = int_to_ptr.vmem [resolvable:$true] %s171
      %177 = dma.hbm_to_vmem [thread:$0]  %s170, 1152, %s172, [#allocation23], 128, 128, 8
    $region69: #{generator_forward.2} parent=1 // pred_fallthru
      _
    // Predicated region
    $region70: #{generator_forward.2} parent=1 // pred_check
      _
    $region71: #{generator_forward.2} parent=1 // pred_check_branch
      %179 = sbr.rel (0) target = $region73
    $region72: #{generator_forward.2} parent=1 // pred_region
      %181 = vsyncadd [#allocation23], 0
      %s182 = sshll.u32 %s17, 4
      %s183 = int_to_ptr.hbm [resolvable:$true] %s182
      %s184 = sshll.u32 [#allocation24], 4
      %s185 = int_to_ptr.vmem [resolvable:$true] %s184
      %190 = dma.hbm_to_vmem [thread:$0]  %s183, 3200, %s185, [#allocation23], 128, 128, 8
    $region73: #{generator_forward.2} parent=1 // pred_fallthru
      _
    // Predicated region
    $region74: #{generator_forward.2} parent=1 // pred_check
      _
    $region75: #{generator_forward.2} parent=1 // pred_check_branch
      %192 = sbr.rel (0) target = $region77
    $region76: #{generator_forward.2} parent=1 // pred_region
      %194 = dma.done [#allocation6], 1024
    $region77: #{generator_forward.2} parent=1 // pred_fallthru
      _
    // Predicated region
    $region78: #{generator_forward.2} parent=1 // pred_check
      _
    $region79: #{generator_forward.2} parent=1 // pred_check_branch
      %196 = sbr.rel (0) target = $region81
    $region80: #{generator_forward.2} parent=1 // pred_region
      %198 = dma.done [#allocation8], 16
    $region81: #{generator_forward.2} parent=1 // pred_fallthru
      _
    // Predicated region
    $region82: #{generator_forward.2} parent=1 // pred_check
      _
    $region83: #{generator_forward.2} parent=1 // pred_check_branch
      %200 = sbr.rel (0) target = $region85
    $region84: #{generator_forward.2} parent=1 // pred_region
      %202 = dma.done [#allocation8], 16
    $region85: #{generator_forward.2} parent=1 // pred_fallthru
      _
    // Predicated region
    $region86: #{generator_forward.2} parent=1 // pred_check
      _
    $region87: #{generator_forward.2} parent=1 // pred_check_branch
      %204 = sbr.rel (0) target = $region89
    $region88: #{generator_forward.2} parent=1 // pred_region
      %206 = dma.done [#allocation11], 9216
    $region89: #{generator_forward.2} parent=1 // pred_fallthru
      _
    // Predicated region
    $region90: #{generator_forward.2} parent=1 // pred_check
      _
    $region91: #{generator_forward.2} parent=1 // pred_check_branch
      %208 = sbr.rel (0) target = $region93
    $region92: #{generator_forward.2} parent=1 // pred_region
      %210 = dma.done [#allocation11], 16
    $region93: #{generator_forward.2} parent=1 // pred_fallthru
      _
    // Predicated region
    $region94: #{generator_forward.2} parent=1 // pred_check
      _
    $region95: #{generator_forward.2} parent=1 // pred_check_branch
      %212 = sbr.rel (0) target = $region97
    $region96: #{generator_forward.2} parent=1 // pred_region
      %214 = dma.done [#allocation14], 16
    $region97: #{generator_forward.2} parent=1 // pred_fallthru
      _
    // Predicated region
    $region98: #{generator_forward.2} parent=1 // pred_check
      _
    $region99: #{generator_forward.2} parent=1 // pred_check_branch
      %216 = sbr.rel (0) target = $region101
    $region100: #{generator_forward.2} parent=1 // pred_region
      %218 = dma.done [#allocation14], 16
    $region101: #{generator_forward.2} parent=1 // pred_fallthru
      _
    // Predicated region
    $region102: #{generator_forward.2} parent=1 // pred_check
      _
    $region103: #{generator_forward.2} parent=1 // pred_check_branch
      %220 = sbr.rel (0) target = $region105
    $region104: #{generator_forward.2} parent=1 // pred_region
      %222 = dma.done [#allocation17], 16
    $region105: #{generator_forward.2} parent=1 // pred_fallthru
      _
    // Predicated region
    $region106: #{generator_forward.2} parent=1 // pred_check
      _
    $region107: #{generator_forward.2} parent=1 // pred_check_branch
      %224 = sbr.rel (0) target = $region109
    $region108: #{generator_forward.2} parent=1 // pred_region
      %226 = dma.done [#allocation17], 16
    $region109: #{generator_forward.2} parent=1 // pred_fallthru
      _
    // Predicated region
    $region110: #{generator_forward.2} parent=1 // pred_check
      _
    $region111: #{generator_forward.2} parent=1 // pred_check_branch
      %228 = sbr.rel (0) target = $region113
    $region112: #{generator_forward.2} parent=1 // pred_region
      %230 = dma.done [#allocation20], 16
    $region113: #{generator_forward.2} parent=1 // pred_fallthru
      _
    // Predicated region
    $region114: #{generator_forward.2} parent=1 // pred_check
      _
    $region115: #{generator_forward.2} parent=1 // pred_check_branch
      %232 = sbr.rel (0) target = $region117
    $region116: #{generator_forward.2} parent=1 // pred_region
      %234 = dma.done [#allocation20], 16
    $region117: #{generator_forward.2} parent=1 // pred_fallthru
      _
    // Predicated region
    $region118: #{generator_forward.2} parent=1 // pred_check
      _
    $region119: #{generator_forward.2} parent=1 // pred_check_branch
      %236 = sbr.rel (0) target = $region121
    $region120: #{generator_forward.2} parent=1 // pred_region
      %238 = dma.done [#allocation23], 1152
    $region121: #{generator_forward.2} parent=1 // pred_fallthru
      _
    // Predicated region
    $region122: #{generator_forward.2} parent=1 // pred_check
      _
    $region123: #{generator_forward.2} parent=1 // pred_check_branch
      %240 = sbr.rel (0) target = $region125
    $region124: #{generator_forward.2} parent=1 // pred_region
      %242 = dma.done [#allocation23], 3200
    $region125: #{generator_forward.2} parent=1 // pred_fallthru
      _
    %v244 = vld [vmem:[%s0] sm:$0x3]
    %v245 = vld [vmem:[%s1] sm:$0x3]
    %v246 = vmul.f32 %v244, %v245
    %v247 = vpack.c.bf16 %v246, %v246
    %v248 = vld [vmem:[#allocation5] sm:$0xff]
    %v249 = vld [vmem:[#allocation5 + $0x8] sm:$0xff]
    %v250 = vld [vmem:[#allocation5 + $0x10] sm:$0xff]
    %v251 = vld [vmem:[#allocation5 + $0x18] sm:$0xff]
    %v252 = vld [vmem:[#allocation5 + $0x20] sm:$0xff]
    %v253 = vld [vmem:[#allocation5 + $0x28] sm:$0xff]
    %v254 = vld [vmem:[#allocation5 + $0x30] sm:$0xff]
    %v255 = vld [vmem:[#allocation5 + $0x38] sm:$0xff]
    %v256 = vld [vmem:[%s3] sm:$0xf]
    %v258 = vperm.slane %v256, 0
    %v259 = vperm.slane %v256, 1
    %v260 = vperm.slane %v256, 2
    %v261 = vperm.slane %v256, 3
    %v274 = vunpack.c.l.b16 %v248
    %v275 = vunpack.c.h.b16 %v248
    %v276 = vunpack.c.l.b16 %v249
    %v277 = vunpack.c.h.b16 %v249
    %v278 = vunpack.c.l.b16 %v250
    %v279 = vunpack.c.h.b16 %v250
    %v280 = vunpack.c.l.b16 %v251
    %v281 = vunpack.c.h.b16 %v251
    %v282 = vunpack.c.l.b16 %v252
    %v283 = vunpack.c.h.b16 %v252
    %v284 = vunpack.c.l.b16 %v253
    %v285 = vunpack.c.h.b16 %v253
    %v286 = vunpack.c.l.b16 %v254
    %v287 = vunpack.c.h.b16 %v254
    %v288 = vunpack.c.l.b16 %v255
    %v289 = vunpack.c.h.b16 %v255
    %v290 = vpack.c.b16 %v278, %v274
    %v291 = vpack.c.b16 %v279, %v275
    %v292 = vpack.c.b16 %v280, %v276
    %v293 = vpack.c.b16 %v281, %v277
    %v294 = vpack.c.b16 %v286, %v282
    %v295 = vpack.c.b16 %v287, %v283
    %v296 = vpack.c.b16 %v288, %v284
    %v297 = vpack.c.b16 %v289, %v285
    %vm306 = vcmask 261120
    %v308 = vsel %vm306, %v247, 0
    %310 = vmatpush.bf16.msra.mxu0 0
    %311 = vmatpush.bf16.msra.mxu0 0
    %312 = vmatpush.bf16.msra.mxu0 0
    %313 = vmatpush.bf16.msra.mxu0 0
    %314 = vmatpush.bf16.msra.mxu0 0
    %315 = vmatpush.bf16.msra.mxu0 0
    %316 = vmatpush.bf16.msra.mxu0 %v294
    %317 = vmatpush.bf16.msra.mxu0 %v290
    %318 = vmatmul.bf16.gmra.mxu0 %v308
    %v319 = vpop.f32.mrf.mxu0
    %v320 = vadd.f32 %v258, %v319
    %v321 = vpop.f32.mrf.mxu0
    %322 = vdwg.mxu0
    %323 = vmatpush.bf16.msra.mxu0 0
    %324 = vmatpush.bf16.msra.mxu0 0
    %325 = vmatpush.bf16.msra.mxu0 0
    %326 = vmatpush.bf16.msra.mxu0 0
    %327 = vmatpush.bf16.msra.mxu0 0
    %328 = vmatpush.bf16.msra.mxu0 0
    %329 = vmatpush.bf16.msra.mxu0 %v295
    %330 = vmatpush.bf16.msra.mxu0 %v291
    %331 = vmatmul.bf16.gmra.mxu0 %v308
    %v332 = vpop.f32.mrf.mxu0
    %v333 = vadd.f32 %v259, %v332
    %v334 = vpop.f32.mrf.mxu0
    %335 = vdwg.mxu0
    %336 = vmatpush.bf16.msra.mxu0 0
    %337 = vmatpush.bf16.msra.mxu0 0
    %338 = vmatpush.bf16.msra.mxu0 0
    %339 = vmatpush.bf16.msra.mxu0 0
    %340 = vmatpush.bf16.msra.mxu0 0
    %341 = vmatpush.bf16.msra.mxu0 0
    %342 = vmatpush.bf16.msra.mxu0 %v296
    %343 = vmatpush.bf16.msra.mxu0 %v292
    %344 = vmatmul.bf16.gmra.mxu0 %v308
    %v345 = vpop.f32.mrf.mxu0
    %v346 = vadd.f32 %v260, %v345
    %v347 = vpop.f32.mrf.mxu0
    %348 = vdwg.mxu0
    %349 = vmatpush.bf16.msra.mxu0 0
    %350 = vmatpush.bf16.msra.mxu0 0
    %351 = vmatpush.bf16.msra.mxu0 0
    %352 = vmatpush.bf16.msra.mxu0 0
    %353 = vmatpush.bf16.msra.mxu0 0
    %354 = vmatpush.bf16.msra.mxu0 0
    %355 = vmatpush.bf16.msra.mxu0 %v297
    %356 = vmatpush.bf16.msra.mxu0 %v293
    %357 = vmatmul.bf16.gmra.mxu0 %v308
    %v358 = vpop.f32.mrf.mxu0
    %v359 = vadd.f32 %v261, %v358
    %v360 = vpop.f32.mrf.mxu0
    %361 = vdwg.mxu0
    %vm362 = vcmask 1041408
    %v363 = vsel %vm362, %v320, 0.0
    %v364 = vrot.slane %v363, 4
    %v365 = vadd.f32 %v363, %v364
    %v366 = vrot.slane %v365, 2
    %v367 = vadd.f32 %v365, %v366
    %v368 = vrot.slane %v367, 1
    %v369 = vadd.f32 %v367, %v368
    %v370 = vadd.f32 %v369, 0.0
    %v371 = vsel %vm362, %v333, 0.0
    %v372 = vrot.slane %v371, 4
    %v373 = vadd.f32 %v371, %v372
    %v374 = vrot.slane %v373, 2
    %v375 = vadd.f32 %v373, %v374
    %v376 = vrot.slane %v375, 1
    %v377 = vadd.f32 %v375, %v376
    %v378 = vadd.f32 %v370, %v377
    %v379 = vsel %vm362, %v346, 0.0
    %v380 = vrot.slane %v379, 4
    %v381 = vadd.f32 %v379, %v380
    %v382 = vrot.slane %v381, 2
    %v383 = vadd.f32 %v381, %v382
    %v384 = vrot.slane %v383, 1
    %v385 = vadd.f32 %v383, %v384
    %v386 = vadd.f32 %v378, %v385
    %v387 = vsel %vm362, %v359, 0.0
    %v388 = vrot.slane %v387, 4
    %v389 = vadd.f32 %v387, %v388
    %v390 = vrot.slane %v389, 2
    %v391 = vadd.f32 %v389, %v390
    %v392 = vrot.slane %v391, 1
    %v393 = vadd.f32 %v391, %v392
    %v394 = vadd.f32 %v386, %v393
    %v395 = vrcp.pop 8.0
    %v396 = vmul.f32 8.0, %v395
    %v397 = vsub.f32 1.0, %v396
    %v398 = vmul.f32 %v395, %v397
    %v399 = vadd.f32 %v395, %v398
    %vm400 = vweird.f32 %v395
    %v401 = vsel %vm400, %v395, %v399
    %v402 = vmul.f32 %v394, %v401
    %v403 = vsub.f32 %v320, %v402
    %v404 = vmul.f32 %v403, %v403
    %v405 = vsel %vm362, %v404, 0.0
    %v406 = vrot.slane %v405, 4
    %v407 = vadd.f32 %v405, %v406
    %v408 = vrot.slane %v407, 2
    %v409 = vadd.f32 %v407, %v408
    %v410 = vrot.slane %v409, 1
    %v411 = vadd.f32 %v409, %v410
    %v412 = vadd.f32 %v411, 0.0
    %v413 = vsub.f32 %v333, %v402
    %v414 = vmul.f32 %v413, %v413
    %v415 = vsel %vm362, %v414, 0.0
    %v416 = vrot.slane %v415, 4
    %v417 = vadd.f32 %v415, %v416
    %v418 = vrot.slane %v417, 2
    %v419 = vadd.f32 %v417, %v418
    %v420 = vrot.slane %v419, 1
    %v421 = vadd.f32 %v419, %v420
    %v422 = vadd.f32 %v412, %v421
    %v423 = vsub.f32 %v346, %v402
    %v424 = vmul.f32 %v423, %v423
    %v425 = vsel %vm362, %v424, 0.0
    %v426 = vrot.slane %v425, 4
    %v427 = vadd.f32 %v425, %v426
    %v428 = vrot.slane %v427, 2
    %v429 = vadd.f32 %v427, %v428
    %v430 = vrot.slane %v429, 1
    %v431 = vadd.f32 %v429, %v430
    %v432 = vadd.f32 %v422, %v431
    %v433 = vsub.f32 %v359, %v402
    %v434 = vmul.f32 %v433, %v433
    %v435 = vsel %vm362, %v434, 0.0
    %v436 = vrot.slane %v435, 4
    %v437 = vadd.f32 %v435, %v436
    %v438 = vrot.slane %v437, 2
    %v439 = vadd.f32 %v437, %v438
    %v440 = vrot.slane %v439, 1
    %v441 = vadd.f32 %v439, %v440
    %v442 = vadd.f32 %v432, %v441
    %v443 = vmul.f32 %v442, %v401
    %v444 = vadd.f32 %v443, 1e-05
    %v445 = vrsqrt.pop %v444
    %v446 = vmul.f32 %v445, %v444
    %v447 = vmul.f32 %v446, %v445
    %v448 = vmul.f32 0.5, %v447
    %v449 = vsub.f32 1.5, %v448
    %v450 = vmul.f32 %v445, %v449
    %vm451 = vweird.f32 %v444
    %vm452 = vweird.f32 %v445
    %vm453 = vmor %vm451, %vm452
    %v454 = vsel %vm453, %v445, %v450
    %v455 = vld [vmem:[#allocation7] sm:$0x1]
    %v456 = vmul.f32 %v454, %v455
    %v457 = vld [vmem:[#allocation9] sm:$0x1]
    %v458 = vmul.f32 %v402, %v456
    %v459 = vsub.f32 %v457, %v458
    %v460 = vperm.slane %v456, 0
    %v461 = vmul.f32 %v320, %v460
    %v463 = vperm.slane %v459, 0
    %v465 = vadd.f32 %v461, %v463
    %v466 = vmul.f32 %v333, %v460
    %v467 = vadd.f32 %v466, %v463
    %v468 = vmul.f32 %v346, %v460
    %v469 = vadd.f32 %v468, %v463
    %v470 = vmul.f32 %v359, %v460
    %v471 = vadd.f32 %v470, %v463
    %472 = vst [vmem:[#allocation2] sm:$0xff] 0.0
    %473 = vst [vmem:[#allocation2 + $0x8] sm:$0xff] 0.0
    %474 = vst [vmem:[#allocation2 + $0x10] sm:$0xff] 0.0
    %475 = vst [vmem:[#allocation2 + $0x18] sm:$0xff] 0.0
    %476 = vst [vmem:[#allocation2 + $0x20] sm:$0xff] 0.0
    %477 = vst [vmem:[#allocation2 + $0x28] sm:$0xff] 0.0
    %478 = vst [vmem:[#allocation2 + $0x30] sm:$0xff] 0.0
    %479 = vst [vmem:[#allocation2 + $0x38] sm:$0xff] 0.0
    %480 = vst [vmem:[#allocation2 + $0x40] sm:$0xff] 0.0
    %481 = vst [vmem:[#allocation2 + $0x48] sm:$0xff] 0.0
    %482 = vst [vmem:[#allocation2 + $0x50] sm:$0x3f] 0.0
    %v483 = vperm.slane %v465, 0
    %v484 = vperm.slane %v467, 0
    %v485 = vsel %vm362, %v483, %v484
    %v487 = vrot.slane %v485, 2
    %vm489 = vcmask 1043456
    %v490 = vsel %vm489, %v485, 0.0
    %vm491 = vcmask 1045504
    %v492 = vsel %vm491, %v490, %v487
    %493 = vst [vmem:[#allocation2 + $0xe] sm:$0xff] %v492
    %494 = vst [vmem:[#allocation2 + $0x16] sm:$0x3] %v487
    %v495 = vperm.slane %v469, 0
    %v496 = vperm.slane %v471, 0
    %v497 = vsel %vm362, %v495, %v496
    %v499 = vrot.slane %v497, 2
    %v501 = vsel %vm489, %v497, 0.0
    %v502 = vsel %vm491, %v501, %v499
    %503 = vst [vmem:[#allocation2 + $0x1a] sm:$0xff] %v502
    %504 = vst [vmem:[#allocation2 + $0x22] sm:$0x3] %v499
    %v505 = vperm.slane %v465, 1
    %v506 = vperm.slane %v467, 1
    %v507 = vsel %vm362, %v505, %v506
    %v509 = vrot.slane %v507, 2
    %v511 = vsel %vm489, %v507, 0.0
    %v512 = vsel %vm491, %v511, %v509
    %513 = vst [vmem:[#allocation2 + $0x32] sm:$0xff] %v512
    %514 = vst [vmem:[#allocation2 + $0x3a] sm:$0x3] %v509
    %v515 = vperm.slane %v469, 1
    %v516 = vperm.slane %v471, 1
    %v517 = vsel %vm362, %v515, %v516
    %v519 = vrot.slane %v517, 2
    %v521 = vsel %vm489, %v517, 0.0
    %v522 = vsel %vm491, %v521, %v519
    %523 = vst [vmem:[#allocation2 + $0x3e] sm:$0xff] %v522
    %524 = vst [vmem:[#allocation2 + $0x46] sm:$0x3] %v519
    %v525 = vld [vmem:[#allocation2] sm:$0xff]
    %v526 = vld [vmem:[#allocation2 + $0x8] sm:$0xff]
    %v527 = vld [vmem:[#allocation2 + $0x10] sm:$0xff]
    %v528 = vld [vmem:[#allocation2 + $0x18] sm:$0xff]
    %v529 = vld [vmem:[#allocation2 + $0x20] sm:$0xff]
    %v530 = vld [vmem:[#allocation2 + $0x28] sm:$0xff]
    %v531 = vld [vmem:[#allocation2 + $0x30] sm:$0xff]
    %v532 = vld [vmem:[#allocation2 + $0x38] sm:$0xff]
    %v533 = vld [vmem:[#allocation2 + $0x40] sm:$0xff]
    %v534 = vpack.c.bf16 %v526, %v525
    %v535 = vpack.c.bf16 %v528, %v527
    %v536 = vpack.c.bf16 %v530, %v529
    %v537 = vpack.c.bf16 %v532, %v531
    %v538 = vpack.c.bf16 %v533, %v533
    %v539 = vld [vmem:[#allocation10] sm:$0xf]
    %v540 = vld [vmem:[#allocation10 + $0x4] sm:$0xf]
    %v541 = vld [vmem:[#allocation10 + $0x8] sm:$0xf]
    %v542 = vld [vmem:[#allocation10 + $0xc] sm:$0xf]
    %v543 = vld [vmem:[#allocation10 + $0x10] sm:$0xf]
    %v544 = vld [vmem:[#allocation10 + $0x14] sm:$0xf]
    %v545 = vld [vmem:[#allocation10 + $0x18] sm:$0xf]
    %v546 = vld [vmem:[#allocation10 + $0x1c] sm:$0xf]
    %v547 = vld [vmem:[#allocation10 + $0x20] sm:$0xf]
    %v548 = vld [vmem:[#allocation10 + $0x24] sm:$0xf]
    %v549 = vld [vmem:[#allocation10 + $0x28] sm:$0xf]
    %v550 = vld [vmem:[#allocation10 + $0x2c] sm:$0xf]
    %v551 = vld [vmem:[#allocation10 + $0x30] sm:$0xf]
    %v552 = vld [vmem:[#allocation10 + $0x34] sm:$0xf]
    %v553 = vld [vmem:[#allocation10 + $0x38] sm:$0xf]
    %v554 = vld [vmem:[#allocation10 + $0x3c] sm:$0xf]
    %v555 = vld [vmem:[#allocation2 + $0x1] sm:$0xff]
    %v556 = vld [vmem:[#allocation2 + $0x9] sm:$0xff]
    %v557 = vld [vmem:[#allocation2 + $0x11] sm:$0xff]
    %v558 = vld [vmem:[#allocation2 + $0x19] sm:$0xff]
    %v559 = vld [vmem:[#allocation2 + $0x21] sm:$0xff]
    %v560 = vld [vmem:[#allocation2 + $0x29] sm:$0xff]
    %v561 = vld [vmem:[#allocation2 + $0x31] sm:$0xff]
    %v562 = vld [vmem:[#allocation2 + $0x39] sm:$0xff]
    %v563 = vld [vmem:[#allocation2 + $0x41] sm:$0xff]
    %v564 = vpack.c.bf16 %v556, %v555
    %v565 = vpack.c.bf16 %v558, %v557
    %v566 = vpack.c.bf16 %v560, %v559
    %v567 = vpack.c.bf16 %v562, %v561
    %v568 = vpack.c.bf16 %v563, %v563
    %s569 = scalar_lea.vmem [#allocation10], 64
    %v570 = vld [vmem:[%s569] sm:$0xf]
    %v571 = vld [vmem:[%s569 + $0x4] sm:$0xf]
    %v572 = vld [vmem:[%s569 + $0x8] sm:$0xf]
    %v573 = vld [vmem:[%s569 + $0xc] sm:$0xf]
    %v574 = vld [vmem:[%s569 + $0x10] sm:$0xf]
    %v575 = vld [vmem:[%s569 + $0x14] sm:$0xf]
    %v576 = vld [vmem:[%s569 + $0x18] sm:$0xf]
    %v577 = vld [vmem:[%s569 + $0x1c] sm:$0xf]
    %v578 = vld [vmem:[%s569 + $0x20] sm:$0xf]
    %v579 = vld [vmem:[%s569 + $0x24] sm:$0xf]
    %v580 = vld [vmem:[%s569 + $0x28] sm:$0xf]
    %v581 = vld [vmem:[%s569 + $0x2c] sm:$0xf]
    %v582 = vld [vmem:[%s569 + $0x30] sm:$0xf]
    %v583 = vld [vmem:[%s569 + $0x34] sm:$0xf]
    %v584 = vld [vmem:[%s569 + $0x38] sm:$0xf]
    %v585 = vld [vmem:[%s569 + $0x3c] sm:$0xf]
    %v602 = vunpack.c.l.b16 %v570
    %v603 = vunpack.c.l.b16 %v571
    %v604 = vunpack.c.l.b16 %v572
    %v605 = vunpack.c.l.b16 %v573
    %v606 = vunpack.c.l.b16 %v574
    %v607 = vunpack.c.l.b16 %v575
    %v608 = vunpack.c.l.b16 %v576
    %v609 = vunpack.c.l.b16 %v577
    %v610 = vunpack.c.l.b16 %v578
    %v611 = vunpack.c.l.b16 %v579
    %v612 = vunpack.c.l.b16 %v580
    %v613 = vunpack.c.l.b16 %v581
    %v614 = vunpack.c.l.b16 %v582
    %v615 = vunpack.c.l.b16 %v583
    %v616 = vunpack.c.l.b16 %v584
    %v617 = vunpack.c.l.b16 %v585
    %v618 = vpack.c.b16 %v603, %v602
    %v619 = vpack.c.b16 %v605, %v604
    %v620 = vpack.c.b16 %v607, %v606
    %v621 = vpack.c.b16 %v609, %v608
    %v622 = vpack.c.b16 %v611, %v610
    %v623 = vpack.c.b16 %v613, %v612
    %v624 = vpack.c.b16 %v615, %v614
    %v625 = vpack.c.b16 %v617, %v616
    %634 = vmatpush.bf16.msra.mxu0 %v625
    %635 = vmatpush.bf16.msra.mxu0 %v624
    %636 = vmatpush.bf16.msra.mxu0 %v623
    %637 = vmatpush.bf16.msra.mxu0 %v622
    %638 = vmatpush.bf16.msra.mxu0 %v621
    %639 = vmatpush.bf16.msra.mxu0 %v620
    %640 = vmatpush.bf16.msra.mxu0 %v619
    %641 = vmatpush.bf16.msra.mxu0 %v618
    %642 = vmatmul.bf16.gmra.mxu0 %v564
    %v643 = vpop.f32.mrf.mxu0
    %v644 = vadd.f32 0.0, %v643
    %v645 = vpop.f32.mrf.mxu0
    %v646 = vadd.f32 0.0, %v645
    %647 = vmatmul.bf16.gmra.mxu0 %v565
    %v648 = vpop.f32.mrf.mxu0
    %v649 = vadd.f32 0.0, %v648
    %v650 = vpop.f32.mrf.mxu0
    %v651 = vadd.f32 0.0, %v650
    %652 = vmatmul.bf16.gmra.mxu0 %v566
    %v653 = vpop.f32.mrf.mxu0
    %v654 = vadd.f32 0.0, %v653
    %v655 = vpop.f32.mrf.mxu0
    %v656 = vadd.f32 0.0, %v655
    %657 = vmatmul.bf16.gmra.mxu0 %v567
    %v658 = vpop.f32.mrf.mxu0
    %v659 = vadd.f32 0.0, %v658
    %v660 = vpop.f32.mrf.mxu0
    %v661 = vadd.f32 0.0, %v660
    %662 = vmatmul.bf16.gmra.mxu0 %v568
    %v663 = vpop.f32.mrf.mxu0
    %v664 = vadd.f32 0.0, %v663
    %v665 = vpop.f32.mrf.mxu0
    %666 = vdwg.mxu0
    %v683 = vunpack.c.l.b16 %v539
    %v684 = vunpack.c.l.b16 %v540
    %v685 = vunpack.c.l.b16 %v541
    %v686 = vunpack.c.l.b16 %v542
    %v687 = vunpack.c.l.b16 %v543
    %v688 = vunpack.c.l.b16 %v544
    %v689 = vunpack.c.l.b16 %v545
    %v690 = vunpack.c.l.b16 %v546
    %v691 = vunpack.c.l.b16 %v547
    %v692 = vunpack.c.l.b16 %v548
    %v693 = vunpack.c.l.b16 %v549
    %v694 = vunpack.c.l.b16 %v550
    %v695 = vunpack.c.l.b16 %v551
    %v696 = vunpack.c.l.b16 %v552
    %v697 = vunpack.c.l.b16 %v553
    %v698 = vunpack.c.l.b16 %v554
    %v699 = vpack.c.b16 %v684, %v683
    %v700 = vpack.c.b16 %v686, %v685
    %v701 = vpack.c.b16 %v688, %v687
    %v702 = vpack.c.b16 %v690, %v689
    %v703 = vpack.c.b16 %v692, %v691
    %v704 = vpack.c.b16 %v694, %v693
    %v705 = vpack.c.b16 %v696, %v695
    %v706 = vpack.c.b16 %v698, %v697
    %715 = vmatpush.bf16.msra.mxu0 %v706
    %716 = vmatpush.bf16.msra.mxu0 %v705
    %717 = vmatpush.bf16.msra.mxu0 %v704
    %718 = vmatpush.bf16.msra.mxu0 %v703
    %719 = vmatpush.bf16.msra.mxu0 %v702
    %720 = vmatpush.bf16.msra.mxu0 %v701
    %721 = vmatpush.bf16.msra.mxu0 %v700
    %722 = vmatpush.bf16.msra.mxu0 %v699
    %723 = vmatmul.bf16.gmra.mxu0 %v534
    %v724 = vpop.f32.mrf.mxu0
    %v725 = vadd.f32 %v644, %v724
    %v726 = vpop.f32.mrf.mxu0
    %v727 = vadd.f32 %v646, %v726
    %728 = vmatmul.bf16.gmra.mxu0 %v535
    %v729 = vpop.f32.mrf.mxu0
    %v730 = vadd.f32 %v649, %v729
    %v731 = vpop.f32.mrf.mxu0
    %v732 = vadd.f32 %v651, %v731
    %733 = vmatmul.bf16.gmra.mxu0 %v536
    %v734 = vpop.f32.mrf.mxu0
    %v735 = vadd.f32 %v654, %v734
    %v736 = vpop.f32.mrf.mxu0
    %v737 = vadd.f32 %v656, %v736
    %738 = vmatmul.bf16.gmra.mxu0 %v537
    %v739 = vpop.f32.mrf.mxu0
    %v740 = vadd.f32 %v659, %v739
    %v741 = vpop.f32.mrf.mxu0
    %v742 = vadd.f32 %v661, %v741
    %743 = vmatmul.bf16.gmra.mxu0 %v538
    %v744 = vpop.f32.mrf.mxu0
    %v745 = vadd.f32 %v664, %v744
    %v746 = vpop.f32.mrf.mxu0
    %747 = vdwg.mxu0
    %v748 = vld [vmem:[#allocation2 + $0x2] sm:$0xff]
    %v749 = vld [vmem:[#allocation2 + $0xa] sm:$0xff]
    %v750 = vld [vmem:[#allocation2 + $0x12] sm:$0xff]
    %v751 = vld [vmem:[#allocation2 + $0x1a] sm:$0xff]
    %v752 = vld [vmem:[#allocation2 + $0x22] sm:$0xff]
    %v753 = vld [vmem:[#allocation2 + $0x2a] sm:$0xff]
    %v754 = vld [vmem:[#allocation2 + $0x32] sm:$0xff]
    %v755 = vld [vmem:[#allocation2 + $0x3a] sm:$0xff]
    %v756 = vld [vmem:[#allocation2 + $0x42] sm:$0xff]
    %v757 = vpack.c.bf16 %v749, %v748
    %v758 = vpack.c.bf16 %v751, %v750
    %v759 = vpack.c.bf16 %v753, %v752
    %v760 = vpack.c.bf16 %v755, %v754
    %v761 = vpack.c.bf16 %v756, %v756
    %s762 = scalar_lea.vmem [#allocation10], 128
    %v763 = vld [vmem:[%s762] sm:$0xf]
    %v764 = vld [vmem:[%s762 + $0x4] sm:$0xf]
    %v765 = vld [vmem:[%s762 + $0x8] sm:$0xf]
    %v766 = vld [vmem:[%s762 + $0xc] sm:$0xf]
    %v767 = vld [vmem:[%s762 + $0x10] sm:$0xf]
    %v768 = vld [vmem:[%s762 + $0x14] sm:$0xf]
    %v769 = vld [vmem:[%s762 + $0x18] sm:$0xf]
    %v770 = vld [vmem:[%s762 + $0x1c] sm:$0xf]
    %v771 = vld [vmem:[%s762 + $0x20] sm:$0xf]
    %v772 = vld [vmem:[%s762 + $0x24] sm:$0xf]
    %v773 = vld [vmem:[%s762 + $0x28] sm:$0xf]
    %v774 = vld [vmem:[%s762 + $0x2c] sm:$0xf]
    %v775 = vld [vmem:[%s762 + $0x30] sm:$0xf]
    %v776 = vld [vmem:[%s762 + $0x34] sm:$0xf]
    %v777 = vld [vmem:[%s762 + $0x38] sm:$0xf]
    %v778 = vld [vmem:[%s762 + $0x3c] sm:$0xf]
    %v795 = vunpack.c.l.b16 %v763
    %v796 = vunpack.c.l.b16 %v764
    %v797 = vunpack.c.l.b16 %v765
    %v798 = vunpack.c.l.b16 %v766
    %v799 = vunpack.c.l.b16 %v767
    %v800 = vunpack.c.l.b16 %v768
    %v801 = vunpack.c.l.b16 %v769
    %v802 = vunpack.c.l.b16 %v770
    %v803 = vunpack.c.l.b16 %v771
    %v804 = vunpack.c.l.b16 %v772
    %v805 = vunpack.c.l.b16 %v773
    %v806 = vunpack.c.l.b16 %v774
    %v807 = vunpack.c.l.b16 %v775
    %v808 = vunpack.c.l.b16 %v776
    %v809 = vunpack.c.l.b16 %v777
    %v810 = vunpack.c.l.b16 %v778
    %v811 = vpack.c.b16 %v796, %v795
    %v812 = vpack.c.b16 %v798, %v797
    %v813 = vpack.c.b16 %v800, %v799
    %v814 = vpack.c.b16 %v802, %v801
    %v815 = vpack.c.b16 %v804, %v803
    %v816 = vpack.c.b16 %v806, %v805
    %v817 = vpack.c.b16 %v808, %v807
    %v818 = vpack.c.b16 %v810, %v809
    %827 = vmatpush.bf16.msra.mxu0 %v818
    %828 = vmatpush.bf16.msra.mxu0 %v817
    %829 = vmatpush.bf16.msra.mxu0 %v816
    %830 = vmatpush.bf16.msra.mxu0 %v815
    %831 = vmatpush.bf16.msra.mxu0 %v814
    %832 = vmatpush.bf16.msra.mxu0 %v813
    %833 = vmatpush.bf16.msra.mxu0 %v812
    %834 = vmatpush.bf16.msra.mxu0 %v811
    %835 = vmatmul.bf16.gmra.mxu0 %v757
    %v836 = vpop.f32.mrf.mxu0
    %v837 = vadd.f32 0.0, %v836
    %v838 = vpop.f32.mrf.mxu0
    %v839 = vadd.f32 0.0, %v838
    %840 = vmatmul.bf16.gmra.mxu0 %v758
    %v841 = vpop.f32.mrf.mxu0
    %v842 = vadd.f32 0.0, %v841
    %v843 = vpop.f32.mrf.mxu0
    %v844 = vadd.f32 0.0, %v843
    %845 = vmatmul.bf16.gmra.mxu0 %v759
    %v846 = vpop.f32.mrf.mxu0
    %v847 = vadd.f32 0.0, %v846
    %v848 = vpop.f32.mrf.mxu0
    %v849 = vadd.f32 0.0, %v848
    %850 = vmatmul.bf16.gmra.mxu0 %v760
    %v851 = vpop.f32.mrf.mxu0
    %v852 = vadd.f32 0.0, %v851
    %v853 = vpop.f32.mrf.mxu0
    %v854 = vadd.f32 0.0, %v853
    %855 = vmatmul.bf16.gmra.mxu0 %v761
    %v856 = vpop.f32.mrf.mxu0
    %v857 = vadd.f32 0.0, %v856
    %v858 = vpop.f32.mrf.mxu0
    %859 = vdwg.mxu0
    %v860 = vadd.f32 %v725, %v837
    %v861 = vadd.f32 %v727, %v839
    %v862 = vadd.f32 %v730, %v842
    %v863 = vadd.f32 %v732, %v844
    %v864 = vadd.f32 %v735, %v847
    %v865 = vadd.f32 %v737, %v849
    %v866 = vadd.f32 %v740, %v852
    %v867 = vadd.f32 %v742, %v854
    %v868 = vadd.f32 %v745, %v857
    %v869 = vld [vmem:[#allocation2 + $0x6] sm:$0xff]
    %v870 = vld [vmem:[#allocation2 + $0xe] sm:$0xff]
    %v871 = vld [vmem:[#allocation2 + $0x16] sm:$0xff]
    %v872 = vld [vmem:[#allocation2 + $0x1e] sm:$0xff]
    %v873 = vld [vmem:[#allocation2 + $0x26] sm:$0xff]
    %v874 = vld [vmem:[#allocation2 + $0x2e] sm:$0xff]
    %v875 = vld [vmem:[#allocation2 + $0x36] sm:$0xff]
    %v876 = vld [vmem:[#allocation2 + $0x3e] sm:$0xff]
    %v877 = vld [vmem:[#allocation2 + $0x46] sm:$0xff]
    %v878 = vpack.c.bf16 %v870, %v869
    %v879 = vpack.c.bf16 %v872, %v871
    %v880 = vpack.c.bf16 %v874, %v873
    %v881 = vpack.c.bf16 %v876, %v875
    %v882 = vpack.c.bf16 %v877, %v877
    %s883 = scalar_lea.vmem [#allocation10], 192
    %v884 = vld [vmem:[%s883] sm:$0xf]
    %v885 = vld [vmem:[%s883 + $0x4] sm:$0xf]
    %v886 = vld [vmem:[%s883 + $0x8] sm:$0xf]
    %v887 = vld [vmem:[%s883 + $0xc] sm:$0xf]
    %v888 = vld [vmem:[%s883 + $0x10] sm:$0xf]
    %v889 = vld [vmem:[%s883 + $0x14] sm:$0xf]
    %v890 = vld [vmem:[%s883 + $0x18] sm:$0xf]
    %v891 = vld [vmem:[%s883 + $0x1c] sm:$0xf]
    %v892 = vld [vmem:[%s883 + $0x20] sm:$0xf]
    %v893 = vld [vmem:[%s883 + $0x24] sm:$0xf]
    %v894 = vld [vmem:[%s883 + $0x28] sm:$0xf]
    %v895 = vld [vmem:[%s883 + $0x2c] sm:$0xf]
    %v896 = vld [vmem:[%s883 + $0x30] sm:$0xf]
    %v897 = vld [vmem:[%s883 + $0x34] sm:$0xf]
    %v898 = vld [vmem:[%s883 + $0x38] sm:$0xf]
    %v899 = vld [vmem:[%s883 + $0x3c] sm:$0xf]
    %v916 = vunpack.c.l.b16 %v884
    %v917 = vunpack.c.l.b16 %v885
    %v918 = vunpack.c.l.b16 %v886
    %v919 = vunpack.c.l.b16 %v887
    %v920 = vunpack.c.l.b16 %v888
    %v921 = vunpack.c.l.b16 %v889
    %v922 = vunpack.c.l.b16 %v890
    %v923 = vunpack.c.l.b16 %v891
    %v924 = vunpack.c.l.b16 %v892
    %v925 = vunpack.c.l.b16 %v893
    %v926 = vunpack.c.l.b16 %v894
    %v927 = vunpack.c.l.b16 %v895
    %v928 = vunpack.c.l.b16 %v896
    %v929 = vunpack.c.l.b16 %v897
    %v930 = vunpack.c.l.b16 %v898
    %v931 = vunpack.c.l.b16 %v899
    %v932 = vpack.c.b16 %v917, %v916
    %v933 = vpack.c.b16 %v919, %v918
    %v934 = vpack.c.b16 %v921, %v920
    %v935 = vpack.c.b16 %v923, %v922
    %v936 = vpack.c.b16 %v925, %v924
    %v937 = vpack.c.b16 %v927, %v926
    %v938 = vpack.c.b16 %v929, %v928
    %v939 = vpack.c.b16 %v931, %v930
    %948 = vmatpush.bf16.msra.mxu0 %v939
    %949 = vmatpush.bf16.msra.mxu0 %v938
    %950 = vmatpush.bf16.msra.mxu0 %v937
    %951 = vmatpush.bf16.msra.mxu0 %v936
    %952 = vmatpush.bf16.msra.mxu0 %v935
    %953 = vmatpush.bf16.msra.mxu0 %v934
    %954 = vmatpush.bf16.msra.mxu0 %v933
    %955 = vmatpush.bf16.msra.mxu0 %v932
    %956 = vmatmul.bf16.gmra.mxu0 %v878
    %v957 = vpop.f32.mrf.mxu0
    %v958 = vadd.f32 0.0, %v957
    %v959 = vpop.f32.mrf.mxu0
    %v960 = vadd.f32 0.0, %v959
    %961 = vmatmul.bf16.gmra.mxu0 %v879
    %v962 = vpop.f32.mrf.mxu0
    %v963 = vadd.f32 0.0, %v962
    %v964 = vpop.f32.mrf.mxu0
    %v965 = vadd.f32 0.0, %v964
    %966 = vmatmul.bf16.gmra.mxu0 %v880
    %v967 = vpop.f32.mrf.mxu0
    %v968 = vadd.f32 0.0, %v967
    %v969 = vpop.f32.mrf.mxu0
    %v970 = vadd.f32 0.0, %v969
    %971 = vmatmul.bf16.gmra.mxu0 %v881
    %v972 = vpop.f32.mrf.mxu0
    %v973 = vadd.f32 0.0, %v972
    %v974 = vpop.f32.mrf.mxu0
    %v975 = vadd.f32 0.0, %v974
    %976 = vmatmul.bf16.gmra.mxu0 %v882
    %v977 = vpop.f32.mrf.mxu0
    %v978 = vadd.f32 0.0, %v977
    %v979 = vpop.f32.mrf.mxu0
    %980 = vdwg.mxu0
    %v981 = vadd.f32 %v860, %v958
    %v982 = vadd.f32 %v861, %v960
    %v983 = vadd.f32 %v862, %v963
    %v984 = vadd.f32 %v863, %v965
    %v985 = vadd.f32 %v864, %v968
    %v986 = vadd.f32 %v865, %v970
    %v987 = vadd.f32 %v866, %v973
    %v988 = vadd.f32 %v867, %v975
    %v989 = vadd.f32 %v868, %v978
    %v990 = vld [vmem:[#allocation2 + $0x7] sm:$0xff]
    %v991 = vld [vmem:[#allocation2 + $0xf] sm:$0xff]
    %v992 = vld [vmem:[#allocation2 + $0x17] sm:$0xff]
    %v993 = vld [vmem:[#allocation2 + $0x1f] sm:$0xff]
    %v994 = vld [vmem:[#allocation2 + $0x27] sm:$0xff]
    %v995 = vld [vmem:[#allocation2 + $0x2f] sm:$0xff]
    %v996 = vld [vmem:[#allocation2 + $0x37] sm:$0xff]
    %v997 = vld [vmem:[#allocation2 + $0x3f] sm:$0xff]
    %v998 = vld [vmem:[#allocation2 + $0x47] sm:$0xff]
    %v999 = vpack.c.bf16 %v991, %v990
    %v1000 = vpack.c.bf16 %v993, %v992
    %v1001 = vpack.c.bf16 %v995, %v994
    %v1002 = vpack.c.bf16 %v997, %v996
    %v1003 = vpack.c.bf16 %v998, %v998
    %s1004 = scalar_lea.vmem [#allocation10], 256
    %v1005 = vld [vmem:[%s1004] sm:$0xf]
    %v1006 = vld [vmem:[%s1004 + $0x4] sm:$0xf]
    %v1007 = vld [vmem:[%s1004 + $0x8] sm:$0xf]
    %v1008 = vld [vmem:[%s1004 + $0xc] sm:$0xf]
    %v1009 = vld [vmem:[%s1004 + $0x10] sm:$0xf]
    %v1010 = vld [vmem:[%s1004 + $0x14] sm:$0xf]
    %v1011 = vld [vmem:[%s1004 + $0x18] sm:$0xf]
    %v1012 = vld [vmem:[%s1004 + $0x1c] sm:$0xf]
    %v1013 = vld [vmem:[%s1004 + $0x20] sm:$0xf]
    %v1014 = vld [vmem:[%s1004 + $0x24] sm:$0xf]
    %v1015 = vld [vmem:[%s1004 + $0x28] sm:$0xf]
    %v1016 = vld [vmem:[%s1004 + $0x2c] sm:$0xf]
    %v1017 = vld [vmem:[%s1004 + $0x30] sm:$0xf]
    %v1018 = vld [vmem:[%s1004 + $0x34] sm:$0xf]
    %v1019 = vld [vmem:[%s1004 + $0x38] sm:$0xf]
    %v1020 = vld [vmem:[%s1004 + $0x3c] sm:$0xf]
    %v1037 = vunpack.c.l.b16 %v1005
    %v1038 = vunpack.c.l.b16 %v1006
    %v1039 = vunpack.c.l.b16 %v1007
    %v1040 = vunpack.c.l.b16 %v1008
    %v1041 = vunpack.c.l.b16 %v1009
    %v1042 = vunpack.c.l.b16 %v1010
    %v1043 = vunpack.c.l.b16 %v1011
    %v1044 = vunpack.c.l.b16 %v1012
    %v1045 = vunpack.c.l.b16 %v1013
    %v1046 = vunpack.c.l.b16 %v1014
    %v1047 = vunpack.c.l.b16 %v1015
    %v1048 = vunpack.c.l.b16 %v1016
    %v1049 = vunpack.c.l.b16 %v1017
    %v1050 = vunpack.c.l.b16 %v1018
    %v1051 = vunpack.c.l.b16 %v1019
    %v1052 = vunpack.c.l.b16 %v1020
    %v1053 = vpack.c.b16 %v1038, %v1037
    %v1054 = vpack.c.b16 %v1040, %v1039
    %v1055 = vpack.c.b16 %v1042, %v1041
    %v1056 = vpack.c.b16 %v1044, %v1043
    %v1057 = vpack.c.b16 %v1046, %v1045
    %v1058 = vpack.c.b16 %v1048, %v1047
    %v1059 = vpack.c.b16 %v1050, %v1049
    %v1060 = vpack.c.b16 %v1052, %v1051
    %1069 = vmatpush.bf16.msra.mxu0 %v1060
    %1070 = vmatpush.bf16.msra.mxu0 %v1059
    %1071 = vmatpush.bf16.msra.mxu0 %v1058
    %1072 = vmatpush.bf16.msra.mxu0 %v1057
    %1073 = vmatpush.bf16.msra.mxu0 %v1056
    %1074 = vmatpush.bf16.msra.mxu0 %v1055
    %1075 = vmatpush.bf16.msra.mxu0 %v1054
    %1076 = vmatpush.bf16.msra.mxu0 %v1053
    %1077 = vmatmul.bf16.gmra.mxu0 %v999
    %v1078 = vpop.f32.mrf.mxu0
    %v1079 = vadd.f32 0.0, %v1078
    %v1080 = vpop.f32.mrf.mxu0
    %v1081 = vadd.f32 0.0, %v1080
    %1082 = vmatmul.bf16.gmra.mxu0 %v1000
    %v1083 = vpop.f32.mrf.mxu0
    %v1084 = vadd.f32 0.0, %v1083
    %v1085 = vpop.f32.mrf.mxu0
    %v1086 = vadd.f32 0.0, %v1085
    %1087 = vmatmul.bf16.gmra.mxu0 %v1001
    %v1088 = vpop.f32.mrf.mxu0
    %v1089 = vadd.f32 0.0, %v1088
    %v1090 = vpop.f32.mrf.mxu0
    %v1091 = vadd.f32 0.0, %v1090
    %1092 = vmatmul.bf16.gmra.mxu0 %v1002
    %v1093 = vpop.f32.mrf.mxu0
    %v1094 = vadd.f32 0.0, %v1093
    %v1095 = vpop.f32.mrf.mxu0
    %v1096 = vadd.f32 0.0, %v1095
    %1097 = vmatmul.bf16.gmra.mxu0 %v1003
    %v1098 = vpop.f32.mrf.mxu0
    %v1099 = vadd.f32 0.0, %v1098
    %v1100 = vpop.f32.mrf.mxu0
    %1101 = vdwg.mxu0
    %v1102 = vadd.f32 %v981, %v1079
    %v1103 = vadd.f32 %v982, %v1081
    %v1104 = vadd.f32 %v983, %v1084
    %v1105 = vadd.f32 %v984, %v1086
    %v1106 = vadd.f32 %v985, %v1089
    %v1107 = vadd.f32 %v986, %v1091
    %v1108 = vadd.f32 %v987, %v1094
    %v1109 = vadd.f32 %v988, %v1096
    %v1110 = vadd.f32 %v989, %v1099
    %v1111 = vld [vmem:[#allocation2 + $0x8] sm:$0xff]
    %v1112 = vld [vmem:[#allocation2 + $0x10] sm:$0xff]
    %v1113 = vld [vmem:[#allocation2 + $0x18] sm:$0xff]
    %v1114 = vld [vmem:[#allocation2 + $0x20] sm:$0xff]
    %v1115 = vld [vmem:[#allocation2 + $0x28] sm:$0xff]
    %v1116 = vld [vmem:[#allocation2 + $0x30] sm:$0xff]
    %v1117 = vld [vmem:[#allocation2 + $0x38] sm:$0xff]
    %v1118 = vld [vmem:[#allocation2 + $0x40] sm:$0xff]
    %v1119 = vld [vmem:[#allocation2 + $0x48] sm:$0xff]
    %v1120 = vpack.c.bf16 %v1112, %v1111
    %v1121 = vpack.c.bf16 %v1114, %v1113
    %v1122 = vpack.c.bf16 %v1116, %v1115
    %v1123 = vpack.c.bf16 %v1118, %v1117
    %v1124 = vpack.c.bf16 %v1119, %v1119
    %s1125 = scalar_lea.vmem [#allocation10], 320
    %v1126 = vld [vmem:[%s1125] sm:$0xf]
    %v1127 = vld [vmem:[%s1125 + $0x4] sm:$0xf]
    %v1128 = vld [vmem:[%s1125 + $0x8] sm:$0xf]
    %v1129 = vld [vmem:[%s1125 + $0xc] sm:$0xf]
    %v1130 = vld [vmem:[%s1125 + $0x10] sm:$0xf]
    %v1131 = vld [vmem:[%s1125 + $0x14] sm:$0xf]
    %v1132 = vld [vmem:[%s1125 + $0x18] sm:$0xf]
    %v1133 = vld [vmem:[%s1125 + $0x1c] sm:$0xf]
    %v1134 = vld [vmem:[%s1125 + $0x20] sm:$0xf]
    %v1135 = vld [vmem:[%s1125 + $0x24] sm:$0xf]
    %v1136 = vld [vmem:[%s1125 + $0x28] sm:$0xf]
    %v1137 = vld [vmem:[%s1125 + $0x2c] sm:$0xf]
    %v1138 = vld [vmem:[%s1125 + $0x30] sm:$0xf]
    %v1139 = vld [vmem:[%s1125 + $0x34] sm:$0xf]
    %v1140 = vld [vmem:[%s1125 + $0x38] sm:$0xf]
    %v1141 = vld [vmem:[%s1125 + $0x3c] sm:$0xf]
    %v1158 = vunpack.c.l.b16 %v1126
    %v1159 = vunpack.c.l.b16 %v1127
    %v1160 = vunpack.c.l.b16 %v1128
    %v1161 = vunpack.c.l.b16 %v1129
    %v1162 = vunpack.c.l.b16 %v1130
    %v1163 = vunpack.c.l.b16 %v1131
    %v1164 = vunpack.c.l.b16 %v1132
    %v1165 = vunpack.c.l.b16 %v1133
    %v1166 = vunpack.c.l.b16 %v1134
    %v1167 = vunpack.c.l.b16 %v1135
    %v1168 = vunpack.c.l.b16 %v1136
    %v1169 = vunpack.c.l.b16 %v1137
    %v1170 = vunpack.c.l.b16 %v1138
    %v1171 = vunpack.c.l.b16 %v1139
    %v1172 = vunpack.c.l.b16 %v1140
    %v1173 = vunpack.c.l.b16 %v1141
    %v1174 = vpack.c.b16 %v1159, %v1158
    %v1175 = vpack.c.b16 %v1161, %v1160
    %v1176 = vpack.c.b16 %v1163, %v1162
    %v1177 = vpack.c.b16 %v1165, %v1164
    %v1178 = vpack.c.b16 %v1167, %v1166
    %v1179 = vpack.c.b16 %v1169, %v1168
    %v1180 = vpack.c.b16 %v1171, %v1170
    %v1181 = vpack.c.b16 %v1173, %v1172
    %1190 = vmatpush.bf16.msra.mxu0 %v1181
    %1191 = vmatpush.bf16.msra.mxu0 %v1180
    %1192 = vmatpush.bf16.msra.mxu0 %v1179
    %1193 = vmatpush.bf16.msra.mxu0 %v1178
    %1194 = vmatpush.bf16.msra.mxu0 %v1177
    %1195 = vmatpush.bf16.msra.mxu0 %v1176
    %1196 = vmatpush.bf16.msra.mxu0 %v1175
    %1197 = vmatpush.bf16.msra.mxu0 %v1174
    %1198 = vmatmul.bf16.gmra.mxu0 %v1120
    %v1199 = vpop.f32.mrf.mxu0
    %v1200 = vadd.f32 0.0, %v1199
    %v1201 = vpop.f32.mrf.mxu0
    %v1202 = vadd.f32 0.0, %v1201
    %1203 = vmatmul.bf16.gmra.mxu0 %v1121
    %v1204 = vpop.f32.mrf.mxu0
    %v1205 = vadd.f32 0.0, %v1204
    %v1206 = vpop.f32.mrf.mxu0
    %v1207 = vadd.f32 0.0, %v1206
    %1208 = vmatmul.bf16.gmra.mxu0 %v1122
    %v1209 = vpop.f32.mrf.mxu0
    %v1210 = vadd.f32 0.0, %v1209
    %v1211 = vpop.f32.mrf.mxu0
    %v1212 = vadd.f32 0.0, %v1211
    %1213 = vmatmul.bf16.gmra.mxu0 %v1123
    %v1214 = vpop.f32.mrf.mxu0
    %v1215 = vadd.f32 0.0, %v1214
    %v1216 = vpop.f32.mrf.mxu0
    %v1217 = vadd.f32 0.0, %v1216
    %1218 = vmatmul.bf16.gmra.mxu0 %v1124
    %v1219 = vpop.f32.mrf.mxu0
    %v1220 = vadd.f32 0.0, %v1219
    %v1221 = vpop.f32.mrf.mxu0
    %1222 = vdwg.mxu0
    %v1223 = vadd.f32 %v1102, %v1200
    %v1224 = vadd.f32 %v1103, %v1202
    %v1225 = vadd.f32 %v1104, %v1205
    %v1226 = vadd.f32 %v1105, %v1207
    %v1227 = vadd.f32 %v1106, %v1210
    %v1228 = vadd.f32 %v1107, %v1212
    %v1229 = vadd.f32 %v1108, %v1215
    %v1230 = vadd.f32 %v1109, %v1217
    %v1231 = vadd.f32 %v1110, %v1220
    %v1232 = vld [vmem:[#allocation2 + $0xc] sm:$0xff]
    %v1233 = vld [vmem:[#allocation2 + $0x14] sm:$0xff]
    %v1234 = vld [vmem:[#allocation2 + $0x1c] sm:$0xff]
    %v1235 = vld [vmem:[#allocation2 + $0x24] sm:$0xff]
    %v1236 = vld [vmem:[#allocation2 + $0x2c] sm:$0xff]
    %v1237 = vld [vmem:[#allocation2 + $0x34] sm:$0xff]
    %v1238 = vld [vmem:[#allocation2 + $0x3c] sm:$0xff]
    %v1239 = vld [vmem:[#allocation2 + $0x44] sm:$0xff]
    %v1240 = vld [vmem:[#allocation2 + $0x4c] sm:$0xff]
    %v1241 = vpack.c.bf16 %v1233, %v1232
    %v1242 = vpack.c.bf16 %v1235, %v1234
    %v1243 = vpack.c.bf16 %v1237, %v1236
    %v1244 = vpack.c.bf16 %v1239, %v1238
    %v1245 = vpack.c.bf16 %v1240, %v1240
    %s1246 = scalar_lea.vmem [#allocation10], 384
    %v1247 = vld [vmem:[%s1246] sm:$0xf]
    %v1248 = vld [vmem:[%s1246 + $0x4] sm:$0xf]
    %v1249 = vld [vmem:[%s1246 + $0x8] sm:$0xf]
    %v1250 = vld [vmem:[%s1246 + $0xc] sm:$0xf]
    %v1251 = vld [vmem:[%s1246 + $0x10] sm:$0xf]
    %v1252 = vld [vmem:[%s1246 + $0x14] sm:$0xf]
    %v1253 = vld [vmem:[%s1246 + $0x18] sm:$0xf]
    %v1254 = vld [vmem:[%s1246 + $0x1c] sm:$0xf]
    %v1255 = vld [vmem:[%s1246 + $0x20] sm:$0xf]
    %v1256 = vld [vmem:[%s1246 + $0x24] sm:$0xf]
    %v1257 = vld [vmem:[%s1246 + $0x28] sm:$0xf]
    %v1258 = vld [vmem:[%s1246 + $0x2c] sm:$0xf]
    %v1259 = vld [vmem:[%s1246 + $0x30] sm:$0xf]
    %v1260 = vld [vmem:[%s1246 + $0x34] sm:$0xf]
    %v1261 = vld [vmem:[%s1246 + $0x38] sm:$0xf]
    %v1262 = vld [vmem:[%s1246 + $0x3c] sm:$0xf]
    %v1279 = vunpack.c.l.b16 %v1247
    %v1280 = vunpack.c.l.b16 %v1248
    %v1281 = vunpack.c.l.b16 %v1249
    %v1282 = vunpack.c.l.b16 %v1250
    %v1283 = vunpack.c.l.b16 %v1251
    %v1284 = vunpack.c.l.b16 %v1252
    %v1285 = vunpack.c.l.b16 %v1253
    %v1286 = vunpack.c.l.b16 %v1254
    %v1287 = vunpack.c.l.b16 %v1255
    %v1288 = vunpack.c.l.b16 %v1256
    %v1289 = vunpack.c.l.b16 %v1257
    %v1290 = vunpack.c.l.b16 %v1258
    %v1291 = vunpack.c.l.b16 %v1259
    %v1292 = vunpack.c.l.b16 %v1260
    %v1293 = vunpack.c.l.b16 %v1261
    %v1294 = vunpack.c.l.b16 %v1262
    %v1295 = vpack.c.b16 %v1280, %v1279
    %v1296 = vpack.c.b16 %v1282, %v1281
    %v1297 = vpack.c.b16 %v1284, %v1283
    %v1298 = vpack.c.b16 %v1286, %v1285
    %v1299 = vpack.c.b16 %v1288, %v1287
    %v1300 = vpack.c.b16 %v1290, %v1289
    %v1301 = vpack.c.b16 %v1292, %v1291
    %v1302 = vpack.c.b16 %v1294, %v1293
    %1311 = vmatpush.bf16.msra.mxu0 %v1302
    %1312 = vmatpush.bf16.msra.mxu0 %v1301
    %1313 = vmatpush.bf16.msra.mxu0 %v1300
    %1314 = vmatpush.bf16.msra.mxu0 %v1299
    %1315 = vmatpush.bf16.msra.mxu0 %v1298
    %1316 = vmatpush.bf16.msra.mxu0 %v1297
    %1317 = vmatpush.bf16.msra.mxu0 %v1296
    %1318 = vmatpush.bf16.msra.mxu0 %v1295
    %1319 = vmatmul.bf16.gmra.mxu0 %v1241
    %v1320 = vpop.f32.mrf.mxu0
    %v1321 = vadd.f32 0.0, %v1320
    %v1322 = vpop.f32.mrf.mxu0
    %v1323 = vadd.f32 0.0, %v1322
    %1324 = vmatmul.bf16.gmra.mxu0 %v1242
    %v1325 = vpop.f32.mrf.mxu0
    %v1326 = vadd.f32 0.0, %v1325
    %v1327 = vpop.f32.mrf.mxu0
    %v1328 = vadd.f32 0.0, %v1327
    %1329 = vmatmul.bf16.gmra.mxu0 %v1243
    %v1330 = vpop.f32.mrf.mxu0
    %v1331 = vadd.f32 0.0, %v1330
    %v1332 = vpop.f32.mrf.mxu0
    %v1333 = vadd.f32 0.0, %v1332
    %1334 = vmatmul.bf16.gmra.mxu0 %v1244
    %v1335 = vpop.f32.mrf.mxu0
    %v1336 = vadd.f32 0.0, %v1335
    %v1337 = vpop.f32.mrf.mxu0
    %v1338 = vadd.f32 0.0, %v1337
    %1339 = vmatmul.bf16.gmra.mxu0 %v1245
    %v1340 = vpop.f32.mrf.mxu0
    %v1341 = vadd.f32 0.0, %v1340
    %v1342 = vpop.f32.mrf.mxu0
    %1343 = vdwg.mxu0
    %v1344 = vadd.f32 %v1223, %v1321
    %v1345 = vadd.f32 %v1224, %v1323
    %v1346 = vadd.f32 %v1225, %v1326
    %v1347 = vadd.f32 %v1226, %v1328
    %v1348 = vadd.f32 %v1227, %v1331
    %v1349 = vadd.f32 %v1228, %v1333
    %v1350 = vadd.f32 %v1229, %v1336
    %v1351 = vadd.f32 %v1230, %v1338
    %v1352 = vadd.f32 %v1231, %v1341
    %v1353 = vld [vmem:[#allocation2 + $0xd] sm:$0xff]
    %v1354 = vld [vmem:[#allocation2 + $0x15] sm:$0xff]
    %v1355 = vld [vmem:[#allocation2 + $0x1d] sm:$0xff]
    %v1356 = vld [vmem:[#allocation2 + $0x25] sm:$0xff]
    %v1357 = vld [vmem:[#allocation2 + $0x2d] sm:$0xff]
    %v1358 = vld [vmem:[#allocation2 + $0x35] sm:$0xff]
    %v1359 = vld [vmem:[#allocation2 + $0x3d] sm:$0xff]
    %v1360 = vld [vmem:[#allocation2 + $0x45] sm:$0xff]
    %v1361 = vld [vmem:[#allocation2 + $0x4d] sm:$0xff]
    %v1362 = vpack.c.bf16 %v1354, %v1353
    %v1363 = vpack.c.bf16 %v1356, %v1355
    %v1364 = vpack.c.bf16 %v1358, %v1357
    %v1365 = vpack.c.bf16 %v1360, %v1359
    %v1366 = vpack.c.bf16 %v1361, %v1361
    %s1367 = scalar_lea.vmem [#allocation10], 448
    %v1368 = vld [vmem:[%s1367] sm:$0xf]
    %v1369 = vld [vmem:[%s1367 + $0x4] sm:$0xf]
    %v1370 = vld [vmem:[%s1367 + $0x8] sm:$0xf]
    %v1371 = vld [vmem:[%s1367 + $0xc] sm:$0xf]
    %v1372 = vld [vmem:[%s1367 + $0x10] sm:$0xf]
    %v1373 = vld [vmem:[%s1367 + $0x14] sm:$0xf]
    %v1374 = vld [vmem:[%s1367 + $0x18] sm:$0xf]
    %v1375 = vld [vmem:[%s1367 + $0x1c] sm:$0xf]
    %v1376 = vld [vmem:[%s1367 + $0x20] sm:$0xf]
    %v1377 = vld [vmem:[%s1367 + $0x24] sm:$0xf]
    %v1378 = vld [vmem:[%s1367 + $0x28] sm:$0xf]
    %v1379 = vld [vmem:[%s1367 + $0x2c] sm:$0xf]
    %v1380 = vld [vmem:[%s1367 + $0x30] sm:$0xf]
    %v1381 = vld [vmem:[%s1367 + $0x34] sm:$0xf]
    %v1382 = vld [vmem:[%s1367 + $0x38] sm:$0xf]
    %v1383 = vld [vmem:[%s1367 + $0x3c] sm:$0xf]
    %v1400 = vunpack.c.l.b16 %v1368
    %v1401 = vunpack.c.l.b16 %v1369
    %v1402 = vunpack.c.l.b16 %v1370
    %v1403 = vunpack.c.l.b16 %v1371
    %v1404 = vunpack.c.l.b16 %v1372
    %v1405 = vunpack.c.l.b16 %v1373
    %v1406 = vunpack.c.l.b16 %v1374
    %v1407 = vunpack.c.l.b16 %v1375
    %v1408 = vunpack.c.l.b16 %v1376
    %v1409 = vunpack.c.l.b16 %v1377
    %v1410 = vunpack.c.l.b16 %v1378
    %v1411 = vunpack.c.l.b16 %v1379
    %v1412 = vunpack.c.l.b16 %v1380
    %v1413 = vunpack.c.l.b16 %v1381
    %v1414 = vunpack.c.l.b16 %v1382
    %v1415 = vunpack.c.l.b16 %v1383
    %v1416 = vpack.c.b16 %v1401, %v1400
    %v1417 = vpack.c.b16 %v1403, %v1402
    %v1418 = vpack.c.b16 %v1405, %v1404
    %v1419 = vpack.c.b16 %v1407, %v1406
    %v1420 = vpack.c.b16 %v1409, %v1408
    %v1421 = vpack.c.b16 %v1411, %v1410
    %v1422 = vpack.c.b16 %v1413, %v1412
    %v1423 = vpack.c.b16 %v1415, %v1414
    %1432 = vmatpush.bf16.msra.mxu0 %v1423
    %1433 = vmatpush.bf16.msra.mxu0 %v1422
    %1434 = vmatpush.bf16.msra.mxu0 %v1421
    %1435 = vmatpush.bf16.msra.mxu0 %v1420
    %1436 = vmatpush.bf16.msra.mxu0 %v1419
    %1437 = vmatpush.bf16.msra.mxu0 %v1418
    %1438 = vmatpush.bf16.msra.mxu0 %v1417
    %1439 = vmatpush.bf16.msra.mxu0 %v1416
    %1440 = vmatmul.bf16.gmra.mxu0 %v1362
    %v1441 = vpop.f32.mrf.mxu0
    %v1442 = vadd.f32 0.0, %v1441
    %v1443 = vpop.f32.mrf.mxu0
    %v1444 = vadd.f32 0.0, %v1443
    %1445 = vmatmul.bf16.gmra.mxu0 %v1363
    %v1446 = vpop.f32.mrf.mxu0
    %v1447 = vadd.f32 0.0, %v1446
    %v1448 = vpop.f32.mrf.mxu0
    %v1449 = vadd.f32 0.0, %v1448
    %1450 = vmatmul.bf16.gmra.mxu0 %v1364
    %v1451 = vpop.f32.mrf.mxu0
    %v1452 = vadd.f32 0.0, %v1451
    %v1453 = vpop.f32.mrf.mxu0
    %v1454 = vadd.f32 0.0, %v1453
    %1455 = vmatmul.bf16.gmra.mxu0 %v1365
    %v1456 = vpop.f32.mrf.mxu0
    %v1457 = vadd.f32 0.0, %v1456
    %v1458 = vpop.f32.mrf.mxu0
    %v1459 = vadd.f32 0.0, %v1458
    %1460 = vmatmul.bf16.gmra.mxu0 %v1366
    %v1461 = vpop.f32.mrf.mxu0
    %v1462 = vadd.f32 0.0, %v1461
    %v1463 = vpop.f32.mrf.mxu0
    %1464 = vdwg.mxu0
    %v1465 = vadd.f32 %v1344, %v1442
    %v1466 = vadd.f32 %v1345, %v1444
    %v1467 = vadd.f32 %v1346, %v1447
    %v1468 = vadd.f32 %v1347, %v1449
    %v1469 = vadd.f32 %v1348, %v1452
    %v1470 = vadd.f32 %v1349, %v1454
    %v1471 = vadd.f32 %v1350, %v1457
    %v1472 = vadd.f32 %v1351, %v1459
    %v1473 = vadd.f32 %v1352, %v1462
    %v1474 = vld [vmem:[#allocation2 + $0xe] sm:$0xff]
    %v1475 = vld [vmem:[#allocation2 + $0x16] sm:$0xff]
    %v1476 = vld [vmem:[#allocation2 + $0x1e] sm:$0xff]
    %v1477 = vld [vmem:[#allocation2 + $0x26] sm:$0xff]
    %v1478 = vld [vmem:[#allocation2 + $0x2e] sm:$0xff]
    %v1479 = vld [vmem:[#allocation2 + $0x36] sm:$0xff]
    %v1480 = vld [vmem:[#allocation2 + $0x3e] sm:$0xff]
    %v1481 = vld [vmem:[#allocation2 + $0x46] sm:$0xff]
    %v1482 = vld [vmem:[#allocation2 + $0x4e] sm:$0xff]
    %v1483 = vpack.c.bf16 %v1475, %v1474
    %v1484 = vpack.c.bf16 %v1477, %v1476
    %v1485 = vpack.c.bf16 %v1479, %v1478
    %v1486 = vpack.c.bf16 %v1481, %v1480
    %v1487 = vpack.c.bf16 %v1482, %v1482
    %s1488 = scalar_lea.vmem [#allocation10], 512
    %v1489 = vld [vmem:[%s1488] sm:$0xf]
    %v1490 = vld [vmem:[%s1488 + $0x4] sm:$0xf]
    %v1491 = vld [vmem:[%s1488 + $0x8] sm:$0xf]
    %v1492 = vld [vmem:[%s1488 + $0xc] sm:$0xf]
    %v1493 = vld [vmem:[%s1488 + $0x10] sm:$0xf]
    %v1494 = vld [vmem:[%s1488 + $0x14] sm:$0xf]
    %v1495 = vld [vmem:[%s1488 + $0x18] sm:$0xf]
    %v1496 = vld [vmem:[%s1488 + $0x1c] sm:$0xf]
    %v1497 = vld [vmem:[%s1488 + $0x20] sm:$0xf]
    %v1498 = vld [vmem:[%s1488 + $0x24] sm:$0xf]
    %v1499 = vld [vmem:[%s1488 + $0x28] sm:$0xf]
    %v1500 = vld [vmem:[%s1488 + $0x2c] sm:$0xf]
    %v1501 = vld [vmem:[%s1488 + $0x30] sm:$0xf]
    %v1502 = vld [vmem:[%s1488 + $0x34] sm:$0xf]
    %v1503 = vld [vmem:[%s1488 + $0x38] sm:$0xf]
    %v1504 = vld [vmem:[%s1488 + $0x3c] sm:$0xf]
    %v1521 = vunpack.c.l.b16 %v1489
    %v1522 = vunpack.c.l.b16 %v1490
    %v1523 = vunpack.c.l.b16 %v1491
    %v1524 = vunpack.c.l.b16 %v1492
    %v1525 = vunpack.c.l.b16 %v1493
    %v1526 = vunpack.c.l.b16 %v1494
    %v1527 = vunpack.c.l.b16 %v1495
    %v1528 = vunpack.c.l.b16 %v1496
    %v1529 = vunpack.c.l.b16 %v1497
    %v1530 = vunpack.c.l.b16 %v1498
    %v1531 = vunpack.c.l.b16 %v1499
    %v1532 = vunpack.c.l.b16 %v1500
    %v1533 = vunpack.c.l.b16 %v1501
    %v1534 = vunpack.c.l.b16 %v1502
    %v1535 = vunpack.c.l.b16 %v1503
    %v1536 = vunpack.c.l.b16 %v1504
    %v1537 = vpack.c.b16 %v1522, %v1521
    %v1538 = vpack.c.b16 %v1524, %v1523
    %v1539 = vpack.c.b16 %v1526, %v1525
    %v1540 = vpack.c.b16 %v1528, %v1527
    %v1541 = vpack.c.b16 %v1530, %v1529
    %v1542 = vpack.c.b16 %v1532, %v1531
    %v1543 = vpack.c.b16 %v1534, %v1533
    %v1544 = vpack.c.b16 %v1536, %v1535
    %1553 = vmatpush.bf16.msra.mxu0 %v1544
    %1554 = vmatpush.bf16.msra.mxu0 %v1543
    %1555 = vmatpush.bf16.msra.mxu0 %v1542
    %1556 = vmatpush.bf16.msra.mxu0 %v1541
    %1557 = vmatpush.bf16.msra.mxu0 %v1540
    %1558 = vmatpush.bf16.msra.mxu0 %v1539
    %1559 = vmatpush.bf16.msra.mxu0 %v1538
    %1560 = vmatpush.bf16.msra.mxu0 %v1537
    %1561 = vmatmul.bf16.gmra.mxu0 %v1483
    %v1562 = vpop.f32.mrf.mxu0
    %v1563 = vadd.f32 0.0, %v1562
    %v1564 = vpop.f32.mrf.mxu0
    %v1565 = vadd.f32 0.0, %v1564
    %1566 = vmatmul.bf16.gmra.mxu0 %v1484
    %v1567 = vpop.f32.mrf.mxu0
    %v1568 = vadd.f32 0.0, %v1567
    %v1569 = vpop.f32.mrf.mxu0
    %v1570 = vadd.f32 0.0, %v1569
    %1571 = vmatmul.bf16.gmra.mxu0 %v1485
    %v1572 = vpop.f32.mrf.mxu0
    %v1573 = vadd.f32 0.0, %v1572
    %v1574 = vpop.f32.mrf.mxu0
    %v1575 = vadd.f32 0.0, %v1574
    %1576 = vmatmul.bf16.gmra.mxu0 %v1486
    %v1577 = vpop.f32.mrf.mxu0
    %v1578 = vadd.f32 0.0, %v1577
    %v1579 = vpop.f32.mrf.mxu0
    %v1580 = vadd.f32 0.0, %v1579
    %1581 = vmatmul.bf16.gmra.mxu0 %v1487
    %v1582 = vpop.f32.mrf.mxu0
    %v1583 = vadd.f32 0.0, %v1582
    %v1584 = vpop.f32.mrf.mxu0
    %1585 = vdwg.mxu0
    %v1586 = vadd.f32 %v1465, %v1563
    %v1587 = vadd.f32 %v1466, %v1565
    %v1588 = vadd.f32 %v1467, %v1568
    %v1589 = vadd.f32 %v1468, %v1570
    %v1590 = vadd.f32 %v1469, %v1573
    %v1591 = vadd.f32 %v1470, %v1575
    %v1592 = vadd.f32 %v1471, %v1578
    %v1593 = vadd.f32 %v1472, %v1580
    %v1594 = vadd.f32 %v1473, %v1583
    %v1595 = vld [vmem:[#allocation12] sm:$0x1]
    %v1597 = vperm.slane %v1595, 0
    %v1599 = vadd.f32 %v1586, %v1597
    %v1600 = vadd.f32 %v1587, %v1597
    %v1601 = vadd.f32 %v1588, %v1597
    %v1602 = vadd.f32 %v1589, %v1597
    %v1603 = vadd.f32 %v1590, %v1597
    %v1604 = vadd.f32 %v1591, %v1597
    %v1605 = vadd.f32 %v1592, %v1597
    %v1606 = vadd.f32 %v1593, %v1597
    %v1607 = vadd.f32 %v1594, %v1597
    %v1608 = vld [vmem:[#allocation22] sm:$0xff]
    %v1609 = vld [vmem:[#allocation22 + $0x8] sm:$0xff]
    %v1610 = vld [vmem:[#allocation22 + $0x10] sm:$0xff]
    %v1611 = vld [vmem:[#allocation22 + $0x18] sm:$0xff]
    %v1612 = vld [vmem:[#allocation22 + $0x20] sm:$0xff]
    %v1613 = vld [vmem:[#allocation22 + $0x28] sm:$0xff]
    %v1614 = vld [vmem:[#allocation22 + $0x30] sm:$0xff]
    %v1615 = vld [vmem:[#allocation22 + $0x38] sm:$0xff]
    %v1616 = vld [vmem:[#allocation22 + $0x40] sm:$0xff]
    %1618 = vset.pattern.permute.xlu0 0
    %1619 = vperm.xlu0 %1618, %v1608
    %v1620 = vpop.permute.xlu0 %1619
    %1623 = vset.pattern.permute.xlu0 0
    %1624 = vperm.xlu0 %1623, %v1609
    %v1625 = vpop.permute.xlu0 %1624
    %1628 = vset.pattern.permute.xlu0 0
    %1629 = vperm.xlu0 %1628, %v1610
    %v1630 = vpop.permute.xlu0 %1629
    %1633 = vset.pattern.permute.xlu0 0
    %1634 = vperm.xlu0 %1633, %v1611
    %v1635 = vpop.permute.xlu0 %1634
    %1638 = vset.pattern.permute.xlu0 0
    %1639 = vperm.xlu0 %1638, %v1612
    %v1640 = vpop.permute.xlu0 %1639
    %1643 = vset.pattern.permute.xlu0 0
    %1644 = vperm.xlu0 %1643, %v1613
    %v1645 = vpop.permute.xlu0 %1644
    %1648 = vset.pattern.permute.xlu0 0
    %1649 = vperm.xlu0 %1648, %v1614
    %v1650 = vpop.permute.xlu0 %1649
    %1653 = vset.pattern.permute.xlu0 0
    %1654 = vperm.xlu0 %1653, %v1615
    %v1655 = vpop.permute.xlu0 %1654
    %1658 = vset.pattern.permute.xlu0 0
    %1659 = vperm.xlu0 %1658, %v1616
    %v1660 = vpop.permute.xlu0 %1659
    %v1662 = vmul.f32 %v1599, %v1620
    %v1663 = vmul.f32 %v1600, %v1625
    %v1664 = vmul.f32 %v1601, %v1630
    %v1665 = vmul.f32 %v1602, %v1635
    %v1666 = vmul.f32 %v1603, %v1640
    %v1667 = vmul.f32 %v1604, %v1645
    %v1668 = vmul.f32 %v1605, %v1650
    %v1669 = vmul.f32 %v1606, %v1655
    %v1670 = vmul.f32 %v1607, %v1660
    %v1671 = vadd.f32 %v1662, %v1663
    %v1672 = vadd.f32 %v1671, %v1664
    %v1673 = vadd.f32 %v1672, %v1665
    %v1674 = vadd.f32 %v1673, %v1666
    %v1675 = vadd.f32 %v1674, %v1667
    %v1676 = vadd.f32 %v1675, %v1668
    %v1677 = vadd.f32 %v1676, %v1669
    %v1678 = vadd.f32 %v1677, %v1670
    %v1679 = vrot.slane %v1678, 4
    %v1680 = vadd.f32 %v1678, %v1679
    %v1681 = vrot.slane %v1680, 2
    %v1682 = vadd.f32 %v1680, %v1681
    %v1683 = vrot.slane %v1682, 1
    %v1684 = vadd.f32 %v1682, %v1683
    %v1685 = vrcp.pop 32.0
    %v1686 = vmul.f32 32.0, %v1685
    %v1687 = vsub.f32 1.0, %v1686
    %v1688 = vmul.f32 %v1685, %v1687
    %v1689 = vadd.f32 %v1685, %v1688
    %vm1690 = vweird.f32 %v1685
    %v1691 = vsel %vm1690, %v1685, %v1689
    %v1692 = vmul.f32 %v1684, %v1691
    %v1693 = vsub.f32 %v1599, %v1692
    %v1694 = vsub.f32 %v1600, %v1692
    %v1695 = vsub.f32 %v1601, %v1692
    %v1696 = vsub.f32 %v1602, %v1692
    %v1697 = vsub.f32 %v1603, %v1692
    %v1698 = vsub.f32 %v1604, %v1692
    %v1699 = vsub.f32 %v1605, %v1692
    %v1700 = vsub.f32 %v1606, %v1692
    %v1701 = vsub.f32 %v1607, %v1692
    %v1702 = vmul.f32 %v1693, %v1693
    %v1703 = vmul.f32 %v1694, %v1694
    %v1704 = vmul.f32 %v1695, %v1695
    %v1705 = vmul.f32 %v1696, %v1696
    %v1706 = vmul.f32 %v1697, %v1697
    %v1707 = vmul.f32 %v1698, %v1698
    %v1708 = vmul.f32 %v1699, %v1699
    %v1709 = vmul.f32 %v1700, %v1700
    %v1710 = vmul.f32 %v1701, %v1701
    %v1711 = vmul.f32 %v1702, %v1620
    %v1712 = vmul.f32 %v1703, %v1625
    %v1713 = vmul.f32 %v1704, %v1630
    %v1714 = vmul.f32 %v1705, %v1635
    %v1715 = vmul.f32 %v1706, %v1640
    %v1716 = vmul.f32 %v1707, %v1645
    %v1717 = vmul.f32 %v1708, %v1650
    %v1718 = vmul.f32 %v1709, %v1655
    %v1719 = vmul.f32 %v1710, %v1660
    %v1720 = vadd.f32 %v1711, %v1712
    %v1721 = vadd.f32 %v1720, %v1713
    %v1722 = vadd.f32 %v1721, %v1714
    %v1723 = vadd.f32 %v1722, %v1715
    %v1724 = vadd.f32 %v1723, %v1716
    %v1725 = vadd.f32 %v1724, %v1717
    %v1726 = vadd.f32 %v1725, %v1718
    %v1727 = vadd.f32 %v1726, %v1719
    %v1728 = vrot.slane %v1727, 4
    %v1729 = vadd.f32 %v1727, %v1728
    %v1730 = vrot.slane %v1729, 2
    %v1731 = vadd.f32 %v1729, %v1730
    %v1732 = vrot.slane %v1731, 1
    %v1733 = vadd.f32 %v1731, %v1732
    %v1734 = vmul.f32 %v1733, %v1691
    %v1735 = vadd.f32 %v1734, 0.8
    %v1736 = vrsqrt.pop %v1735
    %v1737 = vmul.f32 %v1736, %v1735
    %v1738 = vmul.f32 %v1737, %v1736
    %v1739 = vmul.f32 0.5, %v1738
    %v1740 = vsub.f32 1.5, %v1739
    %v1741 = vmul.f32 %v1736, %v1740
    %vm1742 = vweird.f32 %v1735
    %vm1743 = vweird.f32 %v1736
    %vm1744 = vmor %vm1742, %vm1743
    %v1745 = vsel %vm1744, %v1736, %v1741
    %v1746 = vmul.f32 %v1693, %v1745
    %v1747 = vmul.f32 %v1694, %v1745
    %v1748 = vmul.f32 %v1695, %v1745
    %v1749 = vmul.f32 %v1696, %v1745
    %v1750 = vmul.f32 %v1698, %v1745
    %v1751 = vmul.f32 %v1699, %v1745
    %v1752 = vmul.f32 %v1700, %v1745
    %v1753 = vmul.f32 %v1701, %v1745
    %v1754 = vld [vmem:[#allocation13] sm:$0x1]
    %v1756 = vperm.slane %v1754, 0
    %v1758 = vmul.f32 %v1746, %v1756
    %v1759 = vmul.f32 %v1747, %v1756
    %v1760 = vmul.f32 %v1748, %v1756
    %v1761 = vmul.f32 %v1749, %v1756
    %v1762 = vmul.f32 %v1750, %v1756
    %v1763 = vmul.f32 %v1751, %v1756
    %v1764 = vmul.f32 %v1752, %v1756
    %v1765 = vmul.f32 %v1753, %v1756
    %v1766 = vld [vmem:[#allocation15] sm:$0x1]
    %v1768 = vperm.slane %v1766, 0
    %v1770 = vadd.f32 %v1758, %v1768
    %v1771 = vadd.f32 %v1759, %v1768
    %v1772 = vadd.f32 %v1760, %v1768
    %v1773 = vadd.f32 %v1761, %v1768
    %v1774 = vadd.f32 %v1762, %v1768
    %v1775 = vadd.f32 %v1763, %v1768
    %v1776 = vadd.f32 %v1764, %v1768
    %v1777 = vadd.f32 %v1765, %v1768
    %vm1778 = vcmp.gt.f32.partialorder %v1770, 0.0
    %vm1779 = vcmp.gt.f32.partialorder %v1771, 0.0
    %vm1780 = vcmp.gt.f32.partialorder %v1772, 0.0
    %vm1781 = vcmp.gt.f32.partialorder %v1773, 0.0
    %vm1782 = vcmp.gt.f32.partialorder %v1774, 0.0
    %vm1783 = vcmp.gt.f32.partialorder %v1775, 0.0
    %vm1784 = vcmp.gt.f32.partialorder %v1776, 0.0
    %vm1785 = vcmp.gt.f32.partialorder %v1777, 0.0
    %v1786 = vmul.f32 %v1770, 0.2
    %v1787 = vmul.f32 %v1771, 0.2
    %v1788 = vmul.f32 %v1772, 0.2
    %v1789 = vmul.f32 %v1773, 0.2
    %v1790 = vmul.f32 %v1774, 0.2
    %v1791 = vmul.f32 %v1775, 0.2
    %v1792 = vmul.f32 %v1776, 0.2
    %v1793 = vmul.f32 %v1777, 0.2
    %v1794 = vsel %vm1778, %v1770, %v1786
    %v1795 = vsel %vm1779, %v1771, %v1787
    %v1796 = vsel %vm1780, %v1772, %v1788
    %v1797 = vsel %vm1781, %v1773, %v1789
    %v1798 = vsel %vm1782, %v1774, %v1790
    %v1799 = vsel %vm1783, %v1775, %v1791
    %v1800 = vsel %vm1784, %v1776, %v1792
    %v1801 = vsel %vm1785, %v1777, %v1793
    %1802 = vst [vmem:[#allocation3] sm:$0xff] 0.0
    %1803 = vst [vmem:[#allocation3 + $0x8] sm:$0xff] 0.0
    %1804 = vst [vmem:[#allocation3 + $0x10] sm:$0xff] 0.0
    %1805 = vst [vmem:[#allocation3 + $0x18] sm:$0xff] 0.0
    %1806 = vst [vmem:[#allocation3 + $0x20] sm:$0xff] 0.0
    %1807 = vst [vmem:[#allocation3 + $0x28] sm:$0xff] 0.0
    %1808 = vst [vmem:[#allocation3 + $0x30] sm:$0xff] 0.0
    %1809 = vst [vmem:[#allocation3 + $0x38] sm:$0xff] 0.0
    %1810 = vst [vmem:[#allocation3 + $0x40] sm:$0xff] 0.0
    %1811 = vst [vmem:[#allocation3 + $0x48] sm:$0xff] 0.0
    %1812 = vst [vmem:[#allocation3 + $0x50] sm:$0xff] 0.0
    %1813 = vst [vmem:[#allocation3 + $0x58] sm:$0xff] 0.0
    %1814 = vst [vmem:[#allocation3 + $0x60] sm:$0xff] 0.0
    %1815 = vst [vmem:[#allocation3 + $0x68] sm:$0xff] 0.0
    %1816 = vst [vmem:[#allocation3 + $0x70] sm:$0xff] 0.0
    %1817 = vst [vmem:[#allocation3 + $0x78] sm:$0xff] 0.0
    %1818 = vst [vmem:[#allocation3 + $0x80] sm:$0xff] 0.0
    %1819 = vst [vmem:[#allocation3 + $0x88] sm:$0xff] 0.0
    %1820 = vst [vmem:[#allocation3 + $0x90] sm:$0xff] 0.0
    %1821 = vst [vmem:[#allocation3 + $0x98] sm:$0xff] 0.0
    %1822 = vst [vmem:[#allocation3 + $0xa0] sm:$0xff] 0.0
    %1823 = vst [vmem:[#allocation3 + $0xa8] sm:$0xff] 0.0
    %1824 = vst [vmem:[#allocation3 + $0xb0] sm:$0xff] 0.0
    %1825 = vst [vmem:[#allocation3 + $0xb8] sm:$0xff] 0.0
    %1826 = vst [vmem:[#allocation3 + $0xc0] sm:$0xff] 0.0
    %1827 = vst [vmem:[#allocation3 + $0xc8] sm:$0xff] 0.0
    %1828 = vst [vmem:[#allocation3 + $0xd0] sm:$0xff] 0.0
    %1829 = vst [vmem:[#allocation3 + $0xd8] sm:$0x3f] 0.0
    %v1830 = vperm.slane %v1794, 7
    %v1831 = vperm.slane %v1795, 0
    %v1832 = vperm.slane %v1795, 1
    %v1833 = vperm.slane %v1795, 2
    %v1834 = vsel %vm362, %v1830, %v1831
    %v1835 = vsel %vm489, %v1834, %v1832
    %v1836 = vsel %vm491, %v1835, %v1833
    %v1838 = vrot.slane %v1836, 6
    %v1840 = vsel %vm362, 0.0, %v1838
    %1841 = vst [vmem:[#allocation3 + $0x16] sm:$0xff] %v1836
    %1842 = vst [vmem:[#allocation3 + $0x1e] sm:$0xff] %v1840
    %1843 = vst [vmem:[#allocation3 + $0x26] sm:$0x3] %v1838
    %v1844 = vperm.slane %v1795, 5
    %v1845 = vperm.slane %v1795, 6
    %v1846 = vperm.slane %v1795, 7
    %v1847 = vperm.slane %v1796, 0
    %v1848 = vsel %vm362, %v1844, %v1845
    %v1849 = vsel %vm489, %v1848, %v1846
    %v1850 = vsel %vm491, %v1849, %v1847
    %v1852 = vrot.slane %v1850, 6
    %v1854 = vsel %vm362, 0.0, %v1852
    %1855 = vst [vmem:[#allocation3 + $0x2a] sm:$0xff] %v1850
    %1856 = vst [vmem:[#allocation3 + $0x32] sm:$0xff] %v1854
    %1857 = vst [vmem:[#allocation3 + $0x3a] sm:$0x3] %v1852
    %v1858 = vperm.slane %v1796, 3
    %v1859 = vperm.slane %v1796, 4
    %v1860 = vperm.slane %v1796, 5
    %v1861 = vperm.slane %v1796, 6
    %v1862 = vsel %vm362, %v1858, %v1859
    %v1863 = vsel %vm489, %v1862, %v1860
    %v1864 = vsel %vm491, %v1863, %v1861
    %v1866 = vrot.slane %v1864, 6
    %v1868 = vsel %vm362, 0.0, %v1866
    %1869 = vst [vmem:[#allocation3 + $0x3e] sm:$0xff] %v1864
    %1870 = vst [vmem:[#allocation3 + $0x46] sm:$0xff] %v1868
    %1871 = vst [vmem:[#allocation3 + $0x4e] sm:$0x3] %v1866
    %v1872 = vperm.slane %v1797, 1
    %v1873 = vperm.slane %v1797, 2
    %v1874 = vperm.slane %v1797, 3
    %v1875 = vperm.slane %v1797, 4
    %v1876 = vsel %vm362, %v1872, %v1873
    %v1877 = vsel %vm489, %v1876, %v1874
    %v1878 = vsel %vm491, %v1877, %v1875
    %v1880 = vrot.slane %v1878, 6
    %v1882 = vsel %vm362, 0.0, %v1880
    %1883 = vst [vmem:[#allocation3 + $0x52] sm:$0xff] %v1878
    %1884 = vst [vmem:[#allocation3 + $0x5a] sm:$0xff] %v1882
    %1885 = vst [vmem:[#allocation3 + $0x62] sm:$0x3] %v1880
    %v1886 = vperm.slane %v1798, 3
    %v1887 = vperm.slane %v1798, 4
    %v1888 = vperm.slane %v1798, 5
    %v1889 = vperm.slane %v1798, 6
    %v1890 = vsel %vm362, %v1886, %v1887
    %v1891 = vsel %vm489, %v1890, %v1888
    %v1892 = vsel %vm491, %v1891, %v1889
    %v1894 = vrot.slane %v1892, 6
    %v1896 = vsel %vm362, 0.0, %v1894
    %1897 = vst [vmem:[#allocation3 + $0x7a] sm:$0xff] %v1892
    %1898 = vst [vmem:[#allocation3 + $0x82] sm:$0xff] %v1896
    %1899 = vst [vmem:[#allocation3 + $0x8a] sm:$0x3] %v1894
    %v1900 = vperm.slane %v1799, 1
    %v1901 = vperm.slane %v1799, 2
    %v1902 = vperm.slane %v1799, 3
    %v1903 = vperm.slane %v1799, 4
    %v1904 = vsel %vm362, %v1900, %v1901
    %v1905 = vsel %vm489, %v1904, %v1902
    %v1906 = vsel %vm491, %v1905, %v1903
    %v1908 = vrot.slane %v1906, 6
    %v1910 = vsel %vm362, 0.0, %v1908
    %1911 = vst [vmem:[#allocation3 + $0x8e] sm:$0xff] %v1906
    %1912 = vst [vmem:[#allocation3 + $0x96] sm:$0xff] %v1910
    %1913 = vst [vmem:[#allocation3 + $0x9e] sm:$0x3] %v1908
    %v1914 = vperm.slane %v1799, 7
    %v1915 = vperm.slane %v1800, 0
    %v1916 = vperm.slane %v1800, 1
    %v1917 = vperm.slane %v1800, 2
    %v1918 = vsel %vm362, %v1914, %v1915
    %v1919 = vsel %vm489, %v1918, %v1916
    %v1920 = vsel %vm491, %v1919, %v1917
    %v1922 = vrot.slane %v1920, 6
    %v1924 = vsel %vm362, 0.0, %v1922
    %1925 = vst [vmem:[#allocation3 + $0xa2] sm:$0xff] %v1920
    %1926 = vst [vmem:[#allocation3 + $0xaa] sm:$0xff] %v1924
    %1927 = vst [vmem:[#allocation3 + $0xb2] sm:$0x3] %v1922
    %v1928 = vperm.slane %v1800, 5
    %v1929 = vperm.slane %v1800, 6
    %v1930 = vperm.slane %v1800, 7
    %v1931 = vperm.slane %v1801, 0
    %v1932 = vsel %vm362, %v1928, %v1929
    %v1933 = vsel %vm489, %v1932, %v1930
    %v1934 = vsel %vm491, %v1933, %v1931
    %v1936 = vrot.slane %v1934, 6
    %v1938 = vsel %vm362, 0.0, %v1936
    %1939 = vst [vmem:[#allocation3 + $0xb6] sm:$0xff] %v1934
    %1940 = vst [vmem:[#allocation3 + $0xbe] sm:$0xff] %v1938
    %1941 = vst [vmem:[#allocation3 + $0xc6] sm:$0x3] %v1936
    %v1942 = vld [vmem:[#allocation3] sm:$0xff]
    %v1943 = vld [vmem:[#allocation3 + $0x8] sm:$0xff]
    %v1944 = vld [vmem:[#allocation3 + $0x10] sm:$0xff]
    %v1945 = vld [vmem:[#allocation3 + $0x18] sm:$0xff]
    %v1946 = vld [vmem:[#allocation3 + $0x20] sm:$0xff]
    %v1947 = vld [vmem:[#allocation3 + $0x28] sm:$0xff]
    %v1948 = vld [vmem:[#allocation3 + $0x30] sm:$0xff]
    %v1949 = vld [vmem:[#allocation3 + $0x38] sm:$0xff]
    %v1950 = vld [vmem:[#allocation3 + $0x40] sm:$0xff]
    %v1951 = vld [vmem:[#allocation3 + $0x48] sm:$0xff]
    %v1952 = vld [vmem:[#allocation3 + $0x50] sm:$0xff]
    %v1953 = vld [vmem:[#allocation3 + $0x58] sm:$0xff]
    %v1954 = vld [vmem:[#allocation3 + $0x60] sm:$0xff]
    %v1955 = vld [vmem:[#allocation3 + $0x68] sm:$0xff]
    %v1956 = vld [vmem:[#allocation3 + $0x70] sm:$0xff]
    %v1957 = vld [vmem:[#allocation3 + $0x78] sm:$0xff]
    %v1958 = vld [vmem:[#allocation3 + $0x80] sm:$0xff]
    %v1959 = vld [vmem:[#allocation3 + $0x88] sm:$0xff]
    %v1960 = vld [vmem:[#allocation3 + $0x90] sm:$0xff]
    %v1961 = vld [vmem:[#allocation3 + $0x98] sm:$0xff]
    %v1962 = vld [vmem:[#allocation3 + $0xa0] sm:$0xff]
    %v1963 = vld [vmem:[#allocation3 + $0xa8] sm:$0xff]
    %v1964 = vld [vmem:[#allocation3 + $0xb0] sm:$0xff]
    %v1965 = vld [vmem:[#allocation3 + $0xb8] sm:$0xff]
    %v1966 = vld [vmem:[#allocation3 + $0xc0] sm:$0xff]
    %v1967 = vpack.c.bf16 %v1943, %v1942
    %v1968 = vpack.c.bf16 %v1945, %v1944
    %v1969 = vpack.c.bf16 %v1947, %v1946
    %v1970 = vpack.c.bf16 %v1949, %v1948
    %v1971 = vpack.c.bf16 %v1951, %v1950
    %v1972 = vpack.c.bf16 %v1953, %v1952
    %v1973 = vpack.c.bf16 %v1955, %v1954
    %v1974 = vpack.c.bf16 %v1957, %v1956
    %v1975 = vpack.c.bf16 %v1959, %v1958
    %v1976 = vpack.c.bf16 %v1961, %v1960
    %v1977 = vpack.c.bf16 %v1963, %v1962
    %v1978 = vpack.c.bf16 %v1965, %v1964
    %v1979 = vpack.c.bf16 %v1966, %v1966
    %v1980 = vld [vmem:[%s10] sm:$0xf]
    %v1981 = vld [vmem:[%s10 + $0x4] sm:$0xf]
    %v1982 = vld [vmem:[%s10 + $0x8] sm:$0xf]
    %v1983 = vld [vmem:[%s10 + $0xc] sm:$0xf]
    %v1984 = vld [vmem:[%s10 + $0x10] sm:$0xf]
    %v1985 = vld [vmem:[%s10 + $0x14] sm:$0xf]
    %v1986 = vld [vmem:[%s10 + $0x18] sm:$0xf]
    %v1987 = vld [vmem:[%s10 + $0x1c] sm:$0xf]
    %v1988 = vld [vmem:[%s10 + $0x20] sm:$0xf]
    %v1989 = vld [vmem:[%s10 + $0x24] sm:$0xf]
    %v1990 = vld [vmem:[%s10 + $0x28] sm:$0xf]
    %v1991 = vld [vmem:[%s10 + $0x2c] sm:$0xf]
    %v1992 = vld [vmem:[%s10 + $0x30] sm:$0xf]
    %v1993 = vld [vmem:[%s10 + $0x34] sm:$0xf]
    %v1994 = vld [vmem:[%s10 + $0x38] sm:$0xf]
    %v1995 = vld [vmem:[%s10 + $0x3c] sm:$0xf]
    %v1996 = vld [vmem:[#allocation3 + $0x1] sm:$0xff]
    %v1997 = vld [vmem:[#allocation3 + $0x9] sm:$0xff]
    %v1998 = vld [vmem:[#allocation3 + $0x11] sm:$0xff]
    %v1999 = vld [vmem:[#allocation3 + $0x19] sm:$0xff]
    %v2000 = vld [vmem:[#allocation3 + $0x21] sm:$0xff]
    %v2001 = vld [vmem:[#allocation3 + $0x29] sm:$0xff]
    %v2002 = vld [vmem:[#allocation3 + $0x31] sm:$0xff]
    %v2003 = vld [vmem:[#allocation3 + $0x39] sm:$0xff]
    %v2004 = vld [vmem:[#allocation3 + $0x41] sm:$0xff]
    %v2005 = vld [vmem:[#allocation3 + $0x49] sm:$0xff]
    %v2006 = vld [vmem:[#allocation3 + $0x51] sm:$0xff]
    %v2007 = vld [vmem:[#allocation3 + $0x59] sm:$0xff]
    %v2008 = vld [vmem:[#allocation3 + $0x61] sm:$0xff]
    %v2009 = vld [vmem:[#allocation3 + $0x69] sm:$0xff]
    %v2010 = vld [vmem:[#allocation3 + $0x71] sm:$0xff]
    %v2011 = vld [vmem:[#allocation3 + $0x79] sm:$0xff]
    %v2012 = vld [vmem:[#allocation3 + $0x81] sm:$0xff]
    %v2013 = vld [vmem:[#allocation3 + $0x89] sm:$0xff]
    %v2014 = vld [vmem:[#allocation3 + $0x91] sm:$0xff]
    %v2015 = vld [vmem:[#allocation3 + $0x99] sm:$0xff]
    %v2016 = vld [vmem:[#allocation3 + $0xa1] sm:$0xff]
    %v2017 = vld [vmem:[#allocation3 + $0xa9] sm:$0xff]
    %v2018 = vld [vmem:[#allocation3 + $0xb1] sm:$0xff]
    %v2019 = vld [vmem:[#allocation3 + $0xb9] sm:$0xff]
    %v2020 = vld [vmem:[#allocation3 + $0xc1] sm:$0xff]
    %v2021 = vpack.c.bf16 %v1997, %v1996
    %v2022 = vpack.c.bf16 %v1999, %v1998
    %v2023 = vpack.c.bf16 %v2001, %v2000
    %v2024 = vpack.c.bf16 %v2003, %v2002
    %v2025 = vpack.c.bf16 %v2005, %v2004
    %v2026 = vpack.c.bf16 %v2007, %v2006
    %v2027 = vpack.c.bf16 %v2009, %v2008
    %v2028 = vpack.c.bf16 %v2011, %v2010
    %v2029 = vpack.c.bf16 %v2013, %v2012
    %v2030 = vpack.c.bf16 %v2015, %v2014
    %v2031 = vpack.c.bf16 %v2017, %v2016
    %v2032 = vpack.c.bf16 %v2019, %v2018
    %v2033 = vpack.c.bf16 %v2020, %v2020
    %s2034 = scalar_lea.vmem %s10, 64
    %v2035 = vld [vmem:[%s2034] sm:$0xf]
    %v2036 = vld [vmem:[%s2034 + $0x4] sm:$0xf]
    %v2037 = vld [vmem:[%s2034 + $0x8] sm:$0xf]
    %v2038 = vld [vmem:[%s2034 + $0xc] sm:$0xf]
    %v2039 = vld [vmem:[%s2034 + $0x10] sm:$0xf]
    %v2040 = vld [vmem:[%s2034 + $0x14] sm:$0xf]
    %v2041 = vld [vmem:[%s2034 + $0x18] sm:$0xf]
    %v2042 = vld [vmem:[%s2034 + $0x1c] sm:$0xf]
    %v2043 = vld [vmem:[%s2034 + $0x20] sm:$0xf]
    %v2044 = vld [vmem:[%s2034 + $0x24] sm:$0xf]
    %v2045 = vld [vmem:[%s2034 + $0x28] sm:$0xf]
    %v2046 = vld [vmem:[%s2034 + $0x2c] sm:$0xf]
    %v2047 = vld [vmem:[%s2034 + $0x30] sm:$0xf]
    %v2048 = vld [vmem:[%s2034 + $0x34] sm:$0xf]
    %v2049 = vld [vmem:[%s2034 + $0x38] sm:$0xf]
    %v2050 = vld [vmem:[%s2034 + $0x3c] sm:$0xf]
    %v2067 = vunpack.c.l.b16 %v2035
    %v2068 = vunpack.c.l.b16 %v2036
    %v2069 = vunpack.c.l.b16 %v2037
    %v2070 = vunpack.c.l.b16 %v2038
    %v2071 = vunpack.c.l.b16 %v2039
    %v2072 = vunpack.c.l.b16 %v2040
    %v2073 = vunpack.c.l.b16 %v2041
    %v2074 = vunpack.c.l.b16 %v2042
    %v2075 = vunpack.c.l.b16 %v2043
    %v2076 = vunpack.c.l.b16 %v2044
    %v2077 = vunpack.c.l.b16 %v2045
    %v2078 = vunpack.c.l.b16 %v2046
    %v2079 = vunpack.c.l.b16 %v2047
    %v2080 = vunpack.c.l.b16 %v2048
    %v2081 = vunpack.c.l.b16 %v2049
    %v2082 = vunpack.c.l.b16 %v2050
    %v2083 = vpack.c.b16 %v2068, %v2067
    %v2084 = vpack.c.b16 %v2070, %v2069
    %v2085 = vpack.c.b16 %v2072, %v2071
    %v2086 = vpack.c.b16 %v2074, %v2073
    %v2087 = vpack.c.b16 %v2076, %v2075
    %v2088 = vpack.c.b16 %v2078, %v2077
    %v2089 = vpack.c.b16 %v2080, %v2079
    %v2090 = vpack.c.b16 %v2082, %v2081
    %2099 = vmatpush.bf16.msra.mxu0 %v2090
    %2100 = vmatpush.bf16.msra.mxu0 %v2089
    %2101 = vmatpush.bf16.msra.mxu0 %v2088
    %2102 = vmatpush.bf16.msra.mxu0 %v2087
    %2103 = vmatpush.bf16.msra.mxu0 %v2086
    %2104 = vmatpush.bf16.msra.mxu0 %v2085
    %2105 = vmatpush.bf16.msra.mxu0 %v2084
    %2106 = vmatpush.bf16.msra.mxu0 %v2083
    %2107 = vmatmul.bf16.gmra.mxu0 %v2021
    %v2108 = vpop.f32.mrf.mxu0
    %v2109 = vadd.f32 0.0, %v2108
    %v2110 = vpop.f32.mrf.mxu0
    %v2111 = vadd.f32 0.0, %v2110
    %2112 = vmatmul.bf16.gmra.mxu0 %v2022
    %v2113 = vpop.f32.mrf.mxu0
    %v2114 = vadd.f32 0.0, %v2113
    %v2115 = vpop.f32.mrf.mxu0
    %v2116 = vadd.f32 0.0, %v2115
    %2117 = vmatmul.bf16.gmra.mxu0 %v2023
    %v2118 = vpop.f32.mrf.mxu0
    %v2119 = vadd.f32 0.0, %v2118
    %v2120 = vpop.f32.mrf.mxu0
    %v2121 = vadd.f32 0.0, %v2120
    %2122 = vmatmul.bf16.gmra.mxu0 %v2024
    %v2123 = vpop.f32.mrf.mxu0
    %v2124 = vadd.f32 0.0, %v2123
    %v2125 = vpop.f32.mrf.mxu0
    %v2126 = vadd.f32 0.0, %v2125
    %2127 = vmatmul.bf16.gmra.mxu0 %v2025
    %v2128 = vpop.f32.mrf.mxu0
    %v2129 = vadd.f32 0.0, %v2128
    %v2130 = vpop.f32.mrf.mxu0
    %v2131 = vadd.f32 0.0, %v2130
    %2132 = vmatmul.bf16.gmra.mxu0 %v2026
    %v2133 = vpop.f32.mrf.mxu0
    %v2134 = vadd.f32 0.0, %v2133
    %v2135 = vpop.f32.mrf.mxu0
    %v2136 = vadd.f32 0.0, %v2135
    %2137 = vmatmul.bf16.gmra.mxu0 %v2027
    %v2138 = vpop.f32.mrf.mxu0
    %v2139 = vadd.f32 0.0, %v2138
    %v2140 = vpop.f32.mrf.mxu0
    %v2141 = vadd.f32 0.0, %v2140
    %2142 = vmatmul.bf16.gmra.mxu0 %v2028
    %v2143 = vpop.f32.mrf.mxu0
    %v2144 = vadd.f32 0.0, %v2143
    %v2145 = vpop.f32.mrf.mxu0
    %v2146 = vadd.f32 0.0, %v2145
    %2147 = vmatmul.bf16.gmra.mxu0 %v2029
    %v2148 = vpop.f32.mrf.mxu0
    %v2149 = vadd.f32 0.0, %v2148
    %v2150 = vpop.f32.mrf.mxu0
    %v2151 = vadd.f32 0.0, %v2150
    %2152 = vmatmul.bf16.gmra.mxu0 %v2030
    %v2153 = vpop.f32.mrf.mxu0
    %v2154 = vadd.f32 0.0, %v2153
    %v2155 = vpop.f32.mrf.mxu0
    %v2156 = vadd.f32 0.0, %v2155
    %2157 = vmatmul.bf16.gmra.mxu0 %v2031
    %v2158 = vpop.f32.mrf.mxu0
    %v2159 = vadd.f32 0.0, %v2158
    %v2160 = vpop.f32.mrf.mxu0
    %v2161 = vadd.f32 0.0, %v2160
    %2162 = vmatmul.bf16.gmra.mxu0 %v2032
    %v2163 = vpop.f32.mrf.mxu0
    %v2164 = vadd.f32 0.0, %v2163
    %v2165 = vpop.f32.mrf.mxu0
    %v2166 = vadd.f32 0.0, %v2165
    %2167 = vmatmul.bf16.gmra.mxu0 %v2033
    %v2168 = vpop.f32.mrf.mxu0
    %v2169 = vadd.f32 0.0, %v2168
    %v2170 = vpop.f32.mrf.mxu0
    %2171 = vdwg.mxu0
    %v2188 = vunpack.c.l.b16 %v1980
    %v2189 = vunpack.c.l.b16 %v1981
    %v2190 = vunpack.c.l.b16 %v1982
    %v2191 = vunpack.c.l.b16 %v1983
    %v2192 = vunpack.c.l.b16 %v1984
    %v2193 = vunpack.c.l.b16 %v1985
    %v2194 = vunpack.c.l.b16 %v1986
    %v2195 = vunpack.c.l.b16 %v1987
    %v2196 = vunpack.c.l.b16 %v1988
    %v2197 = vunpack.c.l.b16 %v1989
    %v2198 = vunpack.c.l.b16 %v1990
    %v2199 = vunpack.c.l.b16 %v1991
    %v2200 = vunpack.c.l.b16 %v1992
    %v2201 = vunpack.c.l.b16 %v1993
    %v2202 = vunpack.c.l.b16 %v1994
    %v2203 = vunpack.c.l.b16 %v1995
    %v2204 = vpack.c.b16 %v2189, %v2188
    %v2205 = vpack.c.b16 %v2191, %v2190
    %v2206 = vpack.c.b16 %v2193, %v2192
    %v2207 = vpack.c.b16 %v2195, %v2194
    %v2208 = vpack.c.b16 %v2197, %v2196
    %v2209 = vpack.c.b16 %v2199, %v2198
    %v2210 = vpack.c.b16 %v2201, %v2200
    %v2211 = vpack.c.b16 %v2203, %v2202
    %2220 = vmatpush.bf16.msra.mxu0 %v2211
    %2221 = vmatpush.bf16.msra.mxu0 %v2210
    %2222 = vmatpush.bf16.msra.mxu0 %v2209
    %2223 = vmatpush.bf16.msra.mxu0 %v2208
    %2224 = vmatpush.bf16.msra.mxu0 %v2207
    %2225 = vmatpush.bf16.msra.mxu0 %v2206
    %2226 = vmatpush.bf16.msra.mxu0 %v2205
    %2227 = vmatpush.bf16.msra.mxu0 %v2204
    %2228 = vmatmul.bf16.gmra.mxu0 %v1967
    %v2229 = vpop.f32.mrf.mxu0
    %v2230 = vadd.f32 %v2109, %v2229
    %v2231 = vpop.f32.mrf.mxu0
    %v2232 = vadd.f32 %v2111, %v2231
    %2233 = vmatmul.bf16.gmra.mxu0 %v1968
    %v2234 = vpop.f32.mrf.mxu0
    %v2235 = vadd.f32 %v2114, %v2234
    %v2236 = vpop.f32.mrf.mxu0
    %v2237 = vadd.f32 %v2116, %v2236
    %2238 = vmatmul.bf16.gmra.mxu0 %v1969
    %v2239 = vpop.f32.mrf.mxu0
    %v2240 = vadd.f32 %v2119, %v2239
    %v2241 = vpop.f32.mrf.mxu0
    %v2242 = vadd.f32 %v2121, %v2241
    %2243 = vmatmul.bf16.gmra.mxu0 %v1970
    %v2244 = vpop.f32.mrf.mxu0
    %v2245 = vadd.f32 %v2124, %v2244
    %v2246 = vpop.f32.mrf.mxu0
    %v2247 = vadd.f32 %v2126, %v2246
    %2248 = vmatmul.bf16.gmra.mxu0 %v1971
    %v2249 = vpop.f32.mrf.mxu0
    %v2250 = vadd.f32 %v2129, %v2249
    %v2251 = vpop.f32.mrf.mxu0
    %v2252 = vadd.f32 %v2131, %v2251
    %2253 = vmatmul.bf16.gmra.mxu0 %v1972
    %v2254 = vpop.f32.mrf.mxu0
    %v2255 = vadd.f32 %v2134, %v2254
    %v2256 = vpop.f32.mrf.mxu0
    %v2257 = vadd.f32 %v2136, %v2256
    %2258 = vmatmul.bf16.gmra.mxu0 %v1973
    %v2259 = vpop.f32.mrf.mxu0
    %v2260 = vadd.f32 %v2139, %v2259
    %v2261 = vpop.f32.mrf.mxu0
    %v2262 = vadd.f32 %v2141, %v2261
    %2263 = vmatmul.bf16.gmra.mxu0 %v1974
    %v2264 = vpop.f32.mrf.mxu0
    %v2265 = vadd.f32 %v2144, %v2264
    %v2266 = vpop.f32.mrf.mxu0
    %v2267 = vadd.f32 %v2146, %v2266
    %2268 = vmatmul.bf16.gmra.mxu0 %v1975
    %v2269 = vpop.f32.mrf.mxu0
    %v2270 = vadd.f32 %v2149, %v2269
    %v2271 = vpop.f32.mrf.mxu0
    %v2272 = vadd.f32 %v2151, %v2271
    %2273 = vmatmul.bf16.gmra.mxu0 %v1976
    %v2274 = vpop.f32.mrf.mxu0
    %v2275 = vadd.f32 %v2154, %v2274
    %v2276 = vpop.f32.mrf.mxu0
    %v2277 = vadd.f32 %v2156, %v2276
    %2278 = vmatmul.bf16.gmra.mxu0 %v1977
    %v2279 = vpop.f32.mrf.mxu0
    %v2280 = vadd.f32 %v2159, %v2279
    %v2281 = vpop.f32.mrf.mxu0
    %v2282 = vadd.f32 %v2161, %v2281
    %2283 = vmatmul.bf16.gmra.mxu0 %v1978
    %v2284 = vpop.f32.mrf.mxu0
    %v2285 = vadd.f32 %v2164, %v2284
    %v2286 = vpop.f32.mrf.mxu0
    %v2287 = vadd.f32 %v2166, %v2286
    %2288 = vmatmul.bf16.gmra.mxu0 %v1979
    %v2289 = vpop.f32.mrf.mxu0
    %v2290 = vadd.f32 %v2169, %v2289
    %v2291 = vpop.f32.mrf.mxu0
    %2292 = vdwg.mxu0
    %v2293 = vld [vmem:[#allocation3 + $0x2] sm:$0xff]
    %v2294 = vld [vmem:[#allocation3 + $0xa] sm:$0xff]
    %v2295 = vld [vmem:[#allocation3 + $0x12] sm:$0xff]
    %v2296 = vld [vmem:[#allocation3 + $0x1a] sm:$0xff]
    %v2297 = vld [vmem:[#allocation3 + $0x22] sm:$0xff]
    %v2298 = vld [vmem:[#allocation3 + $0x2a] sm:$0xff]
    %v2299 = vld [vmem:[#allocation3 + $0x32] sm:$0xff]
    %v2300 = vld [vmem:[#allocation3 + $0x3a] sm:$0xff]
    %v2301 = vld [vmem:[#allocation3 + $0x42] sm:$0xff]
    %v2302 = vld [vmem:[#allocation3 + $0x4a] sm:$0xff]
    %v2303 = vld [vmem:[#allocation3 + $0x52] sm:$0xff]
    %v2304 = vld [vmem:[#allocation3 + $0x5a] sm:$0xff]
    %v2305 = vld [vmem:[#allocation3 + $0x62] sm:$0xff]
    %v2306 = vld [vmem:[#allocation3 + $0x6a] sm:$0xff]
    %v2307 = vld [vmem:[#allocation3 + $0x72] sm:$0xff]
    %v2308 = vld [vmem:[#allocation3 + $0x7a] sm:$0xff]
    %v2309 = vld [vmem:[#allocation3 + $0x82] sm:$0xff]
    %v2310 = vld [vmem:[#allocation3 + $0x8a] sm:$0xff]
    %v2311 = vld [vmem:[#allocation3 + $0x92] sm:$0xff]
    %v2312 = vld [vmem:[#allocation3 + $0x9a] sm:$0xff]
    %v2313 = vld [vmem:[#allocation3 + $0xa2] sm:$0xff]
    %v2314 = vld [vmem:[#allocation3 + $0xaa] sm:$0xff]
    %v2315 = vld [vmem:[#allocation3 + $0xb2] sm:$0xff]
    %v2316 = vld [vmem:[#allocation3 + $0xba] sm:$0xff]
    %v2317 = vld [vmem:[#allocation3 + $0xc2] sm:$0xff]
    %v2318 = vpack.c.bf16 %v2294, %v2293
    %v2319 = vpack.c.bf16 %v2296, %v2295
    %v2320 = vpack.c.bf16 %v2298, %v2297
    %v2321 = vpack.c.bf16 %v2300, %v2299
    %v2322 = vpack.c.bf16 %v2302, %v2301
    %v2323 = vpack.c.bf16 %v2304, %v2303
    %v2324 = vpack.c.bf16 %v2306, %v2305
    %v2325 = vpack.c.bf16 %v2308, %v2307
    %v2326 = vpack.c.bf16 %v2310, %v2309
    %v2327 = vpack.c.bf16 %v2312, %v2311
    %v2328 = vpack.c.bf16 %v2314, %v2313
    %v2329 = vpack.c.bf16 %v2316, %v2315
    %v2330 = vpack.c.bf16 %v2317, %v2317
    %s2331 = scalar_lea.vmem %s10, 128
    %v2332 = vld [vmem:[%s2331] sm:$0xf]
    %v2333 = vld [vmem:[%s2331 + $0x4] sm:$0xf]
    %v2334 = vld [vmem:[%s2331 + $0x8] sm:$0xf]
    %v2335 = vld [vmem:[%s2331 + $0xc] sm:$0xf]
    %v2336 = vld [vmem:[%s2331 + $0x10] sm:$0xf]
    %v2337 = vld [vmem:[%s2331 + $0x14] sm:$0xf]
    %v2338 = vld [vmem:[%s2331 + $0x18] sm:$0xf]
    %v2339 = vld [vmem:[%s2331 + $0x1c] sm:$0xf]
    %v2340 = vld [vmem:[%s2331 + $0x20] sm:$0xf]
    %v2341 = vld [vmem:[%s2331 + $0x24] sm:$0xf]
    %v2342 = vld [vmem:[%s2331 + $0x28] sm:$0xf]
    %v2343 = vld [vmem:[%s2331 + $0x2c] sm:$0xf]
    %v2344 = vld [vmem:[%s2331 + $0x30] sm:$0xf]
    %v2345 = vld [vmem:[%s2331 + $0x34] sm:$0xf]
    %v2346 = vld [vmem:[%s2331 + $0x38] sm:$0xf]
    %v2347 = vld [vmem:[%s2331 + $0x3c] sm:$0xf]
    %v2364 = vunpack.c.l.b16 %v2332
    %v2365 = vunpack.c.l.b16 %v2333
    %v2366 = vunpack.c.l.b16 %v2334
    %v2367 = vunpack.c.l.b16 %v2335
    %v2368 = vunpack.c.l.b16 %v2336
    %v2369 = vunpack.c.l.b16 %v2337
    %v2370 = vunpack.c.l.b16 %v2338
    %v2371 = vunpack.c.l.b16 %v2339
    %v2372 = vunpack.c.l.b16 %v2340
    %v2373 = vunpack.c.l.b16 %v2341
    %v2374 = vunpack.c.l.b16 %v2342
    %v2375 = vunpack.c.l.b16 %v2343
    %v2376 = vunpack.c.l.b16 %v2344
    %v2377 = vunpack.c.l.b16 %v2345
    %v2378 = vunpack.c.l.b16 %v2346
    %v2379 = vunpack.c.l.b16 %v2347
    %v2380 = vpack.c.b16 %v2365, %v2364
    %v2381 = vpack.c.b16 %v2367, %v2366
    %v2382 = vpack.c.b16 %v2369, %v2368
    %v2383 = vpack.c.b16 %v2371, %v2370
    %v2384 = vpack.c.b16 %v2373, %v2372
    %v2385 = vpack.c.b16 %v2375, %v2374
    %v2386 = vpack.c.b16 %v2377, %v2376
    %v2387 = vpack.c.b16 %v2379, %v2378
    %2396 = vmatpush.bf16.msra.mxu0 %v2387
    %2397 = vmatpush.bf16.msra.mxu0 %v2386
    %2398 = vmatpush.bf16.msra.mxu0 %v2385
    %2399 = vmatpush.bf16.msra.mxu0 %v2384
    %2400 = vmatpush.bf16.msra.mxu0 %v2383
    %2401 = vmatpush.bf16.msra.mxu0 %v2382
    %2402 = vmatpush.bf16.msra.mxu0 %v2381
    %2403 = vmatpush.bf16.msra.mxu0 %v2380
    %2404 = vmatmul.bf16.gmra.mxu0 %v2318
    %v2405 = vpop.f32.mrf.mxu0
    %v2406 = vadd.f32 0.0, %v2405
    %v2407 = vpop.f32.mrf.mxu0
    %v2408 = vadd.f32 0.0, %v2407
    %2409 = vmatmul.bf16.gmra.mxu0 %v2319
    %v2410 = vpop.f32.mrf.mxu0
    %v2411 = vadd.f32 0.0, %v2410
    %v2412 = vpop.f32.mrf.mxu0
    %v2413 = vadd.f32 0.0, %v2412
    %2414 = vmatmul.bf16.gmra.mxu0 %v2320
    %v2415 = vpop.f32.mrf.mxu0
    %v2416 = vadd.f32 0.0, %v2415
    %v2417 = vpop.f32.mrf.mxu0
    %v2418 = vadd.f32 0.0, %v2417
    %2419 = vmatmul.bf16.gmra.mxu0 %v2321
    %v2420 = vpop.f32.mrf.mxu0
    %v2421 = vadd.f32 0.0, %v2420
    %v2422 = vpop.f32.mrf.mxu0
    %v2423 = vadd.f32 0.0, %v2422
    %2424 = vmatmul.bf16.gmra.mxu0 %v2322
    %v2425 = vpop.f32.mrf.mxu0
    %v2426 = vadd.f32 0.0, %v2425
    %v2427 = vpop.f32.mrf.mxu0
    %v2428 = vadd.f32 0.0, %v2427
    %2429 = vmatmul.bf16.gmra.mxu0 %v2323
    %v2430 = vpop.f32.mrf.mxu0
    %v2431 = vadd.f32 0.0, %v2430
    %v2432 = vpop.f32.mrf.mxu0
    %v2433 = vadd.f32 0.0, %v2432
    %2434 = vmatmul.bf16.gmra.mxu0 %v2324
    %v2435 = vpop.f32.mrf.mxu0
    %v2436 = vadd.f32 0.0, %v2435
    %v2437 = vpop.f32.mrf.mxu0
    %v2438 = vadd.f32 0.0, %v2437
    %2439 = vmatmul.bf16.gmra.mxu0 %v2325
    %v2440 = vpop.f32.mrf.mxu0
    %v2441 = vadd.f32 0.0, %v2440
    %v2442 = vpop.f32.mrf.mxu0
    %v2443 = vadd.f32 0.0, %v2442
    %2444 = vmatmul.bf16.gmra.mxu0 %v2326
    %v2445 = vpop.f32.mrf.mxu0
    %v2446 = vadd.f32 0.0, %v2445
    %v2447 = vpop.f32.mrf.mxu0
    %v2448 = vadd.f32 0.0, %v2447
    %2449 = vmatmul.bf16.gmra.mxu0 %v2327
    %v2450 = vpop.f32.mrf.mxu0
    %v2451 = vadd.f32 0.0, %v2450
    %v2452 = vpop.f32.mrf.mxu0
    %v2453 = vadd.f32 0.0, %v2452
    %2454 = vmatmul.bf16.gmra.mxu0 %v2328
    %v2455 = vpop.f32.mrf.mxu0
    %v2456 = vadd.f32 0.0, %v2455
    %v2457 = vpop.f32.mrf.mxu0
    %v2458 = vadd.f32 0.0, %v2457
    %2459 = vmatmul.bf16.gmra.mxu0 %v2329
    %v2460 = vpop.f32.mrf.mxu0
    %v2461 = vadd.f32 0.0, %v2460
    %v2462 = vpop.f32.mrf.mxu0
    %v2463 = vadd.f32 0.0, %v2462
    %2464 = vmatmul.bf16.gmra.mxu0 %v2330
    %v2465 = vpop.f32.mrf.mxu0
    %v2466 = vadd.f32 0.0, %v2465
    %v2467 = vpop.f32.mrf.mxu0
    %2468 = vdwg.mxu0
    %v2469 = vadd.f32 %v2230, %v2406
    %v2470 = vadd.f32 %v2232, %v2408
    %v2471 = vadd.f32 %v2235, %v2411
    %v2472 = vadd.f32 %v2237, %v2413
    %v2473 = vadd.f32 %v2240, %v2416
    %v2474 = vadd.f32 %v2242, %v2418
    %v2475 = vadd.f32 %v2245, %v2421
    %v2476 = vadd.f32 %v2247, %v2423
    %v2477 = vadd.f32 %v2250, %v2426
    %v2478 = vadd.f32 %v2252, %v2428
    %v2479 = vadd.f32 %v2255, %v2431
    %v2480 = vadd.f32 %v2257, %v2433
    %v2481 = vadd.f32 %v2260, %v2436
    %v2482 = vadd.f32 %v2262, %v2438
    %v2483 = vadd.f32 %v2265, %v2441
    %v2484 = vadd.f32 %v2267, %v2443
    %v2485 = vadd.f32 %v2270, %v2446
    %v2486 = vadd.f32 %v2272, %v2448
    %v2487 = vadd.f32 %v2275, %v2451
    %v2488 = vadd.f32 %v2277, %v2453
    %v2489 = vadd.f32 %v2280, %v2456
    %v2490 = vadd.f32 %v2282, %v2458
    %v2491 = vadd.f32 %v2285, %v2461
    %v2492 = vadd.f32 %v2287, %v2463
    %v2493 = vadd.f32 %v2290, %v2466
    %v2494 = vld [vmem:[#allocation3 + $0xa] sm:$0xff]
    %v2495 = vld [vmem:[#allocation3 + $0x12] sm:$0xff]
    %v2496 = vld [vmem:[#allocation3 + $0x1a] sm:$0xff]
    %v2497 = vld [vmem:[#allocation3 + $0x22] sm:$0xff]
    %v2498 = vld [vmem:[#allocation3 + $0x2a] sm:$0xff]
    %v2499 = vld [vmem:[#allocation3 + $0x32] sm:$0xff]
    %v2500 = vld [vmem:[#allocation3 + $0x3a] sm:$0xff]
    %v2501 = vld [vmem:[#allocation3 + $0x42] sm:$0xff]
    %v2502 = vld [vmem:[#allocation3 + $0x4a] sm:$0xff]
    %v2503 = vld [vmem:[#allocation3 + $0x52] sm:$0xff]
    %v2504 = vld [vmem:[#allocation3 + $0x5a] sm:$0xff]
    %v2505 = vld [vmem:[#allocation3 + $0x62] sm:$0xff]
    %v2506 = vld [vmem:[#allocation3 + $0x6a] sm:$0xff]
    %v2507 = vld [vmem:[#allocation3 + $0x72] sm:$0xff]
    %v2508 = vld [vmem:[#allocation3 + $0x7a] sm:$0xff]
    %v2509 = vld [vmem:[#allocation3 + $0x82] sm:$0xff]
    %v2510 = vld [vmem:[#allocation3 + $0x8a] sm:$0xff]
    %v2511 = vld [vmem:[#allocation3 + $0x92] sm:$0xff]
    %v2512 = vld [vmem:[#allocation3 + $0x9a] sm:$0xff]
    %v2513 = vld [vmem:[#allocation3 + $0xa2] sm:$0xff]
    %v2514 = vld [vmem:[#allocation3 + $0xaa] sm:$0xff]
    %v2515 = vld [vmem:[#allocation3 + $0xb2] sm:$0xff]
    %v2516 = vld [vmem:[#allocation3 + $0xba] sm:$0xff]
    %v2517 = vld [vmem:[#allocation3 + $0xc2] sm:$0xff]
    %v2518 = vld [vmem:[#allocation3 + $0xca] sm:$0xff]
    %v2519 = vpack.c.bf16 %v2495, %v2494
    %v2520 = vpack.c.bf16 %v2497, %v2496
    %v2521 = vpack.c.bf16 %v2499, %v2498
    %v2522 = vpack.c.bf16 %v2501, %v2500
    %v2523 = vpack.c.bf16 %v2503, %v2502
    %v2524 = vpack.c.bf16 %v2505, %v2504
    %v2525 = vpack.c.bf16 %v2507, %v2506
    %v2526 = vpack.c.bf16 %v2509, %v2508
    %v2527 = vpack.c.bf16 %v2511, %v2510
    %v2528 = vpack.c.bf16 %v2513, %v2512
    %v2529 = vpack.c.bf16 %v2515, %v2514
    %v2530 = vpack.c.bf16 %v2517, %v2516
    %v2531 = vpack.c.bf16 %v2518, %v2518
    %s2532 = scalar_lea.vmem %s10, 192
    %v2533 = vld [vmem:[%s2532] sm:$0xf]
    %v2534 = vld [vmem:[%s2532 + $0x4] sm:$0xf]
    %v2535 = vld [vmem:[%s2532 + $0x8] sm:$0xf]
    %v2536 = vld [vmem:[%s2532 + $0xc] sm:$0xf]
    %v2537 = vld [vmem:[%s2532 + $0x10] sm:$0xf]
    %v2538 = vld [vmem:[%s2532 + $0x14] sm:$0xf]
    %v2539 = vld [vmem:[%s2532 + $0x18] sm:$0xf]
    %v2540 = vld [vmem:[%s2532 + $0x1c] sm:$0xf]
    %v2541 = vld [vmem:[%s2532 + $0x20] sm:$0xf]
    %v2542 = vld [vmem:[%s2532 + $0x24] sm:$0xf]
    %v2543 = vld [vmem:[%s2532 + $0x28] sm:$0xf]
    %v2544 = vld [vmem:[%s2532 + $0x2c] sm:$0xf]
    %v2545 = vld [vmem:[%s2532 + $0x30] sm:$0xf]
    %v2546 = vld [vmem:[%s2532 + $0x34] sm:$0xf]
    %v2547 = vld [vmem:[%s2532 + $0x38] sm:$0xf]
    %v2548 = vld [vmem:[%s2532 + $0x3c] sm:$0xf]
    %v2565 = vunpack.c.l.b16 %v2533
    %v2566 = vunpack.c.l.b16 %v2534
    %v2567 = vunpack.c.l.b16 %v2535
    %v2568 = vunpack.c.l.b16 %v2536
    %v2569 = vunpack.c.l.b16 %v2537
    %v2570 = vunpack.c.l.b16 %v2538
    %v2571 = vunpack.c.l.b16 %v2539
    %v2572 = vunpack.c.l.b16 %v2540
    %v2573 = vunpack.c.l.b16 %v2541
    %v2574 = vunpack.c.l.b16 %v2542
    %v2575 = vunpack.c.l.b16 %v2543
    %v2576 = vunpack.c.l.b16 %v2544
    %v2577 = vunpack.c.l.b16 %v2545
    %v2578 = vunpack.c.l.b16 %v2546
    %v2579 = vunpack.c.l.b16 %v2547
    %v2580 = vunpack.c.l.b16 %v2548
    %v2581 = vpack.c.b16 %v2566, %v2565
    %v2582 = vpack.c.b16 %v2568, %v2567
    %v2583 = vpack.c.b16 %v2570, %v2569
    %v2584 = vpack.c.b16 %v2572, %v2571
    %v2585 = vpack.c.b16 %v2574, %v2573
    %v2586 = vpack.c.b16 %v2576, %v2575
    %v2587 = vpack.c.b16 %v2578, %v2577
    %v2588 = vpack.c.b16 %v2580, %v2579
    %2597 = vmatpush.bf16.msra.mxu0 %v2588
    %2598 = vmatpush.bf16.msra.mxu0 %v2587
    %2599 = vmatpush.bf16.msra.mxu0 %v2586
    %2600 = vmatpush.bf16.msra.mxu0 %v2585
    %2601 = vmatpush.bf16.msra.mxu0 %v2584
    %2602 = vmatpush.bf16.msra.mxu0 %v2583
    %2603 = vmatpush.bf16.msra.mxu0 %v2582
    %2604 = vmatpush.bf16.msra.mxu0 %v2581
    %2605 = vmatmul.bf16.gmra.mxu0 %v2519
    %v2606 = vpop.f32.mrf.mxu0
    %v2607 = vadd.f32 0.0, %v2606
    %v2608 = vpop.f32.mrf.mxu0
    %v2609 = vadd.f32 0.0, %v2608
    %2610 = vmatmul.bf16.gmra.mxu0 %v2520
    %v2611 = vpop.f32.mrf.mxu0
    %v2612 = vadd.f32 0.0, %v2611
    %v2613 = vpop.f32.mrf.mxu0
    %v2614 = vadd.f32 0.0, %v2613
    %2615 = vmatmul.bf16.gmra.mxu0 %v2521
    %v2616 = vpop.f32.mrf.mxu0
    %v2617 = vadd.f32 0.0, %v2616
    %v2618 = vpop.f32.mrf.mxu0
    %v2619 = vadd.f32 0.0, %v2618
    %2620 = vmatmul.bf16.gmra.mxu0 %v2522
    %v2621 = vpop.f32.mrf.mxu0
    %v2622 = vadd.f32 0.0, %v2621
    %v2623 = vpop.f32.mrf.mxu0
    %v2624 = vadd.f32 0.0, %v2623
    %2625 = vmatmul.bf16.gmra.mxu0 %v2523
    %v2626 = vpop.f32.mrf.mxu0
    %v2627 = vadd.f32 0.0, %v2626
    %v2628 = vpop.f32.mrf.mxu0
    %v2629 = vadd.f32 0.0, %v2628
    %2630 = vmatmul.bf16.gmra.mxu0 %v2524
    %v2631 = vpop.f32.mrf.mxu0
    %v2632 = vadd.f32 0.0, %v2631
    %v2633 = vpop.f32.mrf.mxu0
    %v2634 = vadd.f32 0.0, %v2633
    %2635 = vmatmul.bf16.gmra.mxu0 %v2525
    %v2636 = vpop.f32.mrf.mxu0
    %v2637 = vadd.f32 0.0, %v2636
    %v2638 = vpop.f32.mrf.mxu0
    %v2639 = vadd.f32 0.0, %v2638
    %2640 = vmatmul.bf16.gmra.mxu0 %v2526
    %v2641 = vpop.f32.mrf.mxu0
    %v2642 = vadd.f32 0.0, %v2641
    %v2643 = vpop.f32.mrf.mxu0
    %v2644 = vadd.f32 0.0, %v2643
    %2645 = vmatmul.bf16.gmra.mxu0 %v2527
    %v2646 = vpop.f32.mrf.mxu0
    %v2647 = vadd.f32 0.0, %v2646
    %v2648 = vpop.f32.mrf.mxu0
    %v2649 = vadd.f32 0.0, %v2648
    %2650 = vmatmul.bf16.gmra.mxu0 %v2528
    %v2651 = vpop.f32.mrf.mxu0
    %v2652 = vadd.f32 0.0, %v2651
    %v2653 = vpop.f32.mrf.mxu0
    %v2654 = vadd.f32 0.0, %v2653
    %2655 = vmatmul.bf16.gmra.mxu0 %v2529
    %v2656 = vpop.f32.mrf.mxu0
    %v2657 = vadd.f32 0.0, %v2656
    %v2658 = vpop.f32.mrf.mxu0
    %v2659 = vadd.f32 0.0, %v2658
    %2660 = vmatmul.bf16.gmra.mxu0 %v2530
    %v2661 = vpop.f32.mrf.mxu0
    %v2662 = vadd.f32 0.0, %v2661
    %v2663 = vpop.f32.mrf.mxu0
    %v2664 = vadd.f32 0.0, %v2663
    %2665 = vmatmul.bf16.gmra.mxu0 %v2531
    %v2666 = vpop.f32.mrf.mxu0
    %v2667 = vadd.f32 0.0, %v2666
    %v2668 = vpop.f32.mrf.mxu0
    %2669 = vdwg.mxu0
    %v2670 = vadd.f32 %v2469, %v2607
    %v2671 = vadd.f32 %v2470, %v2609
    %v2672 = vadd.f32 %v2471, %v2612
    %v2673 = vadd.f32 %v2472, %v2614
    %v2674 = vadd.f32 %v2473, %v2617
    %v2675 = vadd.f32 %v2474, %v2619
    %v2676 = vadd.f32 %v2475, %v2622
    %v2677 = vadd.f32 %v2476, %v2624
    %v2678 = vadd.f32 %v2477, %v2627
    %v2679 = vadd.f32 %v2478, %v2629
    %v2680 = vadd.f32 %v2479, %v2632
    %v2681 = vadd.f32 %v2480, %v2634
    %v2682 = vadd.f32 %v2481, %v2637
    %v2683 = vadd.f32 %v2482, %v2639
    %v2684 = vadd.f32 %v2483, %v2642
    %v2685 = vadd.f32 %v2484, %v2644
    %v2686 = vadd.f32 %v2485, %v2647
    %v2687 = vadd.f32 %v2486, %v2649
    %v2688 = vadd.f32 %v2487, %v2652
    %v2689 = vadd.f32 %v2488, %v2654
    %v2690 = vadd.f32 %v2489, %v2657
    %v2691 = vadd.f32 %v2490, %v2659
    %v2692 = vadd.f32 %v2491, %v2662
    %v2693 = vadd.f32 %v2492, %v2664
    %v2694 = vadd.f32 %v2493, %v2667
    %v2695 = vld [vmem:[#allocation3 + $0xb] sm:$0xff]
    %v2696 = vld [vmem:[#allocation3 + $0x13] sm:$0xff]
    %v2697 = vld [vmem:[#allocation3 + $0x1b] sm:$0xff]
    %v2698 = vld [vmem:[#allocation3 + $0x23] sm:$0xff]
    %v2699 = vld [vmem:[#allocation3 + $0x2b] sm:$0xff]
    %v2700 = vld [vmem:[#allocation3 + $0x33] sm:$0xff]
    %v2701 = vld [vmem:[#allocation3 + $0x3b] sm:$0xff]
    %v2702 = vld [vmem:[#allocation3 + $0x43] sm:$0xff]
    %v2703 = vld [vmem:[#allocation3 + $0x4b] sm:$0xff]
    %v2704 = vld [vmem:[#allocation3 + $0x53] sm:$0xff]
    %v2705 = vld [vmem:[#allocation3 + $0x5b] sm:$0xff]
    %v2706 = vld [vmem:[#allocation3 + $0x63] sm:$0xff]
    %v2707 = vld [vmem:[#allocation3 + $0x6b] sm:$0xff]
    %v2708 = vld [vmem:[#allocation3 + $0x73] sm:$0xff]
    %v2709 = vld [vmem:[#allocation3 + $0x7b] sm:$0xff]
    %v2710 = vld [vmem:[#allocation3 + $0x83] sm:$0xff]
    %v2711 = vld [vmem:[#allocation3 + $0x8b] sm:$0xff]
    %v2712 = vld [vmem:[#allocation3 + $0x93] sm:$0xff]
    %v2713 = vld [vmem:[#allocation3 + $0x9b] sm:$0xff]
    %v2714 = vld [vmem:[#allocation3 + $0xa3] sm:$0xff]
    %v2715 = vld [vmem:[#allocation3 + $0xab] sm:$0xff]
    %v2716 = vld [vmem:[#allocation3 + $0xb3] sm:$0xff]
    %v2717 = vld [vmem:[#allocation3 + $0xbb] sm:$0xff]
    %v2718 = vld [vmem:[#allocation3 + $0xc3] sm:$0xff]
    %v2719 = vld [vmem:[#allocation3 + $0xcb] sm:$0xff]
    %v2720 = vpack.c.bf16 %v2696, %v2695
    %v2721 = vpack.c.bf16 %v2698, %v2697
    %v2722 = vpack.c.bf16 %v2700, %v2699
    %v2723 = vpack.c.bf16 %v2702, %v2701
    %v2724 = vpack.c.bf16 %v2704, %v2703
    %v2725 = vpack.c.bf16 %v2706, %v2705
    %v2726 = vpack.c.bf16 %v2708, %v2707
    %v2727 = vpack.c.bf16 %v2710, %v2709
    %v2728 = vpack.c.bf16 %v2712, %v2711
    %v2729 = vpack.c.bf16 %v2714, %v2713
    %v2730 = vpack.c.bf16 %v2716, %v2715
    %v2731 = vpack.c.bf16 %v2718, %v2717
    %v2732 = vpack.c.bf16 %v2719, %v2719
    %s2733 = scalar_lea.vmem %s10, 256
    %v2734 = vld [vmem:[%s2733] sm:$0xf]
    %v2735 = vld [vmem:[%s2733 + $0x4] sm:$0xf]
    %v2736 = vld [vmem:[%s2733 + $0x8] sm:$0xf]
    %v2737 = vld [vmem:[%s2733 + $0xc] sm:$0xf]
    %v2738 = vld [vmem:[%s2733 + $0x10] sm:$0xf]
    %v2739 = vld [vmem:[%s2733 + $0x14] sm:$0xf]
    %v2740 = vld [vmem:[%s2733 + $0x18] sm:$0xf]
    %v2741 = vld [vmem:[%s2733 + $0x1c] sm:$0xf]
    %v2742 = vld [vmem:[%s2733 + $0x20] sm:$0xf]
    %v2743 = vld [vmem:[%s2733 + $0x24] sm:$0xf]
    %v2744 = vld [vmem:[%s2733 + $0x28] sm:$0xf]
    %v2745 = vld [vmem:[%s2733 + $0x2c] sm:$0xf]
    %v2746 = vld [vmem:[%s2733 + $0x30] sm:$0xf]
    %v2747 = vld [vmem:[%s2733 + $0x34] sm:$0xf]
    %v2748 = vld [vmem:[%s2733 + $0x38] sm:$0xf]
    %v2749 = vld [vmem:[%s2733 + $0x3c] sm:$0xf]
    %v2766 = vunpack.c.l.b16 %v2734
    %v2767 = vunpack.c.l.b16 %v2735
    %v2768 = vunpack.c.l.b16 %v2736
    %v2769 = vunpack.c.l.b16 %v2737
    %v2770 = vunpack.c.l.b16 %v2738
    %v2771 = vunpack.c.l.b16 %v2739
    %v2772 = vunpack.c.l.b16 %v2740
    %v2773 = vunpack.c.l.b16 %v2741
    %v2774 = vunpack.c.l.b16 %v2742
    %v2775 = vunpack.c.l.b16 %v2743
    %v2776 = vunpack.c.l.b16 %v2744
    %v2777 = vunpack.c.l.b16 %v2745
    %v2778 = vunpack.c.l.b16 %v2746
    %v2779 = vunpack.c.l.b16 %v2747
    %v2780 = vunpack.c.l.b16 %v2748
    %v2781 = vunpack.c.l.b16 %v2749
    %v2782 = vpack.c.b16 %v2767, %v2766
    %v2783 = vpack.c.b16 %v2769, %v2768
    %v2784 = vpack.c.b16 %v2771, %v2770
    %v2785 = vpack.c.b16 %v2773, %v2772
    %v2786 = vpack.c.b16 %v2775, %v2774
    %v2787 = vpack.c.b16 %v2777, %v2776
    %v2788 = vpack.c.b16 %v2779, %v2778
    %v2789 = vpack.c.b16 %v2781, %v2780
    %2798 = vmatpush.bf16.msra.mxu0 %v2789
    %2799 = vmatpush.bf16.msra.mxu0 %v2788
    %2800 = vmatpush.bf16.msra.mxu0 %v2787
    %2801 = vmatpush.bf16.msra.mxu0 %v2786
    %2802 = vmatpush.bf16.msra.mxu0 %v2785
    %2803 = vmatpush.bf16.msra.mxu0 %v2784
    %2804 = vmatpush.bf16.msra.mxu0 %v2783
    %2805 = vmatpush.bf16.msra.mxu0 %v2782
    %2806 = vmatmul.bf16.gmra.mxu0 %v2720
    %v2807 = vpop.f32.mrf.mxu0
    %v2808 = vadd.f32 0.0, %v2807
    %v2809 = vpop.f32.mrf.mxu0
    %v2810 = vadd.f32 0.0, %v2809
    %2811 = vmatmul.bf16.gmra.mxu0 %v2721
    %v2812 = vpop.f32.mrf.mxu0
    %v2813 = vadd.f32 0.0, %v2812
    %v2814 = vpop.f32.mrf.mxu0
    %v2815 = vadd.f32 0.0, %v2814
    %2816 = vmatmul.bf16.gmra.mxu0 %v2722
    %v2817 = vpop.f32.mrf.mxu0
    %v2818 = vadd.f32 0.0, %v2817
    %v2819 = vpop.f32.mrf.mxu0
    %v2820 = vadd.f32 0.0, %v2819
    %2821 = vmatmul.bf16.gmra.mxu0 %v2723
    %v2822 = vpop.f32.mrf.mxu0
    %v2823 = vadd.f32 0.0, %v2822
    %v2824 = vpop.f32.mrf.mxu0
    %v2825 = vadd.f32 0.0, %v2824
    %2826 = vmatmul.bf16.gmra.mxu0 %v2724
    %v2827 = vpop.f32.mrf.mxu0
    %v2828 = vadd.f32 0.0, %v2827
    %v2829 = vpop.f32.mrf.mxu0
    %v2830 = vadd.f32 0.0, %v2829
    %2831 = vmatmul.bf16.gmra.mxu0 %v2725
    %v2832 = vpop.f32.mrf.mxu0
    %v2833 = vadd.f32 0.0, %v2832
    %v2834 = vpop.f32.mrf.mxu0
    %v2835 = vadd.f32 0.0, %v2834
    %2836 = vmatmul.bf16.gmra.mxu0 %v2726
    %v2837 = vpop.f32.mrf.mxu0
    %v2838 = vadd.f32 0.0, %v2837
    %v2839 = vpop.f32.mrf.mxu0
    %v2840 = vadd.f32 0.0, %v2839
    %2841 = vmatmul.bf16.gmra.mxu0 %v2727
    %v2842 = vpop.f32.mrf.mxu0
    %v2843 = vadd.f32 0.0, %v2842
    %v2844 = vpop.f32.mrf.mxu0
    %v2845 = vadd.f32 0.0, %v2844
    %2846 = vmatmul.bf16.gmra.mxu0 %v2728
    %v2847 = vpop.f32.mrf.mxu0
    %v2848 = vadd.f32 0.0, %v2847
    %v2849 = vpop.f32.mrf.mxu0
    %v2850 = vadd.f32 0.0, %v2849
    %2851 = vmatmul.bf16.gmra.mxu0 %v2729
    %v2852 = vpop.f32.mrf.mxu0
    %v2853 = vadd.f32 0.0, %v2852
    %v2854 = vpop.f32.mrf.mxu0
    %v2855 = vadd.f32 0.0, %v2854
    %2856 = vmatmul.bf16.gmra.mxu0 %v2730
    %v2857 = vpop.f32.mrf.mxu0
    %v2858 = vadd.f32 0.0, %v2857
    %v2859 = vpop.f32.mrf.mxu0
    %v2860 = vadd.f32 0.0, %v2859
    %2861 = vmatmul.bf16.gmra.mxu0 %v2731
    %v2862 = vpop.f32.mrf.mxu0
    %v2863 = vadd.f32 0.0, %v2862
    %v2864 = vpop.f32.mrf.mxu0
    %v2865 = vadd.f32 0.0, %v2864
    %2866 = vmatmul.bf16.gmra.mxu0 %v2732
    %v2867 = vpop.f32.mrf.mxu0
    %v2868 = vadd.f32 0.0, %v2867
    %v2869 = vpop.f32.mrf.mxu0
    %2870 = vdwg.mxu0
    %v2871 = vadd.f32 %v2670, %v2808
    %v2872 = vadd.f32 %v2671, %v2810
    %v2873 = vadd.f32 %v2672, %v2813
    %v2874 = vadd.f32 %v2673, %v2815
    %v2875 = vadd.f32 %v2674, %v2818
    %v2876 = vadd.f32 %v2675, %v2820
    %v2877 = vadd.f32 %v2676, %v2823
    %v2878 = vadd.f32 %v2677, %v2825
    %v2879 = vadd.f32 %v2678, %v2828
    %v2880 = vadd.f32 %v2679, %v2830
    %v2881 = vadd.f32 %v2680, %v2833
    %v2882 = vadd.f32 %v2681, %v2835
    %v2883 = vadd.f32 %v2682, %v2838
    %v2884 = vadd.f32 %v2683, %v2840
    %v2885 = vadd.f32 %v2684, %v2843
    %v2886 = vadd.f32 %v2685, %v2845
    %v2887 = vadd.f32 %v2686, %v2848
    %v2888 = vadd.f32 %v2687, %v2850
    %v2889 = vadd.f32 %v2688, %v2853
    %v2890 = vadd.f32 %v2689, %v2855
    %v2891 = vadd.f32 %v2690, %v2858
    %v2892 = vadd.f32 %v2691, %v2860
    %v2893 = vadd.f32 %v2692, %v2863
    %v2894 = vadd.f32 %v2693, %v2865
    %v2895 = vadd.f32 %v2694, %v2868
    %v2896 = vld [vmem:[#allocation3 + $0xc] sm:$0xff]
    %v2897 = vld [vmem:[#allocation3 + $0x14] sm:$0xff]
    %v2898 = vld [vmem:[#allocation3 + $0x1c] sm:$0xff]
    %v2899 = vld [vmem:[#allocation3 + $0x24] sm:$0xff]
    %v2900 = vld [vmem:[#allocation3 + $0x2c] sm:$0xff]
    %v2901 = vld [vmem:[#allocation3 + $0x34] sm:$0xff]
    %v2902 = vld [vmem:[#allocation3 + $0x3c] sm:$0xff]
    %v2903 = vld [vmem:[#allocation3 + $0x44] sm:$0xff]
    %v2904 = vld [vmem:[#allocation3 + $0x4c] sm:$0xff]
    %v2905 = vld [vmem:[#allocation3 + $0x54] sm:$0xff]
    %v2906 = vld [vmem:[#allocation3 + $0x5c] sm:$0xff]
    %v2907 = vld [vmem:[#allocation3 + $0x64] sm:$0xff]
    %v2908 = vld [vmem:[#allocation3 + $0x6c] sm:$0xff]
    %v2909 = vld [vmem:[#allocation3 + $0x74] sm:$0xff]
    %v2910 = vld [vmem:[#allocation3 + $0x7c] sm:$0xff]
    %v2911 = vld [vmem:[#allocation3 + $0x84] sm:$0xff]
    %v2912 = vld [vmem:[#allocation3 + $0x8c] sm:$0xff]
    %v2913 = vld [vmem:[#allocation3 + $0x94] sm:$0xff]
    %v2914 = vld [vmem:[#allocation3 + $0x9c] sm:$0xff]
    %v2915 = vld [vmem:[#allocation3 + $0xa4] sm:$0xff]
    %v2916 = vld [vmem:[#allocation3 + $0xac] sm:$0xff]
    %v2917 = vld [vmem:[#allocation3 + $0xb4] sm:$0xff]
    %v2918 = vld [vmem:[#allocation3 + $0xbc] sm:$0xff]
    %v2919 = vld [vmem:[#allocation3 + $0xc4] sm:$0xff]
    %v2920 = vld [vmem:[#allocation3 + $0xcc] sm:$0xff]
    %v2921 = vpack.c.bf16 %v2897, %v2896
    %v2922 = vpack.c.bf16 %v2899, %v2898
    %v2923 = vpack.c.bf16 %v2901, %v2900
    %v2924 = vpack.c.bf16 %v2903, %v2902
    %v2925 = vpack.c.bf16 %v2905, %v2904
    %v2926 = vpack.c.bf16 %v2907, %v2906
    %v2927 = vpack.c.bf16 %v2909, %v2908
    %v2928 = vpack.c.bf16 %v2911, %v2910
    %v2929 = vpack.c.bf16 %v2913, %v2912
    %v2930 = vpack.c.bf16 %v2915, %v2914
    %v2931 = vpack.c.bf16 %v2917, %v2916
    %v2932 = vpack.c.bf16 %v2919, %v2918
    %v2933 = vpack.c.bf16 %v2920, %v2920
    %s2934 = scalar_lea.vmem %s10, 320
    %v2935 = vld [vmem:[%s2934] sm:$0xf]
    %v2936 = vld [vmem:[%s2934 + $0x4] sm:$0xf]
    %v2937 = vld [vmem:[%s2934 + $0x8] sm:$0xf]
    %v2938 = vld [vmem:[%s2934 + $0xc] sm:$0xf]
    %v2939 = vld [vmem:[%s2934 + $0x10] sm:$0xf]
    %v2940 = vld [vmem:[%s2934 + $0x14] sm:$0xf]
    %v2941 = vld [vmem:[%s2934 + $0x18] sm:$0xf]
    %v2942 = vld [vmem:[%s2934 + $0x1c] sm:$0xf]
    %v2943 = vld [vmem:[%s2934 + $0x20] sm:$0xf]
    %v2944 = vld [vmem:[%s2934 + $0x24] sm:$0xf]
    %v2945 = vld [vmem:[%s2934 + $0x28] sm:$0xf]
    %v2946 = vld [vmem:[%s2934 + $0x2c] sm:$0xf]
    %v2947 = vld [vmem:[%s2934 + $0x30] sm:$0xf]
    %v2948 = vld [vmem:[%s2934 + $0x34] sm:$0xf]
    %v2949 = vld [vmem:[%s2934 + $0x38] sm:$0xf]
    %v2950 = vld [vmem:[%s2934 + $0x3c] sm:$0xf]
    %v2967 = vunpack.c.l.b16 %v2935
    %v2968 = vunpack.c.l.b16 %v2936
    %v2969 = vunpack.c.l.b16 %v2937
    %v2970 = vunpack.c.l.b16 %v2938
    %v2971 = vunpack.c.l.b16 %v2939
    %v2972 = vunpack.c.l.b16 %v2940
    %v2973 = vunpack.c.l.b16 %v2941
    %v2974 = vunpack.c.l.b16 %v2942
    %v2975 = vunpack.c.l.b16 %v2943
    %v2976 = vunpack.c.l.b16 %v2944
    %v2977 = vunpack.c.l.b16 %v2945
    %v2978 = vunpack.c.l.b16 %v2946
    %v2979 = vunpack.c.l.b16 %v2947
    %v2980 = vunpack.c.l.b16 %v2948
    %v2981 = vunpack.c.l.b16 %v2949
    %v2982 = vunpack.c.l.b16 %v2950
    %v2983 = vpack.c.b16 %v2968, %v2967
    %v2984 = vpack.c.b16 %v2970, %v2969
    %v2985 = vpack.c.b16 %v2972, %v2971
    %v2986 = vpack.c.b16 %v2974, %v2973
    %v2987 = vpack.c.b16 %v2976, %v2975
    %v2988 = vpack.c.b16 %v2978, %v2977
    %v2989 = vpack.c.b16 %v2980, %v2979
    %v2990 = vpack.c.b16 %v2982, %v2981
    %2999 = vmatpush.bf16.msra.mxu0 %v2990
    %3000 = vmatpush.bf16.msra.mxu0 %v2989
    %3001 = vmatpush.bf16.msra.mxu0 %v2988
    %3002 = vmatpush.bf16.msra.mxu0 %v2987
    %3003 = vmatpush.bf16.msra.mxu0 %v2986
    %3004 = vmatpush.bf16.msra.mxu0 %v2985
    %3005 = vmatpush.bf16.msra.mxu0 %v2984
    %3006 = vmatpush.bf16.msra.mxu0 %v2983
    %3007 = vmatmul.bf16.gmra.mxu0 %v2921
    %v3008 = vpop.f32.mrf.mxu0
    %v3009 = vadd.f32 0.0, %v3008
    %v3010 = vpop.f32.mrf.mxu0
    %v3011 = vadd.f32 0.0, %v3010
    %3012 = vmatmul.bf16.gmra.mxu0 %v2922
    %v3013 = vpop.f32.mrf.mxu0
    %v3014 = vadd.f32 0.0, %v3013
    %v3015 = vpop.f32.mrf.mxu0
    %v3016 = vadd.f32 0.0, %v3015
    %3017 = vmatmul.bf16.gmra.mxu0 %v2923
    %v3018 = vpop.f32.mrf.mxu0
    %v3019 = vadd.f32 0.0, %v3018
    %v3020 = vpop.f32.mrf.mxu0
    %v3021 = vadd.f32 0.0, %v3020
    %3022 = vmatmul.bf16.gmra.mxu0 %v2924
    %v3023 = vpop.f32.mrf.mxu0
    %v3024 = vadd.f32 0.0, %v3023
    %v3025 = vpop.f32.mrf.mxu0
    %v3026 = vadd.f32 0.0, %v3025
    %3027 = vmatmul.bf16.gmra.mxu0 %v2925
    %v3028 = vpop.f32.mrf.mxu0
    %v3029 = vadd.f32 0.0, %v3028
    %v3030 = vpop.f32.mrf.mxu0
    %v3031 = vadd.f32 0.0, %v3030
    %3032 = vmatmul.bf16.gmra.mxu0 %v2926
    %v3033 = vpop.f32.mrf.mxu0
    %v3034 = vadd.f32 0.0, %v3033
    %v3035 = vpop.f32.mrf.mxu0
    %v3036 = vadd.f32 0.0, %v3035
    %3037 = vmatmul.bf16.gmra.mxu0 %v2927
    %v3038 = vpop.f32.mrf.mxu0
    %v3039 = vadd.f32 0.0, %v3038
    %v3040 = vpop.f32.mrf.mxu0
    %v3041 = vadd.f32 0.0, %v3040
    %3042 = vmatmul.bf16.gmra.mxu0 %v2928
    %v3043 = vpop.f32.mrf.mxu0
    %v3044 = vadd.f32 0.0, %v3043
    %v3045 = vpop.f32.mrf.mxu0
    %v3046 = vadd.f32 0.0, %v3045
    %3047 = vmatmul.bf16.gmra.mxu0 %v2929
    %v3048 = vpop.f32.mrf.mxu0
    %v3049 = vadd.f32 0.0, %v3048
    %v3050 = vpop.f32.mrf.mxu0
    %v3051 = vadd.f32 0.0, %v3050
    %3052 = vmatmul.bf16.gmra.mxu0 %v2930
    %v3053 = vpop.f32.mrf.mxu0
    %v3054 = vadd.f32 0.0, %v3053
    %v3055 = vpop.f32.mrf.mxu0
    %v3056 = vadd.f32 0.0, %v3055
    %3057 = vmatmul.bf16.gmra.mxu0 %v2931
    %v3058 = vpop.f32.mrf.mxu0
    %v3059 = vadd.f32 0.0, %v3058
    %v3060 = vpop.f32.mrf.mxu0
    %v3061 = vadd.f32 0.0, %v3060
    %3062 = vmatmul.bf16.gmra.mxu0 %v2932
    %v3063 = vpop.f32.mrf.mxu0
    %v3064 = vadd.f32 0.0, %v3063
    %v3065 = vpop.f32.mrf.mxu0
    %v3066 = vadd.f32 0.0, %v3065
    %3067 = vmatmul.bf16.gmra.mxu0 %v2933
    %v3068 = vpop.f32.mrf.mxu0
    %v3069 = vadd.f32 0.0, %v3068
    %v3070 = vpop.f32.mrf.mxu0
    %3071 = vdwg.mxu0
    %v3072 = vadd.f32 %v2871, %v3009
    %v3073 = vadd.f32 %v2872, %v3011
    %v3074 = vadd.f32 %v2873, %v3014
    %v3075 = vadd.f32 %v2874, %v3016
    %v3076 = vadd.f32 %v2875, %v3019
    %v3077 = vadd.f32 %v2876, %v3021
    %v3078 = vadd.f32 %v2877, %v3024
    %v3079 = vadd.f32 %v2878, %v3026
    %v3080 = vadd.f32 %v2879, %v3029
    %v3081 = vadd.f32 %v2880, %v3031
    %v3082 = vadd.f32 %v2881, %v3034
    %v3083 = vadd.f32 %v2882, %v3036
    %v3084 = vadd.f32 %v2883, %v3039
    %v3085 = vadd.f32 %v2884, %v3041
    %v3086 = vadd.f32 %v2885, %v3044
    %v3087 = vadd.f32 %v2886, %v3046
    %v3088 = vadd.f32 %v2887, %v3049
    %v3089 = vadd.f32 %v2888, %v3051
    %v3090 = vadd.f32 %v2889, %v3054
    %v3091 = vadd.f32 %v2890, %v3056
    %v3092 = vadd.f32 %v2891, %v3059
    %v3093 = vadd.f32 %v2892, %v3061
    %v3094 = vadd.f32 %v2893, %v3064
    %v3095 = vadd.f32 %v2894, %v3066
    %v3096 = vadd.f32 %v2895, %v3069
    %v3097 = vld [vmem:[#allocation3 + $0x14] sm:$0xff]
    %v3098 = vld [vmem:[#allocation3 + $0x1c] sm:$0xff]
    %v3099 = vld [vmem:[#allocation3 + $0x24] sm:$0xff]
    %v3100 = vld [vmem:[#allocation3 + $0x2c] sm:$0xff]
    %v3101 = vld [vmem:[#allocation3 + $0x34] sm:$0xff]
    %v3102 = vld [vmem:[#allocation3 + $0x3c] sm:$0xff]
    %v3103 = vld [vmem:[#allocation3 + $0x44] sm:$0xff]
    %v3104 = vld [vmem:[#allocation3 + $0x4c] sm:$0xff]
    %v3105 = vld [vmem:[#allocation3 + $0x54] sm:$0xff]
    %v3106 = vld [vmem:[#allocation3 + $0x5c] sm:$0xff]
    %v3107 = vld [vmem:[#allocation3 + $0x64] sm:$0xff]
    %v3108 = vld [vmem:[#allocation3 + $0x6c] sm:$0xff]
    %v3109 = vld [vmem:[#allocation3 + $0x74] sm:$0xff]
    %v3110 = vld [vmem:[#allocation3 + $0x7c] sm:$0xff]
    %v3111 = vld [vmem:[#allocation3 + $0x84] sm:$0xff]
    %v3112 = vld [vmem:[#allocation3 + $0x8c] sm:$0xff]
    %v3113 = vld [vmem:[#allocation3 + $0x94] sm:$0xff]
    %v3114 = vld [vmem:[#allocation3 + $0x9c] sm:$0xff]
    %v3115 = vld [vmem:[#allocation3 + $0xa4] sm:$0xff]
    %v3116 = vld [vmem:[#allocation3 + $0xac] sm:$0xff]
    %v3117 = vld [vmem:[#allocation3 + $0xb4] sm:$0xff]
    %v3118 = vld [vmem:[#allocation3 + $0xbc] sm:$0xff]
    %v3119 = vld [vmem:[#allocation3 + $0xc4] sm:$0xff]
    %v3120 = vld [vmem:[#allocation3 + $0xcc] sm:$0xff]
    %v3121 = vld [vmem:[#allocation3 + $0xd4] sm:$0xff]
    %v3122 = vpack.c.bf16 %v3098, %v3097
    %v3123 = vpack.c.bf16 %v3100, %v3099
    %v3124 = vpack.c.bf16 %v3102, %v3101
    %v3125 = vpack.c.bf16 %v3104, %v3103
    %v3126 = vpack.c.bf16 %v3106, %v3105
    %v3127 = vpack.c.bf16 %v3108, %v3107
    %v3128 = vpack.c.bf16 %v3110, %v3109
    %v3129 = vpack.c.bf16 %v3112, %v3111
    %v3130 = vpack.c.bf16 %v3114, %v3113
    %v3131 = vpack.c.bf16 %v3116, %v3115
    %v3132 = vpack.c.bf16 %v3118, %v3117
    %v3133 = vpack.c.bf16 %v3120, %v3119
    %v3134 = vpack.c.bf16 %v3121, %v3121
    %s3135 = scalar_lea.vmem %s10, 384
    %v3136 = vld [vmem:[%s3135] sm:$0xf]
    %v3137 = vld [vmem:[%s3135 + $0x4] sm:$0xf]
    %v3138 = vld [vmem:[%s3135 + $0x8] sm:$0xf]
    %v3139 = vld [vmem:[%s3135 + $0xc] sm:$0xf]
    %v3140 = vld [vmem:[%s3135 + $0x10] sm:$0xf]
    %v3141 = vld [vmem:[%s3135 + $0x14] sm:$0xf]
    %v3142 = vld [vmem:[%s3135 + $0x18] sm:$0xf]
    %v3143 = vld [vmem:[%s3135 + $0x1c] sm:$0xf]
    %v3144 = vld [vmem:[%s3135 + $0x20] sm:$0xf]
    %v3145 = vld [vmem:[%s3135 + $0x24] sm:$0xf]
    %v3146 = vld [vmem:[%s3135 + $0x28] sm:$0xf]
    %v3147 = vld [vmem:[%s3135 + $0x2c] sm:$0xf]
    %v3148 = vld [vmem:[%s3135 + $0x30] sm:$0xf]
    %v3149 = vld [vmem:[%s3135 + $0x34] sm:$0xf]
    %v3150 = vld [vmem:[%s3135 + $0x38] sm:$0xf]
    %v3151 = vld [vmem:[%s3135 + $0x3c] sm:$0xf]
    %v3168 = vunpack.c.l.b16 %v3136
    %v3169 = vunpack.c.l.b16 %v3137
    %v3170 = vunpack.c.l.b16 %v3138
    %v3171 = vunpack.c.l.b16 %v3139
    %v3172 = vunpack.c.l.b16 %v3140
    %v3173 = vunpack.c.l.b16 %v3141
    %v3174 = vunpack.c.l.b16 %v3142
    %v3175 = vunpack.c.l.b16 %v3143
    %v3176 = vunpack.c.l.b16 %v3144
    %v3177 = vunpack.c.l.b16 %v3145
    %v3178 = vunpack.c.l.b16 %v3146
    %v3179 = vunpack.c.l.b16 %v3147
    %v3180 = vunpack.c.l.b16 %v3148
    %v3181 = vunpack.c.l.b16 %v3149
    %v3182 = vunpack.c.l.b16 %v3150
    %v3183 = vunpack.c.l.b16 %v3151
    %v3184 = vpack.c.b16 %v3169, %v3168
    %v3185 = vpack.c.b16 %v3171, %v3170
    %v3186 = vpack.c.b16 %v3173, %v3172
    %v3187 = vpack.c.b16 %v3175, %v3174
    %v3188 = vpack.c.b16 %v3177, %v3176
    %v3189 = vpack.c.b16 %v3179, %v3178
    %v3190 = vpack.c.b16 %v3181, %v3180
    %v3191 = vpack.c.b16 %v3183, %v3182
    %3200 = vmatpush.bf16.msra.mxu0 %v3191
    %3201 = vmatpush.bf16.msra.mxu0 %v3190
    %3202 = vmatpush.bf16.msra.mxu0 %v3189
    %3203 = vmatpush.bf16.msra.mxu0 %v3188
    %3204 = vmatpush.bf16.msra.mxu0 %v3187
    %3205 = vmatpush.bf16.msra.mxu0 %v3186
    %3206 = vmatpush.bf16.msra.mxu0 %v3185
    %3207 = vmatpush.bf16.msra.mxu0 %v3184
    %3208 = vmatmul.bf16.gmra.mxu0 %v3122
    %v3209 = vpop.f32.mrf.mxu0
    %v3210 = vadd.f32 0.0, %v3209
    %v3211 = vpop.f32.mrf.mxu0
    %v3212 = vadd.f32 0.0, %v3211
    %3213 = vmatmul.bf16.gmra.mxu0 %v3123
    %v3214 = vpop.f32.mrf.mxu0
    %v3215 = vadd.f32 0.0, %v3214
    %v3216 = vpop.f32.mrf.mxu0
    %v3217 = vadd.f32 0.0, %v3216
    %3218 = vmatmul.bf16.gmra.mxu0 %v3124
    %v3219 = vpop.f32.mrf.mxu0
    %v3220 = vadd.f32 0.0, %v3219
    %v3221 = vpop.f32.mrf.mxu0
    %v3222 = vadd.f32 0.0, %v3221
    %3223 = vmatmul.bf16.gmra.mxu0 %v3125
    %v3224 = vpop.f32.mrf.mxu0
    %v3225 = vadd.f32 0.0, %v3224
    %v3226 = vpop.f32.mrf.mxu0
    %v3227 = vadd.f32 0.0, %v3226
    %3228 = vmatmul.bf16.gmra.mxu0 %v3126
    %v3229 = vpop.f32.mrf.mxu0
    %v3230 = vadd.f32 0.0, %v3229
    %v3231 = vpop.f32.mrf.mxu0
    %v3232 = vadd.f32 0.0, %v3231
    %3233 = vmatmul.bf16.gmra.mxu0 %v3127
    %v3234 = vpop.f32.mrf.mxu0
    %v3235 = vadd.f32 0.0, %v3234
    %v3236 = vpop.f32.mrf.mxu0
    %v3237 = vadd.f32 0.0, %v3236
    %3238 = vmatmul.bf16.gmra.mxu0 %v3128
    %v3239 = vpop.f32.mrf.mxu0
    %v3240 = vadd.f32 0.0, %v3239
    %v3241 = vpop.f32.mrf.mxu0
    %v3242 = vadd.f32 0.0, %v3241
    %3243 = vmatmul.bf16.gmra.mxu0 %v3129
    %v3244 = vpop.f32.mrf.mxu0
    %v3245 = vadd.f32 0.0, %v3244
    %v3246 = vpop.f32.mrf.mxu0
    %v3247 = vadd.f32 0.0, %v3246
    %3248 = vmatmul.bf16.gmra.mxu0 %v3130
    %v3249 = vpop.f32.mrf.mxu0
    %v3250 = vadd.f32 0.0, %v3249
    %v3251 = vpop.f32.mrf.mxu0
    %v3252 = vadd.f32 0.0, %v3251
    %3253 = vmatmul.bf16.gmra.mxu0 %v3131
    %v3254 = vpop.f32.mrf.mxu0
    %v3255 = vadd.f32 0.0, %v3254
    %v3256 = vpop.f32.mrf.mxu0
    %v3257 = vadd.f32 0.0, %v3256
    %3258 = vmatmul.bf16.gmra.mxu0 %v3132
    %v3259 = vpop.f32.mrf.mxu0
    %v3260 = vadd.f32 0.0, %v3259
    %v3261 = vpop.f32.mrf.mxu0
    %v3262 = vadd.f32 0.0, %v3261
    %3263 = vmatmul.bf16.gmra.mxu0 %v3133
    %v3264 = vpop.f32.mrf.mxu0
    %v3265 = vadd.f32 0.0, %v3264
    %v3266 = vpop.f32.mrf.mxu0
    %v3267 = vadd.f32 0.0, %v3266
    %3268 = vmatmul.bf16.gmra.mxu0 %v3134
    %v3269 = vpop.f32.mrf.mxu0
    %v3270 = vadd.f32 0.0, %v3269
    %v3271 = vpop.f32.mrf.mxu0
    %3272 = vdwg.mxu0
    %v3273 = vadd.f32 %v3072, %v3210
    %v3274 = vadd.f32 %v3073, %v3212
    %v3275 = vadd.f32 %v3074, %v3215
    %v3276 = vadd.f32 %v3075, %v3217
    %v3277 = vadd.f32 %v3076, %v3220
    %v3278 = vadd.f32 %v3077, %v3222
    %v3279 = vadd.f32 %v3078, %v3225
    %v3280 = vadd.f32 %v3079, %v3227
    %v3281 = vadd.f32 %v3080, %v3230
    %v3282 = vadd.f32 %v3081, %v3232
    %v3283 = vadd.f32 %v3082, %v3235
    %v3284 = vadd.f32 %v3083, %v3237
    %v3285 = vadd.f32 %v3084, %v3240
    %v3286 = vadd.f32 %v3085, %v3242
    %v3287 = vadd.f32 %v3086, %v3245
    %v3288 = vadd.f32 %v3087, %v3247
    %v3289 = vadd.f32 %v3088, %v3250
    %v3290 = vadd.f32 %v3089, %v3252
    %v3291 = vadd.f32 %v3090, %v3255
    %v3292 = vadd.f32 %v3091, %v3257
    %v3293 = vadd.f32 %v3092, %v3260
    %v3294 = vadd.f32 %v3093, %v3262
    %v3295 = vadd.f32 %v3094, %v3265
    %v3296 = vadd.f32 %v3095, %v3267
    %v3297 = vadd.f32 %v3096, %v3270
    %v3298 = vld [vmem:[#allocation3 + $0x15] sm:$0xff]
    %v3299 = vld [vmem:[#allocation3 + $0x1d] sm:$0xff]
    %v3300 = vld [vmem:[#allocation3 + $0x25] sm:$0xff]
    %v3301 = vld [vmem:[#allocation3 + $0x2d] sm:$0xff]
    %v3302 = vld [vmem:[#allocation3 + $0x35] sm:$0xff]
    %v3303 = vld [vmem:[#allocation3 + $0x3d] sm:$0xff]
    %v3304 = vld [vmem:[#allocation3 + $0x45] sm:$0xff]
    %v3305 = vld [vmem:[#allocation3 + $0x4d] sm:$0xff]
    %v3306 = vld [vmem:[#allocation3 + $0x55] sm:$0xff]
    %v3307 = vld [vmem:[#allocation3 + $0x5d] sm:$0xff]
    %v3308 = vld [vmem:[#allocation3 + $0x65] sm:$0xff]
    %v3309 = vld [vmem:[#allocation3 + $0x6d] sm:$0xff]
    %v3310 = vld [vmem:[#allocation3 + $0x75] sm:$0xff]
    %v3311 = vld [vmem:[#allocation3 + $0x7d] sm:$0xff]
    %v3312 = vld [vmem:[#allocation3 + $0x85] sm:$0xff]
    %v3313 = vld [vmem:[#allocation3 + $0x8d] sm:$0xff]
    %v3314 = vld [vmem:[#allocation3 + $0x95] sm:$0xff]
    %v3315 = vld [vmem:[#allocation3 + $0x9d] sm:$0xff]
    %v3316 = vld [vmem:[#allocation3 + $0xa5] sm:$0xff]
    %v3317 = vld [vmem:[#allocation3 + $0xad] sm:$0xff]
    %v3318 = vld [vmem:[#allocation3 + $0xb5] sm:$0xff]
    %v3319 = vld [vmem:[#allocation3 + $0xbd] sm:$0xff]
    %v3320 = vld [vmem:[#allocation3 + $0xc5] sm:$0xff]
    %v3321 = vld [vmem:[#allocation3 + $0xcd] sm:$0xff]
    %v3322 = vld [vmem:[#allocation3 + $0xd5] sm:$0xff]
    %v3323 = vpack.c.bf16 %v3299, %v3298
    %v3324 = vpack.c.bf16 %v3301, %v3300
    %v3325 = vpack.c.bf16 %v3303, %v3302
    %v3326 = vpack.c.bf16 %v3305, %v3304
    %v3327 = vpack.c.bf16 %v3307, %v3306
    %v3328 = vpack.c.bf16 %v3309, %v3308
    %v3329 = vpack.c.bf16 %v3311, %v3310
    %v3330 = vpack.c.bf16 %v3313, %v3312
    %v3331 = vpack.c.bf16 %v3315, %v3314
    %v3332 = vpack.c.bf16 %v3317, %v3316
    %v3333 = vpack.c.bf16 %v3319, %v3318
    %v3334 = vpack.c.bf16 %v3321, %v3320
    %v3335 = vpack.c.bf16 %v3322, %v3322
    %s3336 = scalar_lea.vmem %s10, 448
    %v3337 = vld [vmem:[%s3336] sm:$0xf]
    %v3338 = vld [vmem:[%s3336 + $0x4] sm:$0xf]
    %v3339 = vld [vmem:[%s3336 + $0x8] sm:$0xf]
    %v3340 = vld [vmem:[%s3336 + $0xc] sm:$0xf]
    %v3341 = vld [vmem:[%s3336 + $0x10] sm:$0xf]
    %v3342 = vld [vmem:[%s3336 + $0x14] sm:$0xf]
    %v3343 = vld [vmem:[%s3336 + $0x18] sm:$0xf]
    %v3344 = vld [vmem:[%s3336 + $0x1c] sm:$0xf]
    %v3345 = vld [vmem:[%s3336 + $0x20] sm:$0xf]
    %v3346 = vld [vmem:[%s3336 + $0x24] sm:$0xf]
    %v3347 = vld [vmem:[%s3336 + $0x28] sm:$0xf]
    %v3348 = vld [vmem:[%s3336 + $0x2c] sm:$0xf]
    %v3349 = vld [vmem:[%s3336 + $0x30] sm:$0xf]
    %v3350 = vld [vmem:[%s3336 + $0x34] sm:$0xf]
    %v3351 = vld [vmem:[%s3336 + $0x38] sm:$0xf]
    %v3352 = vld [vmem:[%s3336 + $0x3c] sm:$0xf]
    %v3369 = vunpack.c.l.b16 %v3337
    %v3370 = vunpack.c.l.b16 %v3338
    %v3371 = vunpack.c.l.b16 %v3339
    %v3372 = vunpack.c.l.b16 %v3340
    %v3373 = vunpack.c.l.b16 %v3341
    %v3374 = vunpack.c.l.b16 %v3342
    %v3375 = vunpack.c.l.b16 %v3343
    %v3376 = vunpack.c.l.b16 %v3344
    %v3377 = vunpack.c.l.b16 %v3345
    %v3378 = vunpack.c.l.b16 %v3346
    %v3379 = vunpack.c.l.b16 %v3347
    %v3380 = vunpack.c.l.b16 %v3348
    %v3381 = vunpack.c.l.b16 %v3349
    %v3382 = vunpack.c.l.b16 %v3350
    %v3383 = vunpack.c.l.b16 %v3351
    %v3384 = vunpack.c.l.b16 %v3352
    %v3385 = vpack.c.b16 %v3370, %v3369
    %v3386 = vpack.c.b16 %v3372, %v3371
    %v3387 = vpack.c.b16 %v3374, %v3373
    %v3388 = vpack.c.b16 %v3376, %v3375
    %v3389 = vpack.c.b16 %v3378, %v3377
    %v3390 = vpack.c.b16 %v3380, %v3379
    %v3391 = vpack.c.b16 %v3382, %v3381
    %v3392 = vpack.c.b16 %v3384, %v3383
    %3401 = vmatpush.bf16.msra.mxu0 %v3392
    %3402 = vmatpush.bf16.msra.mxu0 %v3391
    %3403 = vmatpush.bf16.msra.mxu0 %v3390
    %3404 = vmatpush.bf16.msra.mxu0 %v3389
    %3405 = vmatpush.bf16.msra.mxu0 %v3388
    %3406 = vmatpush.bf16.msra.mxu0 %v3387
    %3407 = vmatpush.bf16.msra.mxu0 %v3386
    %3408 = vmatpush.bf16.msra.mxu0 %v3385
    %3409 = vmatmul.bf16.gmra.mxu0 %v3323
    %v3410 = vpop.f32.mrf.mxu0
    %v3411 = vadd.f32 0.0, %v3410
    %v3412 = vpop.f32.mrf.mxu0
    %v3413 = vadd.f32 0.0, %v3412
    %3414 = vmatmul.bf16.gmra.mxu0 %v3324
    %v3415 = vpop.f32.mrf.mxu0
    %v3416 = vadd.f32 0.0, %v3415
    %v3417 = vpop.f32.mrf.mxu0
    %v3418 = vadd.f32 0.0, %v3417
    %3419 = vmatmul.bf16.gmra.mxu0 %v3325
    %v3420 = vpop.f32.mrf.mxu0
    %v3421 = vadd.f32 0.0, %v3420
    %v3422 = vpop.f32.mrf.mxu0
    %v3423 = vadd.f32 0.0, %v3422
    %3424 = vmatmul.bf16.gmra.mxu0 %v3326
    %v3425 = vpop.f32.mrf.mxu0
    %v3426 = vadd.f32 0.0, %v3425
    %v3427 = vpop.f32.mrf.mxu0
    %v3428 = vadd.f32 0.0, %v3427
    %3429 = vmatmul.bf16.gmra.mxu0 %v3327
    %v3430 = vpop.f32.mrf.mxu0
    %v3431 = vadd.f32 0.0, %v3430
    %v3432 = vpop.f32.mrf.mxu0
    %v3433 = vadd.f32 0.0, %v3432
    %3434 = vmatmul.bf16.gmra.mxu0 %v3328
    %v3435 = vpop.f32.mrf.mxu0
    %v3436 = vadd.f32 0.0, %v3435
    %v3437 = vpop.f32.mrf.mxu0
    %v3438 = vadd.f32 0.0, %v3437
    %3439 = vmatmul.bf16.gmra.mxu0 %v3329
    %v3440 = vpop.f32.mrf.mxu0
    %v3441 = vadd.f32 0.0, %v3440
    %v3442 = vpop.f32.mrf.mxu0
    %v3443 = vadd.f32 0.0, %v3442
    %3444 = vmatmul.bf16.gmra.mxu0 %v3330
    %v3445 = vpop.f32.mrf.mxu0
    %v3446 = vadd.f32 0.0, %v3445
    %v3447 = vpop.f32.mrf.mxu0
    %v3448 = vadd.f32 0.0, %v3447
    %3449 = vmatmul.bf16.gmra.mxu0 %v3331
    %v3450 = vpop.f32.mrf.mxu0
    %v3451 = vadd.f32 0.0, %v3450
    %v3452 = vpop.f32.mrf.mxu0
    %v3453 = vadd.f32 0.0, %v3452
    %3454 = vmatmul.bf16.gmra.mxu0 %v3332
    %v3455 = vpop.f32.mrf.mxu0
    %v3456 = vadd.f32 0.0, %v3455
    %v3457 = vpop.f32.mrf.mxu0
    %v3458 = vadd.f32 0.0, %v3457
    %3459 = vmatmul.bf16.gmra.mxu0 %v3333
    %v3460 = vpop.f32.mrf.mxu0
    %v3461 = vadd.f32 0.0, %v3460
    %v3462 = vpop.f32.mrf.mxu0
    %v3463 = vadd.f32 0.0, %v3462
    %3464 = vmatmul.bf16.gmra.mxu0 %v3334
    %v3465 = vpop.f32.mrf.mxu0
    %v3466 = vadd.f32 0.0, %v3465
    %v3467 = vpop.f32.mrf.mxu0
    %v3468 = vadd.f32 0.0, %v3467
    %3469 = vmatmul.bf16.gmra.mxu0 %v3335
    %v3470 = vpop.f32.mrf.mxu0
    %v3471 = vadd.f32 0.0, %v3470
    %v3472 = vpop.f32.mrf.mxu0
    %3473 = vdwg.mxu0
    %v3474 = vadd.f32 %v3273, %v3411
    %v3475 = vadd.f32 %v3274, %v3413
    %v3476 = vadd.f32 %v3275, %v3416
    %v3477 = vadd.f32 %v3276, %v3418
    %v3478 = vadd.f32 %v3277, %v3421
    %v3479 = vadd.f32 %v3278, %v3423
    %v3480 = vadd.f32 %v3279, %v3426
    %v3481 = vadd.f32 %v3280, %v3428
    %v3482 = vadd.f32 %v3281, %v3431
    %v3483 = vadd.f32 %v3282, %v3433
    %v3484 = vadd.f32 %v3283, %v3436
    %v3485 = vadd.f32 %v3284, %v3438
    %v3486 = vadd.f32 %v3285, %v3441
    %v3487 = vadd.f32 %v3286, %v3443
    %v3488 = vadd.f32 %v3287, %v3446
    %v3489 = vadd.f32 %v3288, %v3448
    %v3490 = vadd.f32 %v3289, %v3451
    %v3491 = vadd.f32 %v3290, %v3453
    %v3492 = vadd.f32 %v3291, %v3456
    %v3493 = vadd.f32 %v3292, %v3458
    %v3494 = vadd.f32 %v3293, %v3461
    %v3495 = vadd.f32 %v3294, %v3463
    %v3496 = vadd.f32 %v3295, %v3466
    %v3497 = vadd.f32 %v3296, %v3468
    %v3498 = vadd.f32 %v3297, %v3471
    %v3499 = vld [vmem:[#allocation3 + $0x16] sm:$0xff]
    %v3500 = vld [vmem:[#allocation3 + $0x1e] sm:$0xff]
    %v3501 = vld [vmem:[#allocation3 + $0x26] sm:$0xff]
    %v3502 = vld [vmem:[#allocation3 + $0x2e] sm:$0xff]
    %v3503 = vld [vmem:[#allocation3 + $0x36] sm:$0xff]
    %v3504 = vld [vmem:[#allocation3 + $0x3e] sm:$0xff]
    %v3505 = vld [vmem:[#allocation3 + $0x46] sm:$0xff]
    %v3506 = vld [vmem:[#allocation3 + $0x4e] sm:$0xff]
    %v3507 = vld [vmem:[#allocation3 + $0x56] sm:$0xff]
    %v3508 = vld [vmem:[#allocation3 + $0x5e] sm:$0xff]
    %v3509 = vld [vmem:[#allocation3 + $0x66] sm:$0xff]
    %v3510 = vld [vmem:[#allocation3 + $0x6e] sm:$0xff]
    %v3511 = vld [vmem:[#allocation3 + $0x76] sm:$0xff]
    %v3512 = vld [vmem:[#allocation3 + $0x7e] sm:$0xff]
    %v3513 = vld [vmem:[#allocation3 + $0x86] sm:$0xff]
    %v3514 = vld [vmem:[#allocation3 + $0x8e] sm:$0xff]
    %v3515 = vld [vmem:[#allocation3 + $0x96] sm:$0xff]
    %v3516 = vld [vmem:[#allocation3 + $0x9e] sm:$0xff]
    %v3517 = vld [vmem:[#allocation3 + $0xa6] sm:$0xff]
    %v3518 = vld [vmem:[#allocation3 + $0xae] sm:$0xff]
    %v3519 = vld [vmem:[#allocation3 + $0xb6] sm:$0xff]
    %v3520 = vld [vmem:[#allocation3 + $0xbe] sm:$0xff]
    %v3521 = vld [vmem:[#allocation3 + $0xc6] sm:$0xff]
    %v3522 = vld [vmem:[#allocation3 + $0xce] sm:$0xff]
    %v3523 = vld [vmem:[#allocation3 + $0xd6] sm:$0xff]
    %v3524 = vpack.c.bf16 %v3500, %v3499
    %v3525 = vpack.c.bf16 %v3502, %v3501
    %v3526 = vpack.c.bf16 %v3504, %v3503
    %v3527 = vpack.c.bf16 %v3506, %v3505
    %v3528 = vpack.c.bf16 %v3508, %v3507
    %v3529 = vpack.c.bf16 %v3510, %v3509
    %v3530 = vpack.c.bf16 %v3512, %v3511
    %v3531 = vpack.c.bf16 %v3514, %v3513
    %v3532 = vpack.c.bf16 %v3516, %v3515
    %v3533 = vpack.c.bf16 %v3518, %v3517
    %v3534 = vpack.c.bf16 %v3520, %v3519
    %v3535 = vpack.c.bf16 %v3522, %v3521
    %v3536 = vpack.c.bf16 %v3523, %v3523
    %s3537 = scalar_lea.vmem %s10, 512
    %v3538 = vld [vmem:[%s3537] sm:$0xf]
    %v3539 = vld [vmem:[%s3537 + $0x4] sm:$0xf]
    %v3540 = vld [vmem:[%s3537 + $0x8] sm:$0xf]
    %v3541 = vld [vmem:[%s3537 + $0xc] sm:$0xf]
    %v3542 = vld [vmem:[%s3537 + $0x10] sm:$0xf]
    %v3543 = vld [vmem:[%s3537 + $0x14] sm:$0xf]
    %v3544 = vld [vmem:[%s3537 + $0x18] sm:$0xf]
    %v3545 = vld [vmem:[%s3537 + $0x1c] sm:$0xf]
    %v3546 = vld [vmem:[%s3537 + $0x20] sm:$0xf]
    %v3547 = vld [vmem:[%s3537 + $0x24] sm:$0xf]
    %v3548 = vld [vmem:[%s3537 + $0x28] sm:$0xf]
    %v3549 = vld [vmem:[%s3537 + $0x2c] sm:$0xf]
    %v3550 = vld [vmem:[%s3537 + $0x30] sm:$0xf]
    %v3551 = vld [vmem:[%s3537 + $0x34] sm:$0xf]
    %v3552 = vld [vmem:[%s3537 + $0x38] sm:$0xf]
    %v3553 = vld [vmem:[%s3537 + $0x3c] sm:$0xf]
    %v3570 = vunpack.c.l.b16 %v3538
    %v3571 = vunpack.c.l.b16 %v3539
    %v3572 = vunpack.c.l.b16 %v3540
    %v3573 = vunpack.c.l.b16 %v3541
    %v3574 = vunpack.c.l.b16 %v3542
    %v3575 = vunpack.c.l.b16 %v3543
    %v3576 = vunpack.c.l.b16 %v3544
    %v3577 = vunpack.c.l.b16 %v3545
    %v3578 = vunpack.c.l.b16 %v3546
    %v3579 = vunpack.c.l.b16 %v3547
    %v3580 = vunpack.c.l.b16 %v3548
    %v3581 = vunpack.c.l.b16 %v3549
    %v3582 = vunpack.c.l.b16 %v3550
    %v3583 = vunpack.c.l.b16 %v3551
    %v3584 = vunpack.c.l.b16 %v3552
    %v3585 = vunpack.c.l.b16 %v3553
    %v3586 = vpack.c.b16 %v3571, %v3570
    %v3587 = vpack.c.b16 %v3573, %v3572
    %v3588 = vpack.c.b16 %v3575, %v3574
    %v3589 = vpack.c.b16 %v3577, %v3576
    %v3590 = vpack.c.b16 %v3579, %v3578
    %v3591 = vpack.c.b16 %v3581, %v3580
    %v3592 = vpack.c.b16 %v3583, %v3582
    %v3593 = vpack.c.b16 %v3585, %v3584
    %3602 = vmatpush.bf16.msra.mxu0 %v3593
    %3603 = vmatpush.bf16.msra.mxu0 %v3592
    %3604 = vmatpush.bf16.msra.mxu0 %v3591
    %3605 = vmatpush.bf16.msra.mxu0 %v3590
    %3606 = vmatpush.bf16.msra.mxu0 %v3589
    %3607 = vmatpush.bf16.msra.mxu0 %v3588
    %3608 = vmatpush.bf16.msra.mxu0 %v3587
    %3609 = vmatpush.bf16.msra.mxu0 %v3586
    %3610 = vmatmul.bf16.gmra.mxu0 %v3524
    %v3611 = vpop.f32.mrf.mxu0
    %v3612 = vadd.f32 0.0, %v3611
    %v3613 = vpop.f32.mrf.mxu0
    %v3614 = vadd.f32 0.0, %v3613
    %3615 = vmatmul.bf16.gmra.mxu0 %v3525
    %v3616 = vpop.f32.mrf.mxu0
    %v3617 = vadd.f32 0.0, %v3616
    %v3618 = vpop.f32.mrf.mxu0
    %v3619 = vadd.f32 0.0, %v3618
    %3620 = vmatmul.bf16.gmra.mxu0 %v3526
    %v3621 = vpop.f32.mrf.mxu0
    %v3622 = vadd.f32 0.0, %v3621
    %v3623 = vpop.f32.mrf.mxu0
    %v3624 = vadd.f32 0.0, %v3623
    %3625 = vmatmul.bf16.gmra.mxu0 %v3527
    %v3626 = vpop.f32.mrf.mxu0
    %v3627 = vadd.f32 0.0, %v3626
    %v3628 = vpop.f32.mrf.mxu0
    %v3629 = vadd.f32 0.0, %v3628
    %3630 = vmatmul.bf16.gmra.mxu0 %v3528
    %v3631 = vpop.f32.mrf.mxu0
    %v3632 = vadd.f32 0.0, %v3631
    %v3633 = vpop.f32.mrf.mxu0
    %v3634 = vadd.f32 0.0, %v3633
    %3635 = vmatmul.bf16.gmra.mxu0 %v3529
    %v3636 = vpop.f32.mrf.mxu0
    %v3637 = vadd.f32 0.0, %v3636
    %v3638 = vpop.f32.mrf.mxu0
    %v3639 = vadd.f32 0.0, %v3638
    %3640 = vmatmul.bf16.gmra.mxu0 %v3530
    %v3641 = vpop.f32.mrf.mxu0
    %v3642 = vadd.f32 0.0, %v3641
    %v3643 = vpop.f32.mrf.mxu0
    %v3644 = vadd.f32 0.0, %v3643
    %3645 = vmatmul.bf16.gmra.mxu0 %v3531
    %v3646 = vpop.f32.mrf.mxu0
    %v3647 = vadd.f32 0.0, %v3646
    %v3648 = vpop.f32.mrf.mxu0
    %v3649 = vadd.f32 0.0, %v3648
    %3650 = vmatmul.bf16.gmra.mxu0 %v3532
    %v3651 = vpop.f32.mrf.mxu0
    %v3652 = vadd.f32 0.0, %v3651
    %v3653 = vpop.f32.mrf.mxu0
    %v3654 = vadd.f32 0.0, %v3653
    %3655 = vmatmul.bf16.gmra.mxu0 %v3533
    %v3656 = vpop.f32.mrf.mxu0
    %v3657 = vadd.f32 0.0, %v3656
    %v3658 = vpop.f32.mrf.mxu0
    %v3659 = vadd.f32 0.0, %v3658
    %3660 = vmatmul.bf16.gmra.mxu0 %v3534
    %v3661 = vpop.f32.mrf.mxu0
    %v3662 = vadd.f32 0.0, %v3661
    %v3663 = vpop.f32.mrf.mxu0
    %v3664 = vadd.f32 0.0, %v3663
    %3665 = vmatmul.bf16.gmra.mxu0 %v3535
    %v3666 = vpop.f32.mrf.mxu0
    %v3667 = vadd.f32 0.0, %v3666
    %v3668 = vpop.f32.mrf.mxu0
    %v3669 = vadd.f32 0.0, %v3668
    %3670 = vmatmul.bf16.gmra.mxu0 %v3536
    %v3671 = vpop.f32.mrf.mxu0
    %v3672 = vadd.f32 0.0, %v3671
    %v3673 = vpop.f32.mrf.mxu0
    %3674 = vdwg.mxu0
    %v3675 = vadd.f32 %v3474, %v3612
    %v3676 = vadd.f32 %v3475, %v3614
    %v3677 = vadd.f32 %v3476, %v3617
    %v3678 = vadd.f32 %v3477, %v3619
    %v3679 = vadd.f32 %v3478, %v3622
    %v3680 = vadd.f32 %v3479, %v3624
    %v3681 = vadd.f32 %v3480, %v3627
    %v3682 = vadd.f32 %v3481, %v3629
    %v3683 = vadd.f32 %v3482, %v3632
    %v3684 = vadd.f32 %v3483, %v3634
    %v3685 = vadd.f32 %v3484, %v3637
    %v3686 = vadd.f32 %v3485, %v3639
    %v3687 = vadd.f32 %v3486, %v3642
    %v3688 = vadd.f32 %v3487, %v3644
    %v3689 = vadd.f32 %v3488, %v3647
    %v3690 = vadd.f32 %v3489, %v3649
    %v3691 = vadd.f32 %v3490, %v3652
    %v3692 = vadd.f32 %v3491, %v3654
    %v3693 = vadd.f32 %v3492, %v3657
    %v3694 = vadd.f32 %v3493, %v3659
    %v3695 = vadd.f32 %v3494, %v3662
    %v3696 = vadd.f32 %v3495, %v3664
    %v3697 = vadd.f32 %v3496, %v3667
    %v3698 = vadd.f32 %v3497, %v3669
    %v3699 = vadd.f32 %v3498, %v3672
    %v3700 = vld [vmem:[#allocation16] sm:$0x1]
    %v3702 = vperm.slane %v3700, 0
    %v3704 = vadd.f32 %v3675, %v3702
    %v3705 = vadd.f32 %v3676, %v3702
    %v3706 = vadd.f32 %v3677, %v3702
    %v3707 = vadd.f32 %v3678, %v3702
    %v3708 = vadd.f32 %v3679, %v3702
    %v3709 = vadd.f32 %v3680, %v3702
    %v3710 = vadd.f32 %v3681, %v3702
    %v3711 = vadd.f32 %v3682, %v3702
    %v3712 = vadd.f32 %v3683, %v3702
    %v3713 = vadd.f32 %v3684, %v3702
    %v3714 = vadd.f32 %v3685, %v3702
    %v3715 = vadd.f32 %v3686, %v3702
    %v3716 = vadd.f32 %v3687, %v3702
    %v3717 = vadd.f32 %v3688, %v3702
    %v3718 = vadd.f32 %v3689, %v3702
    %v3719 = vadd.f32 %v3690, %v3702
    %v3720 = vadd.f32 %v3691, %v3702
    %v3721 = vadd.f32 %v3692, %v3702
    %v3722 = vadd.f32 %v3693, %v3702
    %v3723 = vadd.f32 %v3694, %v3702
    %v3724 = vadd.f32 %v3695, %v3702
    %v3725 = vadd.f32 %v3696, %v3702
    %v3726 = vadd.f32 %v3697, %v3702
    %v3727 = vadd.f32 %v3698, %v3702
    %v3728 = vadd.f32 %v3699, %v3702
    %v3729 = vld [vmem:[#allocation24] sm:$0xff]
    %v3730 = vld [vmem:[#allocation24 + $0x8] sm:$0xff]
    %v3731 = vld [vmem:[#allocation24 + $0x10] sm:$0xff]
    %v3732 = vld [vmem:[#allocation24 + $0x18] sm:$0xff]
    %v3733 = vld [vmem:[#allocation24 + $0x20] sm:$0xff]
    %v3734 = vld [vmem:[#allocation24 + $0x28] sm:$0xff]
    %v3735 = vld [vmem:[#allocation24 + $0x30] sm:$0xff]
    %v3736 = vld [vmem:[#allocation24 + $0x38] sm:$0xff]
    %v3737 = vld [vmem:[#allocation24 + $0x40] sm:$0xff]
    %v3738 = vld [vmem:[#allocation24 + $0x48] sm:$0xff]
    %v3739 = vld [vmem:[#allocation24 + $0x50] sm:$0xff]
    %v3740 = vld [vmem:[#allocation24 + $0x58] sm:$0xff]
    %v3741 = vld [vmem:[#allocation24 + $0x60] sm:$0xff]
    %v3742 = vld [vmem:[#allocation24 + $0x68] sm:$0xff]
    %v3743 = vld [vmem:[#allocation24 + $0x70] sm:$0xff]
    %v3744 = vld [vmem:[#allocation24 + $0x78] sm:$0xff]
    %v3745 = vld [vmem:[#allocation24 + $0x80] sm:$0xff]
    %v3746 = vld [vmem:[#allocation24 + $0x88] sm:$0xff]
    %v3747 = vld [vmem:[#allocation24 + $0x90] sm:$0xff]
    %v3748 = vld [vmem:[#allocation24 + $0x98] sm:$0xff]
    %v3749 = vld [vmem:[#allocation24 + $0xa0] sm:$0xff]
    %v3750 = vld [vmem:[#allocation24 + $0xa8] sm:$0xff]
    %v3751 = vld [vmem:[#allocation24 + $0xb0] sm:$0xff]
    %v3752 = vld [vmem:[#allocation24 + $0xb8] sm:$0xff]
    %v3753 = vld [vmem:[#allocation24 + $0xc0] sm:$0xff]
    %3755 = vset.pattern.permute.xlu0 0
    %3756 = vperm.xlu0 %3755, %v3729
    %v3757 = vpop.permute.xlu0 %3756
    %3760 = vset.pattern.permute.xlu0 0
    %3761 = vperm.xlu0 %3760, %v3730
    %v3762 = vpop.permute.xlu0 %3761
    %3765 = vset.pattern.permute.xlu0 0
    %3766 = vperm.xlu0 %3765, %v3731
    %v3767 = vpop.permute.xlu0 %3766
    %3770 = vset.pattern.permute.xlu0 0
    %3771 = vperm.xlu0 %3770, %v3732
    %v3772 = vpop.permute.xlu0 %3771
    %3775 = vset.pattern.permute.xlu0 0
    %3776 = vperm.xlu0 %3775, %v3733
    %v3777 = vpop.permute.xlu0 %3776
    %3780 = vset.pattern.permute.xlu0 0
    %3781 = vperm.xlu0 %3780, %v3734
    %v3782 = vpop.permute.xlu0 %3781
    %3785 = vset.pattern.permute.xlu0 0
    %3786 = vperm.xlu0 %3785, %v3735
    %v3787 = vpop.permute.xlu0 %3786
    %3790 = vset.pattern.permute.xlu0 0
    %3791 = vperm.xlu0 %3790, %v3736
    %v3792 = vpop.permute.xlu0 %3791
    %3795 = vset.pattern.permute.xlu0 0
    %3796 = vperm.xlu0 %3795, %v3737
    %v3797 = vpop.permute.xlu0 %3796
    %3800 = vset.pattern.permute.xlu0 0
    %3801 = vperm.xlu0 %3800, %v3738
    %v3802 = vpop.permute.xlu0 %3801
    %3805 = vset.pattern.permute.xlu0 0
    %3806 = vperm.xlu0 %3805, %v3739
    %v3807 = vpop.permute.xlu0 %3806
    %3810 = vset.pattern.permute.xlu0 0
    %3811 = vperm.xlu0 %3810, %v3740
    %v3812 = vpop.permute.xlu0 %3811
    %3815 = vset.pattern.permute.xlu0 0
    %3816 = vperm.xlu0 %3815, %v3741
    %v3817 = vpop.permute.xlu0 %3816
    %3820 = vset.pattern.permute.xlu0 0
    %3821 = vperm.xlu0 %3820, %v3742
    %v3822 = vpop.permute.xlu0 %3821
    %3825 = vset.pattern.permute.xlu0 0
    %3826 = vperm.xlu0 %3825, %v3743
    %v3827 = vpop.permute.xlu0 %3826
    %3830 = vset.pattern.permute.xlu0 0
    %3831 = vperm.xlu0 %3830, %v3744
    %v3832 = vpop.permute.xlu0 %3831
    %3835 = vset.pattern.permute.xlu0 0
    %3836 = vperm.xlu0 %3835, %v3745
    %v3837 = vpop.permute.xlu0 %3836
    %3840 = vset.pattern.permute.xlu0 0
    %3841 = vperm.xlu0 %3840, %v3746
    %v3842 = vpop.permute.xlu0 %3841
    %3845 = vset.pattern.permute.xlu0 0
    %3846 = vperm.xlu0 %3845, %v3747
    %v3847 = vpop.permute.xlu0 %3846
    %3850 = vset.pattern.permute.xlu0 0
    %3851 = vperm.xlu0 %3850, %v3748
    %v3852 = vpop.permute.xlu0 %3851
    %3855 = vset.pattern.permute.xlu0 0
    %3856 = vperm.xlu0 %3855, %v3749
    %v3857 = vpop.permute.xlu0 %3856
    %3860 = vset.pattern.permute.xlu0 0
    %3861 = vperm.xlu0 %3860, %v3750
    %v3862 = vpop.permute.xlu0 %3861
    %3865 = vset.pattern.permute.xlu0 0
    %3866 = vperm.xlu0 %3865, %v3751
    %v3867 = vpop.permute.xlu0 %3866
    %3870 = vset.pattern.permute.xlu0 0
    %3871 = vperm.xlu0 %3870, %v3752
    %v3872 = vpop.permute.xlu0 %3871
    %3875 = vset.pattern.permute.xlu0 0
    %3876 = vperm.xlu0 %3875, %v3753
    %v3877 = vpop.permute.xlu0 %3876
    %v3879 = vmul.f32 %v3704, %v3757
    %v3880 = vmul.f32 %v3705, %v3762
    %v3881 = vmul.f32 %v3706, %v3767
    %v3882 = vmul.f32 %v3707, %v3772
    %v3883 = vmul.f32 %v3708, %v3777
    %v3884 = vmul.f32 %v3709, %v3782
    %v3885 = vmul.f32 %v3710, %v3787
    %v3886 = vmul.f32 %v3711, %v3792
    %v3887 = vmul.f32 %v3712, %v3797
    %v3888 = vmul.f32 %v3713, %v3802
    %v3889 = vmul.f32 %v3714, %v3807
    %v3890 = vmul.f32 %v3715, %v3812
    %v3891 = vmul.f32 %v3716, %v3817
    %v3892 = vmul.f32 %v3717, %v3822
    %v3893 = vmul.f32 %v3718, %v3827
    %v3894 = vmul.f32 %v3719, %v3832
    %v3895 = vmul.f32 %v3720, %v3837
    %v3896 = vmul.f32 %v3721, %v3842
    %v3897 = vmul.f32 %v3722, %v3847
    %v3898 = vmul.f32 %v3723, %v3852
    %v3899 = vmul.f32 %v3724, %v3857
    %v3900 = vmul.f32 %v3725, %v3862
    %v3901 = vmul.f32 %v3726, %v3867
    %v3902 = vmul.f32 %v3727, %v3872
    %v3903 = vmul.f32 %v3728, %v3877
    %vm3904 = vcmask 523264
    %v3905 = vsel %vm3904, %v3879, 0.0
    %v3906 = vsel %vm3904, %v3880, 0.0
    %v3907 = vadd.f32 %v3905, %v3906
    %v3908 = vsel %vm3904, %v3881, 0.0
    %v3909 = vadd.f32 %v3907, %v3908
    %v3910 = vsel %vm3904, %v3882, 0.0
    %v3911 = vadd.f32 %v3909, %v3910
    %v3912 = vsel %vm3904, %v3883, 0.0
    %v3913 = vadd.f32 %v3911, %v3912
    %v3914 = vsel %vm3904, %v3884, 0.0
    %v3915 = vadd.f32 %v3913, %v3914
    %v3916 = vsel %vm3904, %v3885, 0.0
    %v3917 = vadd.f32 %v3915, %v3916
    %v3918 = vsel %vm3904, %v3886, 0.0
    %v3919 = vadd.f32 %v3917, %v3918
    %v3920 = vsel %vm3904, %v3887, 0.0
    %v3921 = vadd.f32 %v3919, %v3920
    %v3922 = vsel %vm3904, %v3888, 0.0
    %v3923 = vadd.f32 %v3921, %v3922
    %v3924 = vsel %vm3904, %v3889, 0.0
    %v3925 = vadd.f32 %v3923, %v3924
    %v3926 = vsel %vm3904, %v3890, 0.0
    %v3927 = vadd.f32 %v3925, %v3926
    %v3928 = vsel %vm3904, %v3891, 0.0
    %v3929 = vadd.f32 %v3927, %v3928
    %v3930 = vsel %vm3904, %v3892, 0.0
    %v3931 = vadd.f32 %v3929, %v3930
    %v3932 = vsel %vm3904, %v3893, 0.0
    %v3933 = vadd.f32 %v3931, %v3932
    %v3934 = vsel %vm3904, %v3894, 0.0
    %v3935 = vadd.f32 %v3933, %v3934
    %v3936 = vsel %vm3904, %v3895, 0.0
    %v3937 = vadd.f32 %v3935, %v3936
    %v3938 = vsel %vm3904, %v3896, 0.0
    %v3939 = vadd.f32 %v3937, %v3938
    %v3940 = vsel %vm3904, %v3897, 0.0
    %v3941 = vadd.f32 %v3939, %v3940
    %v3942 = vsel %vm3904, %v3898, 0.0
    %v3943 = vadd.f32 %v3941, %v3942
    %v3944 = vsel %vm3904, %v3899, 0.0
    %v3945 = vadd.f32 %v3943, %v3944
    %v3946 = vsel %vm3904, %v3900, 0.0
    %v3947 = vadd.f32 %v3945, %v3946
    %v3948 = vsel %vm3904, %v3901, 0.0
    %v3949 = vadd.f32 %v3947, %v3948
    %v3950 = vsel %vm3904, %v3902, 0.0
    %v3951 = vadd.f32 %v3949, %v3950
    %v3952 = vsel %vm3904, %v3903, 0.0
    %v3953 = vadd.f32 %v3951, %v3952
    %v3954 = vrot.slane %v3953, 4
    %v3955 = vadd.f32 %v3953, %v3954
    %v3956 = vrot.slane %v3955, 2
    %v3957 = vadd.f32 %v3955, %v3956
    %v3958 = vrot.slane %v3957, 1
    %v3959 = vadd.f32 %v3957, %v3958
    %v3960 = vrcp.pop 128.0
    %v3961 = vmul.f32 128.0, %v3960
    %v3962 = vsub.f32 1.0, %v3961
    %v3963 = vmul.f32 %v3960, %v3962
    %v3964 = vadd.f32 %v3960, %v3963
    %vm3965 = vweird.f32 %v3960
    %v3966 = vsel %vm3965, %v3960, %v3964
    %v3967 = vmul.f32 %v3959, %v3966
    %v3968 = vsub.f32 %v3704, %v3967
    %v3969 = vsub.f32 %v3705, %v3967
    %v3970 = vsub.f32 %v3706, %v3967
    %v3971 = vsub.f32 %v3707, %v3967
    %v3972 = vsub.f32 %v3708, %v3967
    %v3973 = vsub.f32 %v3709, %v3967
    %v3974 = vsub.f32 %v3710, %v3967
    %v3975 = vsub.f32 %v3711, %v3967
    %v3976 = vsub.f32 %v3712, %v3967
    %v3977 = vsub.f32 %v3713, %v3967
    %v3978 = vsub.f32 %v3714, %v3967
    %v3979 = vsub.f32 %v3715, %v3967
    %v3980 = vsub.f32 %v3716, %v3967
    %v3981 = vsub.f32 %v3717, %v3967
    %v3982 = vsub.f32 %v3718, %v3967
    %v3983 = vsub.f32 %v3719, %v3967
    %v3984 = vsub.f32 %v3720, %v3967
    %v3985 = vsub.f32 %v3721, %v3967
    %v3986 = vsub.f32 %v3722, %v3967
    %v3987 = vsub.f32 %v3723, %v3967
    %v3988 = vsub.f32 %v3724, %v3967
    %v3989 = vsub.f32 %v3725, %v3967
    %v3990 = vsub.f32 %v3726, %v3967
    %v3991 = vsub.f32 %v3727, %v3967
    %v3992 = vsub.f32 %v3728, %v3967
    %v3993 = vmul.f32 %v3968, %v3968
    %v3994 = vmul.f32 %v3969, %v3969
    %v3995 = vmul.f32 %v3970, %v3970
    %v3996 = vmul.f32 %v3971, %v3971
    %v3997 = vmul.f32 %v3972, %v3972
    %v3998 = vmul.f32 %v3973, %v3973
    %v3999 = vmul.f32 %v3974, %v3974
    %v4000 = vmul.f32 %v3975, %v3975
    %v4001 = vmul.f32 %v3976, %v3976
    %v4002 = vmul.f32 %v3977, %v3977
    %v4003 = vmul.f32 %v3978, %v3978
    %v4004 = vmul.f32 %v3979, %v3979
    %v4005 = vmul.f32 %v3980, %v3980
    %v4006 = vmul.f32 %v3981, %v3981
    %v4007 = vmul.f32 %v3982, %v3982
    %v4008 = vmul.f32 %v3983, %v3983
    %v4009 = vmul.f32 %v3984, %v3984
    %v4010 = vmul.f32 %v3985, %v3985
    %v4011 = vmul.f32 %v3986, %v3986
    %v4012 = vmul.f32 %v3987, %v3987
    %v4013 = vmul.f32 %v3988, %v3988
    %v4014 = vmul.f32 %v3989, %v3989
    %v4015 = vmul.f32 %v3990, %v3990
    %v4016 = vmul.f32 %v3991, %v3991
    %v4017 = vmul.f32 %v3992, %v3992
    %v4018 = vmul.f32 %v3993, %v3757
    %v4019 = vmul.f32 %v3994, %v3762
    %v4020 = vmul.f32 %v3995, %v3767
    %v4021 = vmul.f32 %v3996, %v3772
    %v4022 = vmul.f32 %v3997, %v3777
    %v4023 = vmul.f32 %v3998, %v3782
    %v4024 = vmul.f32 %v3999, %v3787
    %v4025 = vmul.f32 %v4000, %v3792
    %v4026 = vmul.f32 %v4001, %v3797
    %v4027 = vmul.f32 %v4002, %v3802
    %v4028 = vmul.f32 %v4003, %v3807
    %v4029 = vmul.f32 %v4004, %v3812
    %v4030 = vmul.f32 %v4005, %v3817
    %v4031 = vmul.f32 %v4006, %v3822
    %v4032 = vmul.f32 %v4007, %v3827
    %v4033 = vmul.f32 %v4008, %v3832
    %v4034 = vmul.f32 %v4009, %v3837
    %v4035 = vmul.f32 %v4010, %v3842
    %v4036 = vmul.f32 %v4011, %v3847
    %v4037 = vmul.f32 %v4012, %v3852
    %v4038 = vmul.f32 %v4013, %v3857
    %v4039 = vmul.f32 %v4014, %v3862
    %v4040 = vmul.f32 %v4015, %v3867
    %v4041 = vmul.f32 %v4016, %v3872
    %v4042 = vmul.f32 %v4017, %v3877
    %v4043 = vsel %vm3904, %v4018, 0.0
    %v4044 = vsel %vm3904, %v4019, 0.0
    %v4045 = vadd.f32 %v4043, %v4044
    %v4046 = vsel %vm3904, %v4020, 0.0
    %v4047 = vadd.f32 %v4045, %v4046
    %v4048 = vsel %vm3904, %v4021, 0.0
    %v4049 = vadd.f32 %v4047, %v4048
    %v4050 = vsel %vm3904, %v4022, 0.0
    %v4051 = vadd.f32 %v4049, %v4050
    %v4052 = vsel %vm3904, %v4023, 0.0
    %v4053 = vadd.f32 %v4051, %v4052
    %v4054 = vsel %vm3904, %v4024, 0.0
    %v4055 = vadd.f32 %v4053, %v4054
    %v4056 = vsel %vm3904, %v4025, 0.0
    %v4057 = vadd.f32 %v4055, %v4056
    %v4058 = vsel %vm3904, %v4026, 0.0
    %v4059 = vadd.f32 %v4057, %v4058
    %v4060 = vsel %vm3904, %v4027, 0.0
    %v4061 = vadd.f32 %v4059, %v4060
    %v4062 = vsel %vm3904, %v4028, 0.0
    %v4063 = vadd.f32 %v4061, %v4062
    %v4064 = vsel %vm3904, %v4029, 0.0
    %v4065 = vadd.f32 %v4063, %v4064
    %v4066 = vsel %vm3904, %v4030, 0.0
    %v4067 = vadd.f32 %v4065, %v4066
    %v4068 = vsel %vm3904, %v4031, 0.0
    %v4069 = vadd.f32 %v4067, %v4068
    %v4070 = vsel %vm3904, %v4032, 0.0
    %v4071 = vadd.f32 %v4069, %v4070
    %v4072 = vsel %vm3904, %v4033, 0.0
    %v4073 = vadd.f32 %v4071, %v4072
    %v4074 = vsel %vm3904, %v4034, 0.0
    %v4075 = vadd.f32 %v4073, %v4074
    %v4076 = vsel %vm3904, %v4035, 0.0
    %v4077 = vadd.f32 %v4075, %v4076
    %v4078 = vsel %vm3904, %v4036, 0.0
    %v4079 = vadd.f32 %v4077, %v4078
    %v4080 = vsel %vm3904, %v4037, 0.0
    %v4081 = vadd.f32 %v4079, %v4080
    %v4082 = vsel %vm3904, %v4038, 0.0
    %v4083 = vadd.f32 %v4081, %v4082
    %v4084 = vsel %vm3904, %v4039, 0.0
    %v4085 = vadd.f32 %v4083, %v4084
    %v4086 = vsel %vm3904, %v4040, 0.0
    %v4087 = vadd.f32 %v4085, %v4086
    %v4088 = vsel %vm3904, %v4041, 0.0
    %v4089 = vadd.f32 %v4087, %v4088
    %v4090 = vsel %vm3904, %v4042, 0.0
    %v4091 = vadd.f32 %v4089, %v4090
    %v4092 = vrot.slane %v4091, 4
    %v4093 = vadd.f32 %v4091, %v4092
    %v4094 = vrot.slane %v4093, 2
    %v4095 = vadd.f32 %v4093, %v4094
    %v4096 = vrot.slane %v4095, 1
    %v4097 = vadd.f32 %v4095, %v4096
    %v4098 = vmul.f32 %v4097, %v3966
    %v4099 = vadd.f32 %v4098, 0.8
    %v4100 = vrsqrt.pop %v4099
    %v4101 = vmul.f32 %v4100, %v4099
    %v4102 = vmul.f32 %v4101, %v4100
    %v4103 = vmul.f32 0.5, %v4102
    %v4104 = vsub.f32 1.5, %v4103
    %v4105 = vmul.f32 %v4100, %v4104
    %vm4106 = vweird.f32 %v4099
    %vm4107 = vweird.f32 %v4100
    %vm4108 = vmor %vm4106, %vm4107
    %v4109 = vsel %vm4108, %v4100, %v4105
    %v4110 = vmul.f32 %v3968, %v4109
    %v4111 = vmul.f32 %v3969, %v4109
    %v4112 = vmul.f32 %v3970, %v4109
    %v4113 = vmul.f32 %v3971, %v4109
    %v4114 = vmul.f32 %v3972, %v4109
    %v4115 = vmul.f32 %v3973, %v4109
    %v4116 = vmul.f32 %v3974, %v4109
    %v4117 = vmul.f32 %v3975, %v4109
    %v4118 = vmul.f32 %v3976, %v4109
    %v4119 = vmul.f32 %v3977, %v4109
    %v4120 = vmul.f32 %v3978, %v4109
    %v4121 = vmul.f32 %v3979, %v4109
    %v4122 = vmul.f32 %v3980, %v4109
    %v4123 = vmul.f32 %v3981, %v4109
    %v4124 = vmul.f32 %v3982, %v4109
    %v4125 = vmul.f32 %v3983, %v4109
    %v4126 = vmul.f32 %v3984, %v4109
    %v4127 = vmul.f32 %v3985, %v4109
    %v4128 = vmul.f32 %v3986, %v4109
    %v4129 = vmul.f32 %v3987, %v4109
    %v4130 = vmul.f32 %v3988, %v4109
    %v4131 = vmul.f32 %v3989, %v4109
    %v4132 = vmul.f32 %v3990, %v4109
    %v4133 = vmul.f32 %v3991, %v4109
    %v4134 = vmul.f32 %v3992, %v4109
    %v4135 = vld [vmem:[#allocation18] sm:$0x1]
    %v4137 = vperm.slane %v4135, 0
    %v4139 = vmul.f32 %v4110, %v4137
    %v4140 = vmul.f32 %v4111, %v4137
    %v4141 = vmul.f32 %v4112, %v4137
    %v4142 = vmul.f32 %v4113, %v4137
    %v4143 = vmul.f32 %v4114, %v4137
    %v4144 = vmul.f32 %v4115, %v4137
    %v4145 = vmul.f32 %v4116, %v4137
    %v4146 = vmul.f32 %v4117, %v4137
    %v4147 = vmul.f32 %v4118, %v4137
    %v4148 = vmul.f32 %v4119, %v4137
    %v4149 = vmul.f32 %v4120, %v4137
    %v4150 = vmul.f32 %v4121, %v4137
    %v4151 = vmul.f32 %v4122, %v4137
    %v4152 = vmul.f32 %v4123, %v4137
    %v4153 = vmul.f32 %v4124, %v4137
    %v4154 = vmul.f32 %v4125, %v4137
    %v4155 = vmul.f32 %v4126, %v4137
    %v4156 = vmul.f32 %v4127, %v4137
    %v4157 = vmul.f32 %v4128, %v4137
    %v4158 = vmul.f32 %v4129, %v4137
    %v4159 = vmul.f32 %v4130, %v4137
    %v4160 = vmul.f32 %v4131, %v4137
    %v4161 = vmul.f32 %v4132, %v4137
    %v4162 = vmul.f32 %v4133, %v4137
    %v4163 = vmul.f32 %v4134, %v4137
    %v4164 = vld [vmem:[#allocation19] sm:$0x1]
    %v4166 = vperm.slane %v4164, 0
    %v4168 = vadd.f32 %v4139, %v4166
    %v4169 = vadd.f32 %v4140, %v4166
    %v4170 = vadd.f32 %v4141, %v4166
    %v4171 = vadd.f32 %v4142, %v4166
    %v4172 = vadd.f32 %v4143, %v4166
    %v4173 = vadd.f32 %v4144, %v4166
    %v4174 = vadd.f32 %v4145, %v4166
    %v4175 = vadd.f32 %v4146, %v4166
    %v4176 = vadd.f32 %v4147, %v4166
    %v4177 = vadd.f32 %v4148, %v4166
    %v4178 = vadd.f32 %v4149, %v4166
    %v4179 = vadd.f32 %v4150, %v4166
    %v4180 = vadd.f32 %v4151, %v4166
    %v4181 = vadd.f32 %v4152, %v4166
    %v4182 = vadd.f32 %v4153, %v4166
    %v4183 = vadd.f32 %v4154, %v4166
    %v4184 = vadd.f32 %v4155, %v4166
    %v4185 = vadd.f32 %v4156, %v4166
    %v4186 = vadd.f32 %v4157, %v4166
    %v4187 = vadd.f32 %v4158, %v4166
    %v4188 = vadd.f32 %v4159, %v4166
    %v4189 = vadd.f32 %v4160, %v4166
    %v4190 = vadd.f32 %v4161, %v4166
    %v4191 = vadd.f32 %v4162, %v4166
    %v4192 = vadd.f32 %v4163, %v4166
    %vm4193 = vcmp.gt.f32.partialorder %v4168, 0.0
    %vm4194 = vcmp.gt.f32.partialorder %v4169, 0.0
    %vm4195 = vcmp.gt.f32.partialorder %v4170, 0.0
    %vm4196 = vcmp.gt.f32.partialorder %v4171, 0.0
    %vm4197 = vcmp.gt.f32.partialorder %v4172, 0.0
    %vm4198 = vcmp.gt.f32.partialorder %v4173, 0.0
    %vm4199 = vcmp.gt.f32.partialorder %v4174, 0.0
    %vm4200 = vcmp.gt.f32.partialorder %v4175, 0.0
    %vm4201 = vcmp.gt.f32.partialorder %v4176, 0.0
    %vm4202 = vcmp.gt.f32.partialorder %v4177, 0.0
    %vm4203 = vcmp.gt.f32.partialorder %v4178, 0.0
    %vm4204 = vcmp.gt.f32.partialorder %v4179, 0.0
    %vm4205 = vcmp.gt.f32.partialorder %v4180, 0.0
    %vm4206 = vcmp.gt.f32.partialorder %v4181, 0.0
    %vm4207 = vcmp.gt.f32.partialorder %v4182, 0.0
    %vm4208 = vcmp.gt.f32.partialorder %v4183, 0.0
    %vm4209 = vcmp.gt.f32.partialorder %v4184, 0.0
    %vm4210 = vcmp.gt.f32.partialorder %v4185, 0.0
    %vm4211 = vcmp.gt.f32.partialorder %v4186, 0.0
    %vm4212 = vcmp.gt.f32.partialorder %v4187, 0.0
    %vm4213 = vcmp.gt.f32.partialorder %v4188, 0.0
    %vm4214 = vcmp.gt.f32.partialorder %v4189, 0.0
    %vm4215 = vcmp.gt.f32.partialorder %v4190, 0.0
    %vm4216 = vcmp.gt.f32.partialorder %v4191, 0.0
    %vm4217 = vcmp.gt.f32.partialorder %v4192, 0.0
    %v4218 = vmul.f32 %v4168, 0.2
    %v4219 = vmul.f32 %v4169, 0.2
    %v4220 = vmul.f32 %v4170, 0.2
    %v4221 = vmul.f32 %v4171, 0.2
    %v4222 = vmul.f32 %v4172, 0.2
    %v4223 = vmul.f32 %v4173, 0.2
    %v4224 = vmul.f32 %v4174, 0.2
    %v4225 = vmul.f32 %v4175, 0.2
    %v4226 = vmul.f32 %v4176, 0.2
    %v4227 = vmul.f32 %v4177, 0.2
    %v4228 = vmul.f32 %v4178, 0.2
    %v4229 = vmul.f32 %v4179, 0.2
    %v4230 = vmul.f32 %v4180, 0.2
    %v4231 = vmul.f32 %v4181, 0.2
    %v4232 = vmul.f32 %v4182, 0.2
    %v4233 = vmul.f32 %v4183, 0.2
    %v4234 = vmul.f32 %v4184, 0.2
    %v4235 = vmul.f32 %v4185, 0.2
    %v4236 = vmul.f32 %v4186, 0.2
    %v4237 = vmul.f32 %v4187, 0.2
    %v4238 = vmul.f32 %v4188, 0.2
    %v4239 = vmul.f32 %v4189, 0.2
    %v4240 = vmul.f32 %v4190, 0.2
    %v4241 = vmul.f32 %v4191, 0.2
    %v4242 = vmul.f32 %v4192, 0.2
    %v4243 = vsel %vm4193, %v4168, %v4218
    %v4244 = vsel %vm4194, %v4169, %v4219
    %v4245 = vsel %vm4195, %v4170, %v4220
    %v4246 = vsel %vm4196, %v4171, %v4221
    %v4247 = vsel %vm4197, %v4172, %v4222
    %v4248 = vsel %vm4198, %v4173, %v4223
    %v4249 = vsel %vm4199, %v4174, %v4224
    %v4250 = vsel %vm4200, %v4175, %v4225
    %v4251 = vsel %vm4201, %v4176, %v4226
    %v4252 = vsel %vm4202, %v4177, %v4227
    %v4253 = vsel %vm4203, %v4178, %v4228
    %v4254 = vsel %vm4204, %v4179, %v4229
    %v4255 = vsel %vm4205, %v4180, %v4230
    %v4256 = vsel %vm4206, %v4181, %v4231
    %v4257 = vsel %vm4207, %v4182, %v4232
    %v4258 = vsel %vm4208, %v4183, %v4233
    %v4259 = vsel %vm4209, %v4184, %v4234
    %v4260 = vsel %vm4210, %v4185, %v4235
    %v4261 = vsel %vm4211, %v4186, %v4236
    %v4262 = vsel %vm4212, %v4187, %v4237
    %v4263 = vsel %vm4213, %v4188, %v4238
    %v4264 = vsel %vm4214, %v4189, %v4239
    %v4265 = vsel %vm4215, %v4190, %v4240
    %v4266 = vsel %vm4216, %v4191, %v4241
    %v4267 = vsel %vm4217, %v4192, %v4242
    %4268 = vst.msk [vmem:[#allocation4] sm:$0xff] %vm3904, 0.0
    %4269 = vst.msk [vmem:[#allocation4 + $0x8] sm:$0xff] %vm3904, 0.0
    %4270 = vst.msk [vmem:[#allocation4 + $0x10] sm:$0xff] %vm3904, 0.0
    %4271 = vst.msk [vmem:[#allocation4 + $0x18] sm:$0xff] %vm3904, 0.0
    %4272 = vst.msk [vmem:[#allocation4 + $0x20] sm:$0xff] %vm3904, 0.0
    %4273 = vst.msk [vmem:[#allocation4 + $0x28] sm:$0xff] %vm3904, 0.0
    %4274 = vst.msk [vmem:[#allocation4 + $0x30] sm:$0xff] %vm3904, 0.0
    %4275 = vst.msk [vmem:[#allocation4 + $0x38] sm:$0xff] %vm3904, 0.0
    %4276 = vst.msk [vmem:[#allocation4 + $0x40] sm:$0xff] %vm3904, 0.0
    %4277 = vst.msk [vmem:[#allocation4 + $0x48] sm:$0xff] %vm3904, 0.0
    %4278 = vst.msk [vmem:[#allocation4 + $0x50] sm:$0xff] %vm3904, 0.0
    %4279 = vst.msk [vmem:[#allocation4 + $0x58] sm:$0xff] %vm3904, 0.0
    %4280 = vst.msk [vmem:[#allocation4 + $0x60] sm:$0xff] %vm3904, 0.0
    %4281 = vst.msk [vmem:[#allocation4 + $0x68] sm:$0xff] %vm3904, 0.0
    %4282 = vst.msk [vmem:[#allocation4 + $0x70] sm:$0xff] %vm3904, 0.0
    %4283 = vst.msk [vmem:[#allocation4 + $0x78] sm:$0xff] %vm3904, 0.0
    %4284 = vst.msk [vmem:[#allocation4 + $0x80] sm:$0xff] %vm3904, 0.0
    %4285 = vst.msk [vmem:[#allocation4 + $0x88] sm:$0xff] %vm3904, 0.0
    %4286 = vst.msk [vmem:[#allocation4 + $0x90] sm:$0xff] %vm3904, 0.0
    %4287 = vst.msk [vmem:[#allocation4 + $0x98] sm:$0xff] %vm3904, 0.0
    %4288 = vst.msk [vmem:[#allocation4 + $0xa0] sm:$0xff] %vm3904, 0.0
    %4289 = vst.msk [vmem:[#allocation4 + $0xa8] sm:$0xff] %vm3904, 0.0
    %4290 = vst.msk [vmem:[#allocation4 + $0xb0] sm:$0xff] %vm3904, 0.0
    %4291 = vst.msk [vmem:[#allocation4 + $0xb8] sm:$0xff] %vm3904, 0.0
    %4292 = vst.msk [vmem:[#allocation4 + $0xc0] sm:$0xff] %vm3904, 0.0
    %4293 = vst.msk [vmem:[#allocation4 + $0xc8] sm:$0xff] %vm3904, 0.0
    %4294 = vst.msk [vmem:[#allocation4 + $0xd0] sm:$0xff] %vm3904, 0.0
    %vm4295 = vcmask 521216
    %4296 = vst.msk [vmem:[#allocation4 + $0xd8] sm:$0x3f] %vm4295, 0.0
    %v4297 = vmul.f32 %v4243, %v3757
    %v4298 = vmul.f32 %v4244, %v3762
    %v4299 = vmul.f32 %v4245, %v3767
    %v4300 = vmul.f32 %v4246, %v3772
    %v4301 = vmul.f32 %v4247, %v3777
    %v4302 = vmul.f32 %v4248, %v3782
    %v4303 = vmul.f32 %v4249, %v3787
    %v4304 = vmul.f32 %v4250, %v3792
    %v4305 = vmul.f32 %v4251, %v3797
    %v4306 = vmul.f32 %v4252, %v3802
    %v4307 = vmul.f32 %v4253, %v3807
    %v4308 = vmul.f32 %v4254, %v3812
    %v4309 = vmul.f32 %v4255, %v3817
    %v4310 = vmul.f32 %v4256, %v3822
    %v4311 = vmul.f32 %v4257, %v3827
    %v4312 = vmul.f32 %v4258, %v3832
    %v4313 = vmul.f32 %v4259, %v3837
    %v4314 = vmul.f32 %v4260, %v3842
    %v4315 = vmul.f32 %v4261, %v3847
    %v4316 = vmul.f32 %v4262, %v3852
    %v4317 = vmul.f32 %v4263, %v3857
    %v4318 = vmul.f32 %v4264, %v3862
    %v4319 = vmul.f32 %v4265, %v3867
    %v4320 = vmul.f32 %v4266, %v3872
    %v4321 = vmul.f32 %v4267, %v3877
    %4322 = vst.msk [vmem:[#allocation4 + $0xb] sm:$0xff] %vm3904, %v4297
    %4323 = vst.msk [vmem:[#allocation4 + $0x13] sm:$0xff] %vm3904, %v4298
    %4324 = vst.msk [vmem:[#allocation4 + $0x1b] sm:$0xff] %vm3904, %v4299
    %4325 = vst.msk [vmem:[#allocation4 + $0x23] sm:$0xff] %vm3904, %v4300
    %4326 = vst.msk [vmem:[#allocation4 + $0x2b] sm:$0xff] %vm3904, %v4301
    %4327 = vst.msk [vmem:[#allocation4 + $0x33] sm:$0xff] %vm3904, %v4302
    %4328 = vst.msk [vmem:[#allocation4 + $0x3b] sm:$0xff] %vm3904, %v4303
    %4329 = vst.msk [vmem:[#allocation4 + $0x43] sm:$0xff] %vm3904, %v4304
    %4330 = vst.msk [vmem:[#allocation4 + $0x4b] sm:$0xff] %vm3904, %v4305
    %4331 = vst.msk [vmem:[#allocation4 + $0x53] sm:$0xff] %vm3904, %v4306
    %4332 = vst.msk [vmem:[#allocation4 + $0x5b] sm:$0xff] %vm3904, %v4307
    %4333 = vst.msk [vmem:[#allocation4 + $0x63] sm:$0xff] %vm3904, %v4308
    %4334 = vst.msk [vmem:[#allocation4 + $0x6b] sm:$0xff] %vm3904, %v4309
    %4335 = vst.msk [vmem:[#allocation4 + $0x73] sm:$0xff] %vm3904, %v4310
    %4336 = vst.msk [vmem:[#allocation4 + $0x7b] sm:$0xff] %vm3904, %v4311
    %4337 = vst.msk [vmem:[#allocation4 + $0x83] sm:$0xff] %vm3904, %v4312
    %4338 = vst.msk [vmem:[#allocation4 + $0x8b] sm:$0xff] %vm3904, %v4313
    %4339 = vst.msk [vmem:[#allocation4 + $0x93] sm:$0xff] %vm3904, %v4314
    %4340 = vst.msk [vmem:[#allocation4 + $0x9b] sm:$0xff] %vm3904, %v4315
    %4341 = vst.msk [vmem:[#allocation4 + $0xa3] sm:$0xff] %vm3904, %v4316
    %4342 = vst.msk [vmem:[#allocation4 + $0xab] sm:$0xff] %vm3904, %v4317
    %4343 = vst.msk [vmem:[#allocation4 + $0xb3] sm:$0xff] %vm3904, %v4318
    %4344 = vst.msk [vmem:[#allocation4 + $0xbb] sm:$0xff] %vm3904, %v4319
    %4345 = vst.msk [vmem:[#allocation4 + $0xc3] sm:$0xff] %vm3904, %v4320
    %4346 = vst.msk [vmem:[#allocation4 + $0xcb] sm:$0xff] %vm3904, %v4321
    %v4347 = vld [vmem:[#allocation4] sm:$0xff]
    %v4348 = vld [vmem:[#allocation4 + $0x8] sm:$0xff]
    %v4349 = vld [vmem:[#allocation4 + $0x10] sm:$0xff]
    %v4350 = vld [vmem:[#allocation4 + $0x18] sm:$0xff]
    %v4351 = vld [vmem:[#allocation4 + $0x20] sm:$0xff]
    %v4352 = vld [vmem:[#allocation4 + $0x28] sm:$0xff]
    %v4353 = vld [vmem:[#allocation4 + $0x30] sm:$0xff]
    %v4354 = vld [vmem:[#allocation4 + $0x38] sm:$0xff]
    %v4355 = vld [vmem:[#allocation4 + $0x40] sm:$0xff]
    %v4356 = vld [vmem:[#allocation4 + $0x48] sm:$0xff]
    %v4357 = vld [vmem:[#allocation4 + $0x50] sm:$0xff]
    %v4358 = vld [vmem:[#allocation4 + $0x58] sm:$0xff]
    %v4359 = vld [vmem:[#allocation4 + $0x60] sm:$0xff]
    %v4360 = vld [vmem:[#allocation4 + $0x68] sm:$0xff]
    %v4361 = vld [vmem:[#allocation4 + $0x70] sm:$0xff]
    %v4362 = vld [vmem:[#allocation4 + $0x78] sm:$0xff]
    %v4363 = vld [vmem:[#allocation4 + $0x80] sm:$0xff]
    %v4364 = vld [vmem:[#allocation4 + $0x88] sm:$0xff]
    %v4365 = vld [vmem:[#allocation4 + $0x90] sm:$0xff]
    %v4366 = vld [vmem:[#allocation4 + $0x98] sm:$0xff]
    %v4367 = vld [vmem:[#allocation4 + $0xa0] sm:$0xff]
    %v4368 = vld [vmem:[#allocation4 + $0xa8] sm:$0xff]
    %v4369 = vld [vmem:[#allocation4 + $0xb0] sm:$0xff]
    %v4370 = vld [vmem:[#allocation4 + $0xb8] sm:$0xff]
    %v4371 = vld [vmem:[#allocation4 + $0xc0] sm:$0xff]
    %v4372 = vpack.c.bf16 %v4348, %v4347
    %v4373 = vpack.c.bf16 %v4350, %v4349
    %v4374 = vpack.c.bf16 %v4352, %v4351
    %v4375 = vpack.c.bf16 %v4354, %v4353
    %v4376 = vpack.c.bf16 %v4356, %v4355
    %v4377 = vpack.c.bf16 %v4358, %v4357
    %v4378 = vpack.c.bf16 %v4360, %v4359
    %v4379 = vpack.c.bf16 %v4362, %v4361
    %v4380 = vpack.c.bf16 %v4364, %v4363
    %v4381 = vpack.c.bf16 %v4366, %v4365
    %v4382 = vpack.c.bf16 %v4368, %v4367
    %v4383 = vpack.c.bf16 %v4370, %v4369
    %v4384 = vpack.c.bf16 %v4371, %v4371
    %v4385 = vld [vmem:[%s14] sm:$0xf]
    %v4386 = vld [vmem:[%s14 + $0x4] sm:$0xf]
    %v4387 = vld [vmem:[%s14 + $0x8] sm:$0xf]
    %v4388 = vld [vmem:[%s14 + $0xc] sm:$0xf]
    %v4389 = vld [vmem:[%s14 + $0x10] sm:$0xf]
    %v4390 = vld [vmem:[%s14 + $0x14] sm:$0xf]
    %v4391 = vld [vmem:[%s14 + $0x18] sm:$0xf]
    %v4392 = vld [vmem:[%s14 + $0x1c] sm:$0xf]
    %v4393 = vld [vmem:[#allocation4 + $0x1] sm:$0xff]
    %v4394 = vld [vmem:[#allocation4 + $0x9] sm:$0xff]
    %v4395 = vld [vmem:[#allocation4 + $0x11] sm:$0xff]
    %v4396 = vld [vmem:[#allocation4 + $0x19] sm:$0xff]
    %v4397 = vld [vmem:[#allocation4 + $0x21] sm:$0xff]
    %v4398 = vld [vmem:[#allocation4 + $0x29] sm:$0xff]
    %v4399 = vld [vmem:[#allocation4 + $0x31] sm:$0xff]
    %v4400 = vld [vmem:[#allocation4 + $0x39] sm:$0xff]
    %v4401 = vld [vmem:[#allocation4 + $0x41] sm:$0xff]
    %v4402 = vld [vmem:[#allocation4 + $0x49] sm:$0xff]
    %v4403 = vld [vmem:[#allocation4 + $0x51] sm:$0xff]
    %v4404 = vld [vmem:[#allocation4 + $0x59] sm:$0xff]
    %v4405 = vld [vmem:[#allocation4 + $0x61] sm:$0xff]
    %v4406 = vld [vmem:[#allocation4 + $0x69] sm:$0xff]
    %v4407 = vld [vmem:[#allocation4 + $0x71] sm:$0xff]
    %v4408 = vld [vmem:[#allocation4 + $0x79] sm:$0xff]
    %v4409 = vld [vmem:[#allocation4 + $0x81] sm:$0xff]
    %v4410 = vld [vmem:[#allocation4 + $0x89] sm:$0xff]
    %v4411 = vld [vmem:[#allocation4 + $0x91] sm:$0xff]
    %v4412 = vld [vmem:[#allocation4 + $0x99] sm:$0xff]
    %v4413 = vld [vmem:[#allocation4 + $0xa1] sm:$0xff]
    %v4414 = vld [vmem:[#allocation4 + $0xa9] sm:$0xff]
    %v4415 = vld [vmem:[#allocation4 + $0xb1] sm:$0xff]
    %v4416 = vld [vmem:[#allocation4 + $0xb9] sm:$0xff]
    %v4417 = vld [vmem:[#allocation4 + $0xc1] sm:$0xff]
    %v4418 = vpack.c.bf16 %v4394, %v4393
    %v4419 = vpack.c.bf16 %v4396, %v4395
    %v4420 = vpack.c.bf16 %v4398, %v4397
    %v4421 = vpack.c.bf16 %v4400, %v4399
    %v4422 = vpack.c.bf16 %v4402, %v4401
    %v4423 = vpack.c.bf16 %v4404, %v4403
    %v4424 = vpack.c.bf16 %v4406, %v4405
    %v4425 = vpack.c.bf16 %v4408, %v4407
    %v4426 = vpack.c.bf16 %v4410, %v4409
    %v4427 = vpack.c.bf16 %v4412, %v4411
    %v4428 = vpack.c.bf16 %v4414, %v4413
    %v4429 = vpack.c.bf16 %v4416, %v4415
    %v4430 = vpack.c.bf16 %v4417, %v4417
    %s4431 = scalar_lea.vmem %s14, 32
    %v4432 = vld [vmem:[%s4431] sm:$0xf]
    %v4433 = vld [vmem:[%s4431 + $0x4] sm:$0xf]
    %v4434 = vld [vmem:[%s4431 + $0x8] sm:$0xf]
    %v4435 = vld [vmem:[%s4431 + $0xc] sm:$0xf]
    %v4436 = vld [vmem:[%s4431 + $0x10] sm:$0xf]
    %v4437 = vld [vmem:[%s4431 + $0x14] sm:$0xf]
    %v4438 = vld [vmem:[%s4431 + $0x18] sm:$0xf]
    %v4439 = vld [vmem:[%s4431 + $0x1c] sm:$0xf]
    %v4448 = vunpack.c.l.b16 %v4432
    %v4449 = vunpack.c.l.b16 %v4433
    %v4450 = vunpack.c.l.b16 %v4434
    %v4451 = vunpack.c.l.b16 %v4435
    %v4452 = vunpack.c.l.b16 %v4436
    %v4453 = vunpack.c.l.b16 %v4437
    %v4454 = vunpack.c.l.b16 %v4438
    %v4455 = vunpack.c.l.b16 %v4439
    %v4456 = vpack.c.b16 %v4449, %v4448
    %v4457 = vpack.c.b16 %v4451, %v4450
    %v4458 = vpack.c.b16 %v4453, %v4452
    %v4459 = vpack.c.b16 %v4455, %v4454
    %v4465 = vsel %vm3904, %v4418, 0
    %v4468 = vsel %vm3904, %v4419, 0
    %v4471 = vsel %vm3904, %v4420, 0
    %v4474 = vsel %vm3904, %v4421, 0
    %v4477 = vsel %vm3904, %v4422, 0
    %v4480 = vsel %vm3904, %v4423, 0
    %v4483 = vsel %vm3904, %v4424, 0
    %v4486 = vsel %vm3904, %v4425, 0
    %v4489 = vsel %vm3904, %v4426, 0
    %v4492 = vsel %vm3904, %v4427, 0
    %v4495 = vsel %vm3904, %v4428, 0
    %v4498 = vsel %vm3904, %v4429, 0
    %v4501 = vsel %vm3904, %v4430, 0
    %4503 = vmatpush.bf16.msra.mxu0 0
    %4504 = vmatpush.bf16.msra.mxu0 0
    %4505 = vmatpush.bf16.msra.mxu0 0
    %4506 = vmatpush.bf16.msra.mxu0 0
    %4507 = vmatpush.bf16.msra.mxu0 %v4459
    %4508 = vmatpush.bf16.msra.mxu0 %v4458
    %4509 = vmatpush.bf16.msra.mxu0 %v4457
    %4510 = vmatpush.bf16.msra.mxu0 %v4456
    %4511 = vmatmul.bf16.gmra.mxu0 %v4465
    %v4512 = vpop.f32.mrf.mxu0
    %v4513 = vpop.f32.mrf.mxu0
    %v4514 = vadd.f32 0.0, %v4513
    %4515 = vmatmul.bf16.gmra.mxu0 %v4468
    %v4516 = vpop.f32.mrf.mxu0
    %v4517 = vadd.f32 0.0, %v4516
    %v4518 = vpop.f32.mrf.mxu0
    %v4519 = vadd.f32 0.0, %v4518
    %4520 = vmatmul.bf16.gmra.mxu0 %v4471
    %v4521 = vpop.f32.mrf.mxu0
    %v4522 = vadd.f32 0.0, %v4521
    %v4523 = vpop.f32.mrf.mxu0
    %v4524 = vadd.f32 0.0, %v4523
    %4525 = vmatmul.bf16.gmra.mxu0 %v4474
    %v4526 = vpop.f32.mrf.mxu0
    %v4527 = vadd.f32 0.0, %v4526
    %v4528 = vpop.f32.mrf.mxu0
    %v4529 = vadd.f32 0.0, %v4528
    %4530 = vmatmul.bf16.gmra.mxu0 %v4477
    %v4531 = vpop.f32.mrf.mxu0
    %v4532 = vadd.f32 0.0, %v4531
    %v4533 = vpop.f32.mrf.mxu0
    %v4534 = vadd.f32 0.0, %v4533
    %4535 = vmatmul.bf16.gmra.mxu0 %v4480
    %v4536 = vpop.f32.mrf.mxu0
    %v4537 = vadd.f32 0.0, %v4536
    %v4538 = vpop.f32.mrf.mxu0
    %v4539 = vadd.f32 0.0, %v4538
    %4540 = vmatmul.bf16.gmra.mxu0 %v4483
    %v4541 = vpop.f32.mrf.mxu0
    %v4542 = vpop.f32.mrf.mxu0
    %v4543 = vadd.f32 0.0, %v4542
    %4544 = vmatmul.bf16.gmra.mxu0 %v4486
    %v4545 = vpop.f32.mrf.mxu0
    %v4546 = vadd.f32 0.0, %v4545
    %v4547 = vpop.f32.mrf.mxu0
    %v4548 = vadd.f32 0.0, %v4547
    %4549 = vmatmul.bf16.gmra.mxu0 %v4489
    %v4550 = vpop.f32.mrf.mxu0
    %v4551 = vadd.f32 0.0, %v4550
    %v4552 = vpop.f32.mrf.mxu0
    %v4553 = vadd.f32 0.0, %v4552
    %4554 = vmatmul.bf16.gmra.mxu0 %v4492
    %v4555 = vpop.f32.mrf.mxu0
    %v4556 = vadd.f32 0.0, %v4555
    %v4557 = vpop.f32.mrf.mxu0
    %v4558 = vadd.f32 0.0, %v4557
    %4559 = vmatmul.bf16.gmra.mxu0 %v4495
    %v4560 = vpop.f32.mrf.mxu0
    %v4561 = vadd.f32 0.0, %v4560
    %v4562 = vpop.f32.mrf.mxu0
    %v4563 = vadd.f32 0.0, %v4562
    %4564 = vmatmul.bf16.gmra.mxu0 %v4498
    %v4565 = vpop.f32.mrf.mxu0
    %v4566 = vadd.f32 0.0, %v4565
    %v4567 = vpop.f32.mrf.mxu0
    %v4568 = vadd.f32 0.0, %v4567
    %4569 = vmatmul.bf16.gmra.mxu0 %v4501
    %v4570 = vpop.f32.mrf.mxu0
    %v4571 = vpop.f32.mrf.mxu0
    %4572 = vdwg.mxu0
    %v4581 = vunpack.c.l.b16 %v4385
    %v4582 = vunpack.c.l.b16 %v4386
    %v4583 = vunpack.c.l.b16 %v4387
    %v4584 = vunpack.c.l.b16 %v4388
    %v4585 = vunpack.c.l.b16 %v4389
    %v4586 = vunpack.c.l.b16 %v4390
    %v4587 = vunpack.c.l.b16 %v4391
    %v4588 = vunpack.c.l.b16 %v4392
    %v4589 = vpack.c.b16 %v4582, %v4581
    %v4590 = vpack.c.b16 %v4584, %v4583
    %v4591 = vpack.c.b16 %v4586, %v4585
    %v4592 = vpack.c.b16 %v4588, %v4587
    %v4598 = vsel %vm3904, %v4372, 0
    %v4601 = vsel %vm3904, %v4373, 0
    %v4604 = vsel %vm3904, %v4374, 0
    %v4607 = vsel %vm3904, %v4375, 0
    %v4610 = vsel %vm3904, %v4376, 0
    %v4613 = vsel %vm3904, %v4377, 0
    %v4616 = vsel %vm3904, %v4378, 0
    %v4619 = vsel %vm3904, %v4379, 0
    %v4622 = vsel %vm3904, %v4380, 0
    %v4625 = vsel %vm3904, %v4381, 0
    %v4628 = vsel %vm3904, %v4382, 0
    %v4631 = vsel %vm3904, %v4383, 0
    %v4634 = vsel %vm3904, %v4384, 0
    %4636 = vmatpush.bf16.msra.mxu0 0
    %4637 = vmatpush.bf16.msra.mxu0 0
    %4638 = vmatpush.bf16.msra.mxu0 0
    %4639 = vmatpush.bf16.msra.mxu0 0
    %4640 = vmatpush.bf16.msra.mxu0 %v4592
    %4641 = vmatpush.bf16.msra.mxu0 %v4591
    %4642 = vmatpush.bf16.msra.mxu0 %v4590
    %4643 = vmatpush.bf16.msra.mxu0 %v4589
    %4644 = vmatmul.bf16.gmra.mxu0 %v4598
    %v4645 = vpop.f32.mrf.mxu0
    %v4646 = vpop.f32.mrf.mxu0
    %v4647 = vadd.f32 %v4514, %v4646
    %4648 = vmatmul.bf16.gmra.mxu0 %v4601
    %v4649 = vpop.f32.mrf.mxu0
    %v4650 = vadd.f32 %v4517, %v4649
    %v4651 = vpop.f32.mrf.mxu0
    %v4652 = vadd.f32 %v4519, %v4651
    %4653 = vmatmul.bf16.gmra.mxu0 %v4604
    %v4654 = vpop.f32.mrf.mxu0
    %v4655 = vadd.f32 %v4522, %v4654
    %v4656 = vpop.f32.mrf.mxu0
    %v4657 = vadd.f32 %v4524, %v4656
    %4658 = vmatmul.bf16.gmra.mxu0 %v4607
    %v4659 = vpop.f32.mrf.mxu0
    %v4660 = vadd.f32 %v4527, %v4659
    %v4661 = vpop.f32.mrf.mxu0
    %v4662 = vadd.f32 %v4529, %v4661
    %4663 = vmatmul.bf16.gmra.mxu0 %v4610
    %v4664 = vpop.f32.mrf.mxu0
    %v4665 = vadd.f32 %v4532, %v4664
    %v4666 = vpop.f32.mrf.mxu0
    %v4667 = vadd.f32 %v4534, %v4666
    %4668 = vmatmul.bf16.gmra.mxu0 %v4613
    %v4669 = vpop.f32.mrf.mxu0
    %v4670 = vadd.f32 %v4537, %v4669
    %v4671 = vpop.f32.mrf.mxu0
    %v4672 = vadd.f32 %v4539, %v4671
    %4673 = vmatmul.bf16.gmra.mxu0 %v4616
    %v4674 = vpop.f32.mrf.mxu0
    %v4675 = vpop.f32.mrf.mxu0
    %v4676 = vadd.f32 %v4543, %v4675
    %4677 = vmatmul.bf16.gmra.mxu0 %v4619
    %v4678 = vpop.f32.mrf.mxu0
    %v4679 = vadd.f32 %v4546, %v4678
    %v4680 = vpop.f32.mrf.mxu0
    %v4681 = vadd.f32 %v4548, %v4680
    %4682 = vmatmul.bf16.gmra.mxu0 %v4622
    %v4683 = vpop.f32.mrf.mxu0
    %v4684 = vadd.f32 %v4551, %v4683
    %v4685 = vpop.f32.mrf.mxu0
    %v4686 = vadd.f32 %v4553, %v4685
    %4687 = vmatmul.bf16.gmra.mxu0 %v4625
    %v4688 = vpop.f32.mrf.mxu0
    %v4689 = vadd.f32 %v4556, %v4688
    %v4690 = vpop.f32.mrf.mxu0
    %v4691 = vadd.f32 %v4558, %v4690
    %4692 = vmatmul.bf16.gmra.mxu0 %v4628
    %v4693 = vpop.f32.mrf.mxu0
    %v4694 = vadd.f32 %v4561, %v4693
    %v4695 = vpop.f32.mrf.mxu0
    %v4696 = vadd.f32 %v4563, %v4695
    %4697 = vmatmul.bf16.gmra.mxu0 %v4631
    %v4698 = vpop.f32.mrf.mxu0
    %v4699 = vadd.f32 %v4566, %v4698
    %v4700 = vpop.f32.mrf.mxu0
    %v4701 = vadd.f32 %v4568, %v4700
    %4702 = vmatmul.bf16.gmra.mxu0 %v4634
    %v4703 = vpop.f32.mrf.mxu0
    %v4704 = vpop.f32.mrf.mxu0
    %4705 = vdwg.mxu0
    %v4706 = vld [vmem:[#allocation4 + $0x2] sm:$0xff]
    %v4707 = vld [vmem:[#allocation4 + $0xa] sm:$0xff]
    %v4708 = vld [vmem:[#allocation4 + $0x12] sm:$0xff]
    %v4709 = vld [vmem:[#allocation4 + $0x1a] sm:$0xff]
    %v4710 = vld [vmem:[#allocation4 + $0x22] sm:$0xff]
    %v4711 = vld [vmem:[#allocation4 + $0x2a] sm:$0xff]
    %v4712 = vld [vmem:[#allocation4 + $0x32] sm:$0xff]
    %v4713 = vld [vmem:[#allocation4 + $0x3a] sm:$0xff]
    %v4714 = vld [vmem:[#allocation4 + $0x42] sm:$0xff]
    %v4715 = vld [vmem:[#allocation4 + $0x4a] sm:$0xff]
    %v4716 = vld [vmem:[#allocation4 + $0x52] sm:$0xff]
    %v4717 = vld [vmem:[#allocation4 + $0x5a] sm:$0xff]
    %v4718 = vld [vmem:[#allocation4 + $0x62] sm:$0xff]
    %v4719 = vld [vmem:[#allocation4 + $0x6a] sm:$0xff]
    %v4720 = vld [vmem:[#allocation4 + $0x72] sm:$0xff]
    %v4721 = vld [vmem:[#allocation4 + $0x7a] sm:$0xff]
    %v4722 = vld [vmem:[#allocation4 + $0x82] sm:$0xff]
    %v4723 = vld [vmem:[#allocation4 + $0x8a] sm:$0xff]
    %v4724 = vld [vmem:[#allocation4 + $0x92] sm:$0xff]
    %v4725 = vld [vmem:[#allocation4 + $0x9a] sm:$0xff]
    %v4726 = vld [vmem:[#allocation4 + $0xa2] sm:$0xff]
    %v4727 = vld [vmem:[#allocation4 + $0xaa] sm:$0xff]
    %v4728 = vld [vmem:[#allocation4 + $0xb2] sm:$0xff]
    %v4729 = vld [vmem:[#allocation4 + $0xba] sm:$0xff]
    %v4730 = vld [vmem:[#allocation4 + $0xc2] sm:$0xff]
    %v4731 = vpack.c.bf16 %v4707, %v4706
    %v4732 = vpack.c.bf16 %v4709, %v4708
    %v4733 = vpack.c.bf16 %v4711, %v4710
    %v4734 = vpack.c.bf16 %v4713, %v4712
    %v4735 = vpack.c.bf16 %v4715, %v4714
    %v4736 = vpack.c.bf16 %v4717, %v4716
    %v4737 = vpack.c.bf16 %v4719, %v4718
    %v4738 = vpack.c.bf16 %v4721, %v4720
    %v4739 = vpack.c.bf16 %v4723, %v4722
    %v4740 = vpack.c.bf16 %v4725, %v4724
    %v4741 = vpack.c.bf16 %v4727, %v4726
    %v4742 = vpack.c.bf16 %v4729, %v4728
    %v4743 = vpack.c.bf16 %v4730, %v4730
    %s4744 = scalar_lea.vmem %s14, 64
    %v4745 = vld [vmem:[%s4744] sm:$0xf]
    %v4746 = vld [vmem:[%s4744 + $0x4] sm:$0xf]
    %v4747 = vld [vmem:[%s4744 + $0x8] sm:$0xf]
    %v4748 = vld [vmem:[%s4744 + $0xc] sm:$0xf]
    %v4749 = vld [vmem:[%s4744 + $0x10] sm:$0xf]
    %v4750 = vld [vmem:[%s4744 + $0x14] sm:$0xf]
    %v4751 = vld [vmem:[%s4744 + $0x18] sm:$0xf]
    %v4752 = vld [vmem:[%s4744 + $0x1c] sm:$0xf]
    %v4761 = vunpack.c.l.b16 %v4745
    %v4762 = vunpack.c.l.b16 %v4746
    %v4763 = vunpack.c.l.b16 %v4747
    %v4764 = vunpack.c.l.b16 %v4748
    %v4765 = vunpack.c.l.b16 %v4749
    %v4766 = vunpack.c.l.b16 %v4750
    %v4767 = vunpack.c.l.b16 %v4751
    %v4768 = vunpack.c.l.b16 %v4752
    %v4769 = vpack.c.b16 %v4762, %v4761
    %v4770 = vpack.c.b16 %v4764, %v4763
    %v4771 = vpack.c.b16 %v4766, %v4765
    %v4772 = vpack.c.b16 %v4768, %v4767
    %v4778 = vsel %vm3904, %v4731, 0
    %v4781 = vsel %vm3904, %v4732, 0
    %v4784 = vsel %vm3904, %v4733, 0
    %v4787 = vsel %vm3904, %v4734, 0
    %v4790 = vsel %vm3904, %v4735, 0
    %v4793 = vsel %vm3904, %v4736, 0
    %v4796 = vsel %vm3904, %v4737, 0
    %v4799 = vsel %vm3904, %v4738, 0
    %v4802 = vsel %vm3904, %v4739, 0
    %v4805 = vsel %vm3904, %v4740, 0
    %v4808 = vsel %vm3904, %v4741, 0
    %v4811 = vsel %vm3904, %v4742, 0
    %v4814 = vsel %vm3904, %v4743, 0
    %4816 = vmatpush.bf16.msra.mxu0 0
    %4817 = vmatpush.bf16.msra.mxu0 0
    %4818 = vmatpush.bf16.msra.mxu0 0
    %4819 = vmatpush.bf16.msra.mxu0 0
    %4820 = vmatpush.bf16.msra.mxu0 %v4772
    %4821 = vmatpush.bf16.msra.mxu0 %v4771
    %4822 = vmatpush.bf16.msra.mxu0 %v4770
    %4823 = vmatpush.bf16.msra.mxu0 %v4769
    %4824 = vmatmul.bf16.gmra.mxu0 %v4778
    %v4825 = vpop.f32.mrf.mxu0
    %v4826 = vpop.f32.mrf.mxu0
    %v4827 = vadd.f32 0.0, %v4826
    %4828 = vmatmul.bf16.gmra.mxu0 %v4781
    %v4829 = vpop.f32.mrf.mxu0
    %v4830 = vadd.f32 0.0, %v4829
    %v4831 = vpop.f32.mrf.mxu0
    %v4832 = vadd.f32 0.0, %v4831
    %4833 = vmatmul.bf16.gmra.mxu0 %v4784
    %v4834 = vpop.f32.mrf.mxu0
    %v4835 = vadd.f32 0.0, %v4834
    %v4836 = vpop.f32.mrf.mxu0
    %v4837 = vadd.f32 0.0, %v4836
    %4838 = vmatmul.bf16.gmra.mxu0 %v4787
    %v4839 = vpop.f32.mrf.mxu0
    %v4840 = vadd.f32 0.0, %v4839
    %v4841 = vpop.f32.mrf.mxu0
    %v4842 = vadd.f32 0.0, %v4841
    %4843 = vmatmul.bf16.gmra.mxu0 %v4790
    %v4844 = vpop.f32.mrf.mxu0
    %v4845 = vadd.f32 0.0, %v4844
    %v4846 = vpop.f32.mrf.mxu0
    %v4847 = vadd.f32 0.0, %v4846
    %4848 = vmatmul.bf16.gmra.mxu0 %v4793
    %v4849 = vpop.f32.mrf.mxu0
    %v4850 = vadd.f32 0.0, %v4849
    %v4851 = vpop.f32.mrf.mxu0
    %v4852 = vadd.f32 0.0, %v4851
    %4853 = vmatmul.bf16.gmra.mxu0 %v4796
    %v4854 = vpop.f32.mrf.mxu0
    %v4855 = vpop.f32.mrf.mxu0
    %v4856 = vadd.f32 0.0, %v4855
    %4857 = vmatmul.bf16.gmra.mxu0 %v4799
    %v4858 = vpop.f32.mrf.mxu0
    %v4859 = vadd.f32 0.0, %v4858
    %v4860 = vpop.f32.mrf.mxu0
    %v4861 = vadd.f32 0.0, %v4860
    %4862 = vmatmul.bf16.gmra.mxu0 %v4802
    %v4863 = vpop.f32.mrf.mxu0
    %v4864 = vadd.f32 0.0, %v4863
    %v4865 = vpop.f32.mrf.mxu0
    %v4866 = vadd.f32 0.0, %v4865
    %4867 = vmatmul.bf16.gmra.mxu0 %v4805
    %v4868 = vpop.f32.mrf.mxu0
    %v4869 = vadd.f32 0.0, %v4868
    %v4870 = vpop.f32.mrf.mxu0
    %v4871 = vadd.f32 0.0, %v4870
    %4872 = vmatmul.bf16.gmra.mxu0 %v4808
    %v4873 = vpop.f32.mrf.mxu0
    %v4874 = vadd.f32 0.0, %v4873
    %v4875 = vpop.f32.mrf.mxu0
    %v4876 = vadd.f32 0.0, %v4875
    %4877 = vmatmul.bf16.gmra.mxu0 %v4811
    %v4878 = vpop.f32.mrf.mxu0
    %v4879 = vadd.f32 0.0, %v4878
    %v4880 = vpop.f32.mrf.mxu0
    %v4881 = vadd.f32 0.0, %v4880
    %4882 = vmatmul.bf16.gmra.mxu0 %v4814
    %v4883 = vpop.f32.mrf.mxu0
    %v4884 = vpop.f32.mrf.mxu0
    %4885 = vdwg.mxu0
    %v4886 = vadd.f32 %v4647, %v4827
    %v4887 = vadd.f32 %v4650, %v4830
    %v4888 = vadd.f32 %v4652, %v4832
    %v4889 = vadd.f32 %v4655, %v4835
    %v4890 = vadd.f32 %v4657, %v4837
    %v4891 = vadd.f32 %v4660, %v4840
    %v4892 = vadd.f32 %v4662, %v4842
    %v4893 = vadd.f32 %v4665, %v4845
    %v4894 = vadd.f32 %v4667, %v4847
    %v4895 = vadd.f32 %v4670, %v4850
    %v4896 = vadd.f32 %v4672, %v4852
    %v4897 = vadd.f32 %v4676, %v4856
    %v4898 = vadd.f32 %v4679, %v4859
    %v4899 = vadd.f32 %v4681, %v4861
    %v4900 = vadd.f32 %v4684, %v4864
    %v4901 = vadd.f32 %v4686, %v4866
    %v4902 = vadd.f32 %v4689, %v4869
    %v4903 = vadd.f32 %v4691, %v4871
    %v4904 = vadd.f32 %v4694, %v4874
    %v4905 = vadd.f32 %v4696, %v4876
    %v4906 = vadd.f32 %v4699, %v4879
    %v4907 = vadd.f32 %v4701, %v4881
    %v4908 = vld [vmem:[#allocation4 + $0xa] sm:$0xff]
    %v4909 = vld [vmem:[#allocation4 + $0x12] sm:$0xff]
    %v4910 = vld [vmem:[#allocation4 + $0x1a] sm:$0xff]
    %v4911 = vld [vmem:[#allocation4 + $0x22] sm:$0xff]
    %v4912 = vld [vmem:[#allocation4 + $0x2a] sm:$0xff]
    %v4913 = vld [vmem:[#allocation4 + $0x32] sm:$0xff]
    %v4914 = vld [vmem:[#allocation4 + $0x3a] sm:$0xff]
    %v4915 = vld [vmem:[#allocation4 + $0x42] sm:$0xff]
    %v4916 = vld [vmem:[#allocation4 + $0x4a] sm:$0xff]
    %v4917 = vld [vmem:[#allocation4 + $0x52] sm:$0xff]
    %v4918 = vld [vmem:[#allocation4 + $0x5a] sm:$0xff]
    %v4919 = vld [vmem:[#allocation4 + $0x62] sm:$0xff]
    %v4920 = vld [vmem:[#allocation4 + $0x6a] sm:$0xff]
    %v4921 = vld [vmem:[#allocation4 + $0x72] sm:$0xff]
    %v4922 = vld [vmem:[#allocation4 + $0x7a] sm:$0xff]
    %v4923 = vld [vmem:[#allocation4 + $0x82] sm:$0xff]
    %v4924 = vld [vmem:[#allocation4 + $0x8a] sm:$0xff]
    %v4925 = vld [vmem:[#allocation4 + $0x92] sm:$0xff]
    %v4926 = vld [vmem:[#allocation4 + $0x9a] sm:$0xff]
    %v4927 = vld [vmem:[#allocation4 + $0xa2] sm:$0xff]
    %v4928 = vld [vmem:[#allocation4 + $0xaa] sm:$0xff]
    %v4929 = vld [vmem:[#allocation4 + $0xb2] sm:$0xff]
    %v4930 = vld [vmem:[#allocation4 + $0xba] sm:$0xff]
    %v4931 = vld [vmem:[#allocation4 + $0xc2] sm:$0xff]
    %v4932 = vld [vmem:[#allocation4 + $0xca] sm:$0xff]
    %v4933 = vpack.c.bf16 %v4909, %v4908
    %v4934 = vpack.c.bf16 %v4911, %v4910
    %v4935 = vpack.c.bf16 %v4913, %v4912
    %v4936 = vpack.c.bf16 %v4915, %v4914
    %v4937 = vpack.c.bf16 %v4917, %v4916
    %v4938 = vpack.c.bf16 %v4919, %v4918
    %v4939 = vpack.c.bf16 %v4921, %v4920
    %v4940 = vpack.c.bf16 %v4923, %v4922
    %v4941 = vpack.c.bf16 %v4925, %v4924
    %v4942 = vpack.c.bf16 %v4927, %v4926
    %v4943 = vpack.c.bf16 %v4929, %v4928
    %v4944 = vpack.c.bf16 %v4931, %v4930
    %v4945 = vpack.c.bf16 %v4932, %v4932
    %s4946 = scalar_lea.vmem %s14, 96
    %v4947 = vld [vmem:[%s4946] sm:$0xf]
    %v4948 = vld [vmem:[%s4946 + $0x4] sm:$0xf]
    %v4949 = vld [vmem:[%s4946 + $0x8] sm:$0xf]
    %v4950 = vld [vmem:[%s4946 + $0xc] sm:$0xf]
    %v4951 = vld [vmem:[%s4946 + $0x10] sm:$0xf]
    %v4952 = vld [vmem:[%s4946 + $0x14] sm:$0xf]
    %v4953 = vld [vmem:[%s4946 + $0x18] sm:$0xf]
    %v4954 = vld [vmem:[%s4946 + $0x1c] sm:$0xf]
    %v4963 = vunpack.c.l.b16 %v4947
    %v4964 = vunpack.c.l.b16 %v4948
    %v4965 = vunpack.c.l.b16 %v4949
    %v4966 = vunpack.c.l.b16 %v4950
    %v4967 = vunpack.c.l.b16 %v4951
    %v4968 = vunpack.c.l.b16 %v4952
    %v4969 = vunpack.c.l.b16 %v4953
    %v4970 = vunpack.c.l.b16 %v4954
    %v4971 = vpack.c.b16 %v4964, %v4963
    %v4972 = vpack.c.b16 %v4966, %v4965
    %v4973 = vpack.c.b16 %v4968, %v4967
    %v4974 = vpack.c.b16 %v4970, %v4969
    %v4980 = vsel %vm3904, %v4933, 0
    %v4983 = vsel %vm3904, %v4934, 0
    %v4986 = vsel %vm3904, %v4935, 0
    %v4989 = vsel %vm3904, %v4936, 0
    %v4992 = vsel %vm3904, %v4937, 0
    %v4995 = vsel %vm3904, %v4938, 0
    %v4998 = vsel %vm3904, %v4939, 0
    %v5001 = vsel %vm3904, %v4940, 0
    %v5004 = vsel %vm3904, %v4941, 0
    %v5007 = vsel %vm3904, %v4942, 0
    %v5010 = vsel %vm3904, %v4943, 0
    %v5013 = vsel %vm3904, %v4944, 0
    %v5016 = vsel %vm3904, %v4945, 0
    %5018 = vmatpush.bf16.msra.mxu0 0
    %5019 = vmatpush.bf16.msra.mxu0 0
    %5020 = vmatpush.bf16.msra.mxu0 0
    %5021 = vmatpush.bf16.msra.mxu0 0
    %5022 = vmatpush.bf16.msra.mxu0 %v4974
    %5023 = vmatpush.bf16.msra.mxu0 %v4973
    %5024 = vmatpush.bf16.msra.mxu0 %v4972
    %5025 = vmatpush.bf16.msra.mxu0 %v4971
    %5026 = vmatmul.bf16.gmra.mxu0 %v4980
    %v5027 = vpop.f32.mrf.mxu0
    %v5028 = vpop.f32.mrf.mxu0
    %v5029 = vadd.f32 0.0, %v5028
    %5030 = vmatmul.bf16.gmra.mxu0 %v4983
    %v5031 = vpop.f32.mrf.mxu0
    %v5032 = vadd.f32 0.0, %v5031
    %v5033 = vpop.f32.mrf.mxu0
    %v5034 = vadd.f32 0.0, %v5033
    %5035 = vmatmul.bf16.gmra.mxu0 %v4986
    %v5036 = vpop.f32.mrf.mxu0
    %v5037 = vadd.f32 0.0, %v5036
    %v5038 = vpop.f32.mrf.mxu0
    %v5039 = vadd.f32 0.0, %v5038
    %5040 = vmatmul.bf16.gmra.mxu0 %v4989
    %v5041 = vpop.f32.mrf.mxu0
    %v5042 = vadd.f32 0.0, %v5041
    %v5043 = vpop.f32.mrf.mxu0
    %v5044 = vadd.f32 0.0, %v5043
    %5045 = vmatmul.bf16.gmra.mxu0 %v4992
    %v5046 = vpop.f32.mrf.mxu0
    %v5047 = vadd.f32 0.0, %v5046
    %v5048 = vpop.f32.mrf.mxu0
    %v5049 = vadd.f32 0.0, %v5048
    %5050 = vmatmul.bf16.gmra.mxu0 %v4995
    %v5051 = vpop.f32.mrf.mxu0
    %v5052 = vadd.f32 0.0, %v5051
    %v5053 = vpop.f32.mrf.mxu0
    %v5054 = vadd.f32 0.0, %v5053
    %5055 = vmatmul.bf16.gmra.mxu0 %v4998
    %v5056 = vpop.f32.mrf.mxu0
    %v5057 = vpop.f32.mrf.mxu0
    %v5058 = vadd.f32 0.0, %v5057
    %5059 = vmatmul.bf16.gmra.mxu0 %v5001
    %v5060 = vpop.f32.mrf.mxu0
    %v5061 = vadd.f32 0.0, %v5060
    %v5062 = vpop.f32.mrf.mxu0
    %v5063 = vadd.f32 0.0, %v5062
    %5064 = vmatmul.bf16.gmra.mxu0 %v5004
    %v5065 = vpop.f32.mrf.mxu0
    %v5066 = vadd.f32 0.0, %v5065
    %v5067 = vpop.f32.mrf.mxu0
    %v5068 = vadd.f32 0.0, %v5067
    %5069 = vmatmul.bf16.gmra.mxu0 %v5007
    %v5070 = vpop.f32.mrf.mxu0
    %v5071 = vadd.f32 0.0, %v5070
    %v5072 = vpop.f32.mrf.mxu0
    %v5073 = vadd.f32 0.0, %v5072
    %5074 = vmatmul.bf16.gmra.mxu0 %v5010
    %v5075 = vpop.f32.mrf.mxu0
    %v5076 = vadd.f32 0.0, %v5075
    %v5077 = vpop.f32.mrf.mxu0
    %v5078 = vadd.f32 0.0, %v5077
    %5079 = vmatmul.bf16.gmra.mxu0 %v5013
    %v5080 = vpop.f32.mrf.mxu0
    %v5081 = vadd.f32 0.0, %v5080
    %v5082 = vpop.f32.mrf.mxu0
    %v5083 = vadd.f32 0.0, %v5082
    %5084 = vmatmul.bf16.gmra.mxu0 %v5016
    %v5085 = vpop.f32.mrf.mxu0
    %v5086 = vpop.f32.mrf.mxu0
    %5087 = vdwg.mxu0
    %v5088 = vadd.f32 %v4886, %v5029
    %v5089 = vadd.f32 %v4887, %v5032
    %v5090 = vadd.f32 %v4888, %v5034
    %v5091 = vadd.f32 %v4889, %v5037
    %v5092 = vadd.f32 %v4890, %v5039
    %v5093 = vadd.f32 %v4891, %v5042
    %v5094 = vadd.f32 %v4892, %v5044
    %v5095 = vadd.f32 %v4893, %v5047
    %v5096 = vadd.f32 %v4894, %v5049
    %v5097 = vadd.f32 %v4895, %v5052
    %v5098 = vadd.f32 %v4896, %v5054
    %v5099 = vadd.f32 %v4897, %v5058
    %v5100 = vadd.f32 %v4898, %v5061
    %v5101 = vadd.f32 %v4899, %v5063
    %v5102 = vadd.f32 %v4900, %v5066
    %v5103 = vadd.f32 %v4901, %v5068
    %v5104 = vadd.f32 %v4902, %v5071
    %v5105 = vadd.f32 %v4903, %v5073
    %v5106 = vadd.f32 %v4904, %v5076
    %v5107 = vadd.f32 %v4905, %v5078
    %v5108 = vadd.f32 %v4906, %v5081
    %v5109 = vadd.f32 %v4907, %v5083
    %v5110 = vld [vmem:[#allocation4 + $0xb] sm:$0xff]
    %v5111 = vld [vmem:[#allocation4 + $0x13] sm:$0xff]
    %v5112 = vld [vmem:[#allocation4 + $0x1b] sm:$0xff]
    %v5113 = vld [vmem:[#allocation4 + $0x23] sm:$0xff]
    %v5114 = vld [vmem:[#allocation4 + $0x2b] sm:$0xff]
    %v5115 = vld [vmem:[#allocation4 + $0x33] sm:$0xff]
    %v5116 = vld [vmem:[#allocation4 + $0x3b] sm:$0xff]
    %v5117 = vld [vmem:[#allocation4 + $0x43] sm:$0xff]
    %v5118 = vld [vmem:[#allocation4 + $0x4b] sm:$0xff]
    %v5119 = vld [vmem:[#allocation4 + $0x53] sm:$0xff]
    %v5120 = vld [vmem:[#allocation4 + $0x5b] sm:$0xff]
    %v5121 = vld [vmem:[#allocation4 + $0x63] sm:$0xff]
    %v5122 = vld [vmem:[#allocation4 + $0x6b] sm:$0xff]
    %v5123 = vld [vmem:[#allocation4 + $0x73] sm:$0xff]
    %v5124 = vld [vmem:[#allocation4 + $0x7b] sm:$0xff]
    %v5125 = vld [vmem:[#allocation4 + $0x83] sm:$0xff]
    %v5126 = vld [vmem:[#allocation4 + $0x8b] sm:$0xff]
    %v5127 = vld [vmem:[#allocation4 + $0x93] sm:$0xff]
    %v5128 = vld [vmem:[#allocation4 + $0x9b] sm:$0xff]
    %v5129 = vld [vmem:[#allocation4 + $0xa3] sm:$0xff]
    %v5130 = vld [vmem:[#allocation4 + $0xab] sm:$0xff]
    %v5131 = vld [vmem:[#allocation4 + $0xb3] sm:$0xff]
    %v5132 = vld [vmem:[#allocation4 + $0xbb] sm:$0xff]
    %v5133 = vld [vmem:[#allocation4 + $0xc3] sm:$0xff]
    %v5134 = vld [vmem:[#allocation4 + $0xcb] sm:$0xff]
    %v5135 = vpack.c.bf16 %v5111, %v5110
    %v5136 = vpack.c.bf16 %v5113, %v5112
    %v5137 = vpack.c.bf16 %v5115, %v5114
    %v5138 = vpack.c.bf16 %v5117, %v5116
    %v5139 = vpack.c.bf16 %v5119, %v5118
    %v5140 = vpack.c.bf16 %v5121, %v5120
    %v5141 = vpack.c.bf16 %v5123, %v5122
    %v5142 = vpack.c.bf16 %v5125, %v5124
    %v5143 = vpack.c.bf16 %v5127, %v5126
    %v5144 = vpack.c.bf16 %v5129, %v5128
    %v5145 = vpack.c.bf16 %v5131, %v5130
    %v5146 = vpack.c.bf16 %v5133, %v5132
    %v5147 = vpack.c.bf16 %v5134, %v5134
    %s5148 = scalar_lea.vmem %s14, 128
    %v5149 = vld [vmem:[%s5148] sm:$0xf]
    %v5150 = vld [vmem:[%s5148 + $0x4] sm:$0xf]
    %v5151 = vld [vmem:[%s5148 + $0x8] sm:$0xf]
    %v5152 = vld [vmem:[%s5148 + $0xc] sm:$0xf]
    %v5153 = vld [vmem:[%s5148 + $0x10] sm:$0xf]
    %v5154 = vld [vmem:[%s5148 + $0x14] sm:$0xf]
    %v5155 = vld [vmem:[%s5148 + $0x18] sm:$0xf]
    %v5156 = vld [vmem:[%s5148 + $0x1c] sm:$0xf]
    %v5165 = vunpack.c.l.b16 %v5149
    %v5166 = vunpack.c.l.b16 %v5150
    %v5167 = vunpack.c.l.b16 %v5151
    %v5168 = vunpack.c.l.b16 %v5152
    %v5169 = vunpack.c.l.b16 %v5153
    %v5170 = vunpack.c.l.b16 %v5154
    %v5171 = vunpack.c.l.b16 %v5155
    %v5172 = vunpack.c.l.b16 %v5156
    %v5173 = vpack.c.b16 %v5166, %v5165
    %v5174 = vpack.c.b16 %v5168, %v5167
    %v5175 = vpack.c.b16 %v5170, %v5169
    %v5176 = vpack.c.b16 %v5172, %v5171
    %v5182 = vsel %vm3904, %v5135, 0
    %v5185 = vsel %vm3904, %v5136, 0
    %v5188 = vsel %vm3904, %v5137, 0
    %v5191 = vsel %vm3904, %v5138, 0
    %v5194 = vsel %vm3904, %v5139, 0
    %v5197 = vsel %vm3904, %v5140, 0
    %v5200 = vsel %vm3904, %v5141, 0
    %v5203 = vsel %vm3904, %v5142, 0
    %v5206 = vsel %vm3904, %v5143, 0
    %v5209 = vsel %vm3904, %v5144, 0
    %v5212 = vsel %vm3904, %v5145, 0
    %v5215 = vsel %vm3904, %v5146, 0
    %v5218 = vsel %vm3904, %v5147, 0
    %5220 = vmatpush.bf16.msra.mxu0 0
    %5221 = vmatpush.bf16.msra.mxu0 0
    %5222 = vmatpush.bf16.msra.mxu0 0
    %5223 = vmatpush.bf16.msra.mxu0 0
    %5224 = vmatpush.bf16.msra.mxu0 %v5176
    %5225 = vmatpush.bf16.msra.mxu0 %v5175
    %5226 = vmatpush.bf16.msra.mxu0 %v5174
    %5227 = vmatpush.bf16.msra.mxu0 %v5173
    %5228 = vmatmul.bf16.gmra.mxu0 %v5182
    %v5229 = vpop.f32.mrf.mxu0
    %v5230 = vpop.f32.mrf.mxu0
    %v5231 = vadd.f32 0.0, %v5230
    %5232 = vmatmul.bf16.gmra.mxu0 %v5185
    %v5233 = vpop.f32.mrf.mxu0
    %v5234 = vadd.f32 0.0, %v5233
    %v5235 = vpop.f32.mrf.mxu0
    %v5236 = vadd.f32 0.0, %v5235
    %5237 = vmatmul.bf16.gmra.mxu0 %v5188
    %v5238 = vpop.f32.mrf.mxu0
    %v5239 = vadd.f32 0.0, %v5238
    %v5240 = vpop.f32.mrf.mxu0
    %v5241 = vadd.f32 0.0, %v5240
    %5242 = vmatmul.bf16.gmra.mxu0 %v5191
    %v5243 = vpop.f32.mrf.mxu0
    %v5244 = vadd.f32 0.0, %v5243
    %v5245 = vpop.f32.mrf.mxu0
    %v5246 = vadd.f32 0.0, %v5245
    %5247 = vmatmul.bf16.gmra.mxu0 %v5194
    %v5248 = vpop.f32.mrf.mxu0
    %v5249 = vadd.f32 0.0, %v5248
    %v5250 = vpop.f32.mrf.mxu0
    %v5251 = vadd.f32 0.0, %v5250
    %5252 = vmatmul.bf16.gmra.mxu0 %v5197
    %v5253 = vpop.f32.mrf.mxu0
    %v5254 = vadd.f32 0.0, %v5253
    %v5255 = vpop.f32.mrf.mxu0
    %v5256 = vadd.f32 0.0, %v5255
    %5257 = vmatmul.bf16.gmra.mxu0 %v5200
    %v5258 = vpop.f32.mrf.mxu0
    %v5259 = vpop.f32.mrf.mxu0
    %v5260 = vadd.f32 0.0, %v5259
    %5261 = vmatmul.bf16.gmra.mxu0 %v5203
    %v5262 = vpop.f32.mrf.mxu0
    %v5263 = vadd.f32 0.0, %v5262
    %v5264 = vpop.f32.mrf.mxu0
    %v5265 = vadd.f32 0.0, %v5264
    %5266 = vmatmul.bf16.gmra.mxu0 %v5206
    %v5267 = vpop.f32.mrf.mxu0
    %v5268 = vadd.f32 0.0, %v5267
    %v5269 = vpop.f32.mrf.mxu0
    %v5270 = vadd.f32 0.0, %v5269
    %5271 = vmatmul.bf16.gmra.mxu0 %v5209
    %v5272 = vpop.f32.mrf.mxu0
    %v5273 = vadd.f32 0.0, %v5272
    %v5274 = vpop.f32.mrf.mxu0
    %v5275 = vadd.f32 0.0, %v5274
    %5276 = vmatmul.bf16.gmra.mxu0 %v5212
    %v5277 = vpop.f32.mrf.mxu0
    %v5278 = vadd.f32 0.0, %v5277
    %v5279 = vpop.f32.mrf.mxu0
    %v5280 = vadd.f32 0.0, %v5279
    %5281 = vmatmul.bf16.gmra.mxu0 %v5215
    %v5282 = vpop.f32.mrf.mxu0
    %v5283 = vadd.f32 0.0, %v5282
    %v5284 = vpop.f32.mrf.mxu0
    %v5285 = vadd.f32 0.0, %v5284
    %5286 = vmatmul.bf16.gmra.mxu0 %v5218
    %v5287 = vpop.f32.mrf.mxu0
    %v5288 = vpop.f32.mrf.mxu0
    %5289 = vdwg.mxu0
    %v5290 = vadd.f32 %v5088, %v5231
    %v5291 = vadd.f32 %v5089, %v5234
    %v5292 = vadd.f32 %v5090, %v5236
    %v5293 = vadd.f32 %v5091, %v5239
    %v5294 = vadd.f32 %v5092, %v5241
    %v5295 = vadd.f32 %v5093, %v5244
    %v5296 = vadd.f32 %v5094, %v5246
    %v5297 = vadd.f32 %v5095, %v5249
    %v5298 = vadd.f32 %v5096, %v5251
    %v5299 = vadd.f32 %v5097, %v5254
    %v5300 = vadd.f32 %v5098, %v5256
    %v5301 = vadd.f32 %v5099, %v5260
    %v5302 = vadd.f32 %v5100, %v5263
    %v5303 = vadd.f32 %v5101, %v5265
    %v5304 = vadd.f32 %v5102, %v5268
    %v5305 = vadd.f32 %v5103, %v5270
    %v5306 = vadd.f32 %v5104, %v5273
    %v5307 = vadd.f32 %v5105, %v5275
    %v5308 = vadd.f32 %v5106, %v5278
    %v5309 = vadd.f32 %v5107, %v5280
    %v5310 = vadd.f32 %v5108, %v5283
    %v5311 = vadd.f32 %v5109, %v5285
    %v5312 = vld [vmem:[#allocation4 + $0xc] sm:$0xff]
    %v5313 = vld [vmem:[#allocation4 + $0x14] sm:$0xff]
    %v5314 = vld [vmem:[#allocation4 + $0x1c] sm:$0xff]
    %v5315 = vld [vmem:[#allocation4 + $0x24] sm:$0xff]
    %v5316 = vld [vmem:[#allocation4 + $0x2c] sm:$0xff]
    %v5317 = vld [vmem:[#allocation4 + $0x34] sm:$0xff]
    %v5318 = vld [vmem:[#allocation4 + $0x3c] sm:$0xff]
    %v5319 = vld [vmem:[#allocation4 + $0x44] sm:$0xff]
    %v5320 = vld [vmem:[#allocation4 + $0x4c] sm:$0xff]
    %v5321 = vld [vmem:[#allocation4 + $0x54] sm:$0xff]
    %v5322 = vld [vmem:[#allocation4 + $0x5c] sm:$0xff]
    %v5323 = vld [vmem:[#allocation4 + $0x64] sm:$0xff]
    %v5324 = vld [vmem:[#allocation4 + $0x6c] sm:$0xff]
    %v5325 = vld [vmem:[#allocation4 + $0x74] sm:$0xff]
    %v5326 = vld [vmem:[#allocation4 + $0x7c] sm:$0xff]
    %v5327 = vld [vmem:[#allocation4 + $0x84] sm:$0xff]
    %v5328 = vld [vmem:[#allocation4 + $0x8c] sm:$0xff]
    %v5329 = vld [vmem:[#allocation4 + $0x94] sm:$0xff]
    %v5330 = vld [vmem:[#allocation4 + $0x9c] sm:$0xff]
    %v5331 = vld [vmem:[#allocation4 + $0xa4] sm:$0xff]
    %v5332 = vld [vmem:[#allocation4 + $0xac] sm:$0xff]
    %v5333 = vld [vmem:[#allocation4 + $0xb4] sm:$0xff]
    %v5334 = vld [vmem:[#allocation4 + $0xbc] sm:$0xff]
    %v5335 = vld [vmem:[#allocation4 + $0xc4] sm:$0xff]
    %v5336 = vld [vmem:[#allocation4 + $0xcc] sm:$0xff]
    %v5337 = vpack.c.bf16 %v5313, %v5312
    %v5338 = vpack.c.bf16 %v5315, %v5314
    %v5339 = vpack.c.bf16 %v5317, %v5316
    %v5340 = vpack.c.bf16 %v5319, %v5318
    %v5341 = vpack.c.bf16 %v5321, %v5320
    %v5342 = vpack.c.bf16 %v5323, %v5322
    %v5343 = vpack.c.bf16 %v5325, %v5324
    %v5344 = vpack.c.bf16 %v5327, %v5326
    %v5345 = vpack.c.bf16 %v5329, %v5328
    %v5346 = vpack.c.bf16 %v5331, %v5330
    %v5347 = vpack.c.bf16 %v5333, %v5332
    %v5348 = vpack.c.bf16 %v5335, %v5334
    %v5349 = vpack.c.bf16 %v5336, %v5336
    %s5350 = scalar_lea.vmem %s14, 160
    %v5351 = vld [vmem:[%s5350] sm:$0xf]
    %v5352 = vld [vmem:[%s5350 + $0x4] sm:$0xf]
    %v5353 = vld [vmem:[%s5350 + $0x8] sm:$0xf]
    %v5354 = vld [vmem:[%s5350 + $0xc] sm:$0xf]
    %v5355 = vld [vmem:[%s5350 + $0x10] sm:$0xf]
    %v5356 = vld [vmem:[%s5350 + $0x14] sm:$0xf]
    %v5357 = vld [vmem:[%s5350 + $0x18] sm:$0xf]
    %v5358 = vld [vmem:[%s5350 + $0x1c] sm:$0xf]
    %v5367 = vunpack.c.l.b16 %v5351
    %v5368 = vunpack.c.l.b16 %v5352
    %v5369 = vunpack.c.l.b16 %v5353
    %v5370 = vunpack.c.l.b16 %v5354
    %v5371 = vunpack.c.l.b16 %v5355
    %v5372 = vunpack.c.l.b16 %v5356
    %v5373 = vunpack.c.l.b16 %v5357
    %v5374 = vunpack.c.l.b16 %v5358
    %v5375 = vpack.c.b16 %v5368, %v5367
    %v5376 = vpack.c.b16 %v5370, %v5369
    %v5377 = vpack.c.b16 %v5372, %v5371
    %v5378 = vpack.c.b16 %v5374, %v5373
    %v5384 = vsel %vm3904, %v5337, 0
    %v5387 = vsel %vm3904, %v5338, 0
    %v5390 = vsel %vm3904, %v5339, 0
    %v5393 = vsel %vm3904, %v5340, 0
    %v5396 = vsel %vm3904, %v5341, 0
    %v5399 = vsel %vm3904, %v5342, 0
    %v5402 = vsel %vm3904, %v5343, 0
    %v5405 = vsel %vm3904, %v5344, 0
    %v5408 = vsel %vm3904, %v5345, 0
    %v5411 = vsel %vm3904, %v5346, 0
    %v5414 = vsel %vm3904, %v5347, 0
    %v5417 = vsel %vm3904, %v5348, 0
    %v5420 = vsel %vm3904, %v5349, 0
    %5422 = vmatpush.bf16.msra.mxu0 0
    %5423 = vmatpush.bf16.msra.mxu0 0
    %5424 = vmatpush.bf16.msra.mxu0 0
    %5425 = vmatpush.bf16.msra.mxu0 0
    %5426 = vmatpush.bf16.msra.mxu0 %v5378
    %5427 = vmatpush.bf16.msra.mxu0 %v5377
    %5428 = vmatpush.bf16.msra.mxu0 %v5376
    %5429 = vmatpush.bf16.msra.mxu0 %v5375
    %5430 = vmatmul.bf16.gmra.mxu0 %v5384
    %v5431 = vpop.f32.mrf.mxu0
    %v5432 = vpop.f32.mrf.mxu0
    %v5433 = vadd.f32 0.0, %v5432
    %5434 = vmatmul.bf16.gmra.mxu0 %v5387
    %v5435 = vpop.f32.mrf.mxu0
    %v5436 = vadd.f32 0.0, %v5435
    %v5437 = vpop.f32.mrf.mxu0
    %v5438 = vadd.f32 0.0, %v5437
    %5439 = vmatmul.bf16.gmra.mxu0 %v5390
    %v5440 = vpop.f32.mrf.mxu0
    %v5441 = vadd.f32 0.0, %v5440
    %v5442 = vpop.f32.mrf.mxu0
    %v5443 = vadd.f32 0.0, %v5442
    %5444 = vmatmul.bf16.gmra.mxu0 %v5393
    %v5445 = vpop.f32.mrf.mxu0
    %v5446 = vadd.f32 0.0, %v5445
    %v5447 = vpop.f32.mrf.mxu0
    %v5448 = vadd.f32 0.0, %v5447
    %5449 = vmatmul.bf16.gmra.mxu0 %v5396
    %v5450 = vpop.f32.mrf.mxu0
    %v5451 = vadd.f32 0.0, %v5450
    %v5452 = vpop.f32.mrf.mxu0
    %v5453 = vadd.f32 0.0, %v5452
    %5454 = vmatmul.bf16.gmra.mxu0 %v5399
    %v5455 = vpop.f32.mrf.mxu0
    %v5456 = vadd.f32 0.0, %v5455
    %v5457 = vpop.f32.mrf.mxu0
    %v5458 = vadd.f32 0.0, %v5457
    %5459 = vmatmul.bf16.gmra.mxu0 %v5402
    %v5460 = vpop.f32.mrf.mxu0
    %v5461 = vpop.f32.mrf.mxu0
    %v5462 = vadd.f32 0.0, %v5461
    %5463 = vmatmul.bf16.gmra.mxu0 %v5405
    %v5464 = vpop.f32.mrf.mxu0
    %v5465 = vadd.f32 0.0, %v5464
    %v5466 = vpop.f32.mrf.mxu0
    %v5467 = vadd.f32 0.0, %v5466
    %5468 = vmatmul.bf16.gmra.mxu0 %v5408
    %v5469 = vpop.f32.mrf.mxu0
    %v5470 = vadd.f32 0.0, %v5469
    %v5471 = vpop.f32.mrf.mxu0
    %v5472 = vadd.f32 0.0, %v5471
    %5473 = vmatmul.bf16.gmra.mxu0 %v5411
    %v5474 = vpop.f32.mrf.mxu0
    %v5475 = vadd.f32 0.0, %v5474
    %v5476 = vpop.f32.mrf.mxu0
    %v5477 = vadd.f32 0.0, %v5476
    %5478 = vmatmul.bf16.gmra.mxu0 %v5414
    %v5479 = vpop.f32.mrf.mxu0
    %v5480 = vadd.f32 0.0, %v5479
    %v5481 = vpop.f32.mrf.mxu0
    %v5482 = vadd.f32 0.0, %v5481
    %5483 = vmatmul.bf16.gmra.mxu0 %v5417
    %v5484 = vpop.f32.mrf.mxu0
    %v5485 = vadd.f32 0.0, %v5484
    %v5486 = vpop.f32.mrf.mxu0
    %v5487 = vadd.f32 0.0, %v5486
    %5488 = vmatmul.bf16.gmra.mxu0 %v5420
    %v5489 = vpop.f32.mrf.mxu0
    %v5490 = vpop.f32.mrf.mxu0
    %5491 = vdwg.mxu0
    %v5492 = vadd.f32 %v5290, %v5433
    %v5493 = vadd.f32 %v5291, %v5436
    %v5494 = vadd.f32 %v5292, %v5438
    %v5495 = vadd.f32 %v5293, %v5441
    %v5496 = vadd.f32 %v5294, %v5443
    %v5497 = vadd.f32 %v5295, %v5446
    %v5498 = vadd.f32 %v5296, %v5448
    %v5499 = vadd.f32 %v5297, %v5451
    %v5500 = vadd.f32 %v5298, %v5453
    %v5501 = vadd.f32 %v5299, %v5456
    %v5502 = vadd.f32 %v5300, %v5458
    %v5503 = vadd.f32 %v5301, %v5462
    %v5504 = vadd.f32 %v5302, %v5465
    %v5505 = vadd.f32 %v5303, %v5467
    %v5506 = vadd.f32 %v5304, %v5470
    %v5507 = vadd.f32 %v5305, %v5472
    %v5508 = vadd.f32 %v5306, %v5475
    %v5509 = vadd.f32 %v5307, %v5477
    %v5510 = vadd.f32 %v5308, %v5480
    %v5511 = vadd.f32 %v5309, %v5482
    %v5512 = vadd.f32 %v5310, %v5485
    %v5513 = vadd.f32 %v5311, %v5487
    %v5514 = vld [vmem:[#allocation4 + $0x14] sm:$0xff]
    %v5515 = vld [vmem:[#allocation4 + $0x1c] sm:$0xff]
    %v5516 = vld [vmem:[#allocation4 + $0x24] sm:$0xff]
    %v5517 = vld [vmem:[#allocation4 + $0x2c] sm:$0xff]
    %v5518 = vld [vmem:[#allocation4 + $0x34] sm:$0xff]
    %v5519 = vld [vmem:[#allocation4 + $0x3c] sm:$0xff]
    %v5520 = vld [vmem:[#allocation4 + $0x44] sm:$0xff]
    %v5521 = vld [vmem:[#allocation4 + $0x4c] sm:$0xff]
    %v5522 = vld [vmem:[#allocation4 + $0x54] sm:$0xff]
    %v5523 = vld [vmem:[#allocation4 + $0x5c] sm:$0xff]
    %v5524 = vld [vmem:[#allocation4 + $0x64] sm:$0xff]
    %v5525 = vld [vmem:[#allocation4 + $0x6c] sm:$0xff]
    %v5526 = vld [vmem:[#allocation4 + $0x74] sm:$0xff]
    %v5527 = vld [vmem:[#allocation4 + $0x7c] sm:$0xff]
    %v5528 = vld [vmem:[#allocation4 + $0x84] sm:$0xff]
    %v5529 = vld [vmem:[#allocation4 + $0x8c] sm:$0xff]
    %v5530 = vld [vmem:[#allocation4 + $0x94] sm:$0xff]
    %v5531 = vld [vmem:[#allocation4 + $0x9c] sm:$0xff]
    %v5532 = vld [vmem:[#allocation4 + $0xa4] sm:$0xff]
    %v5533 = vld [vmem:[#allocation4 + $0xac] sm:$0xff]
    %v5534 = vld [vmem:[#allocation4 + $0xb4] sm:$0xff]
    %v5535 = vld [vmem:[#allocation4 + $0xbc] sm:$0xff]
    %v5536 = vld [vmem:[#allocation4 + $0xc4] sm:$0xff]
    %v5537 = vld [vmem:[#allocation4 + $0xcc] sm:$0xff]
    %v5538 = vld [vmem:[#allocation4 + $0xd4] sm:$0xff]
    %v5539 = vpack.c.bf16 %v5515, %v5514
    %v5540 = vpack.c.bf16 %v5517, %v5516
    %v5541 = vpack.c.bf16 %v5519, %v5518
    %v5542 = vpack.c.bf16 %v5521, %v5520
    %v5543 = vpack.c.bf16 %v5523, %v5522
    %v5544 = vpack.c.bf16 %v5525, %v5524
    %v5545 = vpack.c.bf16 %v5527, %v5526
    %v5546 = vpack.c.bf16 %v5529, %v5528
    %v5547 = vpack.c.bf16 %v5531, %v5530
    %v5548 = vpack.c.bf16 %v5533, %v5532
    %v5549 = vpack.c.bf16 %v5535, %v5534
    %v5550 = vpack.c.bf16 %v5537, %v5536
    %v5551 = vpack.c.bf16 %v5538, %v5538
    %s5552 = scalar_lea.vmem %s14, 192
    %v5553 = vld [vmem:[%s5552] sm:$0xf]
    %v5554 = vld [vmem:[%s5552 + $0x4] sm:$0xf]
    %v5555 = vld [vmem:[%s5552 + $0x8] sm:$0xf]
    %v5556 = vld [vmem:[%s5552 + $0xc] sm:$0xf]
    %v5557 = vld [vmem:[%s5552 + $0x10] sm:$0xf]
    %v5558 = vld [vmem:[%s5552 + $0x14] sm:$0xf]
    %v5559 = vld [vmem:[%s5552 + $0x18] sm:$0xf]
    %v5560 = vld [vmem:[%s5552 + $0x1c] sm:$0xf]
    %v5569 = vunpack.c.l.b16 %v5553
    %v5570 = vunpack.c.l.b16 %v5554
    %v5571 = vunpack.c.l.b16 %v5555
    %v5572 = vunpack.c.l.b16 %v5556
    %v5573 = vunpack.c.l.b16 %v5557
    %v5574 = vunpack.c.l.b16 %v5558
    %v5575 = vunpack.c.l.b16 %v5559
    %v5576 = vunpack.c.l.b16 %v5560
    %v5577 = vpack.c.b16 %v5570, %v5569
    %v5578 = vpack.c.b16 %v5572, %v5571
    %v5579 = vpack.c.b16 %v5574, %v5573
    %v5580 = vpack.c.b16 %v5576, %v5575
    %v5586 = vsel %vm3904, %v5539, 0
    %v5589 = vsel %vm3904, %v5540, 0
    %v5592 = vsel %vm3904, %v5541, 0
    %v5595 = vsel %vm3904, %v5542, 0
    %v5598 = vsel %vm3904, %v5543, 0
    %v5601 = vsel %vm3904, %v5544, 0
    %v5604 = vsel %vm3904, %v5545, 0
    %v5607 = vsel %vm3904, %v5546, 0
    %v5610 = vsel %vm3904, %v5547, 0
    %v5613 = vsel %vm3904, %v5548, 0
    %v5616 = vsel %vm3904, %v5549, 0
    %v5619 = vsel %vm3904, %v5550, 0
    %v5622 = vsel %vm3904, %v5551, 0
    %5624 = vmatpush.bf16.msra.mxu0 0
    %5625 = vmatpush.bf16.msra.mxu0 0
    %5626 = vmatpush.bf16.msra.mxu0 0
    %5627 = vmatpush.bf16.msra.mxu0 0
    %5628 = vmatpush.bf16.msra.mxu0 %v5580
    %5629 = vmatpush.bf16.msra.mxu0 %v5579
    %5630 = vmatpush.bf16.msra.mxu0 %v5578
    %5631 = vmatpush.bf16.msra.mxu0 %v5577
    %5632 = vmatmul.bf16.gmra.mxu0 %v5586
    %v5633 = vpop.f32.mrf.mxu0
    %v5634 = vpop.f32.mrf.mxu0
    %v5635 = vadd.f32 0.0, %v5634
    %5636 = vmatmul.bf16.gmra.mxu0 %v5589
    %v5637 = vpop.f32.mrf.mxu0
    %v5638 = vadd.f32 0.0, %v5637
    %v5639 = vpop.f32.mrf.mxu0
    %v5640 = vadd.f32 0.0, %v5639
    %5641 = vmatmul.bf16.gmra.mxu0 %v5592
    %v5642 = vpop.f32.mrf.mxu0
    %v5643 = vadd.f32 0.0, %v5642
    %v5644 = vpop.f32.mrf.mxu0
    %v5645 = vadd.f32 0.0, %v5644
    %5646 = vmatmul.bf16.gmra.mxu0 %v5595
    %v5647 = vpop.f32.mrf.mxu0
    %v5648 = vadd.f32 0.0, %v5647
    %v5649 = vpop.f32.mrf.mxu0
    %v5650 = vadd.f32 0.0, %v5649
    %5651 = vmatmul.bf16.gmra.mxu0 %v5598
    %v5652 = vpop.f32.mrf.mxu0
    %v5653 = vadd.f32 0.0, %v5652
    %v5654 = vpop.f32.mrf.mxu0
    %v5655 = vadd.f32 0.0, %v5654
    %5656 = vmatmul.bf16.gmra.mxu0 %v5601
    %v5657 = vpop.f32.mrf.mxu0
    %v5658 = vadd.f32 0.0, %v5657
    %v5659 = vpop.f32.mrf.mxu0
    %v5660 = vadd.f32 0.0, %v5659
    %5661 = vmatmul.bf16.gmra.mxu0 %v5604
    %v5662 = vpop.f32.mrf.mxu0
    %v5663 = vpop.f32.mrf.mxu0
    %v5664 = vadd.f32 0.0, %v5663
    %5665 = vmatmul.bf16.gmra.mxu0 %v5607
    %v5666 = vpop.f32.mrf.mxu0
    %v5667 = vadd.f32 0.0, %v5666
    %v5668 = vpop.f32.mrf.mxu0
    %v5669 = vadd.f32 0.0, %v5668
    %5670 = vmatmul.bf16.gmra.mxu0 %v5610
    %v5671 = vpop.f32.mrf.mxu0
    %v5672 = vadd.f32 0.0, %v5671
    %v5673 = vpop.f32.mrf.mxu0
    %v5674 = vadd.f32 0.0, %v5673
    %5675 = vmatmul.bf16.gmra.mxu0 %v5613
    %v5676 = vpop.f32.mrf.mxu0
    %v5677 = vadd.f32 0.0, %v5676
    %v5678 = vpop.f32.mrf.mxu0
    %v5679 = vadd.f32 0.0, %v5678
    %5680 = vmatmul.bf16.gmra.mxu0 %v5616
    %v5681 = vpop.f32.mrf.mxu0
    %v5682 = vadd.f32 0.0, %v5681
    %v5683 = vpop.f32.mrf.mxu0
    %v5684 = vadd.f32 0.0, %v5683
    %5685 = vmatmul.bf16.gmra.mxu0 %v5619
    %v5686 = vpop.f32.mrf.mxu0
    %v5687 = vadd.f32 0.0, %v5686
    %v5688 = vpop.f32.mrf.mxu0
    %v5689 = vadd.f32 0.0, %v5688
    %5690 = vmatmul.bf16.gmra.mxu0 %v5622
    %v5691 = vpop.f32.mrf.mxu0
    %v5692 = vpop.f32.mrf.mxu0
    %5693 = vdwg.mxu0
    %v5694 = vadd.f32 %v5492, %v5635
    %v5695 = vadd.f32 %v5493, %v5638
    %v5696 = vadd.f32 %v5494, %v5640
    %v5697 = vadd.f32 %v5495, %v5643
    %v5698 = vadd.f32 %v5496, %v5645
    %v5699 = vadd.f32 %v5497, %v5648
    %v5700 = vadd.f32 %v5498, %v5650
    %v5701 = vadd.f32 %v5499, %v5653
    %v5702 = vadd.f32 %v5500, %v5655
    %v5703 = vadd.f32 %v5501, %v5658
    %v5704 = vadd.f32 %v5502, %v5660
    %v5705 = vadd.f32 %v5503, %v5664
    %v5706 = vadd.f32 %v5504, %v5667
    %v5707 = vadd.f32 %v5505, %v5669
    %v5708 = vadd.f32 %v5506, %v5672
    %v5709 = vadd.f32 %v5507, %v5674
    %v5710 = vadd.f32 %v5508, %v5677
    %v5711 = vadd.f32 %v5509, %v5679
    %v5712 = vadd.f32 %v5510, %v5682
    %v5713 = vadd.f32 %v5511, %v5684
    %v5714 = vadd.f32 %v5512, %v5687
    %v5715 = vadd.f32 %v5513, %v5689
    %v5716 = vld [vmem:[#allocation4 + $0x15] sm:$0xff]
    %v5717 = vld [vmem:[#allocation4 + $0x1d] sm:$0xff]
    %v5718 = vld [vmem:[#allocation4 + $0x25] sm:$0xff]
    %v5719 = vld [vmem:[#allocation4 + $0x2d] sm:$0xff]
    %v5720 = vld [vmem:[#allocation4 + $0x35] sm:$0xff]
    %v5721 = vld [vmem:[#allocation4 + $0x3d] sm:$0xff]
    %v5722 = vld [vmem:[#allocation4 + $0x45] sm:$0xff]
    %v5723 = vld [vmem:[#allocation4 + $0x4d] sm:$0xff]
    %v5724 = vld [vmem:[#allocation4 + $0x55] sm:$0xff]
    %v5725 = vld [vmem:[#allocation4 + $0x5d] sm:$0xff]
    %v5726 = vld [vmem:[#allocation4 + $0x65] sm:$0xff]
    %v5727 = vld [vmem:[#allocation4 + $0x6d] sm:$0xff]
    %v5728 = vld [vmem:[#allocation4 + $0x75] sm:$0xff]
    %v5729 = vld [vmem:[#allocation4 + $0x7d] sm:$0xff]
    %v5730 = vld [vmem:[#allocation4 + $0x85] sm:$0xff]
    %v5731 = vld [vmem:[#allocation4 + $0x8d] sm:$0xff]
    %v5732 = vld [vmem:[#allocation4 + $0x95] sm:$0xff]
    %v5733 = vld [vmem:[#allocation4 + $0x9d] sm:$0xff]
    %v5734 = vld [vmem:[#allocation4 + $0xa5] sm:$0xff]
    %v5735 = vld [vmem:[#allocation4 + $0xad] sm:$0xff]
    %v5736 = vld [vmem:[#allocation4 + $0xb5] sm:$0xff]
    %v5737 = vld [vmem:[#allocation4 + $0xbd] sm:$0xff]
    %v5738 = vld [vmem:[#allocation4 + $0xc5] sm:$0xff]
    %v5739 = vld [vmem:[#allocation4 + $0xcd] sm:$0xff]
    %v5740 = vld [vmem:[#allocation4 + $0xd5] sm:$0xff]
    %v5741 = vpack.c.bf16 %v5717, %v5716
    %v5742 = vpack.c.bf16 %v5719, %v5718
    %v5743 = vpack.c.bf16 %v5721, %v5720
    %v5744 = vpack.c.bf16 %v5723, %v5722
    %v5745 = vpack.c.bf16 %v5725, %v5724
    %v5746 = vpack.c.bf16 %v5727, %v5726
    %v5747 = vpack.c.bf16 %v5729, %v5728
    %v5748 = vpack.c.bf16 %v5731, %v5730
    %v5749 = vpack.c.bf16 %v5733, %v5732
    %v5750 = vpack.c.bf16 %v5735, %v5734
    %v5751 = vpack.c.bf16 %v5737, %v5736
    %v5752 = vpack.c.bf16 %v5739, %v5738
    %v5753 = vpack.c.bf16 %v5740, %v5740
    %s5754 = scalar_lea.vmem %s14, 224
    %v5755 = vld [vmem:[%s5754] sm:$0xf]
    %v5756 = vld [vmem:[%s5754 + $0x4] sm:$0xf]
    %v5757 = vld [vmem:[%s5754 + $0x8] sm:$0xf]
    %v5758 = vld [vmem:[%s5754 + $0xc] sm:$0xf]
    %v5759 = vld [vmem:[%s5754 + $0x10] sm:$0xf]
    %v5760 = vld [vmem:[%s5754 + $0x14] sm:$0xf]
    %v5761 = vld [vmem:[%s5754 + $0x18] sm:$0xf]
    %v5762 = vld [vmem:[%s5754 + $0x1c] sm:$0xf]
    %v5771 = vunpack.c.l.b16 %v5755
    %v5772 = vunpack.c.l.b16 %v5756
    %v5773 = vunpack.c.l.b16 %v5757
    %v5774 = vunpack.c.l.b16 %v5758
    %v5775 = vunpack.c.l.b16 %v5759
    %v5776 = vunpack.c.l.b16 %v5760
    %v5777 = vunpack.c.l.b16 %v5761
    %v5778 = vunpack.c.l.b16 %v5762
    %v5779 = vpack.c.b16 %v5772, %v5771
    %v5780 = vpack.c.b16 %v5774, %v5773
    %v5781 = vpack.c.b16 %v5776, %v5775
    %v5782 = vpack.c.b16 %v5778, %v5777
    %v5788 = vsel %vm3904, %v5741, 0
    %v5791 = vsel %vm3904, %v5742, 0
    %v5794 = vsel %vm3904, %v5743, 0
    %v5797 = vsel %vm3904, %v5744, 0
    %v5800 = vsel %vm3904, %v5745, 0
    %v5803 = vsel %vm3904, %v5746, 0
    %v5806 = vsel %vm3904, %v5747, 0
    %v5809 = vsel %vm3904, %v5748, 0
    %v5812 = vsel %vm3904, %v5749, 0
    %v5815 = vsel %vm3904, %v5750, 0
    %v5818 = vsel %vm3904, %v5751, 0
    %v5821 = vsel %vm3904, %v5752, 0
    %v5824 = vsel %vm3904, %v5753, 0
    %5826 = vmatpush.bf16.msra.mxu0 0
    %5827 = vmatpush.bf16.msra.mxu0 0
    %5828 = vmatpush.bf16.msra.mxu0 0
    %5829 = vmatpush.bf16.msra.mxu0 0
    %5830 = vmatpush.bf16.msra.mxu0 %v5782
    %5831 = vmatpush.bf16.msra.mxu0 %v5781
    %5832 = vmatpush.bf16.msra.mxu0 %v5780
    %5833 = vmatpush.bf16.msra.mxu0 %v5779
    %5834 = vmatmul.bf16.gmra.mxu0 %v5788
    %v5835 = vpop.f32.mrf.mxu0
    %v5836 = vpop.f32.mrf.mxu0
    %v5837 = vadd.f32 0.0, %v5836
    %5838 = vmatmul.bf16.gmra.mxu0 %v5791
    %v5839 = vpop.f32.mrf.mxu0
    %v5840 = vadd.f32 0.0, %v5839
    %v5841 = vpop.f32.mrf.mxu0
    %v5842 = vadd.f32 0.0, %v5841
    %5843 = vmatmul.bf16.gmra.mxu0 %v5794
    %v5844 = vpop.f32.mrf.mxu0
    %v5845 = vadd.f32 0.0, %v5844
    %v5846 = vpop.f32.mrf.mxu0
    %v5847 = vadd.f32 0.0, %v5846
    %5848 = vmatmul.bf16.gmra.mxu0 %v5797
    %v5849 = vpop.f32.mrf.mxu0
    %v5850 = vadd.f32 0.0, %v5849
    %v5851 = vpop.f32.mrf.mxu0
    %v5852 = vadd.f32 0.0, %v5851
    %5853 = vmatmul.bf16.gmra.mxu0 %v5800
    %v5854 = vpop.f32.mrf.mxu0
    %v5855 = vadd.f32 0.0, %v5854
    %v5856 = vpop.f32.mrf.mxu0
    %v5857 = vadd.f32 0.0, %v5856
    %5858 = vmatmul.bf16.gmra.mxu0 %v5803
    %v5859 = vpop.f32.mrf.mxu0
    %v5860 = vadd.f32 0.0, %v5859
    %v5861 = vpop.f32.mrf.mxu0
    %v5862 = vadd.f32 0.0, %v5861
    %5863 = vmatmul.bf16.gmra.mxu0 %v5806
    %v5864 = vpop.f32.mrf.mxu0
    %v5865 = vpop.f32.mrf.mxu0
    %v5866 = vadd.f32 0.0, %v5865
    %5867 = vmatmul.bf16.gmra.mxu0 %v5809
    %v5868 = vpop.f32.mrf.mxu0
    %v5869 = vadd.f32 0.0, %v5868
    %v5870 = vpop.f32.mrf.mxu0
    %v5871 = vadd.f32 0.0, %v5870
    %5872 = vmatmul.bf16.gmra.mxu0 %v5812
    %v5873 = vpop.f32.mrf.mxu0
    %v5874 = vadd.f32 0.0, %v5873
    %v5875 = vpop.f32.mrf.mxu0
    %v5876 = vadd.f32 0.0, %v5875
    %5877 = vmatmul.bf16.gmra.mxu0 %v5815
    %v5878 = vpop.f32.mrf.mxu0
    %v5879 = vadd.f32 0.0, %v5878
    %v5880 = vpop.f32.mrf.mxu0
    %v5881 = vadd.f32 0.0, %v5880
    %5882 = vmatmul.bf16.gmra.mxu0 %v5818
    %v5883 = vpop.f32.mrf.mxu0
    %v5884 = vadd.f32 0.0, %v5883
    %v5885 = vpop.f32.mrf.mxu0
    %v5886 = vadd.f32 0.0, %v5885
    %5887 = vmatmul.bf16.gmra.mxu0 %v5821
    %v5888 = vpop.f32.mrf.mxu0
    %v5889 = vadd.f32 0.0, %v5888
    %v5890 = vpop.f32.mrf.mxu0
    %v5891 = vadd.f32 0.0, %v5890
    %5892 = vmatmul.bf16.gmra.mxu0 %v5824
    %v5893 = vpop.f32.mrf.mxu0
    %v5894 = vpop.f32.mrf.mxu0
    %5895 = vdwg.mxu0
    %v5896 = vadd.f32 %v5694, %v5837
    %v5897 = vadd.f32 %v5695, %v5840
    %v5898 = vadd.f32 %v5696, %v5842
    %v5899 = vadd.f32 %v5697, %v5845
    %v5900 = vadd.f32 %v5698, %v5847
    %v5901 = vadd.f32 %v5699, %v5850
    %v5902 = vadd.f32 %v5700, %v5852
    %v5903 = vadd.f32 %v5701, %v5855
    %v5904 = vadd.f32 %v5702, %v5857
    %v5905 = vadd.f32 %v5703, %v5860
    %v5906 = vadd.f32 %v5704, %v5862
    %v5907 = vadd.f32 %v5705, %v5866
    %v5908 = vadd.f32 %v5706, %v5869
    %v5909 = vadd.f32 %v5707, %v5871
    %v5910 = vadd.f32 %v5708, %v5874
    %v5911 = vadd.f32 %v5709, %v5876
    %v5912 = vadd.f32 %v5710, %v5879
    %v5913 = vadd.f32 %v5711, %v5881
    %v5914 = vadd.f32 %v5712, %v5884
    %v5915 = vadd.f32 %v5713, %v5886
    %v5916 = vadd.f32 %v5714, %v5889
    %v5917 = vadd.f32 %v5715, %v5891
    %v5918 = vld [vmem:[#allocation4 + $0x16] sm:$0xff]
    %v5919 = vld [vmem:[#allocation4 + $0x1e] sm:$0xff]
    %v5920 = vld [vmem:[#allocation4 + $0x26] sm:$0xff]
    %v5921 = vld [vmem:[#allocation4 + $0x2e] sm:$0xff]
    %v5922 = vld [vmem:[#allocation4 + $0x36] sm:$0xff]
    %v5923 = vld [vmem:[#allocation4 + $0x3e] sm:$0xff]
    %v5924 = vld [vmem:[#allocation4 + $0x46] sm:$0xff]
    %v5925 = vld [vmem:[#allocation4 + $0x4e] sm:$0xff]
    %v5926 = vld [vmem:[#allocation4 + $0x56] sm:$0xff]
    %v5927 = vld [vmem:[#allocation4 + $0x5e] sm:$0xff]
    %v5928 = vld [vmem:[#allocation4 + $0x66] sm:$0xff]
    %v5929 = vld [vmem:[#allocation4 + $0x6e] sm:$0xff]
    %v5930 = vld [vmem:[#allocation4 + $0x76] sm:$0xff]
    %v5931 = vld [vmem:[#allocation4 + $0x7e] sm:$0xff]
    %v5932 = vld [vmem:[#allocation4 + $0x86] sm:$0xff]
    %v5933 = vld [vmem:[#allocation4 + $0x8e] sm:$0xff]
    %v5934 = vld [vmem:[#allocation4 + $0x96] sm:$0xff]
    %v5935 = vld [vmem:[#allocation4 + $0x9e] sm:$0xff]
    %v5936 = vld [vmem:[#allocation4 + $0xa6] sm:$0xff]
    %v5937 = vld [vmem:[#allocation4 + $0xae] sm:$0xff]
    %v5938 = vld [vmem:[#allocation4 + $0xb6] sm:$0xff]
    %v5939 = vld [vmem:[#allocation4 + $0xbe] sm:$0xff]
    %v5940 = vld [vmem:[#allocation4 + $0xc6] sm:$0xff]
    %v5941 = vld [vmem:[#allocation4 + $0xce] sm:$0xff]
    %v5942 = vld [vmem:[#allocation4 + $0xd6] sm:$0xff]
    %v5943 = vpack.c.bf16 %v5919, %v5918
    %v5944 = vpack.c.bf16 %v5921, %v5920
    %v5945 = vpack.c.bf16 %v5923, %v5922
    %v5946 = vpack.c.bf16 %v5925, %v5924
    %v5947 = vpack.c.bf16 %v5927, %v5926
    %v5948 = vpack.c.bf16 %v5929, %v5928
    %v5949 = vpack.c.bf16 %v5931, %v5930
    %v5950 = vpack.c.bf16 %v5933, %v5932
    %v5951 = vpack.c.bf16 %v5935, %v5934
    %v5952 = vpack.c.bf16 %v5937, %v5936
    %v5953 = vpack.c.bf16 %v5939, %v5938
    %v5954 = vpack.c.bf16 %v5941, %v5940
    %v5955 = vpack.c.bf16 %v5942, %v5942
    %s5956 = scalar_lea.vmem %s14, 256
    %v5957 = vld [vmem:[%s5956] sm:$0xf]
    %v5958 = vld [vmem:[%s5956 + $0x4] sm:$0xf]
    %v5959 = vld [vmem:[%s5956 + $0x8] sm:$0xf]
    %v5960 = vld [vmem:[%s5956 + $0xc] sm:$0xf]
    %v5961 = vld [vmem:[%s5956 + $0x10] sm:$0xf]
    %v5962 = vld [vmem:[%s5956 + $0x14] sm:$0xf]
    %v5963 = vld [vmem:[%s5956 + $0x18] sm:$0xf]
    %v5964 = vld [vmem:[%s5956 + $0x1c] sm:$0xf]
    %v5973 = vunpack.c.l.b16 %v5957
    %v5974 = vunpack.c.l.b16 %v5958
    %v5975 = vunpack.c.l.b16 %v5959
    %v5976 = vunpack.c.l.b16 %v5960
    %v5977 = vunpack.c.l.b16 %v5961
    %v5978 = vunpack.c.l.b16 %v5962
    %v5979 = vunpack.c.l.b16 %v5963
    %v5980 = vunpack.c.l.b16 %v5964
    %v5981 = vpack.c.b16 %v5974, %v5973
    %v5982 = vpack.c.b16 %v5976, %v5975
    %v5983 = vpack.c.b16 %v5978, %v5977
    %v5984 = vpack.c.b16 %v5980, %v5979
    %v5990 = vsel %vm3904, %v5943, 0
    %v5993 = vsel %vm3904, %v5944, 0
    %v5996 = vsel %vm3904, %v5945, 0
    %v5999 = vsel %vm3904, %v5946, 0
    %v6002 = vsel %vm3904, %v5947, 0
    %v6005 = vsel %vm3904, %v5948, 0
    %v6008 = vsel %vm3904, %v5949, 0
    %v6011 = vsel %vm3904, %v5950, 0
    %v6014 = vsel %vm3904, %v5951, 0
    %v6017 = vsel %vm3904, %v5952, 0
    %v6020 = vsel %vm3904, %v5953, 0
    %v6023 = vsel %vm3904, %v5954, 0
    %v6026 = vsel %vm3904, %v5955, 0
    %6028 = vmatpush.bf16.msra.mxu0 0
    %6029 = vmatpush.bf16.msra.mxu0 0
    %6030 = vmatpush.bf16.msra.mxu0 0
    %6031 = vmatpush.bf16.msra.mxu0 0
    %6032 = vmatpush.bf16.msra.mxu0 %v5984
    %6033 = vmatpush.bf16.msra.mxu0 %v5983
    %6034 = vmatpush.bf16.msra.mxu0 %v5982
    %6035 = vmatpush.bf16.msra.mxu0 %v5981
    %6036 = vmatmul.bf16.gmra.mxu0 %v5990
    %v6037 = vpop.f32.mrf.mxu0
    %v6038 = vpop.f32.mrf.mxu0
    %v6039 = vadd.f32 0.0, %v6038
    %6040 = vmatmul.bf16.gmra.mxu0 %v5993
    %v6041 = vpop.f32.mrf.mxu0
    %v6042 = vadd.f32 0.0, %v6041
    %v6043 = vpop.f32.mrf.mxu0
    %v6044 = vadd.f32 0.0, %v6043
    %6045 = vmatmul.bf16.gmra.mxu0 %v5996
    %v6046 = vpop.f32.mrf.mxu0
    %v6047 = vadd.f32 0.0, %v6046
    %v6048 = vpop.f32.mrf.mxu0
    %v6049 = vadd.f32 0.0, %v6048
    %6050 = vmatmul.bf16.gmra.mxu0 %v5999
    %v6051 = vpop.f32.mrf.mxu0
    %v6052 = vadd.f32 0.0, %v6051
    %v6053 = vpop.f32.mrf.mxu0
    %v6054 = vadd.f32 0.0, %v6053
    %6055 = vmatmul.bf16.gmra.mxu0 %v6002
    %v6056 = vpop.f32.mrf.mxu0
    %v6057 = vadd.f32 0.0, %v6056
    %v6058 = vpop.f32.mrf.mxu0
    %v6059 = vadd.f32 0.0, %v6058
    %6060 = vmatmul.bf16.gmra.mxu0 %v6005
    %v6061 = vpop.f32.mrf.mxu0
    %v6062 = vadd.f32 0.0, %v6061
    %v6063 = vpop.f32.mrf.mxu0
    %v6064 = vadd.f32 0.0, %v6063
    %6065 = vmatmul.bf16.gmra.mxu0 %v6008
    %v6066 = vpop.f32.mrf.mxu0
    %v6067 = vpop.f32.mrf.mxu0
    %v6068 = vadd.f32 0.0, %v6067
    %6069 = vmatmul.bf16.gmra.mxu0 %v6011
    %v6070 = vpop.f32.mrf.mxu0
    %v6071 = vadd.f32 0.0, %v6070
    %v6072 = vpop.f32.mrf.mxu0
    %v6073 = vadd.f32 0.0, %v6072
    %6074 = vmatmul.bf16.gmra.mxu0 %v6014
    %v6075 = vpop.f32.mrf.mxu0
    %v6076 = vadd.f32 0.0, %v6075
    %v6077 = vpop.f32.mrf.mxu0
    %v6078 = vadd.f32 0.0, %v6077
    %6079 = vmatmul.bf16.gmra.mxu0 %v6017
    %v6080 = vpop.f32.mrf.mxu0
    %v6081 = vadd.f32 0.0, %v6080
    %v6082 = vpop.f32.mrf.mxu0
    %v6083 = vadd.f32 0.0, %v6082
    %6084 = vmatmul.bf16.gmra.mxu0 %v6020
    %v6085 = vpop.f32.mrf.mxu0
    %v6086 = vadd.f32 0.0, %v6085
    %v6087 = vpop.f32.mrf.mxu0
    %v6088 = vadd.f32 0.0, %v6087
    %6089 = vmatmul.bf16.gmra.mxu0 %v6023
    %v6090 = vpop.f32.mrf.mxu0
    %v6091 = vadd.f32 0.0, %v6090
    %v6092 = vpop.f32.mrf.mxu0
    %v6093 = vadd.f32 0.0, %v6092
    %6094 = vmatmul.bf16.gmra.mxu0 %v6026
    %v6095 = vpop.f32.mrf.mxu0
    %v6096 = vpop.f32.mrf.mxu0
    %6097 = vdwg.mxu0
    %v6098 = vadd.f32 %v5896, %v6039
    %v6099 = vadd.f32 %v5897, %v6042
    %v6100 = vadd.f32 %v5898, %v6044
    %v6101 = vadd.f32 %v5899, %v6047
    %v6102 = vadd.f32 %v5900, %v6049
    %v6103 = vadd.f32 %v5901, %v6052
    %v6104 = vadd.f32 %v5902, %v6054
    %v6105 = vadd.f32 %v5903, %v6057
    %v6106 = vadd.f32 %v5904, %v6059
    %v6107 = vadd.f32 %v5905, %v6062
    %v6108 = vadd.f32 %v5906, %v6064
    %v6109 = vadd.f32 %v5907, %v6068
    %v6110 = vadd.f32 %v5908, %v6071
    %v6111 = vadd.f32 %v5909, %v6073
    %v6112 = vadd.f32 %v5910, %v6076
    %v6113 = vadd.f32 %v5911, %v6078
    %v6114 = vadd.f32 %v5912, %v6081
    %v6115 = vadd.f32 %v5913, %v6083
    %v6116 = vadd.f32 %v5914, %v6086
    %v6117 = vadd.f32 %v5915, %v6088
    %v6118 = vadd.f32 %v5916, %v6091
    %v6119 = vadd.f32 %v5917, %v6093
    %v6120 = vld [vmem:[#allocation21] sm:$0x1]
    %v6122 = vperm.slane %v6120, 0
    %v6124 = vadd.f32 %v6098, %v6122
    %v6125 = vadd.f32 %v6099, %v6122
    %v6126 = vadd.f32 %v6100, %v6122
    %v6127 = vadd.f32 %v6101, %v6122
    %v6128 = vadd.f32 %v6102, %v6122
    %v6129 = vadd.f32 %v6103, %v6122
    %v6130 = vadd.f32 %v6104, %v6122
    %v6131 = vadd.f32 %v6105, %v6122
    %v6132 = vadd.f32 %v6106, %v6122
    %v6133 = vadd.f32 %v6107, %v6122
    %v6134 = vadd.f32 %v6108, %v6122
    %v6135 = vadd.f32 %v6109, %v6122
    %v6136 = vadd.f32 %v6110, %v6122
    %v6137 = vadd.f32 %v6111, %v6122
    %v6138 = vadd.f32 %v6112, %v6122
    %v6139 = vadd.f32 %v6113, %v6122
    %v6140 = vadd.f32 %v6114, %v6122
    %v6141 = vadd.f32 %v6115, %v6122
    %v6142 = vadd.f32 %v6116, %v6122
    %v6143 = vadd.f32 %v6117, %v6122
    %v6144 = vadd.f32 %v6118, %v6122
    %v6145 = vadd.f32 %v6119, %v6122
    %vm6146 = vcmask 31747
    %6147 = vst.msk [vmem:[%s18 - $0x3] sm:$0xf8] %vm6146, %v6124
    %vm6148 = vcmask 26624
    %6149 = vst.msk [vmem:[%s18 + $0x5] sm:$0x7] %vm6148, %v6125
    %vm6150 = vcmask 31749
    %6151 = vst.msk [vmem:[%s18 + $0x3] sm:$0xe0] %vm6150, %v6125
    %vm6152 = vcmask 28672
    %6153 = vst.msk [vmem:[%s18 + $0xb] sm:$0x1f] %vm6152, %v6126
    %vm6154 = vcmask 31751
    %6155 = vst.msk [vmem:[%s18 + $0x9] sm:$0x80] %vm6154, %v6126
    %vm6156 = vcmask 30720
    %6157 = vst.msk [vmem:[%s18 + $0x11] sm:$0x7f] %vm6156, %v6127
    %vm6158 = vcmask 31745
    %6159 = vst.msk [vmem:[%s18 + $0x17] sm:$0xfe] %vm6158, %v6128
    %vm6160 = vcmask 24576
    %6161 = vst.msk [vmem:[%s18 + $0x1f] sm:$0x1] %vm6160, %v6129
    %6162 = vst.msk [vmem:[%s18 + $0x1d] sm:$0xf8] %vm6146, %v6129
    %6163 = vst.msk [vmem:[%s18 + $0x25] sm:$0x7] %vm6148, %v6130
    %6164 = vst.msk [vmem:[%s18 + $0x23] sm:$0xe0] %vm6150, %v6130
    %6165 = vst.msk [vmem:[%s18 + $0x2b] sm:$0x1f] %vm6152, %v6131
    %6166 = vst.msk [vmem:[%s18 + $0x29] sm:$0x80] %vm6154, %v6131
    %6167 = vst.msk [vmem:[%s18 + $0x31] sm:$0x7f] %vm6156, %v6132
    %6168 = vst.msk [vmem:[%s18 + $0x37] sm:$0xfe] %vm6158, %v6133
    %6169 = vst.msk [vmem:[%s18 + $0x3f] sm:$0x1] %vm6160, %v6134
    %6170 = vst.msk [vmem:[%s18 + $0x39] sm:$0x80] %vm6154, %v6135
    %6171 = vst.msk [vmem:[%s18 + $0x41] sm:$0x7f] %vm6156, %v6136
    %6172 = vst.msk [vmem:[%s18 + $0x47] sm:$0xfe] %vm6158, %v6137
    %6173 = vst.msk [vmem:[%s18 + $0x4f] sm:$0x1] %vm6160, %v6138
    %6174 = vst.msk [vmem:[%s18 + $0x4d] sm:$0xf8] %vm6146, %v6138
    %6175 = vst.msk [vmem:[%s18 + $0x55] sm:$0x7] %vm6148, %v6139
    %6176 = vst.msk [vmem:[%s18 + $0x53] sm:$0xe0] %vm6150, %v6139
    %6177 = vst.msk [vmem:[%s18 + $0x5b] sm:$0x1f] %vm6152, %v6140
    %6178 = vst.msk [vmem:[%s18 + $0x59] sm:$0x80] %vm6154, %v6140
    %6179 = vst.msk [vmem:[%s18 + $0x61] sm:$0x7f] %vm6156, %v6141
    %6180 = vst.msk [vmem:[%s18 + $0x67] sm:$0xfe] %vm6158, %v6142
    %6181 = vst.msk [vmem:[%s18 + $0x6f] sm:$0x1] %vm6160, %v6143
    %6182 = vst.msk [vmem:[%s18 + $0x6d] sm:$0xf8] %vm6146, %v6143
    %6183 = vst.msk [vmem:[%s18 + $0x75] sm:$0x7] %vm6148, %v6144
    %6184 = vst.msk [vmem:[%s18 + $0x73] sm:$0xe0] %vm6150, %v6144
    %6185 = vst.msk [vmem:[%s18 + $0x7b] sm:$0x1f] %vm6152, %v6145
    // Predicated region
    $region126: #{generator_forward.2} parent=1 // pred_check
      _
    $region127: #{generator_forward.2} parent=1 // pred_check_branch
      %6187 = sbr.rel (0) target = $region129
    $region128: #{generator_forward.2} parent=1 // pred_region
      _
    $region129: #{generator_forward.2} parent=1 // pred_fallthru
      _
    // Predicated region
    $region130: #{generator_forward.2} parent=1 // pred_check
      _
    $region131: #{generator_forward.2} parent=1 // pred_check_branch
      %6189 = sbr.rel (0) target = $region133
    $region132: #{generator_forward.2} parent=1 // pred_region
      _
    $region133: #{generator_forward.2} parent=1 // pred_fallthru
      _
    %6190 = vsyncpa [#allocation6], 1
    %6191 = vsyncpa [#allocation8], 1
    %6192 = vsyncpa [#allocation11], 1
    %6193 = vsyncpa [#allocation14], 1
    %6194 = vsyncpa [#allocation17], 1
    %6195 = vsyncpa [#allocation20], 1
    %6196 = vsyncpa [#allocation23], 1

</llo_original>
